<compile_context>
chip_gen: v7x
topology: tpu7x:2x2x1
jax: 0.10.0
libtpu: 0.0.40
codegen_flags: <defaults>
</compile_context>

<pallas_src>
import functools

import jax
import jax.numpy as jnp
from jax.experimental import pallas as pl
from jax.experimental.pallas import tpu as pltpu


# Static architecture config: (expand_ratio, in_ch, out_ch, stride).
_BLOCK_CFG = ((1, 8, 16, 1), (6, 16, 16, 2), (6, 16, 16, 1))


# ------------------------------ BlockSpec helpers ---------------------------

def _batched_spec(shape):
    """Per-image block: grid runs over batch; kernel sees (H, W, C)."""
    return pl.BlockSpec((None,) + tuple(shape), lambda b: (b, 0, 0, 0))


def _bcast_spec(shape):
    """Whole-array block broadcast to every grid step (weights / BN params)."""
    nd = len(shape)
    return pl.BlockSpec(tuple(shape), lambda b, _nd=nd: (0,) * _nd)


# ----------------------------- Pallas kernels ------------------------------

def _stem_kernel(x_ref, w_ref, s_ref, b_ref, o_ref, pad_ref):
    """3x3 conv, stride 2, pad 1 + BN + ReLU6, fully in VMEM.

    x_ref: (H, W, Cin) f32, w_ref: (9, Cin, Cout) bf16 (tap k = di*3+dj),
    s_ref/b_ref: (1, Cout) f32, o_ref: (H/2, W/2, Cout) f32,
    pad_ref: (H+2, W+2, Cin) f32 scratch.
    """
    h, w, cin = x_ref.shape
    ho, wo, cout = o_ref.shape

    pad_ref[...] = jnp.zeros(pad_ref.shape, pad_ref.dtype)
    pad_ref[1:h + 1, 1:w + 1, :] = x_ref[...]

    acc = jnp.zeros((ho * wo, cout), jnp.float32)
    for di in range(3):
        for dj in range(3):
            patch = pad_ref[pl.ds(di, ho, 2), pl.ds(dj, wo, 2), :]
            p2 = patch.reshape(ho * wo, cin).astype(jnp.bfloat16)
            acc = acc + jnp.dot(p2, w_ref[di * 3 + dj],
                                preferred_element_type=jnp.float32)

    y = jnp.clip(acc * s_ref[...] + b_ref[...], 0.0, 6.0)
    o_ref[...] = y.reshape(ho, wo, cout).astype(o_ref.dtype)


def _invres_kernel(*refs, stride, has_expand, use_res):
    """Fused inverted residual block (per image, everything VMEM-resident).

    expand 1x1 (bf16 MXU) -> depthwise 3x3 (f32 VPU, direct stride) ->
    project 1x1 (bf16 MXU) -> optional residual add, with folded-BN affine
    and ReLU6 where MobileNetV2 applies them.
    """
    if has_expand:
        (x_ref, exp_w, exp_s, exp_b,
         dw_w, dw_s, dw_b, pj_w, pj_s, pj_b, o_ref, pad_ref) = refs
    else:
        (x_ref, dw_w, dw_s, dw_b, pj_w, pj_s, pj_b, o_ref, pad_ref) = refs

    h, w, cin = x_ref.shape
    ho, wo, cout = o_ref.shape
    chid = dw_s.shape[-1]

    x2 = x_ref[...].reshape(h * w, cin)                       # (HW, Cin) f32

    # 1) 1x1 expand + BN + ReLU6 (skipped when expand ratio == 1).
    if has_expand:
        hid = jnp.dot(x2.astype(jnp.bfloat16), exp_w[...],
                      preferred_element_type=jnp.float32)
        hid = jnp.clip(hid * exp_s[...] + exp_b[...], 0.0, 6.0)
    else:
        hid = x2

    # 2) depthwise 3x3 (pad 1, stride `stride`) + BN + ReLU6.
    pad_ref[...] = jnp.zeros(pad_ref.shape, pad_ref.dtype)
    pad_ref[1:h + 1, 1:w + 1, :] = hid.reshape(h, w, chid)

    wdw = dw_w[...]                                           # (9, Chid) f32
    acc = jnp.zeros((ho * wo, chid), jnp.float32)
    for di in range(3):
        for dj in range(3):
            if stride == 1:
                patch = pad_ref[pl.ds(di, ho), pl.ds(dj, wo), :]
            else:  # stride-2 output computed directly via strided reads
                patch = pad_ref[pl.ds(di, ho, 2), pl.ds(dj, wo, 2), :]
            k = di * 3 + dj
            acc = acc + patch.reshape(ho * wo, chid) * wdw[k:k + 1, :]
    hdw = jnp.clip(acc * dw_s[...] + dw_b[...], 0.0, 6.0)

    # 3) 1x1 project + BN (linear) + optional residual.
    out = jnp.dot(hdw.astype(jnp.bfloat16), pj_w[...],
                  preferred_element_type=jnp.float32)
    out = out * pj_s[...] + pj_b[...]
    if use_res:
        out = out + x2
    o_ref[...] = out.reshape(ho, wo, cout).astype(o_ref.dtype)


def _head_kernel(x_ref, w_ref, s_ref, b_ref, o_ref):
    """Final 1x1 conv + BN + ReLU6."""
    h, w, cin = x_ref.shape
    ho, wo, cout = o_ref.shape
    x2 = x_ref[...].reshape(h * w, cin)
    y = jnp.dot(x2.astype(jnp.bfloat16), w_ref[...],
                preferred_element_type=jnp.float32)
    y = jnp.clip(y * s_ref[...] + b_ref[...], 0.0, 6.0)
    o_ref[...] = y.reshape(ho, wo, cout).astype(o_ref.dtype)


# --------------------------- pallas_call wrappers ---------------------------

def conv_stem(x, w, scale, bias):
    n, h, wd, cin = x.shape
    cout = w.shape[-1]
    ho, wo = h // 2, wd // 2
    return pl.pallas_call(
        _stem_kernel,
        out_shape=jax.ShapeDtypeStruct((n, ho, wo, cout), jnp.float32),
        grid=(n,),
        in_specs=[_batched_spec((h, wd, cin)),
                  _bcast_spec(w.shape),
                  _bcast_spec(scale.shape),
                  _bcast_spec(bias.shape)],
        out_specs=_batched_spec((ho, wo, cout)),
        scratch_shapes=[pltpu.VMEM((h + 2, wd + 2, cin), jnp.float32)],
        compiler_params=pltpu.CompilerParams(dimension_semantics=("parallel",)),
    )(x, w, scale, bias)


def inverted_residual(x, p, *, stride, expand):
    n, h, w, cin = x.shape
    chid = cin * expand
    cout = p["proj_w"].shape[1]
    ho, wo = h // stride, w // stride
    has_expand = expand != 1
    use_res = (stride == 1 and cin == cout)

    inputs = [x]
    in_specs = [_batched_spec((h, w, cin))]
    if has_expand:
        inputs += [p["exp_w"], p["exp_s"], p["exp_b"]]
        in_specs += [_bcast_spec(p["exp_w"].shape),
                     _bcast_spec(p["exp_s"].shape),
                     _bcast_spec(p["exp_b"].shape)]
    inputs += [p["dw_w"], p["dw_s"], p["dw_b"],
               p["proj_w"], p["proj_s"], p["proj_b"]]
    in_specs += [_bcast_spec(p["dw_w"].shape),
                 _bcast_spec(p["dw_s"].shape),
                 _bcast_spec(p["dw_b"].shape),
                 _bcast_spec(p["proj_w"].shape),
                 _bcast_spec(p["proj_s"].shape),
                 _bcast_spec(p["proj_b"].shape)]

    kern = functools.partial(_invres_kernel, stride=stride,
                             has_expand=has_expand, use_res=use_res)
    return pl.pallas_call(
        kern,
        out_shape=jax.ShapeDtypeStruct((n, ho, wo, cout), jnp.float32),
        grid=(n,),
        in_specs=in_specs,
        out_specs=_batched_spec((ho, wo, cout)),
        scratch_shapes=[pltpu.VMEM((h + 2, w + 2, chid), jnp.float32)],
        input_output_aliases={0: 0} if use_res else {},
        compiler_params=pltpu.CompilerParams(dimension_semantics=("parallel",)),
    )(*inputs)


def conv_head(x, w, scale, bias):
    n, h, wd, cin = x.shape
    cout = w.shape[-1]
    return pl.pallas_call(
        _head_kernel,
        out_shape=jax.ShapeDtypeStruct((n, h, wd, cout), jnp.float32),
        grid=(n,),
        in_specs=[_batched_spec((h, wd, cin)),
                  _bcast_spec(w.shape),
                  _bcast_spec(scale.shape),
                  _bcast_spec(bias.shape)],
        out_specs=_batched_spec((h, wd, cout)),
        compiler_params=pltpu.CompilerParams(dimension_semantics=("parallel",)),
    )(x, w, scale, bias)


# ------------------------------ model (features) ----------------------------

def mobilenet_backbone_forward(x_nchw, params):
    """Equivalent of MobileNetBackbone.forward: x -> mobilenet.features(x)."""
    x = jnp.transpose(x_nchw, (0, 2, 3, 1))        # NCHW -> NHWC (XLA glue)
    x = conv_stem(x, params["stem_w"], params["stem_s"], params["stem_b"])
    for (expand, _cin, _cout, stride), bp in zip(_BLOCK_CFG, params["blocks"]):
        x = inverted_residual(x, bp, stride=stride, expand=expand)
    x = conv_head(x, params["head_w"], params["head_s"], params["head_b"])
    return jnp.transpose(x, (0, 3, 1, 2))          # NHWC -> NCHW


# --------------------------- deterministic params ---------------------------

def _bn_fold(gamma, beta, mean, var, eps=1e-5):
    scale = gamma / jnp.sqrt(var + eps)
    bias = beta - mean * scale
    return scale, bias


def _conv_init(key, shape, std=0.2):
    return std * jax.random.normal(key, shape, jnp.float32)


def _bn_init(key, c):
    k1, k2, k3, k4 = jax.random.split(key, 4)
    gamma = 1.0 + 0.1 * jax.random.normal(k1, (c,), jnp.float32)
    beta = 0.1 * jax.random.normal(k2, (c,), jnp.float32)
    mean = 0.05 * jax.random.normal(k3, (c,), jnp.float32)
    var = jax.random.uniform(k4, (c,), jnp.float32, minval=0.5, maxval=1.5)
    s, b = _bn_fold(gamma, beta, mean, var)
    return s.reshape(1, c), b.reshape(1, c)


def init_params(key):
    """Synthetic MobileNetV2-style `features`, weights pre-laid-out for the
    kernels (1x1 weights as (Cin, Cout) bf16, 3x3 weights tap-major)."""
    keys = iter(jax.random.split(key, 64))
    params = {}

    # stem: torch (Cout=8, Cin=3, 3, 3) -> (9, Cin, Cout) bf16
    w = _conv_init(next(keys), (8, 3, 3, 3))
    params["stem_w"] = jnp.transpose(w, (2, 3, 1, 0)).reshape(9, 3, 8).astype(
        jnp.bfloat16)
    params["stem_s"], params["stem_b"] = _bn_init(next(keys), 8)

    blocks = []
    for expand, cin, cout, _stride in _BLOCK_CFG:
        chid = cin * expand
        p = {}
        if expand != 1:
            # torch (Chid, Cin, 1, 1) -> (Cin, Chid) bf16
            w = _conv_init(next(keys), (chid, cin, 1, 1))
            p["exp_w"] = w.reshape(chid, cin).T.astype(jnp.bfloat16)
            p["exp_s"], p["exp_b"] = _bn_init(next(keys), chid)
        # torch depthwise (Chid, 1, 3, 3) -> (9, Chid) f32, tap k = di*3+dj
        w = _conv_init(next(keys), (chid, 1, 3, 3))
        p["dw_w"] = jnp.transpose(w[:, 0], (1, 2, 0)).reshape(9, chid)
        p["dw_s"], p["dw_b"] = _bn_init(next(keys), chid)
        # torch (Cout, Chid, 1, 1) -> (Chid, Cout) bf16
        w = _conv_init(next(keys), (cout, chid, 1, 1))
        p["proj_w"] = w.reshape(cout, chid).T.astype(jnp.bfloat16)
        p["proj_s"], p["proj_b"] = _bn_init(next(keys), cout)
        blocks.append(p)
    params["blocks"] = blocks

    # head: torch (32, 16, 1, 1) -> (16, 32) bf16
    w = _conv_init(next(keys), (32, 16, 1, 1))
    params["head_w"] = w.reshape(32, 16).T.astype(jnp.bfloat16)
    params["head_s"], params["head_b"] = _bn_init(next(keys), 32)
    return params


# ----------------------------------- main -----------------------------------

if __name__ == "__main__":
    key = jax.random.PRNGKey(0)
    pkey, xkey = jax.random.split(key)
    params = init_params(pkey)

    # NCHW input, just like the PyTorch module.
    x = jax.random.normal(xkey, (2, 3, 32, 32), jnp.float32)

    fwd = jax.jit(mobilenet_backbone_forward)
    y = fwd(x, params)
    jax.block_until_ready(y)

    assert y.shape == (2, 32, 8, 8), y.shape
    assert y.dtype == jnp.float32
    assert bool(jnp.all(jnp.isfinite(y)))
    print("KERNEL_OK")
</pallas_src>

<mosaic_0001>
module attributes {stable_mosaic.version = 11 : i64} {
  func.func @_stem_kernel(%arg0: i32, %arg1: memref<1x32x32x3xf32, #tpu.memory_space<vmem>>, %arg2: memref<9x3x8xbf16, #tpu.memory_space<vmem>>, %arg3: memref<1x8xf32, #tpu.memory_space<vmem>>, %arg4: memref<1x8xf32, #tpu.memory_space<vmem>>, %arg5: memref<1x16x16x8xf32, #tpu.memory_space<vmem>>, %arg6: memref<34x34x3xf32, #tpu.memory_space<vmem>>) attributes {dimension_semantics = [#tpu.dimension_semantics<parallel>], iteration_bounds = array<i64: 2>, scalar_prefetch = 0 : i64, scratch_operands = 1 : i64, tpu.core_type = #tpu.core_type<tc>, window_params = [{transform_indices = @transform_0, window_bounds = array<i64: 1, 32, 32, 3>}, {pipeline_mode = #tpu.pipeline_mode<synchronous>, transform_indices = @transform_1, window_bounds = array<i64: 9, 3, 8>}, {pipeline_mode = #tpu.pipeline_mode<synchronous>, transform_indices = @transform_2, window_bounds = array<i64: 1, 8>}, {pipeline_mode = #tpu.pipeline_mode<synchronous>, transform_indices = @transform_3, window_bounds = array<i64: 1, 8>}, {transform_indices = @transform_4, window_bounds = array<i64: 1, 16, 16, 8>}]} {
    %cst = arith.constant 0.000000e+00 : f32
    %0 = vector.broadcast %cst : f32 to vector<34x34x3xf32>
    %c0 = arith.constant 0 : index
    %c0_0 = arith.constant 0 : index
    %c0_1 = arith.constant 0 : index
    %1 = vector.load %arg6[%c0, %c0_0, %c0_1] : memref<34x34x3xf32, #tpu.memory_space<vmem>>, vector<34x34x3xf32>
    tpu.vector_store %arg6[%c0, %c0_0, %c0_1], %0 {strides = array<i32>} : memref<34x34x3xf32, #tpu.memory_space<vmem>>, vector<34x34x3xf32>,
    %c0_2 = arith.constant 0 : index
    %c0_3 = arith.constant 0 : index
    %c0_4 = arith.constant 0 : index
    %c0_5 = arith.constant 0 : index
    %2 = vector.load %arg1[%c0_2, %c0_3, %c0_4, %c0_5] : memref<1x32x32x3xf32, #tpu.memory_space<vmem>>, vector<1x32x32x3xf32>
    %3 = vector.shape_cast %2 : vector<1x32x32x3xf32> to vector<32x32x3xf32>
    %c1 = arith.constant 1 : index
    %c1_6 = arith.constant 1 : index
    %c0_7 = arith.constant 0 : index
    %4 = vector.load %arg6[%c1, %c1_6, %c0_7] : memref<34x34x3xf32, #tpu.memory_space<vmem>>, vector<32x32x3xf32>
    tpu.vector_store %arg6[%c1, %c1_6, %c0_7], %3 {strides = array<i32>} : memref<34x34x3xf32, #tpu.memory_space<vmem>>, vector<32x32x3xf32>,
    %cst_8 = arith.constant 0.000000e+00 : f32
    %5 = vector.broadcast %cst_8 : f32 to vector<256x8xf32>
    %c0_9 = arith.constant 0 : index
    %c0_10 = arith.constant 0 : index
    %c0_11 = arith.constant 0 : index
    %6 = tpu.strided_load %arg6[%c0_9, %c0_10, %c0_11] {strides = array<i32: 2, 2, 1>} : memref<34x34x3xf32, #tpu.memory_space<vmem>>, vector<16x16x3xf32>
    %7 = vector.shape_cast %6 : vector<16x16x3xf32> to vector<256x3xf32>
    %8 = arith.truncf %7 : vector<256x3xf32> to vector<256x3xbf16>
    %c0_12 = arith.constant 0 : index
    %c0_13 = arith.constant 0 : index
    %c0_14 = arith.constant 0 : index
    %9 = vector.load %arg2[%c0_12, %c0_13, %c0_14] : memref<9x3x8xbf16, #tpu.memory_space<vmem>>, vector<1x3x8xbf16>
    %10 = vector.shape_cast %9 : vector<1x3x8xbf16> to vector<3x8xbf16>
    %cst_15 = arith.constant dense<0.000000e+00> : vector<256x8xf32>
    %11 = tpu.matmul %8, %10, %cst_15 {dimension_numbers = #tpu.dot_dimension_numbers<[1], [0], [0], [1], [0, 0, 1, 1], [], []>} : vector<256x3xbf16>, vector<3x8xbf16>, vector<256x8xf32> -> vector<256x8xf32>
    %12 = arith.addf %5, %11 : vector<256x8xf32>
    %c0_16 = arith.constant 0 : index
    %c1_17 = arith.constant 1 : index
    %c0_18 = arith.constant 0 : index
    %13 = tpu.strided_load %arg6[%c0_16, %c1_17, %c0_18] {strides = array<i32: 2, 2, 1>} : memref<34x34x3xf32, #tpu.memory_space<vmem>>, vector<16x16x3xf32>
    %14 = vector.shape_cast %13 : vector<16x16x3xf32> to vector<256x3xf32>
    %15 = arith.truncf %14 : vector<256x3xf32> to vector<256x3xbf16>
    %c1_19 = arith.constant 1 : index
    %c0_20 = arith.constant 0 : index
    %c0_21 = arith.constant 0 : index
    %16 = vector.load %arg2[%c1_19, %c0_20, %c0_21] : memref<9x3x8xbf16, #tpu.memory_space<vmem>>, vector<1x3x8xbf16>
    %17 = vector.shape_cast %16 : vector<1x3x8xbf16> to vector<3x8xbf16>
    %cst_22 = arith.constant dense<0.000000e+00> : vector<256x8xf32>
    %18 = tpu.matmul %15, %17, %cst_22 {dimension_numbers = #tpu.dot_dimension_numbers<[1], [0], [0], [1], [0, 0, 1, 1], [], []>} : vector<256x3xbf16>, vector<3x8xbf16>, vector<256x8xf32> -> vector<256x8xf32>
    %19 = arith.addf %12, %18 : vector<256x8xf32>
    %c0_23 = arith.constant 0 : index
    %c2 = arith.constant 2 : index
    %c0_24 = arith.constant 0 : index
    %20 = tpu.strided_load %arg6[%c0_23, %c2, %c0_24] {strides = array<i32: 2, 2, 1>} : memref<34x34x3xf32, #tpu.memory_space<vmem>>, vector<16x16x3xf32>
    %21 = vector.shape_cast %20 : vector<16x16x3xf32> to vector<256x3xf32>
    %22 = arith.truncf %21 : vector<256x3xf32> to vector<256x3xbf16>
    %c2_25 = arith.constant 2 : index
    %c0_26 = arith.constant 0 : index
    %c0_27 = arith.constant 0 : index
    %23 = vector.load %arg2[%c2_25, %c0_26, %c0_27] : memref<9x3x8xbf16, #tpu.memory_space<vmem>>, vector<1x3x8xbf16>
    %24 = vector.shape_cast %23 : vector<1x3x8xbf16> to vector<3x8xbf16>
    %cst_28 = arith.constant dense<0.000000e+00> : vector<256x8xf32>
    %25 = tpu.matmul %22, %24, %cst_28 {dimension_numbers = #tpu.dot_dimension_numbers<[1], [0], [0], [1], [0, 0, 1, 1], [], []>} : vector<256x3xbf16>, vector<3x8xbf16>, vector<256x8xf32> -> vector<256x8xf32>
    %26 = arith.addf %19, %25 : vector<256x8xf32>
    %c1_29 = arith.constant 1 : index
    %c0_30 = arith.constant 0 : index
    %c0_31 = arith.constant 0 : index
    %27 = tpu.strided_load %arg6[%c1_29, %c0_30, %c0_31] {strides = array<i32: 2, 2, 1>} : memref<34x34x3xf32, #tpu.memory_space<vmem>>, vector<16x16x3xf32>
    %28 = vector.shape_cast %27 : vector<16x16x3xf32> to vector<256x3xf32>
    %29 = arith.truncf %28 : vector<256x3xf32> to vector<256x3xbf16>
    %c3 = arith.constant 3 : index
    %c0_32 = arith.constant 0 : index
    %c0_33 = arith.constant 0 : index
    %30 = vector.load %arg2[%c3, %c0_32, %c0_33] : memref<9x3x8xbf16, #tpu.memory_space<vmem>>, vector<1x3x8xbf16>
    %31 = vector.shape_cast %30 : vector<1x3x8xbf16> to vector<3x8xbf16>
    %cst_34 = arith.constant dense<0.000000e+00> : vector<256x8xf32>
    %32 = tpu.matmul %29, %31, %cst_34 {dimension_numbers = #tpu.dot_dimension_numbers<[1], [0], [0], [1], [0, 0, 1, 1], [], []>} : vector<256x3xbf16>, vector<3x8xbf16>, vector<256x8xf32> -> vector<256x8xf32>
    %33 = arith.addf %26, %32 : vector<256x8xf32>
    %c1_35 = arith.constant 1 : index
    %c1_36 = arith.constant 1 : index
    %c0_37 = arith.constant 0 : index
    %34 = tpu.strided_load %arg6[%c1_35, %c1_36, %c0_37] {strides = array<i32: 2, 2, 1>} : memref<34x34x3xf32, #tpu.memory_space<vmem>>, vector<16x16x3xf32>
    %35 = vector.shape_cast %34 : vector<16x16x3xf32> to vector<256x3xf32>
    %36 = arith.truncf %35 : vector<256x3xf32> to vector<256x3xbf16>
    %c4 = arith.constant 4 : index
    %c0_38 = arith.constant 0 : index
    %c0_39 = arith.constant 0 : index
    %37 = vector.load %arg2[%c4, %c0_38, %c0_39] : memref<9x3x8xbf16, #tpu.memory_space<vmem>>, vector<1x3x8xbf16>
    %38 = vector.shape_cast %37 : vector<1x3x8xbf16> to vector<3x8xbf16>
    %cst_40 = arith.constant dense<0.000000e+00> : vector<256x8xf32>
    %39 = tpu.matmul %36, %38, %cst_40 {dimension_numbers = #tpu.dot_dimension_numbers<[1], [0], [0], [1], [0, 0, 1, 1], [], []>} : vector<256x3xbf16>, vector<3x8xbf16>, vector<256x8xf32> -> vector<256x8xf32>
    %40 = arith.addf %33, %39 : vector<256x8xf32>
    %c1_41 = arith.constant 1 : index
    %c2_42 = arith.constant 2 : index
    %c0_43 = arith.constant 0 : index
    %41 = tpu.strided_load %arg6[%c1_41, %c2_42, %c0_43] {strides = array<i32: 2, 2, 1>} : memref<34x34x3xf32, #tpu.memory_space<vmem>>, vector<16x16x3xf32>
    %42 = vector.shape_cast %41 : vector<16x16x3xf32> to vector<256x3xf32>
    %43 = arith.truncf %42 : vector<256x3xf32> to vector<256x3xbf16>
    %c5 = arith.constant 5 : index
    %c0_44 = arith.constant 0 : index
    %c0_45 = arith.constant 0 : index
    %44 = vector.load %arg2[%c5, %c0_44, %c0_45] : memref<9x3x8xbf16, #tpu.memory_space<vmem>>, vector<1x3x8xbf16>
    %45 = vector.shape_cast %44 : vector<1x3x8xbf16> to vector<3x8xbf16>
    %cst_46 = arith.constant dense<0.000000e+00> : vector<256x8xf32>
    %46 = tpu.matmul %43, %45, %cst_46 {dimension_numbers = #tpu.dot_dimension_numbers<[1], [0], [0], [1], [0, 0, 1, 1], [], []>} : vector<256x3xbf16>, vector<3x8xbf16>, vector<256x8xf32> -> vector<256x8xf32>
    %47 = arith.addf %40, %46 : vector<256x8xf32>
    %c2_47 = arith.constant 2 : index
    %c0_48 = arith.constant 0 : index
    %c0_49 = arith.constant 0 : index
    %48 = tpu.strided_load %arg6[%c2_47, %c0_48, %c0_49] {strides = array<i32: 2, 2, 1>} : memref<34x34x3xf32, #tpu.memory_space<vmem>>, vector<16x16x3xf32>
    %49 = vector.shape_cast %48 : vector<16x16x3xf32> to vector<256x3xf32>
    %50 = arith.truncf %49 : vector<256x3xf32> to vector<256x3xbf16>
    %c6 = arith.constant 6 : index
    %c0_50 = arith.constant 0 : index
    %c0_51 = arith.constant 0 : index
    %51 = vector.load %arg2[%c6, %c0_50, %c0_51] : memref<9x3x8xbf16, #tpu.memory_space<vmem>>, vector<1x3x8xbf16>
    %52 = vector.shape_cast %51 : vector<1x3x8xbf16> to vector<3x8xbf16>
    %cst_52 = arith.constant dense<0.000000e+00> : vector<256x8xf32>
    %53 = tpu.matmul %50, %52, %cst_52 {dimension_numbers = #tpu.dot_dimension_numbers<[1], [0], [0], [1], [0, 0, 1, 1], [], []>} : vector<256x3xbf16>, vector<3x8xbf16>, vector<256x8xf32> -> vector<256x8xf32>
    %54 = arith.addf %47, %53 : vector<256x8xf32>
    %c2_53 = arith.constant 2 : index
    %c1_54 = arith.constant 1 : index
    %c0_55 = arith.constant 0 : index
    %55 = tpu.strided_load %arg6[%c2_53, %c1_54, %c0_55] {strides = array<i32: 2, 2, 1>} : memref<34x34x3xf32, #tpu.memory_space<vmem>>, vector<16x16x3xf32>
    %56 = vector.shape_cast %55 : vector<16x16x3xf32> to vector<256x3xf32>
    %57 = arith.truncf %56 : vector<256x3xf32> to vector<256x3xbf16>
    %c7 = arith.constant 7 : index
    %c0_56 = arith.constant 0 : index
    %c0_57 = arith.constant 0 : index
    %58 = vector.load %arg2[%c7, %c0_56, %c0_57] : memref<9x3x8xbf16, #tpu.memory_space<vmem>>, vector<1x3x8xbf16>
    %59 = vector.shape_cast %58 : vector<1x3x8xbf16> to vector<3x8xbf16>
    %cst_58 = arith.constant dense<0.000000e+00> : vector<256x8xf32>
    %60 = tpu.matmul %57, %59, %cst_58 {dimension_numbers = #tpu.dot_dimension_numbers<[1], [0], [0], [1], [0, 0, 1, 1], [], []>} : vector<256x3xbf16>, vector<3x8xbf16>, vector<256x8xf32> -> vector<256x8xf32>
    %61 = arith.addf %54, %60 : vector<256x8xf32>
    %c2_59 = arith.constant 2 : index
    %c2_60 = arith.constant 2 : index
    %c0_61 = arith.constant 0 : index
    %62 = tpu.strided_load %arg6[%c2_59, %c2_60, %c0_61] {strides = array<i32: 2, 2, 1>} : memref<34x34x3xf32, #tpu.memory_space<vmem>>, vector<16x16x3xf32>
    %63 = vector.shape_cast %62 : vector<16x16x3xf32> to vector<256x3xf32>
    %64 = arith.truncf %63 : vector<256x3xf32> to vector<256x3xbf16>
    %c8 = arith.constant 8 : index
    %c0_62 = arith.constant 0 : index
    %c0_63 = arith.constant 0 : index
    %65 = vector.load %arg2[%c8, %c0_62, %c0_63] : memref<9x3x8xbf16, #tpu.memory_space<vmem>>, vector<1x3x8xbf16>
    %66 = vector.shape_cast %65 : vector<1x3x8xbf16> to vector<3x8xbf16>
    %cst_64 = arith.constant dense<0.000000e+00> : vector<256x8xf32>
    %67 = tpu.matmul %64, %66, %cst_64 {dimension_numbers = #tpu.dot_dimension_numbers<[1], [0], [0], [1], [0, 0, 1, 1], [], []>} : vector<256x3xbf16>, vector<3x8xbf16>, vector<256x8xf32> -> vector<256x8xf32>
    %68 = arith.addf %61, %67 : vector<256x8xf32>
    %c0_65 = arith.constant 0 : index
    %c0_66 = arith.constant 0 : index
    %69 = vector.load %arg3[%c0_65, %c0_66] : memref<1x8xf32, #tpu.memory_space<vmem>>, vector<1x8xf32>
    %70 = vector.broadcast %69 : vector<1x8xf32> to vector<256x8xf32>
    %71 = arith.mulf %68, %70 : vector<256x8xf32>
    %c0_67 = arith.constant 0 : index
    %c0_68 = arith.constant 0 : index
    %72 = vector.load %arg4[%c0_67, %c0_68] : memref<1x8xf32, #tpu.memory_space<vmem>>, vector<1x8xf32>
    %73 = vector.broadcast %72 : vector<1x8xf32> to vector<256x8xf32>
    %74 = arith.addf %71, %73 : vector<256x8xf32>
    %cst_69 = arith.constant 0.000000e+00 : f32
    %cst_70 = arith.constant 6.000000e+00 : f32
    %75 = vector.broadcast %cst_69 : f32 to vector<256x8xf32>
    %76 = arith.maximumf %75, %74 : vector<256x8xf32>
    %77 = vector.broadcast %cst_70 : f32 to vector<256x8xf32>
    %78 = arith.minimumf %77, %76 : vector<256x8xf32>
    %79 = vector.shape_cast %78 : vector<256x8xf32> to vector<16x16x8xf32>
    %c0_71 = arith.constant 0 : index
    %c0_72 = arith.constant 0 : index
    %c0_73 = arith.constant 0 : index
    %c0_74 = arith.constant 0 : index
    %80 = vector.load %arg5[%c0_71, %c0_72, %c0_73, %c0_74] : memref<1x16x16x8xf32, #tpu.memory_space<vmem>>, vector<1x16x16x8xf32>
    %81 = vector.shape_cast %80 : vector<1x16x16x8xf32> to vector<16x16x8xf32>
    %82 = vector.shape_cast %79 : vector<16x16x8xf32> to vector<1x16x16x8xf32>
    tpu.vector_store %arg5[%c0_71, %c0_72, %c0_73, %c0_74], %82 {strides = array<i32>} : memref<1x16x16x8xf32, #tpu.memory_space<vmem>>, vector<1x16x16x8xf32>,
    return
  }
  func.func @transform_0(%arg0: i32) -> (i32, i32, i32, i32) {
    %c0_i32 = arith.constant 0 : i32
    %c0_i32_0 = arith.constant 0 : i32
    %c0_i32_1 = arith.constant 0 : i32
    %c0_i32_2 = arith.constant 0 : i32
    return %arg0, %c0_i32, %c0_i32_0, %c0_i32_1 : i32, i32, i32, i32
  }
  func.func @transform_1(%arg0: i32) -> (i32, i32, i32) {
    %c0_i32 = arith.constant 0 : i32
    %c0_i32_0 = arith.constant 0 : i32
    %c0_i32_1 = arith.constant 0 : i32
    %c0_i32_2 = arith.constant 0 : i32
    return %c0_i32, %c0_i32_0, %c0_i32_1 : i32, i32, i32
  }
  func.func @transform_2(%arg0: i32) -> (i32, i32) {
    %c0_i32 = arith.constant 0 : i32
    %c0_i32_0 = arith.constant 0 : i32
    %c0_i32_1 = arith.constant 0 : i32
    return %c0_i32, %c0_i32_0 : i32, i32
  }
  func.func @transform_3(%arg0: i32) -> (i32, i32) {
    %c0_i32 = arith.constant 0 : i32
    %c0_i32_0 = arith.constant 0 : i32
    %c0_i32_1 = arith.constant 0 : i32
    return %c0_i32, %c0_i32_0 : i32, i32
  }
  func.func @transform_4(%arg0: i32) -> (i32, i32, i32, i32) {
    %c0_i32 = arith.constant 0 : i32
    %c0_i32_0 = arith.constant 0 : i32
    %c0_i32_1 = arith.constant 0 : i32
    %c0_i32_2 = arith.constant 0 : i32
    return %arg0, %c0_i32, %c0_i32_0, %c0_i32_1 : i32, i32, i32, i32
  }
}

module attributes {stable_mosaic.version = 11 : i64} {
  func.func @_invres_kernel(%arg0: i32, %arg1: memref<1x16x16x8xf32, #tpu.memory_space<vmem>>, %arg2: memref<9x8xf32, #tpu.memory_space<vmem>>, %arg3: memref<1x8xf32, #tpu.memory_space<vmem>>, %arg4: memref<1x8xf32, #tpu.memory_space<vmem>>, %arg5: memref<8x16xbf16, #tpu.memory_space<vmem>>, %arg6: memref<1x16xf32, #tpu.memory_space<vmem>>, %arg7: memref<1x16xf32, #tpu.memory_space<vmem>>, %arg8: memref<1x16x16x16xf32, #tpu.memory_space<vmem>>, %arg9: memref<18x18x8xf32, #tpu.memory_space<vmem>>) attributes {dimension_semantics = [#tpu.dimension_semantics<parallel>], iteration_bounds = array<i64: 2>, scalar_prefetch = 0 : i64, scratch_operands = 1 : i64, tpu.core_type = #tpu.core_type<tc>, window_params = [{transform_indices = @transform_0, window_bounds = array<i64: 1, 16, 16, 8>}, {pipeline_mode = #tpu.pipeline_mode<synchronous>, transform_indices = @transform_1, window_bounds = array<i64: 9, 8>}, {pipeline_mode = #tpu.pipeline_mode<synchronous>, transform_indices = @transform_2, window_bounds = array<i64: 1, 8>}, {pipeline_mode = #tpu.pipeline_mode<synchronous>, transform_indices = @transform_3, window_bounds = array<i64: 1, 8>}, {pipeline_mode = #tpu.pipeline_mode<synchronous>, transform_indices = @transform_4, window_bounds = array<i64: 8, 16>}, {pipeline_mode = #tpu.pipeline_mode<synchronous>, transform_indices = @transform_5, window_bounds = array<i64: 1, 16>}, {pipeline_mode = #tpu.pipeline_mode<synchronous>, transform_indices = @transform_6, window_bounds = array<i64: 1, 16>}, {transform_indices = @transform_7, window_bounds = array<i64: 1, 16, 16, 16>}]} {
    %c0 = arith.constant 0 : index
    %c0_0 = arith.constant 0 : index
    %c0_1 = arith.constant 0 : index
    %c0_2 = arith.constant 0 : index
    %0 = vector.load %arg1[%c0, %c0_0, %c0_1, %c0_2] : memref<1x16x16x8xf32, #tpu.memory_space<vmem>>, vector<1x16x16x8xf32>
    %1 = vector.shape_cast %0 : vector<1x16x16x8xf32> to vector<16x16x8xf32>
    %2 = vector.shape_cast %1 : vector<16x16x8xf32> to vector<256x8xf32>
    %cst = arith.constant 0.000000e+00 : f32
    %3 = vector.broadcast %cst : f32 to vector<18x18x8xf32>
    %c0_3 = arith.constant 0 : index
    %c0_4 = arith.constant 0 : index
    %c0_5 = arith.constant 0 : index
    %4 = vector.load %arg9[%c0_3, %c0_4, %c0_5] : memref<18x18x8xf32, #tpu.memory_space<vmem>>, vector<18x18x8xf32>
    tpu.vector_store %arg9[%c0_3, %c0_4, %c0_5], %3 {strides = array<i32>} : memref<18x18x8xf32, #tpu.memory_space<vmem>>, vector<18x18x8xf32>,
    %5 = vector.shape_cast %2 : vector<256x8xf32> to vector<16x16x8xf32>
    %c1 = arith.constant 1 : index
    %c1_6 = arith.constant 1 : index
    %c0_7 = arith.constant 0 : index
    %6 = vector.load %arg9[%c1, %c1_6, %c0_7] : memref<18x18x8xf32, #tpu.memory_space<vmem>>, vector<16x16x8xf32>
    tpu.vector_store %arg9[%c1, %c1_6, %c0_7], %5 {strides = array<i32>} : memref<18x18x8xf32, #tpu.memory_space<vmem>>, vector<16x16x8xf32>,
    %c0_8 = arith.constant 0 : index
    %c0_9 = arith.constant 0 : index
    %7 = vector.load %arg2[%c0_8, %c0_9] : memref<9x8xf32, #tpu.memory_space<vmem>>, vector<9x8xf32>
    %cst_10 = arith.constant 0.000000e+00 : f32
    %8 = vector.broadcast %cst_10 : f32 to vector<256x8xf32>
    %c0_11 = arith.constant 0 : index
    %c0_12 = arith.constant 0 : index
    %c0_13 = arith.constant 0 : index
    %9 = vector.load %arg9[%c0_11, %c0_12, %c0_13] : memref<18x18x8xf32, #tpu.memory_space<vmem>>, vector<16x16x8xf32>
    %10 = vector.shape_cast %9 : vector<16x16x8xf32> to vector<256x8xf32>
    %11 = vector.extract_strided_slice %7 {offsets = [0, 0], sizes = [1, 8], strides = [1, 1]} : vector<9x8xf32> to vector<1x8xf32>
    %12 = vector.broadcast %11 : vector<1x8xf32> to vector<256x8xf32>
    %13 = arith.mulf %10, %12 : vector<256x8xf32>
    %14 = arith.addf %8, %13 : vector<256x8xf32>
    %c0_14 = arith.constant 0 : index
    %c1_15 = arith.constant 1 : index
    %c0_16 = arith.constant 0 : index
    %15 = vector.load %arg9[%c0_14, %c1_15, %c0_16] : memref<18x18x8xf32, #tpu.memory_space<vmem>>, vector<16x16x8xf32>
    %16 = vector.shape_cast %15 : vector<16x16x8xf32> to vector<256x8xf32>
    %17 = vector.extract_strided_slice %7 {offsets = [1, 0], sizes = [1, 8], strides = [1, 1]} : vector<9x8xf32> to vector<1x8xf32>
    %18 = vector.broadcast %17 : vector<1x8xf32> to vector<256x8xf32>
    %19 = arith.mulf %16, %18 : vector<256x8xf32>
    %20 = arith.addf %14, %19 : vector<256x8xf32>
    %c0_17 = arith.constant 0 : index
    %c2 = arith.constant 2 : index
    %c0_18 = arith.constant 0 : index
    %21 = vector.load %arg9[%c0_17, %c2, %c0_18] : memref<18x18x8xf32, #tpu.memory_space<vmem>>, vector<16x16x8xf32>
    %22 = vector.shape_cast %21 : vector<16x16x8xf32> to vector<256x8xf32>
    %23 = vector.extract_strided_slice %7 {offsets = [2, 0], sizes = [1, 8], strides = [1, 1]} : vector<9x8xf32> to vector<1x8xf32>
    %24 = vector.broadcast %23 : vector<1x8xf32> to vector<256x8xf32>
    %25 = arith.mulf %22, %24 : vector<256x8xf32>
    %26 = arith.addf %20, %25 : vector<256x8xf32>
    %c1_19 = arith.constant 1 : index
    %c0_20 = arith.constant 0 : index
    %c0_21 = arith.constant 0 : index
    %27 = vector.load %arg9[%c1_19, %c0_20, %c0_21] : memref<18x18x8xf32, #tpu.memory_space<vmem>>, vector<16x16x8xf32>
    %28 = vector.shape_cast %27 : vector<16x16x8xf32> to vector<256x8xf32>
    %29 = vector.extract_strided_slice %7 {offsets = [3, 0], sizes = [1, 8], strides = [1, 1]} : vector<9x8xf32> to vector<1x8xf32>
    %30 = vector.broadcast %29 : vector<1x8xf32> to vector<256x8xf32>
    %31 = arith.mulf %28, %30 : vector<256x8xf32>
    %32 = arith.addf %26, %31 : vector<256x8xf32>
    %c1_22 = arith.constant 1 : index
    %c1_23 = arith.constant 1 : index
    %c0_24 = arith.constant 0 : index
    %33 = vector.load %arg9[%c1_22, %c1_23, %c0_24] : memref<18x18x8xf32, #tpu.memory_space<vmem>>, vector<16x16x8xf32>
    %34 = vector.shape_cast %33 : vector<16x16x8xf32> to vector<256x8xf32>
    %35 = vector.extract_strided_slice %7 {offsets = [4, 0], sizes = [1, 8], strides = [1, 1]} : vector<9x8xf32> to vector<1x8xf32>
    %36 = vector.broadcast %35 : vector<1x8xf32> to vector<256x8xf32>
    %37 = arith.mulf %34, %36 : vector<256x8xf32>
    %38 = arith.addf %32, %37 : vector<256x8xf32>
    %c1_25 = arith.constant 1 : index
    %c2_26 = arith.constant 2 : index
    %c0_27 = arith.constant 0 : index
    %39 = vector.load %arg9[%c1_25, %c2_26, %c0_27] : memref<18x18x8xf32, #tpu.memory_space<vmem>>, vector<16x16x8xf32>
    %40 = vector.shape_cast %39 : vector<16x16x8xf32> to vector<256x8xf32>
    %41 = vector.extract_strided_slice %7 {offsets = [5, 0], sizes = [1, 8], strides = [1, 1]} : vector<9x8xf32> to vector<1x8xf32>
    %42 = vector.broadcast %41 : vector<1x8xf32> to vector<256x8xf32>
    %43 = arith.mulf %40, %42 : vector<256x8xf32>
    %44 = arith.addf %38, %43 : vector<256x8xf32>
    %c2_28 = arith.constant 2 : index
    %c0_29 = arith.constant 0 : index
    %c0_30 = arith.constant 0 : index
    %45 = vector.load %arg9[%c2_28, %c0_29, %c0_30] : memref<18x18x8xf32, #tpu.memory_space<vmem>>, vector<16x16x8xf32>
    %46 = vector.shape_cast %45 : vector<16x16x8xf32> to vector<256x8xf32>
    %47 = vector.extract_strided_slice %7 {offsets = [6, 0], sizes = [1, 8], strides = [1, 1]} : vector<9x8xf32> to vector<1x8xf32>
    %48 = vector.broadcast %47 : vector<1x8xf32> to vector<256x8xf32>
    %49 = arith.mulf %46, %48 : vector<256x8xf32>
    %50 = arith.addf %44, %49 : vector<256x8xf32>
    %c2_31 = arith.constant 2 : index
    %c1_32 = arith.constant 1 : index
    %c0_33 = arith.constant 0 : index
    %51 = vector.load %arg9[%c2_31, %c1_32, %c0_33] : memref<18x18x8xf32, #tpu.memory_space<vmem>>, vector<16x16x8xf32>
    %52 = vector.shape_cast %51 : vector<16x16x8xf32> to vector<256x8xf32>
    %53 = vector.extract_strided_slice %7 {offsets = [7, 0], sizes = [1, 8], strides = [1, 1]} : vector<9x8xf32> to vector<1x8xf32>
    %54 = vector.broadcast %53 : vector<1x8xf32> to vector<256x8xf32>
    %55 = arith.mulf %52, %54 : vector<256x8xf32>
    %56 = arith.addf %50, %55 : vector<256x8xf32>
    %c2_34 = arith.constant 2 : index
    %c2_35 = arith.constant 2 : index
    %c0_36 = arith.constant 0 : index
    %57 = vector.load %arg9[%c2_34, %c2_35, %c0_36] : memref<18x18x8xf32, #tpu.memory_space<vmem>>, vector<16x16x8xf32>
    %58 = vector.shape_cast %57 : vector<16x16x8xf32> to vector<256x8xf32>
    %59 = vector.extract_strided_slice %7 {offsets = [8, 0], sizes = [1, 8], strides = [1, 1]} : vector<9x8xf32> to vector<1x8xf32>
    %60 = vector.broadcast %59 : vector<1x8xf32> to vector<256x8xf32>
    %61 = arith.mulf %58, %60 : vector<256x8xf32>
    %62 = arith.addf %56, %61 : vector<256x8xf32>
    %c0_37 = arith.constant 0 : index
    %c0_38 = arith.constant 0 : index
    %63 = vector.load %arg3[%c0_37, %c0_38] : memref<1x8xf32, #tpu.memory_space<vmem>>, vector<1x8xf32>
    %64 = vector.broadcast %63 : vector<1x8xf32> to vector<256x8xf32>
    %65 = arith.mulf %62, %64 : vector<256x8xf32>
    %c0_39 = arith.constant 0 : index
    %c0_40 = arith.constant 0 : index
    %66 = vector.load %arg4[%c0_39, %c0_40] : memref<1x8xf32, #tpu.memory_space<vmem>>, vector<1x8xf32>
    %67 = vector.broadcast %66 : vector<1x8xf32> to vector<256x8xf32>
    %68 = arith.addf %65, %67 : vector<256x8xf32>
    %cst_41 = arith.constant 0.000000e+00 : f32
    %cst_42 = arith.constant 6.000000e+00 : f32
    %69 = vector.broadcast %cst_41 : f32 to vector<256x8xf32>
    %70 = arith.maximumf %69, %68 : vector<256x8xf32>
    %71 = vector.broadcast %cst_42 : f32 to vector<256x8xf32>
    %72 = arith.minimumf %71, %70 : vector<256x8xf32>
    %73 = arith.truncf %72 : vector<256x8xf32> to vector<256x8xbf16>
    %c0_43 = arith.constant 0 : index
    %c0_44 = arith.constant 0 : index
    %74 = vector.load %arg5[%c0_43, %c0_44] : memref<8x16xbf16, #tpu.memory_space<vmem>>, vector<8x16xbf16>
    %cst_45 = arith.constant dense<0.000000e+00> : vector<256x16xf32>
    %75 = tpu.matmul %73, %74, %cst_45 {dimension_numbers = #tpu.dot_dimension_numbers<[1], [0], [0], [1], [0, 0, 1, 1], [], []>} : vector<256x8xbf16>, vector<8x16xbf16>, vector<256x16xf32> -> vector<256x16xf32>
    %c0_46 = arith.constant 0 : index
    %c0_47 = arith.constant 0 : index
    %76 = vector.load %arg6[%c0_46, %c0_47] : memref<1x16xf32, #tpu.memory_space<vmem>>, vector<1x16xf32>
    %77 = vector.broadcast %76 : vector<1x16xf32> to vector<256x16xf32>
    %78 = arith.mulf %75, %77 : vector<256x16xf32>
    %c0_48 = arith.constant 0 : index
    %c0_49 = arith.constant 0 : index
    %79 = vector.load %arg7[%c0_48, %c0_49] : memref<1x16xf32, #tpu.memory_space<vmem>>, vector<1x16xf32>
    %80 = vector.broadcast %79 : vector<1x16xf32> to vector<256x16xf32>
    %81 = arith.addf %78, %80 : vector<256x16xf32>
    %82 = vector.shape_cast %81 : vector<256x16xf32> to vector<16x16x16xf32>
    %c0_50 = arith.constant 0 : index
    %c0_51 = arith.constant 0 : index
    %c0_52 = arith.constant 0 : index
    %c0_53 = arith.constant 0 : index
    %83 = vector.load %arg8[%c0_50, %c0_51, %c0_52, %c0_53] : memref<1x16x16x16xf32, #tpu.memory_space<vmem>>, vector<1x16x16x16xf32>
    %84 = vector.shape_cast %83 : vector<1x16x16x16xf32> to vector<16x16x16xf32>
    %85 = vector.shape_cast %82 : vector<16x16x16xf32> to vector<1x16x16x16xf32>
    tpu.vector_store %arg8[%c0_50, %c0_51, %c0_52, %c0_53], %85 {strides = array<i32>} : memref<1x16x16x16xf32, #tpu.memory_space<vmem>>, vector<1x16x16x16xf32>,
    return
  }
  func.func @transform_0(%arg0: i32) -> (i32, i32, i32, i32) {
    %c0_i32 = arith.constant 0 : i32
    %c0_i32_0 = arith.constant 0 : i32
    %c0_i32_1 = arith.constant 0 : i32
    %c0_i32_2 = arith.constant 0 : i32
    return %arg0, %c0_i32, %c0_i32_0, %c0_i32_1 : i32, i32, i32, i32
  }
  func.func @transform_1(%arg0: i32) -> (i32, i32) {
    %c0_i32 = arith.constant 0 : i32
    %c0_i32_0 = arith.constant 0 : i32
    %c0_i32_1 = arith.constant 0 : i32
    return %c0_i32, %c0_i32_0 : i32, i32
  }
  func.func @transform_2(%arg0: i32) -> (i32, i32) {
    %c0_i32 = arith.constant 0 : i32
    %c0_i32_0 = arith.constant 0 : i32
    %c0_i32_1 = arith.constant 0 : i32
    return %c0_i32, %c0_i32_0 : i32, i32
  }
  func.func @transform_3(%arg0: i32) -> (i32, i32) {
    %c0_i32 = arith.constant 0 : i32
    %c0_i32_0 = arith.constant 0 : i32
    %c0_i32_1 = arith.constant 0 : i32
    return %c0_i32, %c0_i32_0 : i32, i32
  }
  func.func @transform_4(%arg0: i32) -> (i32, i32) {
    %c0_i32 = arith.constant 0 : i32
    %c0_i32_0 = arith.constant 0 : i32
    %c0_i32_1 = arith.constant 0 : i32
    return %c0_i32, %c0_i32_0 : i32, i32
  }
  func.func @transform_5(%arg0: i32) -> (i32, i32) {
    %c0_i32 = arith.constant 0 : i32
    %c0_i32_0 = arith.constant 0 : i32
    %c0_i32_1 = arith.constant 0 : i32
    return %c0_i32, %c0_i32_0 : i32, i32
  }
  func.func @transform_6(%arg0: i32) -> (i32, i32) {
    %c0_i32 = arith.constant 0 : i32
    %c0_i32_0 = arith.constant 0 : i32
    %c0_i32_1 = arith.constant 0 : i32
    return %c0_i32, %c0_i32_0 : i32, i32
  }
  func.func @transform_7(%arg0: i32) -> (i32, i32, i32, i32) {
    %c0_i32 = arith.constant 0 : i32
    %c0_i32_0 = arith.constant 0 : i32
    %c0_i32_1 = arith.constant 0 : i32
    %c0_i32_2 = arith.constant 0 : i32
    return %arg0, %c0_i32, %c0_i32_0, %c0_i32_1 : i32, i32, i32, i32
  }
}

module attributes {stable_mosaic.version = 11 : i64} {
  func.func @_invres_kernel(%arg0: i32, %arg1: memref<1x16x16x16xf32, #tpu.memory_space<vmem>>, %arg2: memref<16x96xbf16, #tpu.memory_space<vmem>>, %arg3: memref<1x96xf32, #tpu.memory_space<vmem>>, %arg4: memref<1x96xf32, #tpu.memory_space<vmem>>, %arg5: memref<9x96xf32, #tpu.memory_space<vmem>>, %arg6: memref<1x96xf32, #tpu.memory_space<vmem>>, %arg7: memref<1x96xf32, #tpu.memory_space<vmem>>, %arg8: memref<96x16xbf16, #tpu.memory_space<vmem>>, %arg9: memref<1x16xf32, #tpu.memory_space<vmem>>, %arg10: memref<1x16xf32, #tpu.memory_space<vmem>>, %arg11: memref<1x8x8x16xf32, #tpu.memory_space<vmem>>, %arg12: memref<18x18x96xf32, #tpu.memory_space<vmem>>) attributes {dimension_semantics = [#tpu.dimension_semantics<parallel>], iteration_bounds = array<i64: 2>, scalar_prefetch = 0 : i64, scratch_operands = 1 : i64, tpu.core_type = #tpu.core_type<tc>, window_params = [{transform_indices = @transform_0, window_bounds = array<i64: 1, 16, 16, 16>}, {pipeline_mode = #tpu.pipeline_mode<synchronous>, transform_indices = @transform_1, window_bounds = array<i64: 16, 96>}, {pipeline_mode = #tpu.pipeline_mode<synchronous>, transform_indices = @transform_2, window_bounds = array<i64: 1, 96>}, {pipeline_mode = #tpu.pipeline_mode<synchronous>, transform_indices = @transform_3, window_bounds = array<i64: 1, 96>}, {pipeline_mode = #tpu.pipeline_mode<synchronous>, transform_indices = @transform_4, window_bounds = array<i64: 9, 96>}, {pipeline_mode = #tpu.pipeline_mode<synchronous>, transform_indices = @transform_5, window_bounds = array<i64: 1, 96>}, {pipeline_mode = #tpu.pipeline_mode<synchronous>, transform_indices = @transform_6, window_bounds = array<i64: 1, 96>}, {pipeline_mode = #tpu.pipeline_mode<synchronous>, transform_indices = @transform_7, window_bounds = array<i64: 96, 16>}, {pipeline_mode = #tpu.pipeline_mode<synchronous>, transform_indices = @transform_8, window_bounds = array<i64: 1, 16>}, {pipeline_mode = #tpu.pipeline_mode<synchronous>, transform_indices = @transform_9, window_bounds = array<i64: 1, 16>}, {transform_indices = @transform_10, window_bounds = array<i64: 1, 8, 8, 16>}]} {
    %c0 = arith.constant 0 : index
    %c0_0 = arith.constant 0 : index
    %c0_1 = arith.constant 0 : index
    %c0_2 = arith.constant 0 : index
    %0 = vector.load %arg1[%c0, %c0_0, %c0_1, %c0_2] : memref<1x16x16x16xf32, #tpu.memory_space<vmem>>, vector<1x16x16x16xf32>
    %1 = vector.shape_cast %0 : vector<1x16x16x16xf32> to vector<16x16x16xf32>
    %2 = vector.shape_cast %1 : vector<16x16x16xf32> to vector<256x16xf32>
    %3 = arith.truncf %2 : vector<256x16xf32> to vector<256x16xbf16>
    %c0_3 = arith.constant 0 : index
    %c0_4 = arith.constant 0 : index
    %4 = vector.load %arg2[%c0_3, %c0_4] : memref<16x96xbf16, #tpu.memory_space<vmem>>, vector<16x96xbf16>
    %cst = arith.constant dense<0.000000e+00> : vector<256x96xf32>
    %5 = tpu.matmul %3, %4, %cst {dimension_numbers = #tpu.dot_dimension_numbers<[1], [0], [0], [1], [0, 0, 1, 1], [], []>} : vector<256x16xbf16>, vector<16x96xbf16>, vector<256x96xf32> -> vector<256x96xf32>
    %c0_5 = arith.constant 0 : index
    %c0_6 = arith.constant 0 : index
    %6 = vector.load %arg3[%c0_5, %c0_6] : memref<1x96xf32, #tpu.memory_space<vmem>>, vector<1x96xf32>
    %7 = vector.broadcast %6 : vector<1x96xf32> to vector<256x96xf32>
    %8 = arith.mulf %5, %7 : vector<256x96xf32>
    %c0_7 = arith.constant 0 : index
    %c0_8 = arith.constant 0 : index
    %9 = vector.load %arg4[%c0_7, %c0_8] : memref<1x96xf32, #tpu.memory_space<vmem>>, vector<1x96xf32>
    %10 = vector.broadcast %9 : vector<1x96xf32> to vector<256x96xf32>
    %11 = arith.addf %8, %10 : vector<256x96xf32>
    %cst_9 = arith.constant 0.000000e+00 : f32
    %cst_10 = arith.constant 6.000000e+00 : f32
    %12 = vector.broadcast %cst_9 : f32 to vector<256x96xf32>
    %13 = arith.maximumf %12, %11 : vector<256x96xf32>
    %14 = vector.broadcast %cst_10 : f32 to vector<256x96xf32>
    %15 = arith.minimumf %14, %13 : vector<256x96xf32>
    %cst_11 = arith.constant 0.000000e+00 : f32
    %16 = vector.broadcast %cst_11 : f32 to vector<18x18x96xf32>
    %c0_12 = arith.constant 0 : index
    %c0_13 = arith.constant 0 : index
    %c0_14 = arith.constant 0 : index
    %17 = vector.load %arg12[%c0_12, %c0_13, %c0_14] : memref<18x18x96xf32, #tpu.memory_space<vmem>>, vector<18x18x96xf32>
    tpu.vector_store %arg12[%c0_12, %c0_13, %c0_14], %16 {strides = array<i32>} : memref<18x18x96xf32, #tpu.memory_space<vmem>>, vector<18x18x96xf32>,
    %18 = vector.shape_cast %15 : vector<256x96xf32> to vector<16x16x96xf32>
    %c1 = arith.constant 1 : index
    %c1_15 = arith.constant 1 : index
    %c0_16 = arith.constant 0 : index
    %19 = vector.load %arg12[%c1, %c1_15, %c0_16] : memref<18x18x96xf32, #tpu.memory_space<vmem>>, vector<16x16x96xf32>
    tpu.vector_store %arg12[%c1, %c1_15, %c0_16], %18 {strides = array<i32>} : memref<18x18x96xf32, #tpu.memory_space<vmem>>, vector<16x16x96xf32>,
    %c0_17 = arith.constant 0 : index
    %c0_18 = arith.constant 0 : index
    %20 = vector.load %arg5[%c0_17, %c0_18] : memref<9x96xf32, #tpu.memory_space<vmem>>, vector<9x96xf32>
    %cst_19 = arith.constant 0.000000e+00 : f32
    %21 = vector.broadcast %cst_19 : f32 to vector<64x96xf32>
    %c0_20 = arith.constant 0 : index
    %c0_21 = arith.constant 0 : index
    %c0_22 = arith.constant 0 : index
    %22 = tpu.strided_load %arg12[%c0_20, %c0_21, %c0_22] {strides = array<i32: 2, 2, 1>} : memref<18x18x96xf32, #tpu.memory_space<vmem>>, vector<8x8x96xf32>
    %23 = vector.shape_cast %22 : vector<8x8x96xf32> to vector<64x96xf32>
    %24 = vector.extract_strided_slice %20 {offsets = [0, 0], sizes = [1, 96], strides = [1, 1]} : vector<9x96xf32> to vector<1x96xf32>
    %25 = vector.broadcast %24 : vector<1x96xf32> to vector<64x96xf32>
    %26 = arith.mulf %23, %25 : vector<64x96xf32>
    %27 = arith.addf %21, %26 : vector<64x96xf32>
    %c0_23 = arith.constant 0 : index
    %c1_24 = arith.constant 1 : index
    %c0_25 = arith.constant 0 : index
    %28 = tpu.strided_load %arg12[%c0_23, %c1_24, %c0_25] {strides = array<i32: 2, 2, 1>} : memref<18x18x96xf32, #tpu.memory_space<vmem>>, vector<8x8x96xf32>
    %29 = vector.shape_cast %28 : vector<8x8x96xf32> to vector<64x96xf32>
    %30 = vector.extract_strided_slice %20 {offsets = [1, 0], sizes = [1, 96], strides = [1, 1]} : vector<9x96xf32> to vector<1x96xf32>
    %31 = vector.broadcast %30 : vector<1x96xf32> to vector<64x96xf32>
    %32 = arith.mulf %29, %31 : vector<64x96xf32>
    %33 = arith.addf %27, %32 : vector<64x96xf32>
    %c0_26 = arith.constant 0 : index
    %c2 = arith.constant 2 : index
    %c0_27 = arith.constant 0 : index
    %34 = tpu.strided_load %arg12[%c0_26, %c2, %c0_27] {strides = array<i32: 2, 2, 1>} : memref<18x18x96xf32, #tpu.memory_space<vmem>>, vector<8x8x96xf32>
    %35 = vector.shape_cast %34 : vector<8x8x96xf32> to vector<64x96xf32>
    %36 = vector.extract_strided_slice %20 {offsets = [2, 0], sizes = [1, 96], strides = [1, 1]} : vector<9x96xf32> to vector<1x96xf32>
    %37 = vector.broadcast %36 : vector<1x96xf32> to vector<64x96xf32>
    %38 = arith.mulf %35, %37 : vector<64x96xf32>
    %39 = arith.addf %33, %38 : vector<64x96xf32>
    %c1_28 = arith.constant 1 : index
    %c0_29 = arith.constant 0 : index
    %c0_30 = arith.constant 0 : index
    %40 = tpu.strided_load %arg12[%c1_28, %c0_29, %c0_30] {strides = array<i32: 2, 2, 1>} : memref<18x18x96xf32, #tpu.memory_space<vmem>>, vector<8x8x96xf32>
    %41 = vector.shape_cast %40 : vector<8x8x96xf32> to vector<64x96xf32>
    %42 = vector.extract_strided_slice %20 {offsets = [3, 0], sizes = [1, 96], strides = [1, 1]} : vector<9x96xf32> to vector<1x96xf32>
    %43 = vector.broadcast %42 : vector<1x96xf32> to vector<64x96xf32>
    %44 = arith.mulf %41, %43 : vector<64x96xf32>
    %45 = arith.addf %39, %44 : vector<64x96xf32>
    %c1_31 = arith.constant 1 : index
    %c1_32 = arith.constant 1 : index
    %c0_33 = arith.constant 0 : index
    %46 = tpu.strided_load %arg12[%c1_31, %c1_32, %c0_33] {strides = array<i32: 2, 2, 1>} : memref<18x18x96xf32, #tpu.memory_space<vmem>>, vector<8x8x96xf32>
    %47 = vector.shape_cast %46 : vector<8x8x96xf32> to vector<64x96xf32>
    %48 = vector.extract_strided_slice %20 {offsets = [4, 0], sizes = [1, 96], strides = [1, 1]} : vector<9x96xf32> to vector<1x96xf32>
    %49 = vector.broadcast %48 : vector<1x96xf32> to vector<64x96xf32>
    %50 = arith.mulf %47, %49 : vector<64x96xf32>
    %51 = arith.addf %45, %50 : vector<64x96xf32>
    %c1_34 = arith.constant 1 : index
    %c2_35 = arith.constant 2 : index
    %c0_36 = arith.constant 0 : index
    %52 = tpu.strided_load %arg12[%c1_34, %c2_35, %c0_36] {strides = array<i32: 2, 2, 1>} : memref<18x18x96xf32, #tpu.memory_space<vmem>>, vector<8x8x96xf32>
    %53 = vector.shape_cast %52 : vector<8x8x96xf32> to vector<64x96xf32>
    %54 = vector.extract_strided_slice %20 {offsets = [5, 0], sizes = [1, 96], strides = [1, 1]} : vector<9x96xf32> to vector<1x96xf32>
    %55 = vector.broadcast %54 : vector<1x96xf32> to vector<64x96xf32>
    %56 = arith.mulf %53, %55 : vector<64x96xf32>
    %57 = arith.addf %51, %56 : vector<64x96xf32>
    %c2_37 = arith.constant 2 : index
    %c0_38 = arith.constant 0 : index
    %c0_39 = arith.constant 0 : index
    %58 = tpu.strided_load %arg12[%c2_37, %c0_38, %c0_39] {strides = array<i32: 2, 2, 1>} : memref<18x18x96xf32, #tpu.memory_space<vmem>>, vector<8x8x96xf32>
    %59 = vector.shape_cast %58 : vector<8x8x96xf32> to vector<64x96xf32>
    %60 = vector.extract_strided_slice %20 {offsets = [6, 0], sizes = [1, 96], strides = [1, 1]} : vector<9x96xf32> to vector<1x96xf32>
    %61 = vector.broadcast %60 : vector<1x96xf32> to vector<64x96xf32>
    %62 = arith.mulf %59, %61 : vector<64x96xf32>
    %63 = arith.addf %57, %62 : vector<64x96xf32>
    %c2_40 = arith.constant 2 : index
    %c1_41 = arith.constant 1 : index
    %c0_42 = arith.constant 0 : index
    %64 = tpu.strided_load %arg12[%c2_40, %c1_41, %c0_42] {strides = array<i32: 2, 2, 1>} : memref<18x18x96xf32, #tpu.memory_space<vmem>>, vector<8x8x96xf32>
    %65 = vector.shape_cast %64 : vector<8x8x96xf32> to vector<64x96xf32>
    %66 = vector.extract_strided_slice %20 {offsets = [7, 0], sizes = [1, 96], strides = [1, 1]} : vector<9x96xf32> to vector<1x96xf32>
    %67 = vector.broadcast %66 : vector<1x96xf32> to vector<64x96xf32>
    %68 = arith.mulf %65, %67 : vector<64x96xf32>
    %69 = arith.addf %63, %68 : vector<64x96xf32>
    %c2_43 = arith.constant 2 : index
    %c2_44 = arith.constant 2 : index
    %c0_45 = arith.constant 0 : index
    %70 = tpu.strided_load %arg12[%c2_43, %c2_44, %c0_45] {strides = array<i32: 2, 2, 1>} : memref<18x18x96xf32, #tpu.memory_space<vmem>>, vector<8x8x96xf32>
    %71 = vector.shape_cast %70 : vector<8x8x96xf32> to vector<64x96xf32>
    %72 = vector.extract_strided_slice %20 {offsets = [8, 0], sizes = [1, 96], strides = [1, 1]} : vector<9x96xf32> to vector<1x96xf32>
    %73 = vector.broadcast %72 : vector<1x96xf32> to vector<64x96xf32>
    %74 = arith.mulf %71, %73 : vector<64x96xf32>
    %75 = arith.addf %69, %74 : vector<64x96xf32>
    %c0_46 = arith.constant 0 : index
    %c0_47 = arith.constant 0 : index
    %76 = vector.load %arg6[%c0_46, %c0_47] : memref<1x96xf32, #tpu.memory_space<vmem>>, vector<1x96xf32>
    %77 = vector.broadcast %76 : vector<1x96xf32> to vector<64x96xf32>
    %78 = arith.mulf %75, %77 : vector<64x96xf32>
    %c0_48 = arith.constant 0 : index
    %c0_49 = arith.constant 0 : index
    %79 = vector.load %arg7[%c0_48, %c0_49] : memref<1x96xf32, #tpu.memory_space<vmem>>, vector<1x96xf32>
    %80 = vector.broadcast %79 : vector<1x96xf32> to vector<64x96xf32>
    %81 = arith.addf %78, %80 : vector<64x96xf32>
    %cst_50 = arith.constant 0.000000e+00 : f32
    %cst_51 = arith.constant 6.000000e+00 : f32
    %82 = vector.broadcast %cst_50 : f32 to vector<64x96xf32>
    %83 = arith.maximumf %82, %81 : vector<64x96xf32>
    %84 = vector.broadcast %cst_51 : f32 to vector<64x96xf32>
    %85 = arith.minimumf %84, %83 : vector<64x96xf32>
    %86 = arith.truncf %85 : vector<64x96xf32> to vector<64x96xbf16>
    %c0_52 = arith.constant 0 : index
    %c0_53 = arith.constant 0 : index
    %87 = vector.load %arg8[%c0_52, %c0_53] : memref<96x16xbf16, #tpu.memory_space<vmem>>, vector<96x16xbf16>
    %cst_54 = arith.constant dense<0.000000e+00> : vector<64x16xf32>
    %88 = tpu.matmul %86, %87, %cst_54 {dimension_numbers = #tpu.dot_dimension_numbers<[1], [0], [0], [1], [0, 0, 1, 1], [], []>} : vector<64x96xbf16>, vector<96x16xbf16>, vector<64x16xf32> -> vector<64x16xf32>
    %c0_55 = arith.constant 0 : index
    %c0_56 = arith.constant 0 : index
    %89 = vector.load %arg9[%c0_55, %c0_56] : memref<1x16xf32, #tpu.memory_space<vmem>>, vector<1x16xf32>
    %90 = vector.broadcast %89 : vector<1x16xf32> to vector<64x16xf32>
    %91 = arith.mulf %88, %90 : vector<64x16xf32>
    %c0_57 = arith.constant 0 : index
    %c0_58 = arith.constant 0 : index
    %92 = vector.load %arg10[%c0_57, %c0_58] : memref<1x16xf32, #tpu.memory_space<vmem>>, vector<1x16xf32>
    %93 = vector.broadcast %92 : vector<1x16xf32> to vector<64x16xf32>
    %94 = arith.addf %91, %93 : vector<64x16xf32>
    %95 = vector.shape_cast %94 : vector<64x16xf32> to vector<8x8x16xf32>
    %c0_59 = arith.constant 0 : index
    %c0_60 = arith.constant 0 : index
    %c0_61 = arith.constant 0 : index
    %c0_62 = arith.constant 0 : index
    %96 = vector.load %arg11[%c0_59, %c0_60, %c0_61, %c0_62] : memref<1x8x8x16xf32, #tpu.memory_space<vmem>>, vector<1x8x8x16xf32>
    %97 = vector.shape_cast %96 : vector<1x8x8x16xf32> to vector<8x8x16xf32>
    %98 = vector.shape_cast %95 : vector<8x8x16xf32> to vector<1x8x8x16xf32>
    tpu.vector_store %arg11[%c0_59, %c0_60, %c0_61, %c0_62], %98 {strides = array<i32>} : memref<1x8x8x16xf32, #tpu.memory_space<vmem>>, vector<1x8x8x16xf32>,
    return
  }
  func.func @transform_0(%arg0: i32) -> (i32, i32, i32, i32) {
    %c0_i32 = arith.constant 0 : i32
    %c0_i32_0 = arith.constant 0 : i32
    %c0_i32_1 = arith.constant 0 : i32
    %c0_i32_2 = arith.constant 0 : i32
    return %arg0, %c0_i32, %c0_i32_0, %c0_i32_1 : i32, i32, i32, i32
  }
  func.func @transform_1(%arg0: i32) -> (i32, i32) {
    %c0_i32 = arith.constant 0 : i32
    %c0_i32_0 = arith.constant 0 : i32
    %c0_i32_1 = arith.constant 0 : i32
    return %c0_i32, %c0_i32_0 : i32, i32
  }
  func.func @transform_2(%arg0: i32) -> (i32, i32) {
    %c0_i32 = arith.constant 0 : i32
    %c0_i32_0 = arith.constant 0 : i32
    %c0_i32_1 = arith.constant 0 : i32
    return %c0_i32, %c0_i32_0 : i32, i32
  }
  func.func @transform_3(%arg0: i32) -> (i32, i32) {
    %c0_i32 = arith.constant 0 : i32
    %c0_i32_0 = arith.constant 0 : i32
    %c0_i32_1 = arith.constant 0 : i32
    return %c0_i32, %c0_i32_0 : i32, i32
  }
  func.func @transform_4(%arg0: i32) -> (i32, i32) {
    %c0_i32 = arith.constant 0 : i32
    %c0_i32_0 = arith.constant 0 : i32
    %c0_i32_1 = arith.constant 0 : i32
    return %c0_i32, %c0_i32_0 : i32, i32
  }
  func.func @transform_5(%arg0: i32) -> (i32, i32) {
    %c0_i32 = arith.constant 0 : i32
    %c0_i32_0 = arith.constant 0 : i32
    %c0_i32_1 = arith.constant 0 : i32
    return %c0_i32, %c0_i32_0 : i32, i32
  }
  func.func @transform_6(%arg0: i32) -> (i32, i32) {
    %c0_i32 = arith.constant 0 : i32
    %c0_i32_0 = arith.constant 0 : i32
    %c0_i32_1 = arith.constant 0 : i32
    return %c0_i32, %c0_i32_0 : i32, i32
  }
  func.func @transform_7(%arg0: i32) -> (i32, i32) {
    %c0_i32 = arith.constant 0 : i32
    %c0_i32_0 = arith.constant 0 : i32
    %c0_i32_1 = arith.constant 0 : i32
    return %c0_i32, %c0_i32_0 : i32, i32
  }
  func.func @transform_8(%arg0: i32) -> (i32, i32) {
    %c0_i32 = arith.constant 0 : i32
    %c0_i32_0 = arith.constant 0 : i32
    %c0_i32_1 = arith.constant 0 : i32
    return %c0_i32, %c0_i32_0 : i32, i32
  }
  func.func @transform_9(%arg0: i32) -> (i32, i32) {
    %c0_i32 = arith.constant 0 : i32
    %c0_i32_0 = arith.constant 0 : i32
    %c0_i32_1 = arith.constant 0 : i32
    return %c0_i32, %c0_i32_0 : i32, i32
  }
  func.func @transform_10(%arg0: i32) -> (i32, i32, i32, i32) {
    %c0_i32 = arith.constant 0 : i32
    %c0_i32_0 = arith.constant 0 : i32
    %c0_i32_1 = arith.constant 0 : i32
    %c0_i32_2 = arith.constant 0 : i32
    return %arg0, %c0_i32, %c0_i32_0, %c0_i32_1 : i32, i32, i32, i32
  }
}

module attributes {stable_mosaic.version = 11 : i64} {
  func.func @_invres_kernel(%arg0: i32, %arg1: memref<1x8x8x16xf32, #tpu.memory_space<vmem>>, %arg2: memref<16x96xbf16, #tpu.memory_space<vmem>>, %arg3: memref<1x96xf32, #tpu.memory_space<vmem>>, %arg4: memref<1x96xf32, #tpu.memory_space<vmem>>, %arg5: memref<9x96xf32, #tpu.memory_space<vmem>>, %arg6: memref<1x96xf32, #tpu.memory_space<vmem>>, %arg7: memref<1x96xf32, #tpu.memory_space<vmem>>, %arg8: memref<96x16xbf16, #tpu.memory_space<vmem>>, %arg9: memref<1x16xf32, #tpu.memory_space<vmem>>, %arg10: memref<1x16xf32, #tpu.memory_space<vmem>>, %arg11: memref<1x8x8x16xf32, #tpu.memory_space<vmem>>, %arg12: memref<10x10x96xf32, #tpu.memory_space<vmem>>) attributes {dimension_semantics = [#tpu.dimension_semantics<parallel>], iteration_bounds = array<i64: 2>, scalar_prefetch = 0 : i64, scratch_operands = 1 : i64, tpu.core_type = #tpu.core_type<tc>, window_params = [{transform_indices = @transform_0, window_bounds = array<i64: 1, 8, 8, 16>}, {pipeline_mode = #tpu.pipeline_mode<synchronous>, transform_indices = @transform_1, window_bounds = array<i64: 16, 96>}, {pipeline_mode = #tpu.pipeline_mode<synchronous>, transform_indices = @transform_2, window_bounds = array<i64: 1, 96>}, {pipeline_mode = #tpu.pipeline_mode<synchronous>, transform_indices = @transform_3, window_bounds = array<i64: 1, 96>}, {pipeline_mode = #tpu.pipeline_mode<synchronous>, transform_indices = @transform_4, window_bounds = array<i64: 9, 96>}, {pipeline_mode = #tpu.pipeline_mode<synchronous>, transform_indices = @transform_5, window_bounds = array<i64: 1, 96>}, {pipeline_mode = #tpu.pipeline_mode<synchronous>, transform_indices = @transform_6, window_bounds = array<i64: 1, 96>}, {pipeline_mode = #tpu.pipeline_mode<synchronous>, transform_indices = @transform_7, window_bounds = array<i64: 96, 16>}, {pipeline_mode = #tpu.pipeline_mode<synchronous>, transform_indices = @transform_8, window_bounds = array<i64: 1, 16>}, {pipeline_mode = #tpu.pipeline_mode<synchronous>, transform_indices = @transform_9, window_bounds = array<i64: 1, 16>}, {transform_indices = @transform_10, window_bounds = array<i64: 1, 8, 8, 16>}]} {
    %c0 = arith.constant 0 : index
    %c0_0 = arith.constant 0 : index
    %c0_1 = arith.constant 0 : index
    %c0_2 = arith.constant 0 : index
    %0 = vector.load %arg1[%c0, %c0_0, %c0_1, %c0_2] : memref<1x8x8x16xf32, #tpu.memory_space<vmem>>, vector<1x8x8x16xf32>
    %1 = vector.shape_cast %0 : vector<1x8x8x16xf32> to vector<8x8x16xf32>
    %2 = vector.shape_cast %1 : vector<8x8x16xf32> to vector<64x16xf32>
    %3 = arith.truncf %2 : vector<64x16xf32> to vector<64x16xbf16>
    %c0_3 = arith.constant 0 : index
    %c0_4 = arith.constant 0 : index
    %4 = vector.load %arg2[%c0_3, %c0_4] : memref<16x96xbf16, #tpu.memory_space<vmem>>, vector<16x96xbf16>
    %cst = arith.constant dense<0.000000e+00> : vector<64x96xf32>
    %5 = tpu.matmul %3, %4, %cst {dimension_numbers = #tpu.dot_dimension_numbers<[1], [0], [0], [1], [0, 0, 1, 1], [], []>} : vector<64x16xbf16>, vector<16x96xbf16>, vector<64x96xf32> -> vector<64x96xf32>
    %c0_5 = arith.constant 0 : index
    %c0_6 = arith.constant 0 : index
    %6 = vector.load %arg3[%c0_5, %c0_6] : memref<1x96xf32, #tpu.memory_space<vmem>>, vector<1x96xf32>
    %7 = vector.broadcast %6 : vector<1x96xf32> to vector<64x96xf32>
    %8 = arith.mulf %5, %7 : vector<64x96xf32>
    %c0_7 = arith.constant 0 : index
    %c0_8 = arith.constant 0 : index
    %9 = vector.load %arg4[%c0_7, %c0_8] : memref<1x96xf32, #tpu.memory_space<vmem>>, vector<1x96xf32>
    %10 = vector.broadcast %9 : vector<1x96xf32> to vector<64x96xf32>
    %11 = arith.addf %8, %10 : vector<64x96xf32>
    %cst_9 = arith.constant 0.000000e+00 : f32
    %cst_10 = arith.constant 6.000000e+00 : f32
    %12 = vector.broadcast %cst_9 : f32 to vector<64x96xf32>
    %13 = arith.maximumf %12, %11 : vector<64x96xf32>
    %14 = vector.broadcast %cst_10 : f32 to vector<64x96xf32>
    %15 = arith.minimumf %14, %13 : vector<64x96xf32>
    %cst_11 = arith.constant 0.000000e+00 : f32
    %16 = vector.broadcast %cst_11 : f32 to vector<10x10x96xf32>
    %c0_12 = arith.constant 0 : index
    %c0_13 = arith.constant 0 : index
    %c0_14 = arith.constant 0 : index
    %17 = vector.load %arg12[%c0_12, %c0_13, %c0_14] : memref<10x10x96xf32, #tpu.memory_space<vmem>>, vector<10x10x96xf32>
    tpu.vector_store %arg12[%c0_12, %c0_13, %c0_14], %16 {strides = array<i32>} : memref<10x10x96xf32, #tpu.memory_space<vmem>>, vector<10x10x96xf32>,
    %18 = vector.shape_cast %15 : vector<64x96xf32> to vector<8x8x96xf32>
    %c1 = arith.constant 1 : index
    %c1_15 = arith.constant 1 : index
    %c0_16 = arith.constant 0 : index
    %19 = vector.load %arg12[%c1, %c1_15, %c0_16] : memref<10x10x96xf32, #tpu.memory_space<vmem>>, vector<8x8x96xf32>
    tpu.vector_store %arg12[%c1, %c1_15, %c0_16], %18 {strides = array<i32>} : memref<10x10x96xf32, #tpu.memory_space<vmem>>, vector<8x8x96xf32>,
    %c0_17 = arith.constant 0 : index
    %c0_18 = arith.constant 0 : index
    %20 = vector.load %arg5[%c0_17, %c0_18] : memref<9x96xf32, #tpu.memory_space<vmem>>, vector<9x96xf32>
    %cst_19 = arith.constant 0.000000e+00 : f32
    %21 = vector.broadcast %cst_19 : f32 to vector<64x96xf32>
    %c0_20 = arith.constant 0 : index
    %c0_21 = arith.constant 0 : index
    %c0_22 = arith.constant 0 : index
    %22 = vector.load %arg12[%c0_20, %c0_21, %c0_22] : memref<10x10x96xf32, #tpu.memory_space<vmem>>, vector<8x8x96xf32>
    %23 = vector.shape_cast %22 : vector<8x8x96xf32> to vector<64x96xf32>
    %24 = vector.extract_strided_slice %20 {offsets = [0, 0], sizes = [1, 96], strides = [1, 1]} : vector<9x96xf32> to vector<1x96xf32>
    %25 = vector.broadcast %24 : vector<1x96xf32> to vector<64x96xf32>
    %26 = arith.mulf %23, %25 : vector<64x96xf32>
    %27 = arith.addf %21, %26 : vector<64x96xf32>
    %c0_23 = arith.constant 0 : index
    %c1_24 = arith.constant 1 : index
    %c0_25 = arith.constant 0 : index
    %28 = vector.load %arg12[%c0_23, %c1_24, %c0_25] : memref<10x10x96xf32, #tpu.memory_space<vmem>>, vector<8x8x96xf32>
    %29 = vector.shape_cast %28 : vector<8x8x96xf32> to vector<64x96xf32>
    %30 = vector.extract_strided_slice %20 {offsets = [1, 0], sizes = [1, 96], strides = [1, 1]} : vector<9x96xf32> to vector<1x96xf32>
    %31 = vector.broadcast %30 : vector<1x96xf32> to vector<64x96xf32>
    %32 = arith.mulf %29, %31 : vector<64x96xf32>
    %33 = arith.addf %27, %32 : vector<64x96xf32>
    %c0_26 = arith.constant 0 : index
    %c2 = arith.constant 2 : index
    %c0_27 = arith.constant 0 : index
    %34 = vector.load %arg12[%c0_26, %c2, %c0_27] : memref<10x10x96xf32, #tpu.memory_space<vmem>>, vector<8x8x96xf32>
    %35 = vector.shape_cast %34 : vector<8x8x96xf32> to vector<64x96xf32>
    %36 = vector.extract_strided_slice %20 {offsets = [2, 0], sizes = [1, 96], strides = [1, 1]} : vector<9x96xf32> to vector<1x96xf32>
    %37 = vector.broadcast %36 : vector<1x96xf32> to vector<64x96xf32>
    %38 = arith.mulf %35, %37 : vector<64x96xf32>
    %39 = arith.addf %33, %38 : vector<64x96xf32>
    %c1_28 = arith.constant 1 : index
    %c0_29 = arith.constant 0 : index
    %c0_30 = arith.constant 0 : index
    %40 = vector.load %arg12[%c1_28, %c0_29, %c0_30] : memref<10x10x96xf32, #tpu.memory_space<vmem>>, vector<8x8x96xf32>
    %41 = vector.shape_cast %40 : vector<8x8x96xf32> to vector<64x96xf32>
    %42 = vector.extract_strided_slice %20 {offsets = [3, 0], sizes = [1, 96], strides = [1, 1]} : vector<9x96xf32> to vector<1x96xf32>
    %43 = vector.broadcast %42 : vector<1x96xf32> to vector<64x96xf32>
    %44 = arith.mulf %41, %43 : vector<64x96xf32>
    %45 = arith.addf %39, %44 : vector<64x96xf32>
    %c1_31 = arith.constant 1 : index
    %c1_32 = arith.constant 1 : index
    %c0_33 = arith.constant 0 : index
    %46 = vector.load %arg12[%c1_31, %c1_32, %c0_33] : memref<10x10x96xf32, #tpu.memory_space<vmem>>, vector<8x8x96xf32>
    %47 = vector.shape_cast %46 : vector<8x8x96xf32> to vector<64x96xf32>
    %48 = vector.extract_strided_slice %20 {offsets = [4, 0], sizes = [1, 96], strides = [1, 1]} : vector<9x96xf32> to vector<1x96xf32>
    %49 = vector.broadcast %48 : vector<1x96xf32> to vector<64x96xf32>
    %50 = arith.mulf %47, %49 : vector<64x96xf32>
    %51 = arith.addf %45, %50 : vector<64x96xf32>
    %c1_34 = arith.constant 1 : index
    %c2_35 = arith.constant 2 : index
    %c0_36 = arith.constant 0 : index
    %52 = vector.load %arg12[%c1_34, %c2_35, %c0_36] : memref<10x10x96xf32, #tpu.memory_space<vmem>>, vector<8x8x96xf32>
    %53 = vector.shape_cast %52 : vector<8x8x96xf32> to vector<64x96xf32>
    %54 = vector.extract_strided_slice %20 {offsets = [5, 0], sizes = [1, 96], strides = [1, 1]} : vector<9x96xf32> to vector<1x96xf32>
    %55 = vector.broadcast %54 : vector<1x96xf32> to vector<64x96xf32>
    %56 = arith.mulf %53, %55 : vector<64x96xf32>
    %57 = arith.addf %51, %56 : vector<64x96xf32>
    %c2_37 = arith.constant 2 : index
    %c0_38 = arith.constant 0 : index
    %c0_39 = arith.constant 0 : index
    %58 = vector.load %arg12[%c2_37, %c0_38, %c0_39] : memref<10x10x96xf32, #tpu.memory_space<vmem>>, vector<8x8x96xf32>
    %59 = vector.shape_cast %58 : vector<8x8x96xf32> to vector<64x96xf32>
    %60 = vector.extract_strided_slice %20 {offsets = [6, 0], sizes = [1, 96], strides = [1, 1]} : vector<9x96xf32> to vector<1x96xf32>
    %61 = vector.broadcast %60 : vector<1x96xf32> to vector<64x96xf32>
    %62 = arith.mulf %59, %61 : vector<64x96xf32>
    %63 = arith.addf %57, %62 : vector<64x96xf32>
    %c2_40 = arith.constant 2 : index
    %c1_41 = arith.constant 1 : index
    %c0_42 = arith.constant 0 : index
    %64 = vector.load %arg12[%c2_40, %c1_41, %c0_42] : memref<10x10x96xf32, #tpu.memory_space<vmem>>, vector<8x8x96xf32>
    %65 = vector.shape_cast %64 : vector<8x8x96xf32> to vector<64x96xf32>
    %66 = vector.extract_strided_slice %20 {offsets = [7, 0], sizes = [1, 96], strides = [1, 1]} : vector<9x96xf32> to vector<1x96xf32>
    %67 = vector.broadcast %66 : vector<1x96xf32> to vector<64x96xf32>
    %68 = arith.mulf %65, %67 : vector<64x96xf32>
    %69 = arith.addf %63, %68 : vector<64x96xf32>
    %c2_43 = arith.constant 2 : index
    %c2_44 = arith.constant 2 : index
    %c0_45 = arith.constant 0 : index
    %70 = vector.load %arg12[%c2_43, %c2_44, %c0_45] : memref<10x10x96xf32, #tpu.memory_space<vmem>>, vector<8x8x96xf32>
    %71 = vector.shape_cast %70 : vector<8x8x96xf32> to vector<64x96xf32>
    %72 = vector.extract_strided_slice %20 {offsets = [8, 0], sizes = [1, 96], strides = [1, 1]} : vector<9x96xf32> to vector<1x96xf32>
    %73 = vector.broadcast %72 : vector<1x96xf32> to vector<64x96xf32>
    %74 = arith.mulf %71, %73 : vector<64x96xf32>
    %75 = arith.addf %69, %74 : vector<64x96xf32>
    %c0_46 = arith.constant 0 : index
    %c0_47 = arith.constant 0 : index
    %76 = vector.load %arg6[%c0_46, %c0_47] : memref<1x96xf32, #tpu.memory_space<vmem>>, vector<1x96xf32>
    %77 = vector.broadcast %76 : vector<1x96xf32> to vector<64x96xf32>
    %78 = arith.mulf %75, %77 : vector<64x96xf32>
    %c0_48 = arith.constant 0 : index
    %c0_49 = arith.constant 0 : index
    %79 = vector.load %arg7[%c0_48, %c0_49] : memref<1x96xf32, #tpu.memory_space<vmem>>, vector<1x96xf32>
    %80 = vector.broadcast %79 : vector<1x96xf32> to vector<64x96xf32>
    %81 = arith.addf %78, %80 : vector<64x96xf32>
    %cst_50 = arith.constant 0.000000e+00 : f32
    %cst_51 = arith.constant 6.000000e+00 : f32
    %82 = vector.broadcast %cst_50 : f32 to vector<64x96xf32>
    %83 = arith.maximumf %82, %81 : vector<64x96xf32>
    %84 = vector.broadcast %cst_51 : f32 to vector<64x96xf32>
    %85 = arith.minimumf %84, %83 : vector<64x96xf32>
    %86 = arith.truncf %85 : vector<64x96xf32> to vector<64x96xbf16>
    %c0_52 = arith.constant 0 : index
    %c0_53 = arith.constant 0 : index
    %87 = vector.load %arg8[%c0_52, %c0_53] : memref<96x16xbf16, #tpu.memory_space<vmem>>, vector<96x16xbf16>
    %cst_54 = arith.constant dense<0.000000e+00> : vector<64x16xf32>
    %88 = tpu.matmul %86, %87, %cst_54 {dimension_numbers = #tpu.dot_dimension_numbers<[1], [0], [0], [1], [0, 0, 1, 1], [], []>} : vector<64x96xbf16>, vector<96x16xbf16>, vector<64x16xf32> -> vector<64x16xf32>
    %c0_55 = arith.constant 0 : index
    %c0_56 = arith.constant 0 : index
    %89 = vector.load %arg9[%c0_55, %c0_56] : memref<1x16xf32, #tpu.memory_space<vmem>>, vector<1x16xf32>
    %90 = vector.broadcast %89 : vector<1x16xf32> to vector<64x16xf32>
    %91 = arith.mulf %88, %90 : vector<64x16xf32>
    %c0_57 = arith.constant 0 : index
    %c0_58 = arith.constant 0 : index
    %92 = vector.load %arg10[%c0_57, %c0_58] : memref<1x16xf32, #tpu.memory_space<vmem>>, vector<1x16xf32>
    %93 = vector.broadcast %92 : vector<1x16xf32> to vector<64x16xf32>
    %94 = arith.addf %91, %93 : vector<64x16xf32>
    %95 = arith.addf %94, %2 : vector<64x16xf32>
    %96 = vector.shape_cast %95 : vector<64x16xf32> to vector<8x8x16xf32>
    %c0_59 = arith.constant 0 : index
    %c0_60 = arith.constant 0 : index
    %c0_61 = arith.constant 0 : index
    %c0_62 = arith.constant 0 : index
    %97 = vector.load %arg11[%c0_59, %c0_60, %c0_61, %c0_62] : memref<1x8x8x16xf32, #tpu.memory_space<vmem>>, vector<1x8x8x16xf32>
    %98 = vector.shape_cast %97 : vector<1x8x8x16xf32> to vector<8x8x16xf32>
    %99 = vector.shape_cast %96 : vector<8x8x16xf32> to vector<1x8x8x16xf32>
    tpu.vector_store %arg11[%c0_59, %c0_60, %c0_61, %c0_62], %99 {strides = array<i32>} : memref<1x8x8x16xf32, #tpu.memory_space<vmem>>, vector<1x8x8x16xf32>,
    return
  }
  func.func @transform_0(%arg0: i32) -> (i32, i32, i32, i32) {
    %c0_i32 = arith.constant 0 : i32
    %c0_i32_0 = arith.constant 0 : i32
    %c0_i32_1 = arith.constant 0 : i32
    %c0_i32_2 = arith.constant 0 : i32
    return %arg0, %c0_i32, %c0_i32_0, %c0_i32_1 : i32, i32, i32, i32
  }
  func.func @transform_1(%arg0: i32) -> (i32, i32) {
    %c0_i32 = arith.constant 0 : i32
    %c0_i32_0 = arith.constant 0 : i32
    %c0_i32_1 = arith.constant 0 : i32
    return %c0_i32, %c0_i32_0 : i32, i32
  }
  func.func @transform_2(%arg0: i32) -> (i32, i32) {
    %c0_i32 = arith.constant 0 : i32
    %c0_i32_0 = arith.constant 0 : i32
    %c0_i32_1 = arith.constant 0 : i32
    return %c0_i32, %c0_i32_0 : i32, i32
  }
  func.func @transform_3(%arg0: i32) -> (i32, i32) {
    %c0_i32 = arith.constant 0 : i32
    %c0_i32_0 = arith.constant 0 : i32
    %c0_i32_1 = arith.constant 0 : i32
    return %c0_i32, %c0_i32_0 : i32, i32
  }
  func.func @transform_4(%arg0: i32) -> (i32, i32) {
    %c0_i32 = arith.constant 0 : i32
    %c0_i32_0 = arith.constant 0 : i32
    %c0_i32_1 = arith.constant 0 : i32
    return %c0_i32, %c0_i32_0 : i32, i32
  }
  func.func @transform_5(%arg0: i32) -> (i32, i32) {
    %c0_i32 = arith.constant 0 : i32
    %c0_i32_0 = arith.constant 0 : i32
    %c0_i32_1 = arith.constant 0 : i32
    return %c0_i32, %c0_i32_0 : i32, i32
  }
  func.func @transform_6(%arg0: i32) -> (i32, i32) {
    %c0_i32 = arith.constant 0 : i32
    %c0_i32_0 = arith.constant 0 : i32
    %c0_i32_1 = arith.constant 0 : i32
    return %c0_i32, %c0_i32_0 : i32, i32
  }
  func.func @transform_7(%arg0: i32) -> (i32, i32) {
    %c0_i32 = arith.constant 0 : i32
    %c0_i32_0 = arith.constant 0 : i32
    %c0_i32_1 = arith.constant 0 : i32
    return %c0_i32, %c0_i32_0 : i32, i32
  }
  func.func @transform_8(%arg0: i32) -> (i32, i32) {
    %c0_i32 = arith.constant 0 : i32
    %c0_i32_0 = arith.constant 0 : i32
    %c0_i32_1 = arith.constant 0 : i32
    return %c0_i32, %c0_i32_0 : i32, i32
  }
  func.func @transform_9(%arg0: i32) -> (i32, i32) {
    %c0_i32 = arith.constant 0 : i32
    %c0_i32_0 = arith.constant 0 : i32
    %c0_i32_1 = arith.constant 0 : i32
    return %c0_i32, %c0_i32_0 : i32, i32
  }
  func.func @transform_10(%arg0: i32) -> (i32, i32, i32, i32) {
    %c0_i32 = arith.constant 0 : i32
    %c0_i32_0 = arith.constant 0 : i32
    %c0_i32_1 = arith.constant 0 : i32
    %c0_i32_2 = arith.constant 0 : i32
    return %arg0, %c0_i32, %c0_i32_0, %c0_i32_1 : i32, i32, i32, i32
  }
}

module attributes {stable_mosaic.version = 11 : i64} {
  func.func @_head_kernel(%arg0: i32, %arg1: memref<1x8x8x16xf32, #tpu.memory_space<vmem>>, %arg2: memref<16x32xbf16, #tpu.memory_space<vmem>>, %arg3: memref<1x32xf32, #tpu.memory_space<vmem>>, %arg4: memref<1x32xf32, #tpu.memory_space<vmem>>, %arg5: memref<1x8x8x32xf32, #tpu.memory_space<vmem>>) attributes {dimension_semantics = [#tpu.dimension_semantics<parallel>], iteration_bounds = array<i64: 2>, scalar_prefetch = 0 : i64, scratch_operands = 0 : i64, tpu.core_type = #tpu.core_type<tc>, window_params = [{transform_indices = @transform_0, window_bounds = array<i64: 1, 8, 8, 16>}, {pipeline_mode = #tpu.pipeline_mode<synchronous>, transform_indices = @transform_1, window_bounds = array<i64: 16, 32>}, {pipeline_mode = #tpu.pipeline_mode<synchronous>, transform_indices = @transform_2, window_bounds = array<i64: 1, 32>}, {pipeline_mode = #tpu.pipeline_mode<synchronous>, transform_indices = @transform_3, window_bounds = array<i64: 1, 32>}, {transform_indices = @transform_4, window_bounds = array<i64: 1, 8, 8, 32>}]} {
    %c0 = arith.constant 0 : index
    %c0_0 = arith.constant 0 : index
    %c0_1 = arith.constant 0 : index
    %c0_2 = arith.constant 0 : index
    %0 = vector.load %arg1[%c0, %c0_0, %c0_1, %c0_2] : memref<1x8x8x16xf32, #tpu.memory_space<vmem>>, vector<1x8x8x16xf32>
    %1 = vector.shape_cast %0 : vector<1x8x8x16xf32> to vector<8x8x16xf32>
    %2 = vector.shape_cast %1 : vector<8x8x16xf32> to vector<64x16xf32>
    %3 = arith.truncf %2 : vector<64x16xf32> to vector<64x16xbf16>
    %c0_3 = arith.constant 0 : index
    %c0_4 = arith.constant 0 : index
    %4 = vector.load %arg2[%c0_3, %c0_4] : memref<16x32xbf16, #tpu.memory_space<vmem>>, vector<16x32xbf16>
    %cst = arith.constant dense<0.000000e+00> : vector<64x32xf32>
    %5 = tpu.matmul %3, %4, %cst {dimension_numbers = #tpu.dot_dimension_numbers<[1], [0], [0], [1], [0, 0, 1, 1], [], []>} : vector<64x16xbf16>, vector<16x32xbf16>, vector<64x32xf32> -> vector<64x32xf32>
    %c0_5 = arith.constant 0 : index
    %c0_6 = arith.constant 0 : index
    %6 = vector.load %arg3[%c0_5, %c0_6] : memref<1x32xf32, #tpu.memory_space<vmem>>, vector<1x32xf32>
    %7 = vector.broadcast %6 : vector<1x32xf32> to vector<64x32xf32>
    %8 = arith.mulf %5, %7 : vector<64x32xf32>
    %c0_7 = arith.constant 0 : index
    %c0_8 = arith.constant 0 : index
    %9 = vector.load %arg4[%c0_7, %c0_8] : memref<1x32xf32, #tpu.memory_space<vmem>>, vector<1x32xf32>
    %10 = vector.broadcast %9 : vector<1x32xf32> to vector<64x32xf32>
    %11 = arith.addf %8, %10 : vector<64x32xf32>
    %cst_9 = arith.constant 0.000000e+00 : f32
    %cst_10 = arith.constant 6.000000e+00 : f32
    %12 = vector.broadcast %cst_9 : f32 to vector<64x32xf32>
    %13 = arith.maximumf %12, %11 : vector<64x32xf32>
    %14 = vector.broadcast %cst_10 : f32 to vector<64x32xf32>
    %15 = arith.minimumf %14, %13 : vector<64x32xf32>
    %16 = vector.shape_cast %15 : vector<64x32xf32> to vector<8x8x32xf32>
    %c0_11 = arith.constant 0 : index
    %c0_12 = arith.constant 0 : index
    %c0_13 = arith.constant 0 : index
    %c0_14 = arith.constant 0 : index
    %17 = vector.load %arg5[%c0_11, %c0_12, %c0_13, %c0_14] : memref<1x8x8x32xf32, #tpu.memory_space<vmem>>, vector<1x8x8x32xf32>
    %18 = vector.shape_cast %17 : vector<1x8x8x32xf32> to vector<8x8x32xf32>
    %19 = vector.shape_cast %16 : vector<8x8x32xf32> to vector<1x8x8x32xf32>
    tpu.vector_store %arg5[%c0_11, %c0_12, %c0_13, %c0_14], %19 {strides = array<i32>} : memref<1x8x8x32xf32, #tpu.memory_space<vmem>>, vector<1x8x8x32xf32>,
    return
  }
  func.func @transform_0(%arg0: i32) -> (i32, i32, i32, i32) {
    %c0_i32 = arith.constant 0 : i32
    %c0_i32_0 = arith.constant 0 : i32
    %c0_i32_1 = arith.constant 0 : i32
    %c0_i32_2 = arith.constant 0 : i32
    return %arg0, %c0_i32, %c0_i32_0, %c0_i32_1 : i32, i32, i32, i32
  }
  func.func @transform_1(%arg0: i32) -> (i32, i32) {
    %c0_i32 = arith.constant 0 : i32
    %c0_i32_0 = arith.constant 0 : i32
    %c0_i32_1 = arith.constant 0 : i32
    return %c0_i32, %c0_i32_0 : i32, i32
  }
  func.func @transform_2(%arg0: i32) -> (i32, i32) {
    %c0_i32 = arith.constant 0 : i32
    %c0_i32_0 = arith.constant 0 : i32
    %c0_i32_1 = arith.constant 0 : i32
    return %c0_i32, %c0_i32_0 : i32, i32
  }
  func.func @transform_3(%arg0: i32) -> (i32, i32) {
    %c0_i32 = arith.constant 0 : i32
    %c0_i32_0 = arith.constant 0 : i32
    %c0_i32_1 = arith.constant 0 : i32
    return %c0_i32, %c0_i32_0 : i32, i32
  }
  func.func @transform_4(%arg0: i32) -> (i32, i32, i32, i32) {
    %c0_i32 = arith.constant 0 : i32
    %c0_i32_0 = arith.constant 0 : i32
    %c0_i32_1 = arith.constant 0 : i32
    %c0_i32_2 = arith.constant 0 : i32
    return %arg0, %c0_i32, %c0_i32_0, %c0_i32_1 : i32, i32, i32, i32
  }
}

</mosaic_0001>

<llo_original>
// kernel: mobilenet_backbone_forward.7
$region0: #{mobilenet_backbone_forward.7}
  #allocation0 [shape = 'u32[]', space=smem, size = 0x4, offset = 0x4, fixed_abs, tag = 'smem constant byte address 0x4 - core index']
  #allocation1 [shape = 'u32[144,128]{1,0:T(1,128)}', space=vmem, size = 0x12000, scoped, tag = 'internal scratch']
  #allocation2 [shape = 'f32[18,18,96]{2,1,0:T(8,128)}', space=vmem, size = 0x36000, scoped, tag = 'scratch operand']
  %s0 = inlined_call_operand.vmem [shape: f32[2,16,16,16], index: 0, kind: input, shape index: {}]
  %s1 = inlined_call_operand.vmem [shape: bf16[16,96], index: 1, kind: input, shape index: {}]
  %s2 = inlined_call_operand.vmem [shape: f32[1,96], index: 2, kind: input, shape index: {}]
  %s3 = inlined_call_operand.vmem [shape: f32[1,96], index: 3, kind: input, shape index: {}]
  %s4 = inlined_call_operand.vmem [shape: f32[9,96], index: 4, kind: input, shape index: {}]
  %s5 = inlined_call_operand.vmem [shape: f32[1,96], index: 5, kind: input, shape index: {}]
  %s6 = inlined_call_operand.vmem [shape: f32[1,96], index: 6, kind: input, shape index: {}]
  %s7 = inlined_call_operand.vmem [shape: bf16[96,16], index: 7, kind: input, shape index: {}]
  %s8 = inlined_call_operand.vmem [shape: f32[1,16], index: 8, kind: input, shape index: {}]
  %s9 = inlined_call_operand.vmem [shape: f32[1,16], index: 9, kind: input, shape index: {}]
  %s10 = inlined_call_operand.vmem [shape: f32[2,8,8,16], index: 10, kind: output, shape index: {}]
  %s11 = sld [smem:[#allocation0]]
  $region73: #{mobilenet_backbone_forward.7} parent=0
    _
  %s13 = ssub.s32 1, %s11
  %s14 = scalar_select 0, %s13, %s11
  loop: start=0, step=1, limit=4
  $region2: #{mobilenet_backbone_forward.7} parent=0 // loop_pre_header
    _
  $region3: #{mobilenet_backbone_forward.7} parent=0 // loop_header
    %s16 = sphi 0, %s20
    %p17 = scmp.ge.s32.totalorder %s16, 4
    %s26 = sphi 0, %s28
    %s29 = sphi 0, %s26
    %s30 = sphi 0, %s29
    %s46 = sphi 0, %s30
    %s50 = sphi 0, %s50
    %s52 = sphi 0, %s50
    %s53 = sphi 0, %s52
    %s67 = sphi 0, %s53
    %s71 = sphi 0, %s71
    %s73 = sphi 0, %s71
    %s74 = sphi 0, %s73
    %s88 = sphi 0, %s74
    %s92 = sphi 0, %s92
    %s94 = sphi 0, %s92
    %s95 = sphi 0, %s94
    %s109 = sphi 0, %s95
    %s113 = sphi 0, %s113
    %s115 = sphi 0, %s113
    %s116 = sphi 0, %s115
    %s130 = sphi 0, %s116
    %s134 = sphi 0, %s134
    %s136 = sphi 0, %s134
    %s137 = sphi 0, %s136
    %s151 = sphi 0, %s137
    %s155 = sphi 0, %s155
    %s157 = sphi 0, %s155
    %s158 = sphi 0, %s157
    %s172 = sphi 0, %s158
    %s176 = sphi 0, %s176
    %s178 = sphi 0, %s176
    %s179 = sphi 0, %s178
    %s193 = sphi 0, %s179
    %s197 = sphi 0, %s197
    %s199 = sphi 0, %s197
    %s200 = sphi 0, %s199
    %s214 = sphi 0, %s200
    %s218 = sphi 0, %s218
    %s220 = sphi 0, %s218
    %s221 = sphi 0, %s220
    %s235 = sphi 0, %s221
    %s241 = sphi 0, %s243
    %s244 = sphi 0, %s241
    %s245 = sphi 0, %s244
    %s261 = sphi 0, %s245
  $region4: #{mobilenet_backbone_forward.7} parent=0 // loop_header_branch
    %19 = sbr.rel (%p17) target = $region8
  $region5: #{mobilenet_backbone_forward.7} parent=0 // loop_body
    %s21 = ssub.s32 %s16, 1
    %s22 = ssub.s32 %s16, 2
    %s23 = sadd.s32 %s16, 1
    %s24 = ssub.s32 %s16, %s23
    %p25 = scmp.eq.s32.totalorder %s24, 0
    %s27 = sadd.s32 %s26, 1
    %s28 = scalar_select %p25, %s26, %s27
    %p31 = pneg %p25
    %p32 = scmp.eq.s32.totalorder %s16, 1
    %p33 = por %p31, %p32
    %p34 = scmp.ne.s32.totalorder %s26, %s29
    %p35 = scmp.eq.s32.totalorder %s16, 0
    %p36 = por %p34, %p35
    %p37 = scmp.ne.s32.totalorder %s26, %s29
    %p38 = scmp.eq.s32.totalorder %s21, 1
    %p39 = por %p37, %p38
    %p40 = scmp.ne.s32.totalorder %s29, %s30
    %p41 = scmp.eq.s32.totalorder %s21, 0
    %p42 = por %p40, %p41
    %p43 = scmp.ne.s32.totalorder %s29, %s30
    %p44 = scmp.eq.s32.totalorder %s22, 1
    %p45 = por %p43, %p44
    %p47 = scmp.ne.s32.totalorder %s30, %s46
    %p48 = scmp.eq.s32.totalorder %s22, 0
    %p49 = por %p47, %p48
    %s51 = sadd.s32 %s50, 1
    %p54 = scmp.eq.s32.totalorder %s16, 1
    %p55 = scmp.ne.s32.totalorder %s50, %s52
    %p56 = scmp.eq.s32.totalorder %s16, 0
    %p57 = por %p55, %p56
    %p58 = scmp.ne.s32.totalorder %s50, %s52
    %p59 = scmp.eq.s32.totalorder %s21, 1
    %p60 = por %p58, %p59
    %p61 = scmp.ne.s32.totalorder %s52, %s53
    %p62 = scmp.eq.s32.totalorder %s21, 0
    %p63 = por %p61, %p62
    %p64 = scmp.ne.s32.totalorder %s52, %s53
    %p65 = scmp.eq.s32.totalorder %s22, 1
    %p66 = por %p64, %p65
    %p68 = scmp.ne.s32.totalorder %s53, %s67
    %p69 = scmp.eq.s32.totalorder %s22, 0
    %p70 = por %p68, %p69
    %s72 = sadd.s32 %s71, 1
    %p75 = scmp.eq.s32.totalorder %s16, 1
    %p76 = scmp.ne.s32.totalorder %s71, %s73
    %p77 = scmp.eq.s32.totalorder %s16, 0
    %p78 = por %p76, %p77
    %p79 = scmp.ne.s32.totalorder %s71, %s73
    %p80 = scmp.eq.s32.totalorder %s21, 1
    %p81 = por %p79, %p80
    %p82 = scmp.ne.s32.totalorder %s73, %s74
    %p83 = scmp.eq.s32.totalorder %s21, 0
    %p84 = por %p82, %p83
    %p85 = scmp.ne.s32.totalorder %s73, %s74
    %p86 = scmp.eq.s32.totalorder %s22, 1
    %p87 = por %p85, %p86
    %p89 = scmp.ne.s32.totalorder %s74, %s88
    %p90 = scmp.eq.s32.totalorder %s22, 0
    %p91 = por %p89, %p90
    %s93 = sadd.s32 %s92, 1
    %p96 = scmp.eq.s32.totalorder %s16, 1
    %p97 = scmp.ne.s32.totalorder %s92, %s94
    %p98 = scmp.eq.s32.totalorder %s16, 0
    %p99 = por %p97, %p98
    %p100 = scmp.ne.s32.totalorder %s92, %s94
    %p101 = scmp.eq.s32.totalorder %s21, 1
    %p102 = por %p100, %p101
    %p103 = scmp.ne.s32.totalorder %s94, %s95
    %p104 = scmp.eq.s32.totalorder %s21, 0
    %p105 = por %p103, %p104
    %p106 = scmp.ne.s32.totalorder %s94, %s95
    %p107 = scmp.eq.s32.totalorder %s22, 1
    %p108 = por %p106, %p107
    %p110 = scmp.ne.s32.totalorder %s95, %s109
    %p111 = scmp.eq.s32.totalorder %s22, 0
    %p112 = por %p110, %p111
    %s114 = sadd.s32 %s113, 1
    %p117 = scmp.eq.s32.totalorder %s16, 1
    %p118 = scmp.ne.s32.totalorder %s113, %s115
    %p119 = scmp.eq.s32.totalorder %s16, 0
    %p120 = por %p118, %p119
    %p121 = scmp.ne.s32.totalorder %s113, %s115
    %p122 = scmp.eq.s32.totalorder %s21, 1
    %p123 = por %p121, %p122
    %p124 = scmp.ne.s32.totalorder %s115, %s116
    %p125 = scmp.eq.s32.totalorder %s21, 0
    %p126 = por %p124, %p125
    %p127 = scmp.ne.s32.totalorder %s115, %s116
    %p128 = scmp.eq.s32.totalorder %s22, 1
    %p129 = por %p127, %p128
    %p131 = scmp.ne.s32.totalorder %s116, %s130
    %p132 = scmp.eq.s32.totalorder %s22, 0
    %p133 = por %p131, %p132
    %s135 = sadd.s32 %s134, 1
    %p138 = scmp.eq.s32.totalorder %s16, 1
    %p139 = scmp.ne.s32.totalorder %s134, %s136
    %p140 = scmp.eq.s32.totalorder %s16, 0
    %p141 = por %p139, %p140
    %p142 = scmp.ne.s32.totalorder %s134, %s136
    %p143 = scmp.eq.s32.totalorder %s21, 1
    %p144 = por %p142, %p143
    %p145 = scmp.ne.s32.totalorder %s136, %s137
    %p146 = scmp.eq.s32.totalorder %s21, 0
    %p147 = por %p145, %p146
    %p148 = scmp.ne.s32.totalorder %s136, %s137
    %p149 = scmp.eq.s32.totalorder %s22, 1
    %p150 = por %p148, %p149
    %p152 = scmp.ne.s32.totalorder %s137, %s151
    %p153 = scmp.eq.s32.totalorder %s22, 0
    %p154 = por %p152, %p153
    %s156 = sadd.s32 %s155, 1
    %p159 = scmp.eq.s32.totalorder %s16, 1
    %p160 = scmp.ne.s32.totalorder %s155, %s157
    %p161 = scmp.eq.s32.totalorder %s16, 0
    %p162 = por %p160, %p161
    %p163 = scmp.ne.s32.totalorder %s155, %s157
    %p164 = scmp.eq.s32.totalorder %s21, 1
    %p165 = por %p163, %p164
    %p166 = scmp.ne.s32.totalorder %s157, %s158
    %p167 = scmp.eq.s32.totalorder %s21, 0
    %p168 = por %p166, %p167
    %p169 = scmp.ne.s32.totalorder %s157, %s158
    %p170 = scmp.eq.s32.totalorder %s22, 1
    %p171 = por %p169, %p170
    %p173 = scmp.ne.s32.totalorder %s158, %s172
    %p174 = scmp.eq.s32.totalorder %s22, 0
    %p175 = por %p173, %p174
    %s177 = sadd.s32 %s176, 1
    %p180 = scmp.eq.s32.totalorder %s16, 1
    %p181 = scmp.ne.s32.totalorder %s176, %s178
    %p182 = scmp.eq.s32.totalorder %s16, 0
    %p183 = por %p181, %p182
    %p184 = scmp.ne.s32.totalorder %s176, %s178
    %p185 = scmp.eq.s32.totalorder %s21, 1
    %p186 = por %p184, %p185
    %p187 = scmp.ne.s32.totalorder %s178, %s179
    %p188 = scmp.eq.s32.totalorder %s21, 0
    %p189 = por %p187, %p188
    %p190 = scmp.ne.s32.totalorder %s178, %s179
    %p191 = scmp.eq.s32.totalorder %s22, 1
    %p192 = por %p190, %p191
    %p194 = scmp.ne.s32.totalorder %s179, %s193
    %p195 = scmp.eq.s32.totalorder %s22, 0
    %p196 = por %p194, %p195
    %s198 = sadd.s32 %s197, 1
    %p201 = scmp.eq.s32.totalorder %s16, 1
    %p202 = scmp.ne.s32.totalorder %s197, %s199
    %p203 = scmp.eq.s32.totalorder %s16, 0
    %p204 = por %p202, %p203
    %p205 = scmp.ne.s32.totalorder %s197, %s199
    %p206 = scmp.eq.s32.totalorder %s21, 1
    %p207 = por %p205, %p206
    %p208 = scmp.ne.s32.totalorder %s199, %s200
    %p209 = scmp.eq.s32.totalorder %s21, 0
    %p210 = por %p208, %p209
    %p211 = scmp.ne.s32.totalorder %s199, %s200
    %p212 = scmp.eq.s32.totalorder %s22, 1
    %p213 = por %p211, %p212
    %p215 = scmp.ne.s32.totalorder %s200, %s214
    %p216 = scmp.eq.s32.totalorder %s22, 0
    %p217 = por %p215, %p216
    %s219 = sadd.s32 %s218, 1
    %p222 = scmp.eq.s32.totalorder %s16, 1
    %p223 = scmp.ne.s32.totalorder %s218, %s220
    %p224 = scmp.eq.s32.totalorder %s16, 0
    %p225 = por %p223, %p224
    %p226 = scmp.ne.s32.totalorder %s218, %s220
    %p227 = scmp.eq.s32.totalorder %s21, 1
    %p228 = por %p226, %p227
    %p229 = scmp.ne.s32.totalorder %s220, %s221
    %p230 = scmp.eq.s32.totalorder %s21, 0
    %p231 = por %p229, %p230
    %p232 = scmp.ne.s32.totalorder %s220, %s221
    %p233 = scmp.eq.s32.totalorder %s22, 1
    %p234 = por %p232, %p233
    %p236 = scmp.ne.s32.totalorder %s221, %s235
    %p237 = scmp.eq.s32.totalorder %s22, 0
    %p238 = por %p236, %p237
    %s239 = ssub.s32 %s16, %s23
    %p240 = scmp.eq.s32.totalorder %s239, 0
    %s242 = sadd.s32 %s241, 1
    %s243 = scalar_select %p240, %s241, %s242
    %p246 = pneg %p240
    %p247 = scmp.eq.s32.totalorder %s16, 1
    %p248 = por %p246, %p247
    %p249 = scmp.ne.s32.totalorder %s241, %s244
    %p250 = scmp.eq.s32.totalorder %s16, 0
    %p251 = por %p249, %p250
    %p252 = scmp.ne.s32.totalorder %s241, %s244
    %p253 = scmp.eq.s32.totalorder %s21, 1
    %p254 = por %p252, %p253
    %p255 = scmp.ne.s32.totalorder %s244, %s245
    %p256 = scmp.eq.s32.totalorder %s21, 0
    %p257 = por %p255, %p256
    %p258 = scmp.ne.s32.totalorder %s244, %s245
    %p259 = scmp.eq.s32.totalorder %s22, 1
    %p260 = por %p258, %p259
    %p262 = scmp.ne.s32.totalorder %s245, %s261
    %p263 = scmp.eq.s32.totalorder %s22, 0
    %p264 = por %p262, %p263
    %p265 = scmp.le.s32.totalorder 1, %s16
    %p266 = scmp.lt.s32.totalorder %s16, 3
    %p267 = pnand %p265, %p266
    %p268 = pneg %p267
    // Predicated region
    $region9: #{mobilenet_backbone_forward.7} parent=5 // pred_check
      _
    $region10: #{mobilenet_backbone_forward.7} parent=5 // pred_check_branch
      %270 = sbr.rel (%p267) target = $region12
    $region11: #{mobilenet_backbone_forward.7} parent=5 // pred_region
      %s271 = ssub.s32 %s16, 1
      // Predicated region
      $region13: #{mobilenet_backbone_forward.7} parent=11 // pred_check
        %p272 = pneg %p63
      $region14: #{mobilenet_backbone_forward.7} parent=11 // pred_check_branch
        %274 = sbr.rel (%p272) target = $region16
      $region15: #{mobilenet_backbone_forward.7} parent=11 // pred_region
        _
      $region16: #{mobilenet_backbone_forward.7} parent=11 // pred_fallthru
        _
      // Predicated region
      $region17: #{mobilenet_backbone_forward.7} parent=11 // pred_check
        %p275 = pneg %p84
      $region18: #{mobilenet_backbone_forward.7} parent=11 // pred_check_branch
        %277 = sbr.rel (%p275) target = $region20
      $region19: #{mobilenet_backbone_forward.7} parent=11 // pred_region
        _
      $region20: #{mobilenet_backbone_forward.7} parent=11 // pred_fallthru
        _
      // Predicated region
      $region21: #{mobilenet_backbone_forward.7} parent=11 // pred_check
        %p278 = pneg %p105
      $region22: #{mobilenet_backbone_forward.7} parent=11 // pred_check_branch
        %280 = sbr.rel (%p278) target = $region24
      $region23: #{mobilenet_backbone_forward.7} parent=11 // pred_region
        _
      $region24: #{mobilenet_backbone_forward.7} parent=11 // pred_fallthru
        _
      // Predicated region
      $region25: #{mobilenet_backbone_forward.7} parent=11 // pred_check
        %p281 = pneg %p126
      $region26: #{mobilenet_backbone_forward.7} parent=11 // pred_check_branch
        %283 = sbr.rel (%p281) target = $region28
      $region27: #{mobilenet_backbone_forward.7} parent=11 // pred_region
        _
      $region28: #{mobilenet_backbone_forward.7} parent=11 // pred_fallthru
        _
      // Predicated region
      $region29: #{mobilenet_backbone_forward.7} parent=11 // pred_check
        %p284 = pneg %p147
      $region30: #{mobilenet_backbone_forward.7} parent=11 // pred_check_branch
        %286 = sbr.rel (%p284) target = $region32
      $region31: #{mobilenet_backbone_forward.7} parent=11 // pred_region
        _
      $region32: #{mobilenet_backbone_forward.7} parent=11 // pred_fallthru
        _
      // Predicated region
      $region33: #{mobilenet_backbone_forward.7} parent=11 // pred_check
        %p287 = pneg %p168
      $region34: #{mobilenet_backbone_forward.7} parent=11 // pred_check_branch
        %289 = sbr.rel (%p287) target = $region36
      $region35: #{mobilenet_backbone_forward.7} parent=11 // pred_region
        _
      $region36: #{mobilenet_backbone_forward.7} parent=11 // pred_fallthru
        _
      // Predicated region
      $region37: #{mobilenet_backbone_forward.7} parent=11 // pred_check
        %p290 = pneg %p189
      $region38: #{mobilenet_backbone_forward.7} parent=11 // pred_check_branch
        %292 = sbr.rel (%p290) target = $region40
      $region39: #{mobilenet_backbone_forward.7} parent=11 // pred_region
        _
      $region40: #{mobilenet_backbone_forward.7} parent=11 // pred_fallthru
        _
      // Predicated region
      $region41: #{mobilenet_backbone_forward.7} parent=11 // pred_check
        %p293 = pneg %p210
      $region42: #{mobilenet_backbone_forward.7} parent=11 // pred_check_branch
        %295 = sbr.rel (%p293) target = $region44
      $region43: #{mobilenet_backbone_forward.7} parent=11 // pred_region
        _
      $region44: #{mobilenet_backbone_forward.7} parent=11 // pred_fallthru
        _
      // Predicated region
      $region45: #{mobilenet_backbone_forward.7} parent=11 // pred_check
        %p296 = pneg %p231
      $region46: #{mobilenet_backbone_forward.7} parent=11 // pred_check_branch
        %298 = sbr.rel (%p296) target = $region48
      $region47: #{mobilenet_backbone_forward.7} parent=11 // pred_region
        _
      $region48: #{mobilenet_backbone_forward.7} parent=11 // pred_fallthru
        _
    $region12: #{mobilenet_backbone_forward.7} parent=5 // pred_fallthru
      _
    %p299 = scmp.lt.s32.totalorder %s16, 2
    // Predicated region
    $region49: #{mobilenet_backbone_forward.7} parent=5 // pred_check
      %p300 = pneg %p299
    $region50: #{mobilenet_backbone_forward.7} parent=5 // pred_check_branch
      %302 = sbr.rel (%p300) target = $region52
    $region51: #{mobilenet_backbone_forward.7} parent=5 // pred_region
      // Predicated region
      $region53: #{mobilenet_backbone_forward.7} parent=51 // pred_check
        %p303 = pneg %p36
      $region54: #{mobilenet_backbone_forward.7} parent=51 // pred_check_branch
        %305 = sbr.rel (%p303) target = $region56
      $region55: #{mobilenet_backbone_forward.7} parent=51 // pred_region
        %p306 = scmp.lt.s32.totalorder %s16, 1
        %s307 = scalar_select %p306, %s16, 1
        %s308 = smul.addr %s307, 32
        %s309 = smul.addr %s308, 8
        %s310 = scalar_lea.vmem %s0, %s309
      $region56: #{mobilenet_backbone_forward.7} parent=51 // pred_fallthru
        _
    $region52: #{mobilenet_backbone_forward.7} parent=5 // pred_fallthru
      _
    %p311 = scmp.le.s32.totalorder 1, %s16
    %p312 = scmp.lt.s32.totalorder %s16, 3
    %p313 = pnand %p311, %p312
    %p314 = pneg %p313
    // Predicated region
    $region57: #{mobilenet_backbone_forward.7} parent=5 // pred_check
      _
    $region58: #{mobilenet_backbone_forward.7} parent=5 // pred_check_branch
      %316 = sbr.rel (%p313) target = $region60
    $region59: #{mobilenet_backbone_forward.7} parent=5 // pred_region
      %s317 = ssub.s32 %s16, 1
      %p318 = scmp.lt.s32.totalorder %s21, 1
      %s319 = scalar_select %p318, %s21, 1
      %s320 = smul.addr %s319, 32
      %s321 = smul.addr %s320, 8
      %s322 = scalar_lea.vmem %s0, %s321
      %p323 = pneg %p42
      %p324 = pneg %p39
      %p325 = pneg %p63
      %p326 = pneg %p60
      %p327 = pneg %p84
      %p328 = pneg %p81
      %p329 = pneg %p105
      %p330 = pneg %p102
      %p331 = pneg %p126
      %p332 = pneg %p123
      %p333 = pneg %p147
      %p334 = pneg %p144
      %p335 = pneg %p168
      %p336 = pneg %p165
      %p337 = pneg %p189
      %p338 = pneg %p186
      %p339 = pneg %p210
      %p340 = pneg %p207
      %p341 = pneg %p231
      %p342 = pneg %p228
      %p343 = pneg %p257
      %p344 = pneg %p254
      %p345 = scmp.lt.s32.totalorder %s21, 1
      %s346 = scalar_select %p345, %s21, 1
      %s347 = smul.addr %s346, 8
      %s348 = smul.addr %s347, 8
      %s349 = scalar_lea.vmem %s10, %s348
      %p350 = scmp.lt.s32.totalorder %s21, 1
      %s351 = scalar_select %p350, %s21, 1
      %s352 = smul.addr %s351, 32
      %s353 = smul.addr %s352, 8
      %s354 = scalar_lea.vmem %s0, %s353
      %p355 = scmp.lt.s32.totalorder %s21, 1
      %s356 = scalar_select %p355, %s21, 1
      %s357 = smul.addr %s356, 8
      %s358 = smul.addr %s357, 8
      %s359 = scalar_lea.vmem %s10, %s358
      %v361 = vld [vmem:[%s354] sm:$0xff]
      %v362 = vld [vmem:[%s354 + $0x8] sm:$0xff]
      %v363 = vld [vmem:[%s354 + $0x10] sm:$0xff]
      %v364 = vld [vmem:[%s354 + $0x18] sm:$0xff]
      %v365 = vld [vmem:[%s354 + $0x20] sm:$0xff]
      %v366 = vld [vmem:[%s354 + $0x28] sm:$0xff]
      %v367 = vld [vmem:[%s354 + $0x30] sm:$0xff]
      %v368 = vld [vmem:[%s354 + $0x38] sm:$0xff]
      %v369 = vld [vmem:[%s354 + $0x40] sm:$0xff]
      %v370 = vld [vmem:[%s354 + $0x48] sm:$0xff]
      %v371 = vld [vmem:[%s354 + $0x50] sm:$0xff]
      %v372 = vld [vmem:[%s354 + $0x58] sm:$0xff]
      %v373 = vld [vmem:[%s354 + $0x60] sm:$0xff]
      %v374 = vld [vmem:[%s354 + $0x68] sm:$0xff]
      %v375 = vld [vmem:[%s354 + $0x70] sm:$0xff]
      %v376 = vld [vmem:[%s354 + $0x78] sm:$0xff]
      %v377 = vld [vmem:[%s354 + $0x80] sm:$0xff]
      %v378 = vld [vmem:[%s354 + $0x88] sm:$0xff]
      %v379 = vld [vmem:[%s354 + $0x90] sm:$0xff]
      %v380 = vld [vmem:[%s354 + $0x98] sm:$0xff]
      %v381 = vld [vmem:[%s354 + $0xa0] sm:$0xff]
      %v382 = vld [vmem:[%s354 + $0xa8] sm:$0xff]
      %v383 = vld [vmem:[%s354 + $0xb0] sm:$0xff]
      %v384 = vld [vmem:[%s354 + $0xb8] sm:$0xff]
      %v385 = vld [vmem:[%s354 + $0xc0] sm:$0xff]
      %v386 = vld [vmem:[%s354 + $0xc8] sm:$0xff]
      %v387 = vld [vmem:[%s354 + $0xd0] sm:$0xff]
      %v388 = vld [vmem:[%s354 + $0xd8] sm:$0xff]
      %v389 = vld [vmem:[%s354 + $0xe0] sm:$0xff]
      %v390 = vld [vmem:[%s354 + $0xe8] sm:$0xff]
      %v391 = vld [vmem:[%s354 + $0xf0] sm:$0xff]
      %v392 = vld [vmem:[%s354 + $0xf8] sm:$0xff]
      %v393 = vpack.c.bf16 %v362, %v361
      %v394 = vpack.c.bf16 %v364, %v363
      %v395 = vpack.c.bf16 %v366, %v365
      %v396 = vpack.c.bf16 %v368, %v367
      %v397 = vpack.c.bf16 %v370, %v369
      %v398 = vpack.c.bf16 %v372, %v371
      %v399 = vpack.c.bf16 %v374, %v373
      %v400 = vpack.c.bf16 %v376, %v375
      %v401 = vpack.c.bf16 %v378, %v377
      %v402 = vpack.c.bf16 %v380, %v379
      %v403 = vpack.c.bf16 %v382, %v381
      %v404 = vpack.c.bf16 %v384, %v383
      %v405 = vpack.c.bf16 %v386, %v385
      %v406 = vpack.c.bf16 %v388, %v387
      %v407 = vpack.c.bf16 %v390, %v389
      %v408 = vpack.c.bf16 %v392, %v391
      %v409 = vld [vmem:[%s1] sm:$0xf]
      %v410 = vld [vmem:[%s1 + $0x4] sm:$0xf]
      %v413 = vunpack.c.l.b16 %v409
      %v414 = vunpack.c.l.b16 %v410
      %v415 = vpack.c.b16 %v414, %v413
      %vm417 = vcmask 130048
      %v419 = vsel %vm417, %v393, 0
      %v422 = vsel %vm417, %v394, 0
      %v425 = vsel %vm417, %v395, 0
      %v428 = vsel %vm417, %v396, 0
      %v431 = vsel %vm417, %v397, 0
      %v434 = vsel %vm417, %v398, 0
      %v437 = vsel %vm417, %v399, 0
      %v440 = vsel %vm417, %v400, 0
      %v443 = vsel %vm417, %v401, 0
      %v446 = vsel %vm417, %v402, 0
      %v449 = vsel %vm417, %v403, 0
      %v452 = vsel %vm417, %v404, 0
      %v455 = vsel %vm417, %v405, 0
      %v458 = vsel %vm417, %v406, 0
      %v461 = vsel %vm417, %v407, 0
      %v464 = vsel %vm417, %v408, 0
      %466 = vmatprep.subr.bf16.mxu0 0
      %467 = vmatpush1.bf16.msra.mxu0 %v415
      %468 = vmatprep.subr.bf16.mxu0 0
      %469 = vmatpush1.bf16.msra.mxu0 0
      %470 = vmatprep.subr.bf16.mxu0 0
      %471 = vmatpush1.bf16.msra.mxu0 0
      %472 = vmatprep.subr.bf16.mxu0 0
      %473 = vmatpush1.bf16.msra.mxu0 0
      %474 = vmatprep.subr.bf16.mxu0 0
      %475 = vmatpush1.bf16.msra.mxu0 0
      %476 = vmatprep.subr.bf16.mxu0 0
      %477 = vmatpush1.bf16.msra.mxu0 0
      %478 = vmatprep.subr.bf16.mxu0 0
      %479 = vmatpush1.bf16.msra.mxu0 0
      %480 = vmatprep.subr.bf16.mxu0 0
      %481 = vmatpush1.bf16.msra.mxu0 0
      %482 = vmatprep.subr.bf16.mxu0 0
      %483 = vmatpush1.bf16.msra.mxu0 0
      %484 = vmatprep.subr.bf16.mxu0 0
      %485 = vmatpush1.bf16.msra.mxu0 0
      %486 = vmatprep.subr.bf16.mxu0 0
      %487 = vmatpush1.bf16.msra.mxu0 0
      %488 = vmatprep.subr.bf16.mxu0 0
      %489 = vmatpush1.bf16.msra.mxu0 0
      %490 = vmatprep.subr.bf16.mxu0 0
      %491 = vmatpush1.bf16.msra.mxu0 0
      %492 = vmatprep.subr.bf16.mxu0 0
      %493 = vmatpush1.bf16.msra.mxu0 0
      %494 = vmatprep.subr.bf16.mxu0 0
      %495 = vmatpush1.bf16.msra.mxu0 0
      %496 = vmatprep.subr.bf16.mxu0 0
      %497 = vmatpush1.bf16.msra.mxu0 0
      %498 = vmatprep.mubr.bf16.mxu0 0
      %499 = vmatmul.mubr.bf16.gmra.mrb[0].mxu0 %v419
      %v500 = vpop.f32.mrb[0].mxu0
      %v501 = vadd.f32 0.0, %v500
      %v502 = vpop.f32.mrb[0].mxu0
      %v503 = vpop.f32.mrb[0].mxu0
      %v504 = vadd.f32 0.0, %v503
      %v505 = vpop.f32.mrb[0].mxu0
      %506 = vmatprep.mubr.bf16.mxu0 0
      %507 = vmatmul.mubr.bf16.gmra.mrb[0].mxu0 %v422
      %v508 = vpop.f32.mrb[0].mxu0
      %v509 = vadd.f32 0.0, %v508
      %v510 = vpop.f32.mrb[0].mxu0
      %v511 = vpop.f32.mrb[0].mxu0
      %v512 = vadd.f32 0.0, %v511
      %v513 = vpop.f32.mrb[0].mxu0
      %514 = vmatprep.mubr.bf16.mxu0 0
      %515 = vmatmul.mubr.bf16.gmra.mrb[0].mxu0 %v425
      %v516 = vpop.f32.mrb[0].mxu0
      %v517 = vadd.f32 0.0, %v516
      %v518 = vpop.f32.mrb[0].mxu0
      %v519 = vpop.f32.mrb[0].mxu0
      %v520 = vadd.f32 0.0, %v519
      %v521 = vpop.f32.mrb[0].mxu0
      %522 = vmatprep.mubr.bf16.mxu0 0
      %523 = vmatmul.mubr.bf16.gmra.mrb[0].mxu0 %v428
      %v524 = vpop.f32.mrb[0].mxu0
      %v525 = vadd.f32 0.0, %v524
      %v526 = vpop.f32.mrb[0].mxu0
      %v527 = vpop.f32.mrb[0].mxu0
      %v528 = vadd.f32 0.0, %v527
      %v529 = vpop.f32.mrb[0].mxu0
      %530 = vmatprep.mubr.bf16.mxu0 0
      %531 = vmatmul.mubr.bf16.gmra.mrb[0].mxu0 %v431
      %v532 = vpop.f32.mrb[0].mxu0
      %v533 = vadd.f32 0.0, %v532
      %v534 = vpop.f32.mrb[0].mxu0
      %v535 = vpop.f32.mrb[0].mxu0
      %v536 = vadd.f32 0.0, %v535
      %v537 = vpop.f32.mrb[0].mxu0
      %538 = vmatprep.mubr.bf16.mxu0 0
      %539 = vmatmul.mubr.bf16.gmra.mrb[0].mxu0 %v434
      %v540 = vpop.f32.mrb[0].mxu0
      %v541 = vadd.f32 0.0, %v540
      %v542 = vpop.f32.mrb[0].mxu0
      %v543 = vpop.f32.mrb[0].mxu0
      %v544 = vadd.f32 0.0, %v543
      %v545 = vpop.f32.mrb[0].mxu0
      %546 = vmatprep.mubr.bf16.mxu0 0
      %547 = vmatmul.mubr.bf16.gmra.mrb[0].mxu0 %v437
      %v548 = vpop.f32.mrb[0].mxu0
      %v549 = vadd.f32 0.0, %v548
      %v550 = vpop.f32.mrb[0].mxu0
      %v551 = vpop.f32.mrb[0].mxu0
      %v552 = vadd.f32 0.0, %v551
      %v553 = vpop.f32.mrb[0].mxu0
      %554 = vmatprep.mubr.bf16.mxu0 0
      %555 = vmatmul.mubr.bf16.gmra.mrb[0].mxu0 %v440
      %v556 = vpop.f32.mrb[0].mxu0
      %v557 = vadd.f32 0.0, %v556
      %v558 = vpop.f32.mrb[0].mxu0
      %v559 = vpop.f32.mrb[0].mxu0
      %v560 = vadd.f32 0.0, %v559
      %v561 = vpop.f32.mrb[0].mxu0
      %562 = vmatprep.mubr.bf16.mxu0 0
      %563 = vmatmul.mubr.bf16.gmra.mrb[0].mxu0 %v443
      %v564 = vpop.f32.mrb[0].mxu0
      %v565 = vadd.f32 0.0, %v564
      %v566 = vpop.f32.mrb[0].mxu0
      %v567 = vpop.f32.mrb[0].mxu0
      %v568 = vadd.f32 0.0, %v567
      %v569 = vpop.f32.mrb[0].mxu0
      %570 = vmatprep.mubr.bf16.mxu0 0
      %571 = vmatmul.mubr.bf16.gmra.mrb[0].mxu0 %v446
      %v572 = vpop.f32.mrb[0].mxu0
      %v573 = vadd.f32 0.0, %v572
      %v574 = vpop.f32.mrb[0].mxu0
      %v575 = vpop.f32.mrb[0].mxu0
      %v576 = vadd.f32 0.0, %v575
      %v577 = vpop.f32.mrb[0].mxu0
      %578 = vmatprep.mubr.bf16.mxu0 0
      %579 = vmatmul.mubr.bf16.gmra.mrb[0].mxu0 %v449
      %v580 = vpop.f32.mrb[0].mxu0
      %v581 = vadd.f32 0.0, %v580
      %v582 = vpop.f32.mrb[0].mxu0
      %v583 = vpop.f32.mrb[0].mxu0
      %v584 = vadd.f32 0.0, %v583
      %v585 = vpop.f32.mrb[0].mxu0
      %586 = vmatprep.mubr.bf16.mxu0 0
      %587 = vmatmul.mubr.bf16.gmra.mrb[0].mxu0 %v452
      %v588 = vpop.f32.mrb[0].mxu0
      %v589 = vadd.f32 0.0, %v588
      %v590 = vpop.f32.mrb[0].mxu0
      %v591 = vpop.f32.mrb[0].mxu0
      %v592 = vadd.f32 0.0, %v591
      %v593 = vpop.f32.mrb[0].mxu0
      %594 = vmatprep.mubr.bf16.mxu0 0
      %595 = vmatmul.mubr.bf16.gmra.mrb[0].mxu0 %v455
      %v596 = vpop.f32.mrb[0].mxu0
      %v597 = vadd.f32 0.0, %v596
      %v598 = vpop.f32.mrb[0].mxu0
      %v599 = vpop.f32.mrb[0].mxu0
      %v600 = vadd.f32 0.0, %v599
      %v601 = vpop.f32.mrb[0].mxu0
      %602 = vmatprep.mubr.bf16.mxu0 0
      %603 = vmatmul.mubr.bf16.gmra.mrb[0].mxu0 %v458
      %v604 = vpop.f32.mrb[0].mxu0
      %v605 = vadd.f32 0.0, %v604
      %v606 = vpop.f32.mrb[0].mxu0
      %v607 = vpop.f32.mrb[0].mxu0
      %v608 = vadd.f32 0.0, %v607
      %v609 = vpop.f32.mrb[0].mxu0
      %610 = vmatprep.mubr.bf16.mxu0 0
      %611 = vmatmul.mubr.bf16.gmra.mrb[0].mxu0 %v461
      %v612 = vpop.f32.mrb[0].mxu0
      %v613 = vadd.f32 0.0, %v612
      %v614 = vpop.f32.mrb[0].mxu0
      %v615 = vpop.f32.mrb[0].mxu0
      %v616 = vadd.f32 0.0, %v615
      %v617 = vpop.f32.mrb[0].mxu0
      %618 = vmatprep.mubr.bf16.mxu0 0
      %619 = vmatmul.mubr.bf16.gmra.mrb[0].mxu0 %v464
      %v620 = vpop.f32.mrb[0].mxu0
      %v621 = vadd.f32 0.0, %v620
      %v622 = vpop.f32.mrb[0].mxu0
      %v623 = vpop.f32.mrb[0].mxu0
      %v624 = vadd.f32 0.0, %v623
      %v625 = vpop.f32.mrb[0].mxu0
      %626 = vdwg.mxu0
      %v627 = vld [vmem:[%s2] sm:$0x1]
      %v629 = vlaneseq
      %v630 = vshrl.u32 %v629, 7
      %v631 = vsub.s32 0, %v630
      %v632 = vrot.slane %v627, %v631
      %v634 = vmul.f32 %v501, %v632
      %v635 = vmul.f32 %v504, %v632
      %v636 = vmul.f32 %v509, %v632
      %v637 = vmul.f32 %v512, %v632
      %v638 = vmul.f32 %v517, %v632
      %v639 = vmul.f32 %v520, %v632
      %v640 = vmul.f32 %v525, %v632
      %v641 = vmul.f32 %v528, %v632
      %v642 = vmul.f32 %v533, %v632
      %v643 = vmul.f32 %v536, %v632
      %v644 = vmul.f32 %v541, %v632
      %v645 = vmul.f32 %v544, %v632
      %v646 = vmul.f32 %v549, %v632
      %v647 = vmul.f32 %v552, %v632
      %v648 = vmul.f32 %v557, %v632
      %v649 = vmul.f32 %v560, %v632
      %v650 = vmul.f32 %v565, %v632
      %v651 = vmul.f32 %v568, %v632
      %v652 = vmul.f32 %v573, %v632
      %v653 = vmul.f32 %v576, %v632
      %v654 = vmul.f32 %v581, %v632
      %v655 = vmul.f32 %v584, %v632
      %v656 = vmul.f32 %v589, %v632
      %v657 = vmul.f32 %v592, %v632
      %v658 = vmul.f32 %v597, %v632
      %v659 = vmul.f32 %v600, %v632
      %v660 = vmul.f32 %v605, %v632
      %v661 = vmul.f32 %v608, %v632
      %v662 = vmul.f32 %v613, %v632
      %v663 = vmul.f32 %v616, %v632
      %v664 = vmul.f32 %v621, %v632
      %v665 = vmul.f32 %v624, %v632
      %v666 = vld [vmem:[%s3] sm:$0x1]
      %v668 = vlaneseq
      %v669 = vshrl.u32 %v668, 7
      %v670 = vsub.s32 0, %v669
      %v671 = vrot.slane %v666, %v670
      %v673 = vadd.f32 %v634, %v671
      %v674 = vadd.f32 %v635, %v671
      %v675 = vadd.f32 %v636, %v671
      %v676 = vadd.f32 %v637, %v671
      %v677 = vadd.f32 %v638, %v671
      %v678 = vadd.f32 %v639, %v671
      %v679 = vadd.f32 %v640, %v671
      %v680 = vadd.f32 %v641, %v671
      %v681 = vadd.f32 %v642, %v671
      %v682 = vadd.f32 %v643, %v671
      %v683 = vadd.f32 %v644, %v671
      %v684 = vadd.f32 %v645, %v671
      %v685 = vadd.f32 %v646, %v671
      %v686 = vadd.f32 %v647, %v671
      %v687 = vadd.f32 %v648, %v671
      %v688 = vadd.f32 %v649, %v671
      %v689 = vadd.f32 %v650, %v671
      %v690 = vadd.f32 %v651, %v671
      %v691 = vadd.f32 %v652, %v671
      %v692 = vadd.f32 %v653, %v671
      %v693 = vadd.f32 %v654, %v671
      %v694 = vadd.f32 %v655, %v671
      %v695 = vadd.f32 %v656, %v671
      %v696 = vadd.f32 %v657, %v671
      %v697 = vadd.f32 %v658, %v671
      %v698 = vadd.f32 %v659, %v671
      %v699 = vadd.f32 %v660, %v671
      %v700 = vadd.f32 %v661, %v671
      %v701 = vadd.f32 %v662, %v671
      %v702 = vadd.f32 %v663, %v671
      %v703 = vadd.f32 %v664, %v671
      %v704 = vadd.f32 %v665, %v671
      %v705 = vmax.f32 %v673, 0.0
      %v706 = vmax.f32 %v674, 0.0
      %v707 = vmax.f32 %v675, 0.0
      %v708 = vmax.f32 %v676, 0.0
      %v709 = vmax.f32 %v677, 0.0
      %v710 = vmax.f32 %v678, 0.0
      %v711 = vmax.f32 %v679, 0.0
      %v712 = vmax.f32 %v680, 0.0
      %v713 = vmax.f32 %v681, 0.0
      %v714 = vmax.f32 %v682, 0.0
      %v715 = vmax.f32 %v683, 0.0
      %v716 = vmax.f32 %v684, 0.0
      %v717 = vmax.f32 %v685, 0.0
      %v718 = vmax.f32 %v686, 0.0
      %v719 = vmax.f32 %v687, 0.0
      %v720 = vmax.f32 %v688, 0.0
      %v721 = vmax.f32 %v689, 0.0
      %v722 = vmax.f32 %v690, 0.0
      %v723 = vmax.f32 %v691, 0.0
      %v724 = vmax.f32 %v692, 0.0
      %v725 = vmax.f32 %v693, 0.0
      %v726 = vmax.f32 %v694, 0.0
      %v727 = vmax.f32 %v695, 0.0
      %v728 = vmax.f32 %v696, 0.0
      %v729 = vmax.f32 %v697, 0.0
      %v730 = vmax.f32 %v698, 0.0
      %v731 = vmax.f32 %v699, 0.0
      %v732 = vmax.f32 %v700, 0.0
      %v733 = vmax.f32 %v701, 0.0
      %v734 = vmax.f32 %v702, 0.0
      %v735 = vmax.f32 %v703, 0.0
      %v736 = vmax.f32 %v704, 0.0
      %v737 = vmin.f32 %v705, 6.0
      %v738 = vmin.f32 %v706, 6.0
      %v739 = vmin.f32 %v707, 6.0
      %v740 = vmin.f32 %v708, 6.0
      %v741 = vmin.f32 %v709, 6.0
      %v742 = vmin.f32 %v710, 6.0
      %v743 = vmin.f32 %v711, 6.0
      %v744 = vmin.f32 %v712, 6.0
      %v745 = vmin.f32 %v713, 6.0
      %v746 = vmin.f32 %v714, 6.0
      %v747 = vmin.f32 %v715, 6.0
      %v748 = vmin.f32 %v716, 6.0
      %v749 = vmin.f32 %v717, 6.0
      %v750 = vmin.f32 %v718, 6.0
      %v751 = vmin.f32 %v719, 6.0
      %v752 = vmin.f32 %v720, 6.0
      %v753 = vmin.f32 %v721, 6.0
      %v754 = vmin.f32 %v722, 6.0
      %v755 = vmin.f32 %v723, 6.0
      %v756 = vmin.f32 %v724, 6.0
      %v757 = vmin.f32 %v725, 6.0
      %v758 = vmin.f32 %v726, 6.0
      %v759 = vmin.f32 %v727, 6.0
      %v760 = vmin.f32 %v728, 6.0
      %v761 = vmin.f32 %v729, 6.0
      %v762 = vmin.f32 %v730, 6.0
      %v763 = vmin.f32 %v731, 6.0
      %v764 = vmin.f32 %v732, 6.0
      %v765 = vmin.f32 %v733, 6.0
      %v766 = vmin.f32 %v734, 6.0
      %v767 = vmin.f32 %v735, 6.0
      %v768 = vmin.f32 %v736, 6.0
      %vm769 = vcmask 785408
      %770 = vst.msk [vmem:[#allocation2] sm:$0xff] %vm769, 0.0
      %771 = vst.msk [vmem:[#allocation2 + $0x8] sm:$0xff] %vm769, 0.0
      %vm772 = vcmask 779264
      %773 = vst.msk [vmem:[#allocation2 + $0x10] sm:$0x3] %vm772, 0.0
      %774 = vst.msk [vmem:[#allocation2 + $0x18] sm:$0xff] %vm769, 0.0
      %775 = vst.msk [vmem:[#allocation2 + $0x20] sm:$0xff] %vm769, 0.0
      %776 = vst.msk [vmem:[#allocation2 + $0x28] sm:$0x3] %vm772, 0.0
      %777 = vst.msk [vmem:[#allocation2 + $0x30] sm:$0xff] %vm769, 0.0
      %778 = vst.msk [vmem:[#allocation2 + $0x38] sm:$0xff] %vm769, 0.0
      %779 = vst.msk [vmem:[#allocation2 + $0x40] sm:$0x3] %vm772, 0.0
      %780 = vst.msk [vmem:[#allocation2 + $0x48] sm:$0xff] %vm769, 0.0
      %781 = vst.msk [vmem:[#allocation2 + $0x50] sm:$0xff] %vm769, 0.0
      %782 = vst.msk [vmem:[#allocation2 + $0x58] sm:$0x3] %vm772, 0.0
      %783 = vst.msk [vmem:[#allocation2 + $0x60] sm:$0xff] %vm769, 0.0
      %784 = vst.msk [vmem:[#allocation2 + $0x68] sm:$0xff] %vm769, 0.0
      %785 = vst.msk [vmem:[#allocation2 + $0x70] sm:$0x3] %vm772, 0.0
      %786 = vst.msk [vmem:[#allocation2 + $0x78] sm:$0xff] %vm769, 0.0
      %787 = vst.msk [vmem:[#allocation2 + $0x80] sm:$0xff] %vm769, 0.0
      %788 = vst.msk [vmem:[#allocation2 + $0x88] sm:$0x3] %vm772, 0.0
      %789 = vst.msk [vmem:[#allocation2 + $0x90] sm:$0xff] %vm769, 0.0
      %790 = vst.msk [vmem:[#allocation2 + $0x98] sm:$0xff] %vm769, 0.0
      %791 = vst.msk [vmem:[#allocation2 + $0xa0] sm:$0x3] %vm772, 0.0
      %792 = vst.msk [vmem:[#allocation2 + $0xa8] sm:$0xff] %vm769, 0.0
      %793 = vst.msk [vmem:[#allocation2 + $0xb0] sm:$0xff] %vm769, 0.0
      %794 = vst.msk [vmem:[#allocation2 + $0xb8] sm:$0x3] %vm772, 0.0
      %795 = vst.msk [vmem:[#allocation2 + $0xc0] sm:$0xff] %vm769, 0.0
      %796 = vst.msk [vmem:[#allocation2 + $0xc8] sm:$0xff] %vm769, 0.0
      %797 = vst.msk [vmem:[#allocation2 + $0xd0] sm:$0x3] %vm772, 0.0
      %798 = vst.msk [vmem:[#allocation2 + $0xd8] sm:$0xff] %vm769, 0.0
      %799 = vst.msk [vmem:[#allocation2 + $0xe0] sm:$0xff] %vm769, 0.0
      %800 = vst.msk [vmem:[#allocation2 + $0xe8] sm:$0x3] %vm772, 0.0
      %801 = vst.msk [vmem:[#allocation2 + $0xf0] sm:$0xff] %vm769, 0.0
      %802 = vst.msk [vmem:[#allocation2 + $0xf8] sm:$0xff] %vm769, 0.0
      %803 = vst.msk [vmem:[#allocation2 + $0x100] sm:$0x3] %vm772, 0.0
      %804 = vst.msk [vmem:[#allocation2 + $0x108] sm:$0xff] %vm769, 0.0
      %805 = vst.msk [vmem:[#allocation2 + $0x110] sm:$0xff] %vm769, 0.0
      %806 = vst.msk [vmem:[#allocation2 + $0x118] sm:$0x3] %vm772, 0.0
      %807 = vst.msk [vmem:[#allocation2 + $0x120] sm:$0xff] %vm769, 0.0
      %808 = vst.msk [vmem:[#allocation2 + $0x128] sm:$0xff] %vm769, 0.0
      %809 = vst.msk [vmem:[#allocation2 + $0x130] sm:$0x3] %vm772, 0.0
      %810 = vst.msk [vmem:[#allocation2 + $0x138] sm:$0xff] %vm769, 0.0
      %811 = vst.msk [vmem:[#allocation2 + $0x140] sm:$0xff] %vm769, 0.0
      %812 = vst.msk [vmem:[#allocation2 + $0x148] sm:$0x3] %vm772, 0.0
      %813 = vst.msk [vmem:[#allocation2 + $0x150] sm:$0xff] %vm769, 0.0
      %814 = vst.msk [vmem:[#allocation2 + $0x158] sm:$0xff] %vm769, 0.0
      %815 = vst.msk [vmem:[#allocation2 + $0x160] sm:$0x3] %vm772, 0.0
      %816 = vst.msk [vmem:[#allocation2 + $0x168] sm:$0xff] %vm769, 0.0
      %817 = vst.msk [vmem:[#allocation2 + $0x170] sm:$0xff] %vm769, 0.0
      %818 = vst.msk [vmem:[#allocation2 + $0x178] sm:$0x3] %vm772, 0.0
      %819 = vst.msk [vmem:[#allocation2 + $0x180] sm:$0xff] %vm769, 0.0
      %820 = vst.msk [vmem:[#allocation2 + $0x188] sm:$0xff] %vm769, 0.0
      %821 = vst.msk [vmem:[#allocation2 + $0x190] sm:$0x3] %vm772, 0.0
      %822 = vst.msk [vmem:[#allocation2 + $0x198] sm:$0xff] %vm769, 0.0
      %823 = vst.msk [vmem:[#allocation2 + $0x1a0] sm:$0xff] %vm769, 0.0
      %824 = vst.msk [vmem:[#allocation2 + $0x1a8] sm:$0x3] %vm772, 0.0
      %s825 = scalar_lea.vmem [#allocation2], 24
      %826 = vst.msk [vmem:[%s825 + $0x1] sm:$0xff] %vm769, %v737
      %827 = vst.msk [vmem:[%s825 + $0x9] sm:$0xff] %vm769, %v738
      %828 = vst.msk [vmem:[%s825 + $0x19] sm:$0xff] %vm769, %v739
      %829 = vst.msk [vmem:[%s825 + $0x21] sm:$0xff] %vm769, %v740
      %830 = vst.msk [vmem:[%s825 + $0x31] sm:$0xff] %vm769, %v741
      %831 = vst.msk [vmem:[%s825 + $0x39] sm:$0xff] %vm769, %v742
      %832 = vst.msk [vmem:[%s825 + $0x49] sm:$0xff] %vm769, %v743
      %833 = vst.msk [vmem:[%s825 + $0x51] sm:$0xff] %vm769, %v744
      %834 = vst.msk [vmem:[%s825 + $0x61] sm:$0xff] %vm769, %v745
      %835 = vst.msk [vmem:[%s825 + $0x69] sm:$0xff] %vm769, %v746
      %836 = vst.msk [vmem:[%s825 + $0x79] sm:$0xff] %vm769, %v747
      %837 = vst.msk [vmem:[%s825 + $0x81] sm:$0xff] %vm769, %v748
      %838 = vst.msk [vmem:[%s825 + $0x91] sm:$0xff] %vm769, %v749
      %839 = vst.msk [vmem:[%s825 + $0x99] sm:$0xff] %vm769, %v750
      %840 = vst.msk [vmem:[%s825 + $0xa9] sm:$0xff] %vm769, %v751
      %841 = vst.msk [vmem:[%s825 + $0xb1] sm:$0xff] %vm769, %v752
      %842 = vst.msk [vmem:[%s825 + $0xc1] sm:$0xff] %vm769, %v753
      %843 = vst.msk [vmem:[%s825 + $0xc9] sm:$0xff] %vm769, %v754
      %844 = vst.msk [vmem:[%s825 + $0xd9] sm:$0xff] %vm769, %v755
      %845 = vst.msk [vmem:[%s825 + $0xe1] sm:$0xff] %vm769, %v756
      %846 = vst.msk [vmem:[%s825 + $0xf1] sm:$0xff] %vm769, %v757
      %847 = vst.msk [vmem:[%s825 + $0xf9] sm:$0xff] %vm769, %v758
      %848 = vst.msk [vmem:[%s825 + $0x109] sm:$0xff] %vm769, %v759
      %849 = vst.msk [vmem:[%s825 + $0x111] sm:$0xff] %vm769, %v760
      %850 = vst.msk [vmem:[%s825 + $0x121] sm:$0xff] %vm769, %v761
      %851 = vst.msk [vmem:[%s825 + $0x129] sm:$0xff] %vm769, %v762
      %852 = vst.msk [vmem:[%s825 + $0x139] sm:$0xff] %vm769, %v763
      %853 = vst.msk [vmem:[%s825 + $0x141] sm:$0xff] %vm769, %v764
      %854 = vst.msk [vmem:[%s825 + $0x151] sm:$0xff] %vm769, %v765
      %855 = vst.msk [vmem:[%s825 + $0x159] sm:$0xff] %vm769, %v766
      %856 = vst.msk [vmem:[%s825 + $0x169] sm:$0xff] %vm769, %v767
      %857 = vst.msk [vmem:[%s825 + $0x171] sm:$0xff] %vm769, %v768
      %v858 = vld [vmem:[%s4] sm:$0xff]
      %v859 = vld [vmem:[%s4 + $0x8] sm:$0x1]
      %v860 = vld [vmem:[#allocation2] ss:$2 sm:$0xff]
      %s861 = scalar_lea.vmem [#allocation2], 48
      %v862 = vld [vmem:[%s861] ss:$2 sm:$0xff]
      %s863 = scalar_lea.vmem [#allocation2], 96
      %v864 = vld [vmem:[%s863] ss:$2 sm:$0xff]
      %s865 = scalar_lea.vmem [#allocation2], 144
      %v866 = vld [vmem:[%s865] ss:$2 sm:$0xff]
      %s867 = scalar_lea.vmem [#allocation2], 192
      %v868 = vld [vmem:[%s867] ss:$2 sm:$0xff]
      %s869 = scalar_lea.vmem [#allocation2], 240
      %v870 = vld [vmem:[%s869] ss:$2 sm:$0xff]
      %s871 = scalar_lea.vmem [#allocation2], 288
      %v872 = vld [vmem:[%s871] ss:$2 sm:$0xff]
      %s873 = scalar_lea.vmem [#allocation2], 336
      %v874 = vld [vmem:[%s873] ss:$2 sm:$0xff]
      %v875 = vlaneseq
      %v876 = vshrl.u32 %v875, 7
      %v877 = vsub.s32 0, %v876
      %v878 = vrot.slane %v858, %v877
      %v879 = vmul.f32 %v860, %v878
      %v880 = vmul.f32 %v862, %v878
      %v881 = vmul.f32 %v864, %v878
      %v882 = vmul.f32 %v866, %v878
      %v883 = vmul.f32 %v868, %v878
      %v884 = vmul.f32 %v870, %v878
      %v885 = vmul.f32 %v872, %v878
      %v886 = vmul.f32 %v874, %v878
      %v887 = vadd.f32 %v879, 0.0
      %v888 = vadd.f32 %v880, 0.0
      %v889 = vadd.f32 %v881, 0.0
      %v890 = vadd.f32 %v882, 0.0
      %v891 = vadd.f32 %v883, 0.0
      %v892 = vadd.f32 %v884, 0.0
      %v893 = vadd.f32 %v885, 0.0
      %v894 = vadd.f32 %v886, 0.0
      %s895 = scalar_lea.vmem [#allocation2], 1
      %v896 = vld [vmem:[%s895] ss:$2 sm:$0xff]
      %s897 = scalar_lea.vmem [#allocation2], 49
      %v898 = vld [vmem:[%s897] ss:$2 sm:$0xff]
      %s899 = scalar_lea.vmem [#allocation2], 97
      %v900 = vld [vmem:[%s899] ss:$2 sm:$0xff]
      %s901 = scalar_lea.vmem [#allocation2], 145
      %v902 = vld [vmem:[%s901] ss:$2 sm:$0xff]
      %s903 = scalar_lea.vmem [#allocation2], 193
      %v904 = vld [vmem:[%s903] ss:$2 sm:$0xff]
      %s905 = scalar_lea.vmem [#allocation2], 241
      %v906 = vld [vmem:[%s905] ss:$2 sm:$0xff]
      %s907 = scalar_lea.vmem [#allocation2], 289
      %v908 = vld [vmem:[%s907] ss:$2 sm:$0xff]
      %s909 = scalar_lea.vmem [#allocation2], 337
      %v910 = vld [vmem:[%s909] ss:$2 sm:$0xff]
      %v911 = vlaneseq
      %v912 = vshrl.u32 %v911, 7
      %v913 = vsub.s32 1, %v912
      %v914 = vrot.slane %v858, %v913
      %v915 = vmul.f32 %v896, %v914
      %v916 = vmul.f32 %v898, %v914
      %v917 = vmul.f32 %v900, %v914
      %v918 = vmul.f32 %v902, %v914
      %v919 = vmul.f32 %v904, %v914
      %v920 = vmul.f32 %v906, %v914
      %v921 = vmul.f32 %v908, %v914
      %v922 = vmul.f32 %v910, %v914
      %v923 = vadd.f32 %v887, %v915
      %v924 = vadd.f32 %v888, %v916
      %v925 = vadd.f32 %v889, %v917
      %v926 = vadd.f32 %v890, %v918
      %v927 = vadd.f32 %v891, %v919
      %v928 = vadd.f32 %v892, %v920
      %v929 = vadd.f32 %v893, %v921
      %v930 = vadd.f32 %v894, %v922
      %s931 = scalar_lea.vmem [#allocation2], 2
      %v932 = vld [vmem:[%s931] ss:$2 sm:$0xff]
      %s933 = scalar_lea.vmem [#allocation2], 50
      %v934 = vld [vmem:[%s933] ss:$2 sm:$0xff]
      %s935 = scalar_lea.vmem [#allocation2], 98
      %v936 = vld [vmem:[%s935] ss:$2 sm:$0xff]
      %s937 = scalar_lea.vmem [#allocation2], 146
      %v938 = vld [vmem:[%s937] ss:$2 sm:$0xff]
      %s939 = scalar_lea.vmem [#allocation2], 194
      %v940 = vld [vmem:[%s939] ss:$2 sm:$0xff]
      %s941 = scalar_lea.vmem [#allocation2], 242
      %v942 = vld [vmem:[%s941] ss:$2 sm:$0xff]
      %s943 = scalar_lea.vmem [#allocation2], 290
      %v944 = vld [vmem:[%s943] ss:$2 sm:$0xff]
      %s945 = scalar_lea.vmem [#allocation2], 338
      %v946 = vld [vmem:[%s945] ss:$2 sm:$0xff]
      %v947 = vlaneseq
      %v948 = vshrl.u32 %v947, 7
      %v949 = vsub.s32 2, %v948
      %v950 = vrot.slane %v858, %v949
      %v951 = vmul.f32 %v932, %v950
      %v952 = vmul.f32 %v934, %v950
      %v953 = vmul.f32 %v936, %v950
      %v954 = vmul.f32 %v938, %v950
      %v955 = vmul.f32 %v940, %v950
      %v956 = vmul.f32 %v942, %v950
      %v957 = vmul.f32 %v944, %v950
      %v958 = vmul.f32 %v946, %v950
      %v959 = vadd.f32 %v923, %v951
      %v960 = vadd.f32 %v924, %v952
      %v961 = vadd.f32 %v925, %v953
      %v962 = vadd.f32 %v926, %v954
      %v963 = vadd.f32 %v927, %v955
      %v964 = vadd.f32 %v928, %v956
      %v965 = vadd.f32 %v929, %v957
      %v966 = vadd.f32 %v930, %v958
      %v967 = vld [vmem:[%s825] ss:$2 sm:$0xff]
      %s968 = scalar_lea.vmem %s825, 48 [#allocation2]
      %v969 = vld [vmem:[%s968] ss:$2 sm:$0xff]
      %s970 = scalar_lea.vmem %s825, 96 [#allocation2]
      %v971 = vld [vmem:[%s970] ss:$2 sm:$0xff]
      %s972 = scalar_lea.vmem %s825, 144 [#allocation2]
      %v973 = vld [vmem:[%s972] ss:$2 sm:$0xff]
      %s974 = scalar_lea.vmem %s825, 192 [#allocation2]
      %v975 = vld [vmem:[%s974] ss:$2 sm:$0xff]
      %s976 = scalar_lea.vmem %s825, 240 [#allocation2]
      %v977 = vld [vmem:[%s976] ss:$2 sm:$0xff]
      %s978 = scalar_lea.vmem %s825, 288 [#allocation2]
      %v979 = vld [vmem:[%s978] ss:$2 sm:$0xff]
      %s980 = scalar_lea.vmem %s825, 336 [#allocation2]
      %v981 = vld [vmem:[%s980] ss:$2 sm:$0xff]
      %v982 = vlaneseq
      %v983 = vshrl.u32 %v982, 7
      %v984 = vsub.s32 3, %v983
      %v985 = vrot.slane %v858, %v984
      %v986 = vmul.f32 %v967, %v985
      %v987 = vmul.f32 %v969, %v985
      %v988 = vmul.f32 %v971, %v985
      %v989 = vmul.f32 %v973, %v985
      %v990 = vmul.f32 %v975, %v985
      %v991 = vmul.f32 %v977, %v985
      %v992 = vmul.f32 %v979, %v985
      %v993 = vmul.f32 %v981, %v985
      %v994 = vadd.f32 %v959, %v986
      %v995 = vadd.f32 %v960, %v987
      %v996 = vadd.f32 %v961, %v988
      %v997 = vadd.f32 %v962, %v989
      %v998 = vadd.f32 %v963, %v990
      %v999 = vadd.f32 %v964, %v991
      %v1000 = vadd.f32 %v965, %v992
      %v1001 = vadd.f32 %v966, %v993
      %s1002 = scalar_lea.vmem %s825, 1 [#allocation2]
      %v1003 = vld [vmem:[%s1002] ss:$2 sm:$0xff]
      %s1004 = scalar_lea.vmem %s825, 49 [#allocation2]
      %v1005 = vld [vmem:[%s1004] ss:$2 sm:$0xff]
      %s1006 = scalar_lea.vmem %s825, 97 [#allocation2]
      %v1007 = vld [vmem:[%s1006] ss:$2 sm:$0xff]
      %s1008 = scalar_lea.vmem %s825, 145 [#allocation2]
      %v1009 = vld [vmem:[%s1008] ss:$2 sm:$0xff]
      %s1010 = scalar_lea.vmem %s825, 193 [#allocation2]
      %v1011 = vld [vmem:[%s1010] ss:$2 sm:$0xff]
      %s1012 = scalar_lea.vmem %s825, 241 [#allocation2]
      %v1013 = vld [vmem:[%s1012] ss:$2 sm:$0xff]
      %s1014 = scalar_lea.vmem %s825, 289 [#allocation2]
      %v1015 = vld [vmem:[%s1014] ss:$2 sm:$0xff]
      %s1016 = scalar_lea.vmem %s825, 337 [#allocation2]
      %v1017 = vld [vmem:[%s1016] ss:$2 sm:$0xff]
      %v1018 = vlaneseq
      %v1019 = vshrl.u32 %v1018, 7
      %v1020 = vsub.s32 4, %v1019
      %v1021 = vrot.slane %v858, %v1020
      %v1022 = vmul.f32 %v1003, %v1021
      %v1023 = vmul.f32 %v1005, %v1021
      %v1024 = vmul.f32 %v1007, %v1021
      %v1025 = vmul.f32 %v1009, %v1021
      %v1026 = vmul.f32 %v1011, %v1021
      %v1027 = vmul.f32 %v1013, %v1021
      %v1028 = vmul.f32 %v1015, %v1021
      %v1029 = vmul.f32 %v1017, %v1021
      %v1030 = vadd.f32 %v994, %v1022
      %v1031 = vadd.f32 %v995, %v1023
      %v1032 = vadd.f32 %v996, %v1024
      %v1033 = vadd.f32 %v997, %v1025
      %v1034 = vadd.f32 %v998, %v1026
      %v1035 = vadd.f32 %v999, %v1027
      %v1036 = vadd.f32 %v1000, %v1028
      %v1037 = vadd.f32 %v1001, %v1029
      %s1038 = scalar_lea.vmem %s825, 2 [#allocation2]
      %v1039 = vld [vmem:[%s1038] ss:$2 sm:$0xff]
      %s1040 = scalar_lea.vmem %s825, 50 [#allocation2]
      %v1041 = vld [vmem:[%s1040] ss:$2 sm:$0xff]
      %s1042 = scalar_lea.vmem %s825, 98 [#allocation2]
      %v1043 = vld [vmem:[%s1042] ss:$2 sm:$0xff]
      %s1044 = scalar_lea.vmem %s825, 146 [#allocation2]
      %v1045 = vld [vmem:[%s1044] ss:$2 sm:$0xff]
      %s1046 = scalar_lea.vmem %s825, 194 [#allocation2]
      %v1047 = vld [vmem:[%s1046] ss:$2 sm:$0xff]
      %s1048 = scalar_lea.vmem %s825, 242 [#allocation2]
      %v1049 = vld [vmem:[%s1048] ss:$2 sm:$0xff]
      %s1050 = scalar_lea.vmem %s825, 290 [#allocation2]
      %v1051 = vld [vmem:[%s1050] ss:$2 sm:$0xff]
      %s1052 = scalar_lea.vmem %s825, 338 [#allocation2]
      %v1053 = vld [vmem:[%s1052] ss:$2 sm:$0xff]
      %v1054 = vlaneseq
      %v1055 = vshrl.u32 %v1054, 7
      %v1056 = vsub.s32 5, %v1055
      %v1057 = vrot.slane %v858, %v1056
      %v1058 = vmul.f32 %v1039, %v1057
      %v1059 = vmul.f32 %v1041, %v1057
      %v1060 = vmul.f32 %v1043, %v1057
      %v1061 = vmul.f32 %v1045, %v1057
      %v1062 = vmul.f32 %v1047, %v1057
      %v1063 = vmul.f32 %v1049, %v1057
      %v1064 = vmul.f32 %v1051, %v1057
      %v1065 = vmul.f32 %v1053, %v1057
      %v1066 = vadd.f32 %v1030, %v1058
      %v1067 = vadd.f32 %v1031, %v1059
      %v1068 = vadd.f32 %v1032, %v1060
      %v1069 = vadd.f32 %v1033, %v1061
      %v1070 = vadd.f32 %v1034, %v1062
      %v1071 = vadd.f32 %v1035, %v1063
      %v1072 = vadd.f32 %v1036, %v1064
      %v1073 = vadd.f32 %v1037, %v1065
      %s1074 = scalar_lea.vmem [#allocation2], 48
      %v1075 = vld [vmem:[%s1074] ss:$2 sm:$0xff]
      %s1076 = scalar_lea.vmem %s1074, 48 [#allocation2]
      %v1077 = vld [vmem:[%s1076] ss:$2 sm:$0xff]
      %s1078 = scalar_lea.vmem %s1074, 96 [#allocation2]
      %v1079 = vld [vmem:[%s1078] ss:$2 sm:$0xff]
      %s1080 = scalar_lea.vmem %s1074, 144 [#allocation2]
      %v1081 = vld [vmem:[%s1080] ss:$2 sm:$0xff]
      %s1082 = scalar_lea.vmem %s1074, 192 [#allocation2]
      %v1083 = vld [vmem:[%s1082] ss:$2 sm:$0xff]
      %s1084 = scalar_lea.vmem %s1074, 240 [#allocation2]
      %v1085 = vld [vmem:[%s1084] ss:$2 sm:$0xff]
      %s1086 = scalar_lea.vmem %s1074, 288 [#allocation2]
      %v1087 = vld [vmem:[%s1086] ss:$2 sm:$0xff]
      %s1088 = scalar_lea.vmem %s1074, 336 [#allocation2]
      %v1089 = vld [vmem:[%s1088] ss:$2 sm:$0xff]
      %v1090 = vlaneseq
      %v1091 = vshrl.u32 %v1090, 7
      %v1092 = vsub.s32 6, %v1091
      %v1093 = vrot.slane %v858, %v1092
      %v1094 = vmul.f32 %v1075, %v1093
      %v1095 = vmul.f32 %v1077, %v1093
      %v1096 = vmul.f32 %v1079, %v1093
      %v1097 = vmul.f32 %v1081, %v1093
      %v1098 = vmul.f32 %v1083, %v1093
      %v1099 = vmul.f32 %v1085, %v1093
      %v1100 = vmul.f32 %v1087, %v1093
      %v1101 = vmul.f32 %v1089, %v1093
      %v1102 = vadd.f32 %v1066, %v1094
      %v1103 = vadd.f32 %v1067, %v1095
      %v1104 = vadd.f32 %v1068, %v1096
      %v1105 = vadd.f32 %v1069, %v1097
      %v1106 = vadd.f32 %v1070, %v1098
      %v1107 = vadd.f32 %v1071, %v1099
      %v1108 = vadd.f32 %v1072, %v1100
      %v1109 = vadd.f32 %v1073, %v1101
      %s1110 = scalar_lea.vmem %s1074, 1 [#allocation2]
      %v1111 = vld [vmem:[%s1110] ss:$2 sm:$0xff]
      %s1112 = scalar_lea.vmem %s1074, 49 [#allocation2]
      %v1113 = vld [vmem:[%s1112] ss:$2 sm:$0xff]
      %s1114 = scalar_lea.vmem %s1074, 97 [#allocation2]
      %v1115 = vld [vmem:[%s1114] ss:$2 sm:$0xff]
      %s1116 = scalar_lea.vmem %s1074, 145 [#allocation2]
      %v1117 = vld [vmem:[%s1116] ss:$2 sm:$0xff]
      %s1118 = scalar_lea.vmem %s1074, 193 [#allocation2]
      %v1119 = vld [vmem:[%s1118] ss:$2 sm:$0xff]
      %s1120 = scalar_lea.vmem %s1074, 241 [#allocation2]
      %v1121 = vld [vmem:[%s1120] ss:$2 sm:$0xff]
      %s1122 = scalar_lea.vmem %s1074, 289 [#allocation2]
      %v1123 = vld [vmem:[%s1122] ss:$2 sm:$0xff]
      %s1124 = scalar_lea.vmem %s1074, 337 [#allocation2]
      %v1125 = vld [vmem:[%s1124] ss:$2 sm:$0xff]
      %v1126 = vlaneseq
      %v1127 = vshrl.u32 %v1126, 7
      %v1128 = vsub.s32 7, %v1127
      %v1129 = vrot.slane %v858, %v1128
      %v1130 = vmul.f32 %v1111, %v1129
      %v1131 = vmul.f32 %v1113, %v1129
      %v1132 = vmul.f32 %v1115, %v1129
      %v1133 = vmul.f32 %v1117, %v1129
      %v1134 = vmul.f32 %v1119, %v1129
      %v1135 = vmul.f32 %v1121, %v1129
      %v1136 = vmul.f32 %v1123, %v1129
      %v1137 = vmul.f32 %v1125, %v1129
      %v1138 = vadd.f32 %v1102, %v1130
      %v1139 = vadd.f32 %v1103, %v1131
      %v1140 = vadd.f32 %v1104, %v1132
      %v1141 = vadd.f32 %v1105, %v1133
      %v1142 = vadd.f32 %v1106, %v1134
      %v1143 = vadd.f32 %v1107, %v1135
      %v1144 = vadd.f32 %v1108, %v1136
      %v1145 = vadd.f32 %v1109, %v1137
      %s1146 = scalar_lea.vmem %s1074, 2 [#allocation2]
      %v1147 = vld [vmem:[%s1146] ss:$2 sm:$0xff]
      %s1148 = scalar_lea.vmem %s1074, 50 [#allocation2]
      %v1149 = vld [vmem:[%s1148] ss:$2 sm:$0xff]
      %s1150 = scalar_lea.vmem %s1074, 98 [#allocation2]
      %v1151 = vld [vmem:[%s1150] ss:$2 sm:$0xff]
      %s1152 = scalar_lea.vmem %s1074, 146 [#allocation2]
      %v1153 = vld [vmem:[%s1152] ss:$2 sm:$0xff]
      %s1154 = scalar_lea.vmem %s1074, 194 [#allocation2]
      %v1155 = vld [vmem:[%s1154] ss:$2 sm:$0xff]
      %s1156 = scalar_lea.vmem %s1074, 242 [#allocation2]
      %v1157 = vld [vmem:[%s1156] ss:$2 sm:$0xff]
      %s1158 = scalar_lea.vmem %s1074, 290 [#allocation2]
      %v1159 = vld [vmem:[%s1158] ss:$2 sm:$0xff]
      %s1160 = scalar_lea.vmem %s1074, 338 [#allocation2]
      %v1161 = vld [vmem:[%s1160] ss:$2 sm:$0xff]
      %v1162 = vlaneseq
      %v1163 = vshrl.u32 %v1162, 7
      %v1164 = vsub.s32 0, %v1163
      %v1165 = vrot.slane %v859, %v1164
      %v1166 = vmul.f32 %v1147, %v1165
      %v1167 = vmul.f32 %v1149, %v1165
      %v1168 = vmul.f32 %v1151, %v1165
      %v1169 = vmul.f32 %v1153, %v1165
      %v1170 = vmul.f32 %v1155, %v1165
      %v1171 = vmul.f32 %v1157, %v1165
      %v1172 = vmul.f32 %v1159, %v1165
      %v1173 = vmul.f32 %v1161, %v1165
      %v1174 = vadd.f32 %v1138, %v1166
      %v1175 = vadd.f32 %v1139, %v1167
      %v1176 = vadd.f32 %v1140, %v1168
      %v1177 = vadd.f32 %v1141, %v1169
      %v1178 = vadd.f32 %v1142, %v1170
      %v1179 = vadd.f32 %v1143, %v1171
      %v1180 = vadd.f32 %v1144, %v1172
      %v1181 = vadd.f32 %v1145, %v1173
      %v1182 = vld [vmem:[%s5] sm:$0x1]
      %v1184 = vlaneseq
      %v1185 = vshrl.u32 %v1184, 7
      %v1186 = vsub.s32 0, %v1185
      %v1187 = vrot.slane %v1182, %v1186
      %v1189 = vmul.f32 %v1174, %v1187
      %v1190 = vmul.f32 %v1175, %v1187
      %v1191 = vmul.f32 %v1176, %v1187
      %v1192 = vmul.f32 %v1177, %v1187
      %v1193 = vmul.f32 %v1178, %v1187
      %v1194 = vmul.f32 %v1179, %v1187
      %v1195 = vmul.f32 %v1180, %v1187
      %v1196 = vmul.f32 %v1181, %v1187
      %v1197 = vld [vmem:[%s6] sm:$0x1]
      %v1199 = vlaneseq
      %v1200 = vshrl.u32 %v1199, 7
      %v1201 = vsub.s32 0, %v1200
      %v1202 = vrot.slane %v1197, %v1201
      %v1204 = vadd.f32 %v1189, %v1202
      %v1205 = vadd.f32 %v1190, %v1202
      %v1206 = vadd.f32 %v1191, %v1202
      %v1207 = vadd.f32 %v1192, %v1202
      %v1208 = vadd.f32 %v1193, %v1202
      %v1209 = vadd.f32 %v1194, %v1202
      %v1210 = vadd.f32 %v1195, %v1202
      %v1211 = vadd.f32 %v1196, %v1202
      %v1212 = vmax.f32 %v1204, 0.0
      %v1213 = vmax.f32 %v1205, 0.0
      %v1214 = vmax.f32 %v1206, 0.0
      %v1215 = vmax.f32 %v1207, 0.0
      %v1216 = vmax.f32 %v1208, 0.0
      %v1217 = vmax.f32 %v1209, 0.0
      %v1218 = vmax.f32 %v1210, 0.0
      %v1219 = vmax.f32 %v1211, 0.0
      %v1220 = vmin.f32 %v1212, 6.0
      %v1221 = vmin.f32 %v1213, 6.0
      %v1222 = vmin.f32 %v1214, 6.0
      %v1223 = vmin.f32 %v1215, 6.0
      %v1224 = vmin.f32 %v1216, 6.0
      %v1225 = vmin.f32 %v1217, 6.0
      %v1226 = vmin.f32 %v1218, 6.0
      %v1227 = vmin.f32 %v1219, 6.0
      %v1228 = vpack.c.bf16 %v1221, %v1220
      %v1229 = vpack.c.bf16 %v1223, %v1222
      %v1230 = vpack.c.bf16 %v1225, %v1224
      %v1231 = vpack.c.bf16 %v1227, %v1226
      %v1232 = vld [vmem:[%s7] sm:$0xf]
      %v1233 = vld [vmem:[%s7 + $0x4] sm:$0xf]
      %v1234 = vld [vmem:[%s7 + $0x8] sm:$0xf]
      %v1235 = vld [vmem:[%s7 + $0xc] sm:$0xf]
      %v1236 = vld [vmem:[%s7 + $0x10] sm:$0xf]
      %v1237 = vld [vmem:[%s7 + $0x14] sm:$0xf]
      %v1238 = vld [vmem:[%s7 + $0x18] sm:$0xf]
      %v1239 = vld [vmem:[%s7 + $0x1c] sm:$0xf]
      %v1240 = vld [vmem:[%s7 + $0x20] sm:$0xf]
      %v1241 = vld [vmem:[%s7 + $0x24] sm:$0xf]
      %v1242 = vld [vmem:[%s7 + $0x28] sm:$0xf]
      %v1243 = vld [vmem:[%s7 + $0x2c] sm:$0xf]
      %v1256 = vunpack.c.l.b16 %v1232
      %v1257 = vunpack.c.l.b16 %v1233
      %v1258 = vunpack.c.l.b16 %v1234
      %v1259 = vunpack.c.l.b16 %v1235
      %v1260 = vunpack.c.l.b16 %v1236
      %v1261 = vunpack.c.l.b16 %v1237
      %v1262 = vunpack.c.l.b16 %v1238
      %v1263 = vunpack.c.l.b16 %v1239
      %v1264 = vunpack.c.l.b16 %v1240
      %v1265 = vunpack.c.l.b16 %v1241
      %v1266 = vunpack.c.l.b16 %v1242
      %v1267 = vunpack.c.l.b16 %v1243
      %v1268 = vpack.c.b16 %v1257, %v1256
      %v1269 = vpack.c.b16 %v1259, %v1258
      %v1270 = vpack.c.b16 %v1261, %v1260
      %v1271 = vpack.c.b16 %v1263, %v1262
      %v1272 = vpack.c.b16 %v1265, %v1264
      %v1273 = vpack.c.b16 %v1267, %v1266
      %v1281 = vsel %vm769, %v1228, 0
      %v1284 = vsel %vm769, %v1229, 0
      %v1287 = vsel %vm769, %v1230, 0
      %v1290 = vsel %vm769, %v1231, 0
      %1292 = vmatprep.subr.bf16.mxu0 0
      %1293 = vmatpush1.bf16.msra.mxu0 %v1268
      %1294 = vmatprep.subr.bf16.mxu0 0
      %1295 = vmatpush1.bf16.msra.mxu0 %v1269
      %1296 = vmatprep.subr.bf16.mxu0 0
      %1297 = vmatpush1.bf16.msra.mxu0 %v1270
      %1298 = vmatprep.subr.bf16.mxu0 0
      %1299 = vmatpush1.bf16.msra.mxu0 %v1271
      %1300 = vmatprep.subr.bf16.mxu0 0
      %1301 = vmatpush1.bf16.msra.mxu0 %v1272
      %1302 = vmatprep.subr.bf16.mxu0 0
      %1303 = vmatpush1.bf16.msra.mxu0 %v1273
      %1304 = vmatprep.subr.bf16.mxu0 0
      %1305 = vmatpush1.bf16.msra.mxu0 0
      %1306 = vmatprep.subr.bf16.mxu0 0
      %1307 = vmatpush1.bf16.msra.mxu0 0
      %1308 = vmatprep.subr.bf16.mxu0 0
      %1309 = vmatpush1.bf16.msra.mxu0 0
      %1310 = vmatprep.subr.bf16.mxu0 0
      %1311 = vmatpush1.bf16.msra.mxu0 0
      %1312 = vmatprep.subr.bf16.mxu0 0
      %1313 = vmatpush1.bf16.msra.mxu0 0
      %1314 = vmatprep.subr.bf16.mxu0 0
      %1315 = vmatpush1.bf16.msra.mxu0 0
      %1316 = vmatprep.subr.bf16.mxu0 0
      %1317 = vmatpush1.bf16.msra.mxu0 0
      %1318 = vmatprep.subr.bf16.mxu0 0
      %1319 = vmatpush1.bf16.msra.mxu0 0
      %1320 = vmatprep.subr.bf16.mxu0 0
      %1321 = vmatpush1.bf16.msra.mxu0 0
      %1322 = vmatprep.subr.bf16.mxu0 0
      %1323 = vmatpush1.bf16.msra.mxu0 0
      %1324 = vmatprep.mubr.bf16.mxu0 0
      %1325 = vmatmul.mubr.bf16.gmra.mrb[0].mxu0 %v1281
      %v1326 = vpop.f32.mrb[0].mxu0
      %v1327 = vadd.f32 0.0, %v1326
      %v1328 = vpop.f32.mrb[0].mxu0
      %v1329 = vpop.f32.mrb[0].mxu0
      %v1330 = vadd.f32 0.0, %v1329
      %v1331 = vpop.f32.mrb[0].mxu0
      %1332 = vmatprep.mubr.bf16.mxu0 0
      %1333 = vmatmul.mubr.bf16.gmra.mrb[0].mxu0 %v1284
      %v1334 = vpop.f32.mrb[0].mxu0
      %v1335 = vadd.f32 0.0, %v1334
      %v1336 = vpop.f32.mrb[0].mxu0
      %v1337 = vpop.f32.mrb[0].mxu0
      %v1338 = vadd.f32 0.0, %v1337
      %v1339 = vpop.f32.mrb[0].mxu0
      %1340 = vmatprep.mubr.bf16.mxu0 0
      %1341 = vmatmul.mubr.bf16.gmra.mrb[0].mxu0 %v1287
      %v1342 = vpop.f32.mrb[0].mxu0
      %v1343 = vadd.f32 0.0, %v1342
      %v1344 = vpop.f32.mrb[0].mxu0
      %v1345 = vpop.f32.mrb[0].mxu0
      %v1346 = vadd.f32 0.0, %v1345
      %v1347 = vpop.f32.mrb[0].mxu0
      %1348 = vmatprep.mubr.bf16.mxu0 0
      %1349 = vmatmul.mubr.bf16.gmra.mrb[0].mxu0 %v1290
      %v1350 = vpop.f32.mrb[0].mxu0
      %v1351 = vadd.f32 0.0, %v1350
      %v1352 = vpop.f32.mrb[0].mxu0
      %v1353 = vpop.f32.mrb[0].mxu0
      %v1354 = vadd.f32 0.0, %v1353
      %v1355 = vpop.f32.mrb[0].mxu0
      %1356 = vdwg.mxu0
      %v1357 = vld [vmem:[%s8] sm:$0x1]
      %v1359 = vlaneseq
      %v1360 = vshrl.u32 %v1359, 7
      %v1361 = vsub.s32 0, %v1360
      %v1362 = vrot.slane %v1357, %v1361
      %v1364 = vmul.f32 %v1327, %v1362
      %v1365 = vmul.f32 %v1330, %v1362
      %v1366 = vmul.f32 %v1335, %v1362
      %v1367 = vmul.f32 %v1338, %v1362
      %v1368 = vmul.f32 %v1343, %v1362
      %v1369 = vmul.f32 %v1346, %v1362
      %v1370 = vmul.f32 %v1351, %v1362
      %v1371 = vmul.f32 %v1354, %v1362
      %v1372 = vld [vmem:[%s9] sm:$0x1]
      %v1374 = vlaneseq
      %v1375 = vshrl.u32 %v1374, 7
      %v1376 = vsub.s32 0, %v1375
      %v1377 = vrot.slane %v1372, %v1376
      %v1379 = vadd.f32 %v1364, %v1377
      %v1380 = vadd.f32 %v1365, %v1377
      %v1381 = vadd.f32 %v1366, %v1377
      %v1382 = vadd.f32 %v1367, %v1377
      %v1383 = vadd.f32 %v1368, %v1377
      %v1384 = vadd.f32 %v1369, %v1377
      %v1385 = vadd.f32 %v1370, %v1377
      %v1386 = vadd.f32 %v1371, %v1377
      %1387 = vst.msk [vmem:[%s359] sm:$0xff] %vm417, %v1379
      %1388 = vst.msk [vmem:[%s359 + $0x8] sm:$0xff] %vm417, %v1380
      %1389 = vst.msk [vmem:[%s359 + $0x10] sm:$0xff] %vm417, %v1381
      %1390 = vst.msk [vmem:[%s359 + $0x18] sm:$0xff] %vm417, %v1382
      %1391 = vst.msk [vmem:[%s359 + $0x20] sm:$0xff] %vm417, %v1383
      %1392 = vst.msk [vmem:[%s359 + $0x28] sm:$0xff] %vm417, %v1384
      %1393 = vst.msk [vmem:[%s359 + $0x30] sm:$0xff] %vm417, %v1385
      %1394 = vst.msk [vmem:[%s359 + $0x38] sm:$0xff] %vm417, %v1386
      %p1395 = scmp.lt.s32.totalorder %s21, 1
      %s1396 = scalar_select %p1395, %s21, 1
      %s1397 = smul.addr %s1396, 8
      %s1398 = smul.addr %s1397, 8
      %s1399 = scalar_lea.vmem %s10, %s1398
      // Predicated region
      $region61: #{mobilenet_backbone_forward.7} parent=59 // pred_check
        %p1400 = pneg %p254
      $region62: #{mobilenet_backbone_forward.7} parent=59 // pred_check_branch
        %1402 = sbr.rel (%p1400) target = $region64
      $region63: #{mobilenet_backbone_forward.7} parent=59 // pred_region
        _
      $region64: #{mobilenet_backbone_forward.7} parent=59 // pred_fallthru
        _
    $region60: #{mobilenet_backbone_forward.7} parent=5 // pred_fallthru
      _
    %p1403 = scmp.le.s32.totalorder 2, %s16
    // Predicated region
    $region65: #{mobilenet_backbone_forward.7} parent=5 // pred_check
      %p1404 = pneg %p1403
    $region66: #{mobilenet_backbone_forward.7} parent=5 // pred_check_branch
      %1406 = sbr.rel (%p1404) target = $region68
    $region67: #{mobilenet_backbone_forward.7} parent=5 // pred_region
      %s1407 = ssub.s32 %s16, 2
      // Predicated region
      $region69: #{mobilenet_backbone_forward.7} parent=67 // pred_check
        %p1408 = pneg %p260
      $region70: #{mobilenet_backbone_forward.7} parent=67 // pred_check_branch
        %1410 = sbr.rel (%p1408) target = $region72
      $region71: #{mobilenet_backbone_forward.7} parent=67 // pred_region
        %p1411 = scmp.lt.s32.totalorder %s22, 1
        %s1412 = scalar_select %p1411, %s22, 1
        %s1413 = smul.addr %s1412, 8
        %s1414 = smul.addr %s1413, 8
        %s1415 = scalar_lea.vmem %s10, %s1414
      $region72: #{mobilenet_backbone_forward.7} parent=67 // pred_fallthru
        _
    $region68: #{mobilenet_backbone_forward.7} parent=5 // pred_fallthru
      _
  $region6: #{mobilenet_backbone_forward.7} parent=0 // loop_footer
    %s20 = sadd.s32 1, %s16
  $region7: #{mobilenet_backbone_forward.7} parent=0 // loop_footer_branch
    %15 = sbr.rel target = $region3
  $region8: #{mobilenet_backbone_forward.7} parent=0 // loop_exit
    _

// kernel: mobilenet_backbone_forward.8
$region0: #{mobilenet_backbone_forward.8}
  #allocation0 [shape = 'u32[]', space=smem, size = 0x4, offset = 0x4, fixed_abs, tag = 'smem constant byte address 0x4 - core index']
  #allocation1 [shape = 'u32[144,128]{1,0:T(1,128)}', space=vmem, size = 0x12000, scoped, tag = 'internal scratch']
  #allocation2 [shape = 'f32[10,10,96]{2,1,0:T(8,128)}', space=vmem, size = 0x14000, scoped, tag = 'scratch operand']
  %s0 = inlined_call_operand.vmem [shape: f32[2,8,8,16], index: 0, kind: input, shape index: {}, may-alias: {0,10}]
  %s1 = inlined_call_operand.vmem [shape: bf16[16,96], index: 1, kind: input, shape index: {}]
  %s2 = inlined_call_operand.vmem [shape: f32[1,96], index: 2, kind: input, shape index: {}]
  %s3 = inlined_call_operand.vmem [shape: f32[1,96], index: 3, kind: input, shape index: {}]
  %s4 = inlined_call_operand.vmem [shape: f32[9,96], index: 4, kind: input, shape index: {}]
  %s5 = inlined_call_operand.vmem [shape: f32[1,96], index: 5, kind: input, shape index: {}]
  %s6 = inlined_call_operand.vmem [shape: f32[1,96], index: 6, kind: input, shape index: {}]
  %s7 = inlined_call_operand.vmem [shape: bf16[96,16], index: 7, kind: input, shape index: {}]
  %s8 = inlined_call_operand.vmem [shape: f32[1,16], index: 8, kind: input, shape index: {}]
  %s9 = inlined_call_operand.vmem [shape: f32[1,16], index: 9, kind: input, shape index: {}]
  %s10 = inlined_call_operand.vmem [shape: f32[2,8,8,16], index: 10, kind: output, shape index: {}, may-alias: {0,10}]
  %s11 = sld [smem:[#allocation0]]
  $region73: #{mobilenet_backbone_forward.8} parent=0
    _
  %s13 = ssub.s32 1, %s11
  %s14 = scalar_select 0, %s13, %s11
  loop: start=0, step=1, limit=4
  $region2: #{mobilenet_backbone_forward.8} parent=0 // loop_pre_header
    _
  $region3: #{mobilenet_backbone_forward.8} parent=0 // loop_header
    %s16 = sphi 0, %s20
    %p17 = scmp.ge.s32.totalorder %s16, 4
    %s26 = sphi 0, %s28
    %s29 = sphi 0, %s26
    %s30 = sphi 0, %s29
    %s46 = sphi 0, %s30
    %s50 = sphi 0, %s50
    %s52 = sphi 0, %s50
    %s53 = sphi 0, %s52
    %s67 = sphi 0, %s53
    %s71 = sphi 0, %s71
    %s73 = sphi 0, %s71
    %s74 = sphi 0, %s73
    %s88 = sphi 0, %s74
    %s92 = sphi 0, %s92
    %s94 = sphi 0, %s92
    %s95 = sphi 0, %s94
    %s109 = sphi 0, %s95
    %s113 = sphi 0, %s113
    %s115 = sphi 0, %s113
    %s116 = sphi 0, %s115
    %s130 = sphi 0, %s116
    %s134 = sphi 0, %s134
    %s136 = sphi 0, %s134
    %s137 = sphi 0, %s136
    %s151 = sphi 0, %s137
    %s155 = sphi 0, %s155
    %s157 = sphi 0, %s155
    %s158 = sphi 0, %s157
    %s172 = sphi 0, %s158
    %s176 = sphi 0, %s176
    %s178 = sphi 0, %s176
    %s179 = sphi 0, %s178
    %s193 = sphi 0, %s179
    %s197 = sphi 0, %s197
    %s199 = sphi 0, %s197
    %s200 = sphi 0, %s199
    %s214 = sphi 0, %s200
    %s218 = sphi 0, %s218
    %s220 = sphi 0, %s218
    %s221 = sphi 0, %s220
    %s235 = sphi 0, %s221
    %s241 = sphi 0, %s243
    %s244 = sphi 0, %s241
    %s245 = sphi 0, %s244
    %s261 = sphi 0, %s245
  $region4: #{mobilenet_backbone_forward.8} parent=0 // loop_header_branch
    %19 = sbr.rel (%p17) target = $region8
  $region5: #{mobilenet_backbone_forward.8} parent=0 // loop_body
    %s21 = ssub.s32 %s16, 1
    %s22 = ssub.s32 %s16, 2
    %s23 = sadd.s32 %s16, 1
    %s24 = ssub.s32 %s16, %s23
    %p25 = scmp.eq.s32.totalorder %s24, 0
    %s27 = sadd.s32 %s26, 1
    %s28 = scalar_select %p25, %s26, %s27
    %p31 = pneg %p25
    %p32 = scmp.eq.s32.totalorder %s16, 1
    %p33 = por %p31, %p32
    %p34 = scmp.ne.s32.totalorder %s26, %s29
    %p35 = scmp.eq.s32.totalorder %s16, 0
    %p36 = por %p34, %p35
    %p37 = scmp.ne.s32.totalorder %s26, %s29
    %p38 = scmp.eq.s32.totalorder %s21, 1
    %p39 = por %p37, %p38
    %p40 = scmp.ne.s32.totalorder %s29, %s30
    %p41 = scmp.eq.s32.totalorder %s21, 0
    %p42 = por %p40, %p41
    %p43 = scmp.ne.s32.totalorder %s29, %s30
    %p44 = scmp.eq.s32.totalorder %s22, 1
    %p45 = por %p43, %p44
    %p47 = scmp.ne.s32.totalorder %s30, %s46
    %p48 = scmp.eq.s32.totalorder %s22, 0
    %p49 = por %p47, %p48
    %s51 = sadd.s32 %s50, 1
    %p54 = scmp.eq.s32.totalorder %s16, 1
    %p55 = scmp.ne.s32.totalorder %s50, %s52
    %p56 = scmp.eq.s32.totalorder %s16, 0
    %p57 = por %p55, %p56
    %p58 = scmp.ne.s32.totalorder %s50, %s52
    %p59 = scmp.eq.s32.totalorder %s21, 1
    %p60 = por %p58, %p59
    %p61 = scmp.ne.s32.totalorder %s52, %s53
    %p62 = scmp.eq.s32.totalorder %s21, 0
    %p63 = por %p61, %p62
    %p64 = scmp.ne.s32.totalorder %s52, %s53
    %p65 = scmp.eq.s32.totalorder %s22, 1
    %p66 = por %p64, %p65
    %p68 = scmp.ne.s32.totalorder %s53, %s67
    %p69 = scmp.eq.s32.totalorder %s22, 0
    %p70 = por %p68, %p69
    %s72 = sadd.s32 %s71, 1
    %p75 = scmp.eq.s32.totalorder %s16, 1
    %p76 = scmp.ne.s32.totalorder %s71, %s73
    %p77 = scmp.eq.s32.totalorder %s16, 0
    %p78 = por %p76, %p77
    %p79 = scmp.ne.s32.totalorder %s71, %s73
    %p80 = scmp.eq.s32.totalorder %s21, 1
    %p81 = por %p79, %p80
    %p82 = scmp.ne.s32.totalorder %s73, %s74
    %p83 = scmp.eq.s32.totalorder %s21, 0
    %p84 = por %p82, %p83
    %p85 = scmp.ne.s32.totalorder %s73, %s74
    %p86 = scmp.eq.s32.totalorder %s22, 1
    %p87 = por %p85, %p86
    %p89 = scmp.ne.s32.totalorder %s74, %s88
    %p90 = scmp.eq.s32.totalorder %s22, 0
    %p91 = por %p89, %p90
    %s93 = sadd.s32 %s92, 1
    %p96 = scmp.eq.s32.totalorder %s16, 1
    %p97 = scmp.ne.s32.totalorder %s92, %s94
    %p98 = scmp.eq.s32.totalorder %s16, 0
    %p99 = por %p97, %p98
    %p100 = scmp.ne.s32.totalorder %s92, %s94
    %p101 = scmp.eq.s32.totalorder %s21, 1
    %p102 = por %p100, %p101
    %p103 = scmp.ne.s32.totalorder %s94, %s95
    %p104 = scmp.eq.s32.totalorder %s21, 0
    %p105 = por %p103, %p104
    %p106 = scmp.ne.s32.totalorder %s94, %s95
    %p107 = scmp.eq.s32.totalorder %s22, 1
    %p108 = por %p106, %p107
    %p110 = scmp.ne.s32.totalorder %s95, %s109
    %p111 = scmp.eq.s32.totalorder %s22, 0
    %p112 = por %p110, %p111
    %s114 = sadd.s32 %s113, 1
    %p117 = scmp.eq.s32.totalorder %s16, 1
    %p118 = scmp.ne.s32.totalorder %s113, %s115
    %p119 = scmp.eq.s32.totalorder %s16, 0
    %p120 = por %p118, %p119
    %p121 = scmp.ne.s32.totalorder %s113, %s115
    %p122 = scmp.eq.s32.totalorder %s21, 1
    %p123 = por %p121, %p122
    %p124 = scmp.ne.s32.totalorder %s115, %s116
    %p125 = scmp.eq.s32.totalorder %s21, 0
    %p126 = por %p124, %p125
    %p127 = scmp.ne.s32.totalorder %s115, %s116
    %p128 = scmp.eq.s32.totalorder %s22, 1
    %p129 = por %p127, %p128
    %p131 = scmp.ne.s32.totalorder %s116, %s130
    %p132 = scmp.eq.s32.totalorder %s22, 0
    %p133 = por %p131, %p132
    %s135 = sadd.s32 %s134, 1
    %p138 = scmp.eq.s32.totalorder %s16, 1
    %p139 = scmp.ne.s32.totalorder %s134, %s136
    %p140 = scmp.eq.s32.totalorder %s16, 0
    %p141 = por %p139, %p140
    %p142 = scmp.ne.s32.totalorder %s134, %s136
    %p143 = scmp.eq.s32.totalorder %s21, 1
    %p144 = por %p142, %p143
    %p145 = scmp.ne.s32.totalorder %s136, %s137
    %p146 = scmp.eq.s32.totalorder %s21, 0
    %p147 = por %p145, %p146
    %p148 = scmp.ne.s32.totalorder %s136, %s137
    %p149 = scmp.eq.s32.totalorder %s22, 1
    %p150 = por %p148, %p149
    %p152 = scmp.ne.s32.totalorder %s137, %s151
    %p153 = scmp.eq.s32.totalorder %s22, 0
    %p154 = por %p152, %p153
    %s156 = sadd.s32 %s155, 1
    %p159 = scmp.eq.s32.totalorder %s16, 1
    %p160 = scmp.ne.s32.totalorder %s155, %s157
    %p161 = scmp.eq.s32.totalorder %s16, 0
    %p162 = por %p160, %p161
    %p163 = scmp.ne.s32.totalorder %s155, %s157
    %p164 = scmp.eq.s32.totalorder %s21, 1
    %p165 = por %p163, %p164
    %p166 = scmp.ne.s32.totalorder %s157, %s158
    %p167 = scmp.eq.s32.totalorder %s21, 0
    %p168 = por %p166, %p167
    %p169 = scmp.ne.s32.totalorder %s157, %s158
    %p170 = scmp.eq.s32.totalorder %s22, 1
    %p171 = por %p169, %p170
    %p173 = scmp.ne.s32.totalorder %s158, %s172
    %p174 = scmp.eq.s32.totalorder %s22, 0
    %p175 = por %p173, %p174
    %s177 = sadd.s32 %s176, 1
    %p180 = scmp.eq.s32.totalorder %s16, 1
    %p181 = scmp.ne.s32.totalorder %s176, %s178
    %p182 = scmp.eq.s32.totalorder %s16, 0
    %p183 = por %p181, %p182
    %p184 = scmp.ne.s32.totalorder %s176, %s178
    %p185 = scmp.eq.s32.totalorder %s21, 1
    %p186 = por %p184, %p185
    %p187 = scmp.ne.s32.totalorder %s178, %s179
    %p188 = scmp.eq.s32.totalorder %s21, 0
    %p189 = por %p187, %p188
    %p190 = scmp.ne.s32.totalorder %s178, %s179
    %p191 = scmp.eq.s32.totalorder %s22, 1
    %p192 = por %p190, %p191
    %p194 = scmp.ne.s32.totalorder %s179, %s193
    %p195 = scmp.eq.s32.totalorder %s22, 0
    %p196 = por %p194, %p195
    %s198 = sadd.s32 %s197, 1
    %p201 = scmp.eq.s32.totalorder %s16, 1
    %p202 = scmp.ne.s32.totalorder %s197, %s199
    %p203 = scmp.eq.s32.totalorder %s16, 0
    %p204 = por %p202, %p203
    %p205 = scmp.ne.s32.totalorder %s197, %s199
    %p206 = scmp.eq.s32.totalorder %s21, 1
    %p207 = por %p205, %p206
    %p208 = scmp.ne.s32.totalorder %s199, %s200
    %p209 = scmp.eq.s32.totalorder %s21, 0
    %p210 = por %p208, %p209
    %p211 = scmp.ne.s32.totalorder %s199, %s200
    %p212 = scmp.eq.s32.totalorder %s22, 1
    %p213 = por %p211, %p212
    %p215 = scmp.ne.s32.totalorder %s200, %s214
    %p216 = scmp.eq.s32.totalorder %s22, 0
    %p217 = por %p215, %p216
    %s219 = sadd.s32 %s218, 1
    %p222 = scmp.eq.s32.totalorder %s16, 1
    %p223 = scmp.ne.s32.totalorder %s218, %s220
    %p224 = scmp.eq.s32.totalorder %s16, 0
    %p225 = por %p223, %p224
    %p226 = scmp.ne.s32.totalorder %s218, %s220
    %p227 = scmp.eq.s32.totalorder %s21, 1
    %p228 = por %p226, %p227
    %p229 = scmp.ne.s32.totalorder %s220, %s221
    %p230 = scmp.eq.s32.totalorder %s21, 0
    %p231 = por %p229, %p230
    %p232 = scmp.ne.s32.totalorder %s220, %s221
    %p233 = scmp.eq.s32.totalorder %s22, 1
    %p234 = por %p232, %p233
    %p236 = scmp.ne.s32.totalorder %s221, %s235
    %p237 = scmp.eq.s32.totalorder %s22, 0
    %p238 = por %p236, %p237
    %s239 = ssub.s32 %s16, %s23
    %p240 = scmp.eq.s32.totalorder %s239, 0
    %s242 = sadd.s32 %s241, 1
    %s243 = scalar_select %p240, %s241, %s242
    %p246 = pneg %p240
    %p247 = scmp.eq.s32.totalorder %s16, 1
    %p248 = por %p246, %p247
    %p249 = scmp.ne.s32.totalorder %s241, %s244
    %p250 = scmp.eq.s32.totalorder %s16, 0
    %p251 = por %p249, %p250
    %p252 = scmp.ne.s32.totalorder %s241, %s244
    %p253 = scmp.eq.s32.totalorder %s21, 1
    %p254 = por %p252, %p253
    %p255 = scmp.ne.s32.totalorder %s244, %s245
    %p256 = scmp.eq.s32.totalorder %s21, 0
    %p257 = por %p255, %p256
    %p258 = scmp.ne.s32.totalorder %s244, %s245
    %p259 = scmp.eq.s32.totalorder %s22, 1
    %p260 = por %p258, %p259
    %p262 = scmp.ne.s32.totalorder %s245, %s261
    %p263 = scmp.eq.s32.totalorder %s22, 0
    %p264 = por %p262, %p263
    %p265 = scmp.le.s32.totalorder 1, %s16
    %p266 = scmp.lt.s32.totalorder %s16, 3
    %p267 = pnand %p265, %p266
    %p268 = pneg %p267
    // Predicated region
    $region9: #{mobilenet_backbone_forward.8} parent=5 // pred_check
      _
    $region10: #{mobilenet_backbone_forward.8} parent=5 // pred_check_branch
      %270 = sbr.rel (%p267) target = $region12
    $region11: #{mobilenet_backbone_forward.8} parent=5 // pred_region
      %s271 = ssub.s32 %s16, 1
      // Predicated region
      $region13: #{mobilenet_backbone_forward.8} parent=11 // pred_check
        %p272 = pneg %p63
      $region14: #{mobilenet_backbone_forward.8} parent=11 // pred_check_branch
        %274 = sbr.rel (%p272) target = $region16
      $region15: #{mobilenet_backbone_forward.8} parent=11 // pred_region
        _
      $region16: #{mobilenet_backbone_forward.8} parent=11 // pred_fallthru
        _
      // Predicated region
      $region17: #{mobilenet_backbone_forward.8} parent=11 // pred_check
        %p275 = pneg %p84
      $region18: #{mobilenet_backbone_forward.8} parent=11 // pred_check_branch
        %277 = sbr.rel (%p275) target = $region20
      $region19: #{mobilenet_backbone_forward.8} parent=11 // pred_region
        _
      $region20: #{mobilenet_backbone_forward.8} parent=11 // pred_fallthru
        _
      // Predicated region
      $region21: #{mobilenet_backbone_forward.8} parent=11 // pred_check
        %p278 = pneg %p105
      $region22: #{mobilenet_backbone_forward.8} parent=11 // pred_check_branch
        %280 = sbr.rel (%p278) target = $region24
      $region23: #{mobilenet_backbone_forward.8} parent=11 // pred_region
        _
      $region24: #{mobilenet_backbone_forward.8} parent=11 // pred_fallthru
        _
      // Predicated region
      $region25: #{mobilenet_backbone_forward.8} parent=11 // pred_check
        %p281 = pneg %p126
      $region26: #{mobilenet_backbone_forward.8} parent=11 // pred_check_branch
        %283 = sbr.rel (%p281) target = $region28
      $region27: #{mobilenet_backbone_forward.8} parent=11 // pred_region
        _
      $region28: #{mobilenet_backbone_forward.8} parent=11 // pred_fallthru
        _
      // Predicated region
      $region29: #{mobilenet_backbone_forward.8} parent=11 // pred_check
        %p284 = pneg %p147
      $region30: #{mobilenet_backbone_forward.8} parent=11 // pred_check_branch
        %286 = sbr.rel (%p284) target = $region32
      $region31: #{mobilenet_backbone_forward.8} parent=11 // pred_region
        _
      $region32: #{mobilenet_backbone_forward.8} parent=11 // pred_fallthru
        _
      // Predicated region
      $region33: #{mobilenet_backbone_forward.8} parent=11 // pred_check
        %p287 = pneg %p168
      $region34: #{mobilenet_backbone_forward.8} parent=11 // pred_check_branch
        %289 = sbr.rel (%p287) target = $region36
      $region35: #{mobilenet_backbone_forward.8} parent=11 // pred_region
        _
      $region36: #{mobilenet_backbone_forward.8} parent=11 // pred_fallthru
        _
      // Predicated region
      $region37: #{mobilenet_backbone_forward.8} parent=11 // pred_check
        %p290 = pneg %p189
      $region38: #{mobilenet_backbone_forward.8} parent=11 // pred_check_branch
        %292 = sbr.rel (%p290) target = $region40
      $region39: #{mobilenet_backbone_forward.8} parent=11 // pred_region
        _
      $region40: #{mobilenet_backbone_forward.8} parent=11 // pred_fallthru
        _
      // Predicated region
      $region41: #{mobilenet_backbone_forward.8} parent=11 // pred_check
        %p293 = pneg %p210
      $region42: #{mobilenet_backbone_forward.8} parent=11 // pred_check_branch
        %295 = sbr.rel (%p293) target = $region44
      $region43: #{mobilenet_backbone_forward.8} parent=11 // pred_region
        _
      $region44: #{mobilenet_backbone_forward.8} parent=11 // pred_fallthru
        _
      // Predicated region
      $region45: #{mobilenet_backbone_forward.8} parent=11 // pred_check
        %p296 = pneg %p231
      $region46: #{mobilenet_backbone_forward.8} parent=11 // pred_check_branch
        %298 = sbr.rel (%p296) target = $region48
      $region47: #{mobilenet_backbone_forward.8} parent=11 // pred_region
        _
      $region48: #{mobilenet_backbone_forward.8} parent=11 // pred_fallthru
        _
    $region12: #{mobilenet_backbone_forward.8} parent=5 // pred_fallthru
      _
    %p299 = scmp.lt.s32.totalorder %s16, 2
    // Predicated region
    $region49: #{mobilenet_backbone_forward.8} parent=5 // pred_check
      %p300 = pneg %p299
    $region50: #{mobilenet_backbone_forward.8} parent=5 // pred_check_branch
      %302 = sbr.rel (%p300) target = $region52
    $region51: #{mobilenet_backbone_forward.8} parent=5 // pred_region
      // Predicated region
      $region53: #{mobilenet_backbone_forward.8} parent=51 // pred_check
        %p303 = pneg %p36
      $region54: #{mobilenet_backbone_forward.8} parent=51 // pred_check_branch
        %305 = sbr.rel (%p303) target = $region56
      $region55: #{mobilenet_backbone_forward.8} parent=51 // pred_region
        %p306 = scmp.lt.s32.totalorder %s16, 1
        %s307 = scalar_select %p306, %s16, 1
        %s308 = smul.addr %s307, 8
        %s309 = smul.addr %s308, 8
        %s310 = scalar_lea.vmem %s0, %s309
      $region56: #{mobilenet_backbone_forward.8} parent=51 // pred_fallthru
        _
    $region52: #{mobilenet_backbone_forward.8} parent=5 // pred_fallthru
      _
    %p311 = scmp.le.s32.totalorder 1, %s16
    %p312 = scmp.lt.s32.totalorder %s16, 3
    %p313 = pnand %p311, %p312
    %p314 = pneg %p313
    // Predicated region
    $region57: #{mobilenet_backbone_forward.8} parent=5 // pred_check
      _
    $region58: #{mobilenet_backbone_forward.8} parent=5 // pred_check_branch
      %316 = sbr.rel (%p313) target = $region60
    $region59: #{mobilenet_backbone_forward.8} parent=5 // pred_region
      %s317 = ssub.s32 %s16, 1
      %p318 = scmp.lt.s32.totalorder %s21, 1
      %s319 = scalar_select %p318, %s21, 1
      %s320 = smul.addr %s319, 8
      %s321 = smul.addr %s320, 8
      %s322 = scalar_lea.vmem %s0, %s321
      %p323 = pneg %p42
      %p324 = pneg %p39
      %p325 = pneg %p63
      %p326 = pneg %p60
      %p327 = pneg %p84
      %p328 = pneg %p81
      %p329 = pneg %p105
      %p330 = pneg %p102
      %p331 = pneg %p126
      %p332 = pneg %p123
      %p333 = pneg %p147
      %p334 = pneg %p144
      %p335 = pneg %p168
      %p336 = pneg %p165
      %p337 = pneg %p189
      %p338 = pneg %p186
      %p339 = pneg %p210
      %p340 = pneg %p207
      %p341 = pneg %p231
      %p342 = pneg %p228
      %p343 = pneg %p257
      %p344 = pneg %p254
      %p345 = scmp.lt.s32.totalorder %s21, 1
      %s346 = scalar_select %p345, %s21, 1
      %s347 = smul.addr %s346, 8
      %s348 = smul.addr %s347, 8
      %s349 = scalar_lea.vmem %s10, %s348
      %p350 = scmp.lt.s32.totalorder %s21, 1
      %s351 = scalar_select %p350, %s21, 1
      %s352 = smul.addr %s351, 8
      %s353 = smul.addr %s352, 8
      %s354 = scalar_lea.vmem %s0, %s353
      %p355 = scmp.lt.s32.totalorder %s21, 1
      %s356 = scalar_select %p355, %s21, 1
      %s357 = smul.addr %s356, 8
      %s358 = smul.addr %s357, 8
      %s359 = scalar_lea.vmem %s10, %s358
      %v361 = vld [vmem:[%s354] sm:$0xff]
      %v362 = vld [vmem:[%s354 + $0x8] sm:$0xff]
      %v363 = vld [vmem:[%s354 + $0x10] sm:$0xff]
      %v364 = vld [vmem:[%s354 + $0x18] sm:$0xff]
      %v365 = vld [vmem:[%s354 + $0x20] sm:$0xff]
      %v366 = vld [vmem:[%s354 + $0x28] sm:$0xff]
      %v367 = vld [vmem:[%s354 + $0x30] sm:$0xff]
      %v368 = vld [vmem:[%s354 + $0x38] sm:$0xff]
      %v369 = vpack.c.bf16 %v362, %v361
      %v370 = vpack.c.bf16 %v364, %v363
      %v371 = vpack.c.bf16 %v366, %v365
      %v372 = vpack.c.bf16 %v368, %v367
      %v373 = vld [vmem:[%s1] sm:$0xf]
      %v374 = vld [vmem:[%s1 + $0x4] sm:$0xf]
      %v377 = vunpack.c.l.b16 %v373
      %v378 = vunpack.c.l.b16 %v374
      %v379 = vpack.c.b16 %v378, %v377
      %vm381 = vcmask 130048
      %v383 = vsel %vm381, %v369, 0
      %v386 = vsel %vm381, %v370, 0
      %v389 = vsel %vm381, %v371, 0
      %v392 = vsel %vm381, %v372, 0
      %394 = vmatprep.subr.bf16.mxu0 0
      %395 = vmatpush1.bf16.msra.mxu0 %v379
      %396 = vmatprep.subr.bf16.mxu0 0
      %397 = vmatpush1.bf16.msra.mxu0 0
      %398 = vmatprep.subr.bf16.mxu0 0
      %399 = vmatpush1.bf16.msra.mxu0 0
      %400 = vmatprep.subr.bf16.mxu0 0
      %401 = vmatpush1.bf16.msra.mxu0 0
      %402 = vmatprep.subr.bf16.mxu0 0
      %403 = vmatpush1.bf16.msra.mxu0 0
      %404 = vmatprep.subr.bf16.mxu0 0
      %405 = vmatpush1.bf16.msra.mxu0 0
      %406 = vmatprep.subr.bf16.mxu0 0
      %407 = vmatpush1.bf16.msra.mxu0 0
      %408 = vmatprep.subr.bf16.mxu0 0
      %409 = vmatpush1.bf16.msra.mxu0 0
      %410 = vmatprep.subr.bf16.mxu0 0
      %411 = vmatpush1.bf16.msra.mxu0 0
      %412 = vmatprep.subr.bf16.mxu0 0
      %413 = vmatpush1.bf16.msra.mxu0 0
      %414 = vmatprep.subr.bf16.mxu0 0
      %415 = vmatpush1.bf16.msra.mxu0 0
      %416 = vmatprep.subr.bf16.mxu0 0
      %417 = vmatpush1.bf16.msra.mxu0 0
      %418 = vmatprep.subr.bf16.mxu0 0
      %419 = vmatpush1.bf16.msra.mxu0 0
      %420 = vmatprep.subr.bf16.mxu0 0
      %421 = vmatpush1.bf16.msra.mxu0 0
      %422 = vmatprep.subr.bf16.mxu0 0
      %423 = vmatpush1.bf16.msra.mxu0 0
      %424 = vmatprep.subr.bf16.mxu0 0
      %425 = vmatpush1.bf16.msra.mxu0 0
      %426 = vmatprep.mubr.bf16.mxu0 0
      %427 = vmatmul.mubr.bf16.gmra.mrb[0].mxu0 %v383
      %v428 = vpop.f32.mrb[0].mxu0
      %v429 = vadd.f32 0.0, %v428
      %v430 = vpop.f32.mrb[0].mxu0
      %v431 = vpop.f32.mrb[0].mxu0
      %v432 = vadd.f32 0.0, %v431
      %v433 = vpop.f32.mrb[0].mxu0
      %434 = vmatprep.mubr.bf16.mxu0 0
      %435 = vmatmul.mubr.bf16.gmra.mrb[0].mxu0 %v386
      %v436 = vpop.f32.mrb[0].mxu0
      %v437 = vadd.f32 0.0, %v436
      %v438 = vpop.f32.mrb[0].mxu0
      %v439 = vpop.f32.mrb[0].mxu0
      %v440 = vadd.f32 0.0, %v439
      %v441 = vpop.f32.mrb[0].mxu0
      %442 = vmatprep.mubr.bf16.mxu0 0
      %443 = vmatmul.mubr.bf16.gmra.mrb[0].mxu0 %v389
      %v444 = vpop.f32.mrb[0].mxu0
      %v445 = vadd.f32 0.0, %v444
      %v446 = vpop.f32.mrb[0].mxu0
      %v447 = vpop.f32.mrb[0].mxu0
      %v448 = vadd.f32 0.0, %v447
      %v449 = vpop.f32.mrb[0].mxu0
      %450 = vmatprep.mubr.bf16.mxu0 0
      %451 = vmatmul.mubr.bf16.gmra.mrb[0].mxu0 %v392
      %v452 = vpop.f32.mrb[0].mxu0
      %v453 = vadd.f32 0.0, %v452
      %v454 = vpop.f32.mrb[0].mxu0
      %v455 = vpop.f32.mrb[0].mxu0
      %v456 = vadd.f32 0.0, %v455
      %v457 = vpop.f32.mrb[0].mxu0
      %458 = vdwg.mxu0
      %v459 = vld [vmem:[%s2] sm:$0x1]
      %v461 = vlaneseq
      %v462 = vshrl.u32 %v461, 7
      %v463 = vsub.s32 0, %v462
      %v464 = vrot.slane %v459, %v463
      %v466 = vmul.f32 %v429, %v464
      %v467 = vmul.f32 %v432, %v464
      %v468 = vmul.f32 %v437, %v464
      %v469 = vmul.f32 %v440, %v464
      %v470 = vmul.f32 %v445, %v464
      %v471 = vmul.f32 %v448, %v464
      %v472 = vmul.f32 %v453, %v464
      %v473 = vmul.f32 %v456, %v464
      %v474 = vld [vmem:[%s3] sm:$0x1]
      %v476 = vlaneseq
      %v477 = vshrl.u32 %v476, 7
      %v478 = vsub.s32 0, %v477
      %v479 = vrot.slane %v474, %v478
      %v481 = vadd.f32 %v466, %v479
      %v482 = vadd.f32 %v467, %v479
      %v483 = vadd.f32 %v468, %v479
      %v484 = vadd.f32 %v469, %v479
      %v485 = vadd.f32 %v470, %v479
      %v486 = vadd.f32 %v471, %v479
      %v487 = vadd.f32 %v472, %v479
      %v488 = vadd.f32 %v473, %v479
      %v489 = vmax.f32 %v481, 0.0
      %v490 = vmax.f32 %v482, 0.0
      %v491 = vmax.f32 %v483, 0.0
      %v492 = vmax.f32 %v484, 0.0
      %v493 = vmax.f32 %v485, 0.0
      %v494 = vmax.f32 %v486, 0.0
      %v495 = vmax.f32 %v487, 0.0
      %v496 = vmax.f32 %v488, 0.0
      %v497 = vmin.f32 %v489, 6.0
      %v498 = vmin.f32 %v490, 6.0
      %v499 = vmin.f32 %v491, 6.0
      %v500 = vmin.f32 %v492, 6.0
      %v501 = vmin.f32 %v493, 6.0
      %v502 = vmin.f32 %v494, 6.0
      %v503 = vmin.f32 %v495, 6.0
      %v504 = vmin.f32 %v496, 6.0
      %vm505 = vcmask 785408
      %506 = vst.msk [vmem:[#allocation2] sm:$0xff] %vm505, 0.0
      %vm507 = vcmask 779264
      %508 = vst.msk [vmem:[#allocation2 + $0x8] sm:$0x3] %vm507, 0.0
      %509 = vst.msk [vmem:[#allocation2 + $0x10] sm:$0xff] %vm505, 0.0
      %510 = vst.msk [vmem:[#allocation2 + $0x18] sm:$0x3] %vm507, 0.0
      %511 = vst.msk [vmem:[#allocation2 + $0x20] sm:$0xff] %vm505, 0.0
      %512 = vst.msk [vmem:[#allocation2 + $0x28] sm:$0x3] %vm507, 0.0
      %513 = vst.msk [vmem:[#allocation2 + $0x30] sm:$0xff] %vm505, 0.0
      %514 = vst.msk [vmem:[#allocation2 + $0x38] sm:$0x3] %vm507, 0.0
      %515 = vst.msk [vmem:[#allocation2 + $0x40] sm:$0xff] %vm505, 0.0
      %516 = vst.msk [vmem:[#allocation2 + $0x48] sm:$0x3] %vm507, 0.0
      %517 = vst.msk [vmem:[#allocation2 + $0x50] sm:$0xff] %vm505, 0.0
      %518 = vst.msk [vmem:[#allocation2 + $0x58] sm:$0x3] %vm507, 0.0
      %519 = vst.msk [vmem:[#allocation2 + $0x60] sm:$0xff] %vm505, 0.0
      %520 = vst.msk [vmem:[#allocation2 + $0x68] sm:$0x3] %vm507, 0.0
      %521 = vst.msk [vmem:[#allocation2 + $0x70] sm:$0xff] %vm505, 0.0
      %522 = vst.msk [vmem:[#allocation2 + $0x78] sm:$0x3] %vm507, 0.0
      %523 = vst.msk [vmem:[#allocation2 + $0x80] sm:$0xff] %vm505, 0.0
      %524 = vst.msk [vmem:[#allocation2 + $0x88] sm:$0x3] %vm507, 0.0
      %525 = vst.msk [vmem:[#allocation2 + $0x90] sm:$0xff] %vm505, 0.0
      %526 = vst.msk [vmem:[#allocation2 + $0x98] sm:$0x3] %vm507, 0.0
      %s527 = scalar_lea.vmem [#allocation2], 16
      %528 = vst.msk [vmem:[%s527 + $0x1] sm:$0xff] %vm505, %v497
      %529 = vst.msk [vmem:[%s527 + $0x11] sm:$0xff] %vm505, %v498
      %530 = vst.msk [vmem:[%s527 + $0x21] sm:$0xff] %vm505, %v499
      %531 = vst.msk [vmem:[%s527 + $0x31] sm:$0xff] %vm505, %v500
      %532 = vst.msk [vmem:[%s527 + $0x41] sm:$0xff] %vm505, %v501
      %533 = vst.msk [vmem:[%s527 + $0x51] sm:$0xff] %vm505, %v502
      %534 = vst.msk [vmem:[%s527 + $0x61] sm:$0xff] %vm505, %v503
      %535 = vst.msk [vmem:[%s527 + $0x71] sm:$0xff] %vm505, %v504
      %v536 = vld [vmem:[%s4] sm:$0xff]
      %v537 = vld [vmem:[%s4 + $0x8] sm:$0x1]
      %v538 = vld [vmem:[#allocation2] sm:$0xff]
      %v539 = vld [vmem:[#allocation2 + $0x10] sm:$0xff]
      %v540 = vld [vmem:[#allocation2 + $0x20] sm:$0xff]
      %v541 = vld [vmem:[#allocation2 + $0x30] sm:$0xff]
      %v542 = vld [vmem:[#allocation2 + $0x40] sm:$0xff]
      %v543 = vld [vmem:[#allocation2 + $0x50] sm:$0xff]
      %v544 = vld [vmem:[#allocation2 + $0x60] sm:$0xff]
      %v545 = vld [vmem:[#allocation2 + $0x70] sm:$0xff]
      %v546 = vlaneseq
      %v547 = vshrl.u32 %v546, 7
      %v548 = vsub.s32 0, %v547
      %v549 = vrot.slane %v536, %v548
      %v550 = vmul.f32 %v538, %v549
      %v551 = vmul.f32 %v539, %v549
      %v552 = vmul.f32 %v540, %v549
      %v553 = vmul.f32 %v541, %v549
      %v554 = vmul.f32 %v542, %v549
      %v555 = vmul.f32 %v543, %v549
      %v556 = vmul.f32 %v544, %v549
      %v557 = vmul.f32 %v545, %v549
      %v558 = vadd.f32 %v550, 0.0
      %v559 = vadd.f32 %v551, 0.0
      %v560 = vadd.f32 %v552, 0.0
      %v561 = vadd.f32 %v553, 0.0
      %v562 = vadd.f32 %v554, 0.0
      %v563 = vadd.f32 %v555, 0.0
      %v564 = vadd.f32 %v556, 0.0
      %v565 = vadd.f32 %v557, 0.0
      %v566 = vld [vmem:[#allocation2 + $0x1] sm:$0xff]
      %v567 = vld [vmem:[#allocation2 + $0x11] sm:$0xff]
      %v568 = vld [vmem:[#allocation2 + $0x21] sm:$0xff]
      %v569 = vld [vmem:[#allocation2 + $0x31] sm:$0xff]
      %v570 = vld [vmem:[#allocation2 + $0x41] sm:$0xff]
      %v571 = vld [vmem:[#allocation2 + $0x51] sm:$0xff]
      %v572 = vld [vmem:[#allocation2 + $0x61] sm:$0xff]
      %v573 = vld [vmem:[#allocation2 + $0x71] sm:$0xff]
      %v574 = vlaneseq
      %v575 = vshrl.u32 %v574, 7
      %v576 = vsub.s32 1, %v575
      %v577 = vrot.slane %v536, %v576
      %v578 = vmul.f32 %v566, %v577
      %v579 = vmul.f32 %v567, %v577
      %v580 = vmul.f32 %v568, %v577
      %v581 = vmul.f32 %v569, %v577
      %v582 = vmul.f32 %v570, %v577
      %v583 = vmul.f32 %v571, %v577
      %v584 = vmul.f32 %v572, %v577
      %v585 = vmul.f32 %v573, %v577
      %v586 = vadd.f32 %v558, %v578
      %v587 = vadd.f32 %v559, %v579
      %v588 = vadd.f32 %v560, %v580
      %v589 = vadd.f32 %v561, %v581
      %v590 = vadd.f32 %v562, %v582
      %v591 = vadd.f32 %v563, %v583
      %v592 = vadd.f32 %v564, %v584
      %v593 = vadd.f32 %v565, %v585
      %v594 = vld [vmem:[#allocation2 + $0x2] sm:$0xff]
      %v595 = vld [vmem:[#allocation2 + $0x12] sm:$0xff]
      %v596 = vld [vmem:[#allocation2 + $0x22] sm:$0xff]
      %v597 = vld [vmem:[#allocation2 + $0x32] sm:$0xff]
      %v598 = vld [vmem:[#allocation2 + $0x42] sm:$0xff]
      %v599 = vld [vmem:[#allocation2 + $0x52] sm:$0xff]
      %v600 = vld [vmem:[#allocation2 + $0x62] sm:$0xff]
      %v601 = vld [vmem:[#allocation2 + $0x72] sm:$0xff]
      %v602 = vlaneseq
      %v603 = vshrl.u32 %v602, 7
      %v604 = vsub.s32 2, %v603
      %v605 = vrot.slane %v536, %v604
      %v606 = vmul.f32 %v594, %v605
      %v607 = vmul.f32 %v595, %v605
      %v608 = vmul.f32 %v596, %v605
      %v609 = vmul.f32 %v597, %v605
      %v610 = vmul.f32 %v598, %v605
      %v611 = vmul.f32 %v599, %v605
      %v612 = vmul.f32 %v600, %v605
      %v613 = vmul.f32 %v601, %v605
      %v614 = vadd.f32 %v586, %v606
      %v615 = vadd.f32 %v587, %v607
      %v616 = vadd.f32 %v588, %v608
      %v617 = vadd.f32 %v589, %v609
      %v618 = vadd.f32 %v590, %v610
      %v619 = vadd.f32 %v591, %v611
      %v620 = vadd.f32 %v592, %v612
      %v621 = vadd.f32 %v593, %v613
      %v622 = vld [vmem:[%s527] sm:$0xff]
      %v623 = vld [vmem:[%s527 + $0x10] sm:$0xff]
      %v624 = vld [vmem:[%s527 + $0x20] sm:$0xff]
      %v625 = vld [vmem:[%s527 + $0x30] sm:$0xff]
      %v626 = vld [vmem:[%s527 + $0x40] sm:$0xff]
      %v627 = vld [vmem:[%s527 + $0x50] sm:$0xff]
      %v628 = vld [vmem:[%s527 + $0x60] sm:$0xff]
      %v629 = vld [vmem:[%s527 + $0x70] sm:$0xff]
      %v630 = vlaneseq
      %v631 = vshrl.u32 %v630, 7
      %v632 = vsub.s32 3, %v631
      %v633 = vrot.slane %v536, %v632
      %v634 = vmul.f32 %v622, %v633
      %v635 = vmul.f32 %v623, %v633
      %v636 = vmul.f32 %v624, %v633
      %v637 = vmul.f32 %v625, %v633
      %v638 = vmul.f32 %v626, %v633
      %v639 = vmul.f32 %v627, %v633
      %v640 = vmul.f32 %v628, %v633
      %v641 = vmul.f32 %v629, %v633
      %v642 = vadd.f32 %v614, %v634
      %v643 = vadd.f32 %v615, %v635
      %v644 = vadd.f32 %v616, %v636
      %v645 = vadd.f32 %v617, %v637
      %v646 = vadd.f32 %v618, %v638
      %v647 = vadd.f32 %v619, %v639
      %v648 = vadd.f32 %v620, %v640
      %v649 = vadd.f32 %v621, %v641
      %v650 = vld [vmem:[%s527 + $0x1] sm:$0xff]
      %v651 = vld [vmem:[%s527 + $0x11] sm:$0xff]
      %v652 = vld [vmem:[%s527 + $0x21] sm:$0xff]
      %v653 = vld [vmem:[%s527 + $0x31] sm:$0xff]
      %v654 = vld [vmem:[%s527 + $0x41] sm:$0xff]
      %v655 = vld [vmem:[%s527 + $0x51] sm:$0xff]
      %v656 = vld [vmem:[%s527 + $0x61] sm:$0xff]
      %v657 = vld [vmem:[%s527 + $0x71] sm:$0xff]
      %v658 = vlaneseq
      %v659 = vshrl.u32 %v658, 7
      %v660 = vsub.s32 4, %v659
      %v661 = vrot.slane %v536, %v660
      %v662 = vmul.f32 %v650, %v661
      %v663 = vmul.f32 %v651, %v661
      %v664 = vmul.f32 %v652, %v661
      %v665 = vmul.f32 %v653, %v661
      %v666 = vmul.f32 %v654, %v661
      %v667 = vmul.f32 %v655, %v661
      %v668 = vmul.f32 %v656, %v661
      %v669 = vmul.f32 %v657, %v661
      %v670 = vadd.f32 %v642, %v662
      %v671 = vadd.f32 %v643, %v663
      %v672 = vadd.f32 %v644, %v664
      %v673 = vadd.f32 %v645, %v665
      %v674 = vadd.f32 %v646, %v666
      %v675 = vadd.f32 %v647, %v667
      %v676 = vadd.f32 %v648, %v668
      %v677 = vadd.f32 %v649, %v669
      %v678 = vld [vmem:[%s527 + $0x2] sm:$0xff]
      %v679 = vld [vmem:[%s527 + $0x12] sm:$0xff]
      %v680 = vld [vmem:[%s527 + $0x22] sm:$0xff]
      %v681 = vld [vmem:[%s527 + $0x32] sm:$0xff]
      %v682 = vld [vmem:[%s527 + $0x42] sm:$0xff]
      %v683 = vld [vmem:[%s527 + $0x52] sm:$0xff]
      %v684 = vld [vmem:[%s527 + $0x62] sm:$0xff]
      %v685 = vld [vmem:[%s527 + $0x72] sm:$0xff]
      %v686 = vlaneseq
      %v687 = vshrl.u32 %v686, 7
      %v688 = vsub.s32 5, %v687
      %v689 = vrot.slane %v536, %v688
      %v690 = vmul.f32 %v678, %v689
      %v691 = vmul.f32 %v679, %v689
      %v692 = vmul.f32 %v680, %v689
      %v693 = vmul.f32 %v681, %v689
      %v694 = vmul.f32 %v682, %v689
      %v695 = vmul.f32 %v683, %v689
      %v696 = vmul.f32 %v684, %v689
      %v697 = vmul.f32 %v685, %v689
      %v698 = vadd.f32 %v670, %v690
      %v699 = vadd.f32 %v671, %v691
      %v700 = vadd.f32 %v672, %v692
      %v701 = vadd.f32 %v673, %v693
      %v702 = vadd.f32 %v674, %v694
      %v703 = vadd.f32 %v675, %v695
      %v704 = vadd.f32 %v676, %v696
      %v705 = vadd.f32 %v677, %v697
      %s706 = scalar_lea.vmem [#allocation2], 32
      %v707 = vld [vmem:[%s706] sm:$0xff]
      %v708 = vld [vmem:[%s706 + $0x10] sm:$0xff]
      %v709 = vld [vmem:[%s706 + $0x20] sm:$0xff]
      %v710 = vld [vmem:[%s706 + $0x30] sm:$0xff]
      %v711 = vld [vmem:[%s706 + $0x40] sm:$0xff]
      %v712 = vld [vmem:[%s706 + $0x50] sm:$0xff]
      %v713 = vld [vmem:[%s706 + $0x60] sm:$0xff]
      %v714 = vld [vmem:[%s706 + $0x70] sm:$0xff]
      %v715 = vlaneseq
      %v716 = vshrl.u32 %v715, 7
      %v717 = vsub.s32 6, %v716
      %v718 = vrot.slane %v536, %v717
      %v719 = vmul.f32 %v707, %v718
      %v720 = vmul.f32 %v708, %v718
      %v721 = vmul.f32 %v709, %v718
      %v722 = vmul.f32 %v710, %v718
      %v723 = vmul.f32 %v711, %v718
      %v724 = vmul.f32 %v712, %v718
      %v725 = vmul.f32 %v713, %v718
      %v726 = vmul.f32 %v714, %v718
      %v727 = vadd.f32 %v698, %v719
      %v728 = vadd.f32 %v699, %v720
      %v729 = vadd.f32 %v700, %v721
      %v730 = vadd.f32 %v701, %v722
      %v731 = vadd.f32 %v702, %v723
      %v732 = vadd.f32 %v703, %v724
      %v733 = vadd.f32 %v704, %v725
      %v734 = vadd.f32 %v705, %v726
      %v735 = vld [vmem:[%s706 + $0x1] sm:$0xff]
      %v736 = vld [vmem:[%s706 + $0x11] sm:$0xff]
      %v737 = vld [vmem:[%s706 + $0x21] sm:$0xff]
      %v738 = vld [vmem:[%s706 + $0x31] sm:$0xff]
      %v739 = vld [vmem:[%s706 + $0x41] sm:$0xff]
      %v740 = vld [vmem:[%s706 + $0x51] sm:$0xff]
      %v741 = vld [vmem:[%s706 + $0x61] sm:$0xff]
      %v742 = vld [vmem:[%s706 + $0x71] sm:$0xff]
      %v743 = vlaneseq
      %v744 = vshrl.u32 %v743, 7
      %v745 = vsub.s32 7, %v744
      %v746 = vrot.slane %v536, %v745
      %v747 = vmul.f32 %v735, %v746
      %v748 = vmul.f32 %v736, %v746
      %v749 = vmul.f32 %v737, %v746
      %v750 = vmul.f32 %v738, %v746
      %v751 = vmul.f32 %v739, %v746
      %v752 = vmul.f32 %v740, %v746
      %v753 = vmul.f32 %v741, %v746
      %v754 = vmul.f32 %v742, %v746
      %v755 = vadd.f32 %v727, %v747
      %v756 = vadd.f32 %v728, %v748
      %v757 = vadd.f32 %v729, %v749
      %v758 = vadd.f32 %v730, %v750
      %v759 = vadd.f32 %v731, %v751
      %v760 = vadd.f32 %v732, %v752
      %v761 = vadd.f32 %v733, %v753
      %v762 = vadd.f32 %v734, %v754
      %v763 = vld [vmem:[%s706 + $0x2] sm:$0xff]
      %v764 = vld [vmem:[%s706 + $0x12] sm:$0xff]
      %v765 = vld [vmem:[%s706 + $0x22] sm:$0xff]
      %v766 = vld [vmem:[%s706 + $0x32] sm:$0xff]
      %v767 = vld [vmem:[%s706 + $0x42] sm:$0xff]
      %v768 = vld [vmem:[%s706 + $0x52] sm:$0xff]
      %v769 = vld [vmem:[%s706 + $0x62] sm:$0xff]
      %v770 = vld [vmem:[%s706 + $0x72] sm:$0xff]
      %v771 = vlaneseq
      %v772 = vshrl.u32 %v771, 7
      %v773 = vsub.s32 0, %v772
      %v774 = vrot.slane %v537, %v773
      %v775 = vmul.f32 %v763, %v774
      %v776 = vmul.f32 %v764, %v774
      %v777 = vmul.f32 %v765, %v774
      %v778 = vmul.f32 %v766, %v774
      %v779 = vmul.f32 %v767, %v774
      %v780 = vmul.f32 %v768, %v774
      %v781 = vmul.f32 %v769, %v774
      %v782 = vmul.f32 %v770, %v774
      %v783 = vadd.f32 %v755, %v775
      %v784 = vadd.f32 %v756, %v776
      %v785 = vadd.f32 %v757, %v777
      %v786 = vadd.f32 %v758, %v778
      %v787 = vadd.f32 %v759, %v779
      %v788 = vadd.f32 %v760, %v780
      %v789 = vadd.f32 %v761, %v781
      %v790 = vadd.f32 %v762, %v782
      %v791 = vld [vmem:[%s5] sm:$0x1]
      %v793 = vlaneseq
      %v794 = vshrl.u32 %v793, 7
      %v795 = vsub.s32 0, %v794
      %v796 = vrot.slane %v791, %v795
      %v798 = vmul.f32 %v783, %v796
      %v799 = vmul.f32 %v784, %v796
      %v800 = vmul.f32 %v785, %v796
      %v801 = vmul.f32 %v786, %v796
      %v802 = vmul.f32 %v787, %v796
      %v803 = vmul.f32 %v788, %v796
      %v804 = vmul.f32 %v789, %v796
      %v805 = vmul.f32 %v790, %v796
      %v806 = vld [vmem:[%s6] sm:$0x1]
      %v808 = vlaneseq
      %v809 = vshrl.u32 %v808, 7
      %v810 = vsub.s32 0, %v809
      %v811 = vrot.slane %v806, %v810
      %v813 = vadd.f32 %v798, %v811
      %v814 = vadd.f32 %v799, %v811
      %v815 = vadd.f32 %v800, %v811
      %v816 = vadd.f32 %v801, %v811
      %v817 = vadd.f32 %v802, %v811
      %v818 = vadd.f32 %v803, %v811
      %v819 = vadd.f32 %v804, %v811
      %v820 = vadd.f32 %v805, %v811
      %v821 = vmax.f32 %v813, 0.0
      %v822 = vmax.f32 %v814, 0.0
      %v823 = vmax.f32 %v815, 0.0
      %v824 = vmax.f32 %v816, 0.0
      %v825 = vmax.f32 %v817, 0.0
      %v826 = vmax.f32 %v818, 0.0
      %v827 = vmax.f32 %v819, 0.0
      %v828 = vmax.f32 %v820, 0.0
      %v829 = vmin.f32 %v821, 6.0
      %v830 = vmin.f32 %v822, 6.0
      %v831 = vmin.f32 %v823, 6.0
      %v832 = vmin.f32 %v824, 6.0
      %v833 = vmin.f32 %v825, 6.0
      %v834 = vmin.f32 %v826, 6.0
      %v835 = vmin.f32 %v827, 6.0
      %v836 = vmin.f32 %v828, 6.0
      %v837 = vpack.c.bf16 %v830, %v829
      %v838 = vpack.c.bf16 %v832, %v831
      %v839 = vpack.c.bf16 %v834, %v833
      %v840 = vpack.c.bf16 %v836, %v835
      %v841 = vld [vmem:[%s7] sm:$0xf]
      %v842 = vld [vmem:[%s7 + $0x4] sm:$0xf]
      %v843 = vld [vmem:[%s7 + $0x8] sm:$0xf]
      %v844 = vld [vmem:[%s7 + $0xc] sm:$0xf]
      %v845 = vld [vmem:[%s7 + $0x10] sm:$0xf]
      %v846 = vld [vmem:[%s7 + $0x14] sm:$0xf]
      %v847 = vld [vmem:[%s7 + $0x18] sm:$0xf]
      %v848 = vld [vmem:[%s7 + $0x1c] sm:$0xf]
      %v849 = vld [vmem:[%s7 + $0x20] sm:$0xf]
      %v850 = vld [vmem:[%s7 + $0x24] sm:$0xf]
      %v851 = vld [vmem:[%s7 + $0x28] sm:$0xf]
      %v852 = vld [vmem:[%s7 + $0x2c] sm:$0xf]
      %v865 = vunpack.c.l.b16 %v841
      %v866 = vunpack.c.l.b16 %v842
      %v867 = vunpack.c.l.b16 %v843
      %v868 = vunpack.c.l.b16 %v844
      %v869 = vunpack.c.l.b16 %v845
      %v870 = vunpack.c.l.b16 %v846
      %v871 = vunpack.c.l.b16 %v847
      %v872 = vunpack.c.l.b16 %v848
      %v873 = vunpack.c.l.b16 %v849
      %v874 = vunpack.c.l.b16 %v850
      %v875 = vunpack.c.l.b16 %v851
      %v876 = vunpack.c.l.b16 %v852
      %v877 = vpack.c.b16 %v866, %v865
      %v878 = vpack.c.b16 %v868, %v867
      %v879 = vpack.c.b16 %v870, %v869
      %v880 = vpack.c.b16 %v872, %v871
      %v881 = vpack.c.b16 %v874, %v873
      %v882 = vpack.c.b16 %v876, %v875
      %v890 = vsel %vm505, %v837, 0
      %v893 = vsel %vm505, %v838, 0
      %v896 = vsel %vm505, %v839, 0
      %v899 = vsel %vm505, %v840, 0
      %901 = vmatprep.subr.bf16.mxu0 0
      %902 = vmatpush1.bf16.msra.mxu0 %v877
      %903 = vmatprep.subr.bf16.mxu0 0
      %904 = vmatpush1.bf16.msra.mxu0 %v878
      %905 = vmatprep.subr.bf16.mxu0 0
      %906 = vmatpush1.bf16.msra.mxu0 %v879
      %907 = vmatprep.subr.bf16.mxu0 0
      %908 = vmatpush1.bf16.msra.mxu0 %v880
      %909 = vmatprep.subr.bf16.mxu0 0
      %910 = vmatpush1.bf16.msra.mxu0 %v881
      %911 = vmatprep.subr.bf16.mxu0 0
      %912 = vmatpush1.bf16.msra.mxu0 %v882
      %913 = vmatprep.subr.bf16.mxu0 0
      %914 = vmatpush1.bf16.msra.mxu0 0
      %915 = vmatprep.subr.bf16.mxu0 0
      %916 = vmatpush1.bf16.msra.mxu0 0
      %917 = vmatprep.subr.bf16.mxu0 0
      %918 = vmatpush1.bf16.msra.mxu0 0
      %919 = vmatprep.subr.bf16.mxu0 0
      %920 = vmatpush1.bf16.msra.mxu0 0
      %921 = vmatprep.subr.bf16.mxu0 0
      %922 = vmatpush1.bf16.msra.mxu0 0
      %923 = vmatprep.subr.bf16.mxu0 0
      %924 = vmatpush1.bf16.msra.mxu0 0
      %925 = vmatprep.subr.bf16.mxu0 0
      %926 = vmatpush1.bf16.msra.mxu0 0
      %927 = vmatprep.subr.bf16.mxu0 0
      %928 = vmatpush1.bf16.msra.mxu0 0
      %929 = vmatprep.subr.bf16.mxu0 0
      %930 = vmatpush1.bf16.msra.mxu0 0
      %931 = vmatprep.subr.bf16.mxu0 0
      %932 = vmatpush1.bf16.msra.mxu0 0
      %933 = vmatprep.mubr.bf16.mxu0 0
      %934 = vmatmul.mubr.bf16.gmra.mrb[0].mxu0 %v890
      %v935 = vpop.f32.mrb[0].mxu0
      %v936 = vadd.f32 0.0, %v935
      %v937 = vpop.f32.mrb[0].mxu0
      %v938 = vpop.f32.mrb[0].mxu0
      %v939 = vadd.f32 0.0, %v938
      %v940 = vpop.f32.mrb[0].mxu0
      %941 = vmatprep.mubr.bf16.mxu0 0
      %942 = vmatmul.mubr.bf16.gmra.mrb[0].mxu0 %v893
      %v943 = vpop.f32.mrb[0].mxu0
      %v944 = vadd.f32 0.0, %v943
      %v945 = vpop.f32.mrb[0].mxu0
      %v946 = vpop.f32.mrb[0].mxu0
      %v947 = vadd.f32 0.0, %v946
      %v948 = vpop.f32.mrb[0].mxu0
      %949 = vmatprep.mubr.bf16.mxu0 0
      %950 = vmatmul.mubr.bf16.gmra.mrb[0].mxu0 %v896
      %v951 = vpop.f32.mrb[0].mxu0
      %v952 = vadd.f32 0.0, %v951
      %v953 = vpop.f32.mrb[0].mxu0
      %v954 = vpop.f32.mrb[0].mxu0
      %v955 = vadd.f32 0.0, %v954
      %v956 = vpop.f32.mrb[0].mxu0
      %957 = vmatprep.mubr.bf16.mxu0 0
      %958 = vmatmul.mubr.bf16.gmra.mrb[0].mxu0 %v899
      %v959 = vpop.f32.mrb[0].mxu0
      %v960 = vadd.f32 0.0, %v959
      %v961 = vpop.f32.mrb[0].mxu0
      %v962 = vpop.f32.mrb[0].mxu0
      %v963 = vadd.f32 0.0, %v962
      %v964 = vpop.f32.mrb[0].mxu0
      %965 = vdwg.mxu0
      %v966 = vld [vmem:[%s8] sm:$0x1]
      %v968 = vlaneseq
      %v969 = vshrl.u32 %v968, 7
      %v970 = vsub.s32 0, %v969
      %v971 = vrot.slane %v966, %v970
      %v973 = vmul.f32 %v936, %v971
      %v974 = vmul.f32 %v939, %v971
      %v975 = vmul.f32 %v944, %v971
      %v976 = vmul.f32 %v947, %v971
      %v977 = vmul.f32 %v952, %v971
      %v978 = vmul.f32 %v955, %v971
      %v979 = vmul.f32 %v960, %v971
      %v980 = vmul.f32 %v963, %v971
      %v981 = vld [vmem:[%s9] sm:$0x1]
      %v983 = vlaneseq
      %v984 = vshrl.u32 %v983, 7
      %v985 = vsub.s32 0, %v984
      %v986 = vrot.slane %v981, %v985
      %v988 = vadd.f32 %v973, %v986
      %v989 = vadd.f32 %v974, %v986
      %v990 = vadd.f32 %v975, %v986
      %v991 = vadd.f32 %v976, %v986
      %v992 = vadd.f32 %v977, %v986
      %v993 = vadd.f32 %v978, %v986
      %v994 = vadd.f32 %v979, %v986
      %v995 = vadd.f32 %v980, %v986
      %v996 = vadd.f32 %v988, %v361
      %v997 = vadd.f32 %v989, %v362
      %v998 = vadd.f32 %v990, %v363
      %v999 = vadd.f32 %v991, %v364
      %v1000 = vadd.f32 %v992, %v365
      %v1001 = vadd.f32 %v993, %v366
      %v1002 = vadd.f32 %v994, %v367
      %v1003 = vadd.f32 %v995, %v368
      %1004 = vst.msk [vmem:[%s359] sm:$0xff] %vm381, %v996
      %1005 = vst.msk [vmem:[%s359 + $0x8] sm:$0xff] %vm381, %v997
      %1006 = vst.msk [vmem:[%s359 + $0x10] sm:$0xff] %vm381, %v998
      %1007 = vst.msk [vmem:[%s359 + $0x18] sm:$0xff] %vm381, %v999
      %1008 = vst.msk [vmem:[%s359 + $0x20] sm:$0xff] %vm381, %v1000
      %1009 = vst.msk [vmem:[%s359 + $0x28] sm:$0xff] %vm381, %v1001
      %1010 = vst.msk [vmem:[%s359 + $0x30] sm:$0xff] %vm381, %v1002
      %1011 = vst.msk [vmem:[%s359 + $0x38] sm:$0xff] %vm381, %v1003
      %p1012 = scmp.lt.s32.totalorder %s21, 1
      %s1013 = scalar_select %p1012, %s21, 1
      %s1014 = smul.addr %s1013, 8
      %s1015 = smul.addr %s1014, 8
      %s1016 = scalar_lea.vmem %s10, %s1015
      // Predicated region
      $region61: #{mobilenet_backbone_forward.8} parent=59 // pred_check
        %p1017 = pneg %p254
      $region62: #{mobilenet_backbone_forward.8} parent=59 // pred_check_branch
        %1019 = sbr.rel (%p1017) target = $region64
      $region63: #{mobilenet_backbone_forward.8} parent=59 // pred_region
        _
      $region64: #{mobilenet_backbone_forward.8} parent=59 // pred_fallthru
        _
    $region60: #{mobilenet_backbone_forward.8} parent=5 // pred_fallthru
      _
    %p1020 = scmp.le.s32.totalorder 2, %s16
    // Predicated region
    $region65: #{mobilenet_backbone_forward.8} parent=5 // pred_check
      %p1021 = pneg %p1020
    $region66: #{mobilenet_backbone_forward.8} parent=5 // pred_check_branch
      %1023 = sbr.rel (%p1021) target = $region68
    $region67: #{mobilenet_backbone_forward.8} parent=5 // pred_region
      %s1024 = ssub.s32 %s16, 2
      // Predicated region
      $region69: #{mobilenet_backbone_forward.8} parent=67 // pred_check
        %p1025 = pneg %p260
      $region70: #{mobilenet_backbone_forward.8} parent=67 // pred_check_branch
        %1027 = sbr.rel (%p1025) target = $region72
      $region71: #{mobilenet_backbone_forward.8} parent=67 // pred_region
        %p1028 = scmp.lt.s32.totalorder %s22, 1
        %s1029 = scalar_select %p1028, %s22, 1
        %s1030 = smul.addr %s1029, 8
        %s1031 = smul.addr %s1030, 8
        %s1032 = scalar_lea.vmem %s10, %s1031
      $region72: #{mobilenet_backbone_forward.8} parent=67 // pred_fallthru
        _
    $region68: #{mobilenet_backbone_forward.8} parent=5 // pred_fallthru
      _
  $region6: #{mobilenet_backbone_forward.8} parent=0 // loop_footer
    %s20 = sadd.s32 1, %s16
  $region7: #{mobilenet_backbone_forward.8} parent=0 // loop_footer_branch
    %15 = sbr.rel target = $region3
  $region8: #{mobilenet_backbone_forward.8} parent=0 // loop_exit
    _

// kernel: mobilenet_backbone_forward.6
$region0: #{mobilenet_backbone_forward.6}
  #allocation0 [shape = 'u32[]', space=smem, size = 0x4, offset = 0x4, fixed_abs, tag = 'smem constant byte address 0x4 - core index']
  #allocation1 [shape = 'u32[144,128]{1,0:T(1,128)}', space=vmem, size = 0x12000, scoped, tag = 'internal scratch']
  #allocation2 [shape = 'f32[18,18,8]{2,1,0:T(8,128)}', space=vmem, size = 0x36000, scoped, tag = 'scratch operand']
  %s0 = inlined_call_operand.vmem [shape: f32[2,16,16,8], index: 0, kind: input, shape index: {}]
  %s1 = inlined_call_operand.vmem [shape: f32[9,8], index: 1, kind: input, shape index: {}]
  %s2 = inlined_call_operand.vmem [shape: f32[1,8], index: 2, kind: input, shape index: {}]
  %s3 = inlined_call_operand.vmem [shape: f32[1,8], index: 3, kind: input, shape index: {}]
  %s4 = inlined_call_operand.vmem [shape: bf16[8,16], index: 4, kind: input, shape index: {}]
  %s5 = inlined_call_operand.vmem [shape: f32[1,16], index: 5, kind: input, shape index: {}]
  %s6 = inlined_call_operand.vmem [shape: f32[1,16], index: 6, kind: input, shape index: {}]
  %s7 = inlined_call_operand.vmem [shape: f32[2,16,16,16], index: 7, kind: output, shape index: {}]
  %s8 = sld [smem:[#allocation0]]
  $region61: #{mobilenet_backbone_forward.6} parent=0
    _
  %s10 = ssub.s32 1, %s8
  %s11 = scalar_select 0, %s10, %s8
  loop: start=0, step=1, limit=4
  $region2: #{mobilenet_backbone_forward.6} parent=0 // loop_pre_header
    _
  $region3: #{mobilenet_backbone_forward.6} parent=0 // loop_header
    %s13 = sphi 0, %s17
    %p14 = scmp.ge.s32.totalorder %s13, 4
    %s23 = sphi 0, %s25
    %s26 = sphi 0, %s23
    %s27 = sphi 0, %s26
    %s43 = sphi 0, %s27
    %s47 = sphi 0, %s47
    %s49 = sphi 0, %s47
    %s50 = sphi 0, %s49
    %s64 = sphi 0, %s50
    %s68 = sphi 0, %s68
    %s70 = sphi 0, %s68
    %s71 = sphi 0, %s70
    %s85 = sphi 0, %s71
    %s89 = sphi 0, %s89
    %s91 = sphi 0, %s89
    %s92 = sphi 0, %s91
    %s106 = sphi 0, %s92
    %s110 = sphi 0, %s110
    %s112 = sphi 0, %s110
    %s113 = sphi 0, %s112
    %s127 = sphi 0, %s113
    %s131 = sphi 0, %s131
    %s133 = sphi 0, %s131
    %s134 = sphi 0, %s133
    %s148 = sphi 0, %s134
    %s152 = sphi 0, %s152
    %s154 = sphi 0, %s152
    %s155 = sphi 0, %s154
    %s169 = sphi 0, %s155
    %s175 = sphi 0, %s177
    %s178 = sphi 0, %s175
    %s179 = sphi 0, %s178
    %s195 = sphi 0, %s179
  $region4: #{mobilenet_backbone_forward.6} parent=0 // loop_header_branch
    %16 = sbr.rel (%p14) target = $region8
  $region5: #{mobilenet_backbone_forward.6} parent=0 // loop_body
    %s18 = ssub.s32 %s13, 1
    %s19 = ssub.s32 %s13, 2
    %s20 = sadd.s32 %s13, 1
    %s21 = ssub.s32 %s13, %s20
    %p22 = scmp.eq.s32.totalorder %s21, 0
    %s24 = sadd.s32 %s23, 1
    %s25 = scalar_select %p22, %s23, %s24
    %p28 = pneg %p22
    %p29 = scmp.eq.s32.totalorder %s13, 1
    %p30 = por %p28, %p29
    %p31 = scmp.ne.s32.totalorder %s23, %s26
    %p32 = scmp.eq.s32.totalorder %s13, 0
    %p33 = por %p31, %p32
    %p34 = scmp.ne.s32.totalorder %s23, %s26
    %p35 = scmp.eq.s32.totalorder %s18, 1
    %p36 = por %p34, %p35
    %p37 = scmp.ne.s32.totalorder %s26, %s27
    %p38 = scmp.eq.s32.totalorder %s18, 0
    %p39 = por %p37, %p38
    %p40 = scmp.ne.s32.totalorder %s26, %s27
    %p41 = scmp.eq.s32.totalorder %s19, 1
    %p42 = por %p40, %p41
    %p44 = scmp.ne.s32.totalorder %s27, %s43
    %p45 = scmp.eq.s32.totalorder %s19, 0
    %p46 = por %p44, %p45
    %s48 = sadd.s32 %s47, 1
    %p51 = scmp.eq.s32.totalorder %s13, 1
    %p52 = scmp.ne.s32.totalorder %s47, %s49
    %p53 = scmp.eq.s32.totalorder %s13, 0
    %p54 = por %p52, %p53
    %p55 = scmp.ne.s32.totalorder %s47, %s49
    %p56 = scmp.eq.s32.totalorder %s18, 1
    %p57 = por %p55, %p56
    %p58 = scmp.ne.s32.totalorder %s49, %s50
    %p59 = scmp.eq.s32.totalorder %s18, 0
    %p60 = por %p58, %p59
    %p61 = scmp.ne.s32.totalorder %s49, %s50
    %p62 = scmp.eq.s32.totalorder %s19, 1
    %p63 = por %p61, %p62
    %p65 = scmp.ne.s32.totalorder %s50, %s64
    %p66 = scmp.eq.s32.totalorder %s19, 0
    %p67 = por %p65, %p66
    %s69 = sadd.s32 %s68, 1
    %p72 = scmp.eq.s32.totalorder %s13, 1
    %p73 = scmp.ne.s32.totalorder %s68, %s70
    %p74 = scmp.eq.s32.totalorder %s13, 0
    %p75 = por %p73, %p74
    %p76 = scmp.ne.s32.totalorder %s68, %s70
    %p77 = scmp.eq.s32.totalorder %s18, 1
    %p78 = por %p76, %p77
    %p79 = scmp.ne.s32.totalorder %s70, %s71
    %p80 = scmp.eq.s32.totalorder %s18, 0
    %p81 = por %p79, %p80
    %p82 = scmp.ne.s32.totalorder %s70, %s71
    %p83 = scmp.eq.s32.totalorder %s19, 1
    %p84 = por %p82, %p83
    %p86 = scmp.ne.s32.totalorder %s71, %s85
    %p87 = scmp.eq.s32.totalorder %s19, 0
    %p88 = por %p86, %p87
    %s90 = sadd.s32 %s89, 1
    %p93 = scmp.eq.s32.totalorder %s13, 1
    %p94 = scmp.ne.s32.totalorder %s89, %s91
    %p95 = scmp.eq.s32.totalorder %s13, 0
    %p96 = por %p94, %p95
    %p97 = scmp.ne.s32.totalorder %s89, %s91
    %p98 = scmp.eq.s32.totalorder %s18, 1
    %p99 = por %p97, %p98
    %p100 = scmp.ne.s32.totalorder %s91, %s92
    %p101 = scmp.eq.s32.totalorder %s18, 0
    %p102 = por %p100, %p101
    %p103 = scmp.ne.s32.totalorder %s91, %s92
    %p104 = scmp.eq.s32.totalorder %s19, 1
    %p105 = por %p103, %p104
    %p107 = scmp.ne.s32.totalorder %s92, %s106
    %p108 = scmp.eq.s32.totalorder %s19, 0
    %p109 = por %p107, %p108
    %s111 = sadd.s32 %s110, 1
    %p114 = scmp.eq.s32.totalorder %s13, 1
    %p115 = scmp.ne.s32.totalorder %s110, %s112
    %p116 = scmp.eq.s32.totalorder %s13, 0
    %p117 = por %p115, %p116
    %p118 = scmp.ne.s32.totalorder %s110, %s112
    %p119 = scmp.eq.s32.totalorder %s18, 1
    %p120 = por %p118, %p119
    %p121 = scmp.ne.s32.totalorder %s112, %s113
    %p122 = scmp.eq.s32.totalorder %s18, 0
    %p123 = por %p121, %p122
    %p124 = scmp.ne.s32.totalorder %s112, %s113
    %p125 = scmp.eq.s32.totalorder %s19, 1
    %p126 = por %p124, %p125
    %p128 = scmp.ne.s32.totalorder %s113, %s127
    %p129 = scmp.eq.s32.totalorder %s19, 0
    %p130 = por %p128, %p129
    %s132 = sadd.s32 %s131, 1
    %p135 = scmp.eq.s32.totalorder %s13, 1
    %p136 = scmp.ne.s32.totalorder %s131, %s133
    %p137 = scmp.eq.s32.totalorder %s13, 0
    %p138 = por %p136, %p137
    %p139 = scmp.ne.s32.totalorder %s131, %s133
    %p140 = scmp.eq.s32.totalorder %s18, 1
    %p141 = por %p139, %p140
    %p142 = scmp.ne.s32.totalorder %s133, %s134
    %p143 = scmp.eq.s32.totalorder %s18, 0
    %p144 = por %p142, %p143
    %p145 = scmp.ne.s32.totalorder %s133, %s134
    %p146 = scmp.eq.s32.totalorder %s19, 1
    %p147 = por %p145, %p146
    %p149 = scmp.ne.s32.totalorder %s134, %s148
    %p150 = scmp.eq.s32.totalorder %s19, 0
    %p151 = por %p149, %p150
    %s153 = sadd.s32 %s152, 1
    %p156 = scmp.eq.s32.totalorder %s13, 1
    %p157 = scmp.ne.s32.totalorder %s152, %s154
    %p158 = scmp.eq.s32.totalorder %s13, 0
    %p159 = por %p157, %p158
    %p160 = scmp.ne.s32.totalorder %s152, %s154
    %p161 = scmp.eq.s32.totalorder %s18, 1
    %p162 = por %p160, %p161
    %p163 = scmp.ne.s32.totalorder %s154, %s155
    %p164 = scmp.eq.s32.totalorder %s18, 0
    %p165 = por %p163, %p164
    %p166 = scmp.ne.s32.totalorder %s154, %s155
    %p167 = scmp.eq.s32.totalorder %s19, 1
    %p168 = por %p166, %p167
    %p170 = scmp.ne.s32.totalorder %s155, %s169
    %p171 = scmp.eq.s32.totalorder %s19, 0
    %p172 = por %p170, %p171
    %s173 = ssub.s32 %s13, %s20
    %p174 = scmp.eq.s32.totalorder %s173, 0
    %s176 = sadd.s32 %s175, 1
    %s177 = scalar_select %p174, %s175, %s176
    %p180 = pneg %p174
    %p181 = scmp.eq.s32.totalorder %s13, 1
    %p182 = por %p180, %p181
    %p183 = scmp.ne.s32.totalorder %s175, %s178
    %p184 = scmp.eq.s32.totalorder %s13, 0
    %p185 = por %p183, %p184
    %p186 = scmp.ne.s32.totalorder %s175, %s178
    %p187 = scmp.eq.s32.totalorder %s18, 1
    %p188 = por %p186, %p187
    %p189 = scmp.ne.s32.totalorder %s178, %s179
    %p190 = scmp.eq.s32.totalorder %s18, 0
    %p191 = por %p189, %p190
    %p192 = scmp.ne.s32.totalorder %s178, %s179
    %p193 = scmp.eq.s32.totalorder %s19, 1
    %p194 = por %p192, %p193
    %p196 = scmp.ne.s32.totalorder %s179, %s195
    %p197 = scmp.eq.s32.totalorder %s19, 0
    %p198 = por %p196, %p197
    %p199 = scmp.le.s32.totalorder 1, %s13
    %p200 = scmp.lt.s32.totalorder %s13, 3
    %p201 = pnand %p199, %p200
    %p202 = pneg %p201
    // Predicated region
    $region9: #{mobilenet_backbone_forward.6} parent=5 // pred_check
      _
    $region10: #{mobilenet_backbone_forward.6} parent=5 // pred_check_branch
      %204 = sbr.rel (%p201) target = $region12
    $region11: #{mobilenet_backbone_forward.6} parent=5 // pred_region
      %s205 = ssub.s32 %s13, 1
      // Predicated region
      $region13: #{mobilenet_backbone_forward.6} parent=11 // pred_check
        %p206 = pneg %p60
      $region14: #{mobilenet_backbone_forward.6} parent=11 // pred_check_branch
        %208 = sbr.rel (%p206) target = $region16
      $region15: #{mobilenet_backbone_forward.6} parent=11 // pred_region
        _
      $region16: #{mobilenet_backbone_forward.6} parent=11 // pred_fallthru
        _
      // Predicated region
      $region17: #{mobilenet_backbone_forward.6} parent=11 // pred_check
        %p209 = pneg %p81
      $region18: #{mobilenet_backbone_forward.6} parent=11 // pred_check_branch
        %211 = sbr.rel (%p209) target = $region20
      $region19: #{mobilenet_backbone_forward.6} parent=11 // pred_region
        _
      $region20: #{mobilenet_backbone_forward.6} parent=11 // pred_fallthru
        _
      // Predicated region
      $region21: #{mobilenet_backbone_forward.6} parent=11 // pred_check
        %p212 = pneg %p102
      $region22: #{mobilenet_backbone_forward.6} parent=11 // pred_check_branch
        %214 = sbr.rel (%p212) target = $region24
      $region23: #{mobilenet_backbone_forward.6} parent=11 // pred_region
        _
      $region24: #{mobilenet_backbone_forward.6} parent=11 // pred_fallthru
        _
      // Predicated region
      $region25: #{mobilenet_backbone_forward.6} parent=11 // pred_check
        %p215 = pneg %p123
      $region26: #{mobilenet_backbone_forward.6} parent=11 // pred_check_branch
        %217 = sbr.rel (%p215) target = $region28
      $region27: #{mobilenet_backbone_forward.6} parent=11 // pred_region
        _
      $region28: #{mobilenet_backbone_forward.6} parent=11 // pred_fallthru
        _
      // Predicated region
      $region29: #{mobilenet_backbone_forward.6} parent=11 // pred_check
        %p218 = pneg %p144
      $region30: #{mobilenet_backbone_forward.6} parent=11 // pred_check_branch
        %220 = sbr.rel (%p218) target = $region32
      $region31: #{mobilenet_backbone_forward.6} parent=11 // pred_region
        _
      $region32: #{mobilenet_backbone_forward.6} parent=11 // pred_fallthru
        _
      // Predicated region
      $region33: #{mobilenet_backbone_forward.6} parent=11 // pred_check
        %p221 = pneg %p165
      $region34: #{mobilenet_backbone_forward.6} parent=11 // pred_check_branch
        %223 = sbr.rel (%p221) target = $region36
      $region35: #{mobilenet_backbone_forward.6} parent=11 // pred_region
        _
      $region36: #{mobilenet_backbone_forward.6} parent=11 // pred_fallthru
        _
    $region12: #{mobilenet_backbone_forward.6} parent=5 // pred_fallthru
      _
    %p224 = scmp.lt.s32.totalorder %s13, 2
    // Predicated region
    $region37: #{mobilenet_backbone_forward.6} parent=5 // pred_check
      %p225 = pneg %p224
    $region38: #{mobilenet_backbone_forward.6} parent=5 // pred_check_branch
      %227 = sbr.rel (%p225) target = $region40
    $region39: #{mobilenet_backbone_forward.6} parent=5 // pred_region
      // Predicated region
      $region41: #{mobilenet_backbone_forward.6} parent=39 // pred_check
        %p228 = pneg %p33
      $region42: #{mobilenet_backbone_forward.6} parent=39 // pred_check_branch
        %230 = sbr.rel (%p228) target = $region44
      $region43: #{mobilenet_backbone_forward.6} parent=39 // pred_region
        %p231 = scmp.lt.s32.totalorder %s13, 1
        %s232 = scalar_select %p231, %s13, 1
        %s233 = smul.addr %s232, 32
        %s234 = smul.addr %s233, 8
        %s235 = scalar_lea.vmem %s0, %s234
      $region44: #{mobilenet_backbone_forward.6} parent=39 // pred_fallthru
        _
    $region40: #{mobilenet_backbone_forward.6} parent=5 // pred_fallthru
      _
    %p236 = scmp.le.s32.totalorder 1, %s13
    %p237 = scmp.lt.s32.totalorder %s13, 3
    %p238 = pnand %p236, %p237
    %p239 = pneg %p238
    // Predicated region
    $region45: #{mobilenet_backbone_forward.6} parent=5 // pred_check
      _
    $region46: #{mobilenet_backbone_forward.6} parent=5 // pred_check_branch
      %241 = sbr.rel (%p238) target = $region48
    $region47: #{mobilenet_backbone_forward.6} parent=5 // pred_region
      %s242 = ssub.s32 %s13, 1
      %p243 = scmp.lt.s32.totalorder %s18, 1
      %s244 = scalar_select %p243, %s18, 1
      %s245 = smul.addr %s244, 32
      %s246 = smul.addr %s245, 8
      %s247 = scalar_lea.vmem %s0, %s246
      %p248 = pneg %p39
      %p249 = pneg %p36
      %p250 = pneg %p60
      %p251 = pneg %p57
      %p252 = pneg %p81
      %p253 = pneg %p78
      %p254 = pneg %p102
      %p255 = pneg %p99
      %p256 = pneg %p123
      %p257 = pneg %p120
      %p258 = pneg %p144
      %p259 = pneg %p141
      %p260 = pneg %p165
      %p261 = pneg %p162
      %p262 = pneg %p191
      %p263 = pneg %p188
      %p264 = scmp.lt.s32.totalorder %s18, 1
      %s265 = scalar_select %p264, %s18, 1
      %s266 = smul.addr %s265, 32
      %s267 = smul.addr %s266, 8
      %s268 = scalar_lea.vmem %s7, %s267
      %p269 = scmp.lt.s32.totalorder %s18, 1
      %s270 = scalar_select %p269, %s18, 1
      %s271 = smul.addr %s270, 32
      %s272 = smul.addr %s271, 8
      %s273 = scalar_lea.vmem %s0, %s272
      %p274 = scmp.lt.s32.totalorder %s18, 1
      %s275 = scalar_select %p274, %s18, 1
      %s276 = smul.addr %s275, 32
      %s277 = smul.addr %s276, 8
      %s278 = scalar_lea.vmem %s7, %s277
      %v280 = vld [vmem:[%s273] sm:$0xff]
      %v281 = vld [vmem:[%s273 + $0x8] sm:$0xff]
      %v282 = vld [vmem:[%s273 + $0x10] sm:$0xff]
      %v283 = vld [vmem:[%s273 + $0x18] sm:$0xff]
      %v284 = vld [vmem:[%s273 + $0x20] sm:$0xff]
      %v285 = vld [vmem:[%s273 + $0x28] sm:$0xff]
      %v286 = vld [vmem:[%s273 + $0x30] sm:$0xff]
      %v287 = vld [vmem:[%s273 + $0x38] sm:$0xff]
      %v288 = vld [vmem:[%s273 + $0x40] sm:$0xff]
      %v289 = vld [vmem:[%s273 + $0x48] sm:$0xff]
      %v290 = vld [vmem:[%s273 + $0x50] sm:$0xff]
      %v291 = vld [vmem:[%s273 + $0x58] sm:$0xff]
      %v292 = vld [vmem:[%s273 + $0x60] sm:$0xff]
      %v293 = vld [vmem:[%s273 + $0x68] sm:$0xff]
      %v294 = vld [vmem:[%s273 + $0x70] sm:$0xff]
      %v295 = vld [vmem:[%s273 + $0x78] sm:$0xff]
      %v296 = vld [vmem:[%s273 + $0x80] sm:$0xff]
      %v297 = vld [vmem:[%s273 + $0x88] sm:$0xff]
      %v298 = vld [vmem:[%s273 + $0x90] sm:$0xff]
      %v299 = vld [vmem:[%s273 + $0x98] sm:$0xff]
      %v300 = vld [vmem:[%s273 + $0xa0] sm:$0xff]
      %v301 = vld [vmem:[%s273 + $0xa8] sm:$0xff]
      %v302 = vld [vmem:[%s273 + $0xb0] sm:$0xff]
      %v303 = vld [vmem:[%s273 + $0xb8] sm:$0xff]
      %v304 = vld [vmem:[%s273 + $0xc0] sm:$0xff]
      %v305 = vld [vmem:[%s273 + $0xc8] sm:$0xff]
      %v306 = vld [vmem:[%s273 + $0xd0] sm:$0xff]
      %v307 = vld [vmem:[%s273 + $0xd8] sm:$0xff]
      %v308 = vld [vmem:[%s273 + $0xe0] sm:$0xff]
      %v309 = vld [vmem:[%s273 + $0xe8] sm:$0xff]
      %v310 = vld [vmem:[%s273 + $0xf0] sm:$0xff]
      %v311 = vld [vmem:[%s273 + $0xf8] sm:$0xff]
      %vm312 = vcmask 64512
      %313 = vst.msk [vmem:[#allocation2] sm:$0xff] %vm312, 0.0
      %314 = vst.msk [vmem:[#allocation2 + $0x8] sm:$0xff] %vm312, 0.0
      %vm315 = vcmask 58368
      %316 = vst.msk [vmem:[#allocation2 + $0x10] sm:$0x3] %vm315, 0.0
      %317 = vst.msk [vmem:[#allocation2 + $0x18] sm:$0xff] %vm312, 0.0
      %318 = vst.msk [vmem:[#allocation2 + $0x20] sm:$0xff] %vm312, 0.0
      %319 = vst.msk [vmem:[#allocation2 + $0x28] sm:$0x3] %vm315, 0.0
      %320 = vst.msk [vmem:[#allocation2 + $0x30] sm:$0xff] %vm312, 0.0
      %321 = vst.msk [vmem:[#allocation2 + $0x38] sm:$0xff] %vm312, 0.0
      %322 = vst.msk [vmem:[#allocation2 + $0x40] sm:$0x3] %vm315, 0.0
      %323 = vst.msk [vmem:[#allocation2 + $0x48] sm:$0xff] %vm312, 0.0
      %324 = vst.msk [vmem:[#allocation2 + $0x50] sm:$0xff] %vm312, 0.0
      %325 = vst.msk [vmem:[#allocation2 + $0x58] sm:$0x3] %vm315, 0.0
      %326 = vst.msk [vmem:[#allocation2 + $0x60] sm:$0xff] %vm312, 0.0
      %327 = vst.msk [vmem:[#allocation2 + $0x68] sm:$0xff] %vm312, 0.0
      %328 = vst.msk [vmem:[#allocation2 + $0x70] sm:$0x3] %vm315, 0.0
      %329 = vst.msk [vmem:[#allocation2 + $0x78] sm:$0xff] %vm312, 0.0
      %330 = vst.msk [vmem:[#allocation2 + $0x80] sm:$0xff] %vm312, 0.0
      %331 = vst.msk [vmem:[#allocation2 + $0x88] sm:$0x3] %vm315, 0.0
      %332 = vst.msk [vmem:[#allocation2 + $0x90] sm:$0xff] %vm312, 0.0
      %333 = vst.msk [vmem:[#allocation2 + $0x98] sm:$0xff] %vm312, 0.0
      %334 = vst.msk [vmem:[#allocation2 + $0xa0] sm:$0x3] %vm315, 0.0
      %335 = vst.msk [vmem:[#allocation2 + $0xa8] sm:$0xff] %vm312, 0.0
      %336 = vst.msk [vmem:[#allocation2 + $0xb0] sm:$0xff] %vm312, 0.0
      %337 = vst.msk [vmem:[#allocation2 + $0xb8] sm:$0x3] %vm315, 0.0
      %338 = vst.msk [vmem:[#allocation2 + $0xc0] sm:$0xff] %vm312, 0.0
      %339 = vst.msk [vmem:[#allocation2 + $0xc8] sm:$0xff] %vm312, 0.0
      %340 = vst.msk [vmem:[#allocation2 + $0xd0] sm:$0x3] %vm315, 0.0
      %341 = vst.msk [vmem:[#allocation2 + $0xd8] sm:$0xff] %vm312, 0.0
      %342 = vst.msk [vmem:[#allocation2 + $0xe0] sm:$0xff] %vm312, 0.0
      %343 = vst.msk [vmem:[#allocation2 + $0xe8] sm:$0x3] %vm315, 0.0
      %344 = vst.msk [vmem:[#allocation2 + $0xf0] sm:$0xff] %vm312, 0.0
      %345 = vst.msk [vmem:[#allocation2 + $0xf8] sm:$0xff] %vm312, 0.0
      %346 = vst.msk [vmem:[#allocation2 + $0x100] sm:$0x3] %vm315, 0.0
      %347 = vst.msk [vmem:[#allocation2 + $0x108] sm:$0xff] %vm312, 0.0
      %348 = vst.msk [vmem:[#allocation2 + $0x110] sm:$0xff] %vm312, 0.0
      %349 = vst.msk [vmem:[#allocation2 + $0x118] sm:$0x3] %vm315, 0.0
      %350 = vst.msk [vmem:[#allocation2 + $0x120] sm:$0xff] %vm312, 0.0
      %351 = vst.msk [vmem:[#allocation2 + $0x128] sm:$0xff] %vm312, 0.0
      %352 = vst.msk [vmem:[#allocation2 + $0x130] sm:$0x3] %vm315, 0.0
      %353 = vst.msk [vmem:[#allocation2 + $0x138] sm:$0xff] %vm312, 0.0
      %354 = vst.msk [vmem:[#allocation2 + $0x140] sm:$0xff] %vm312, 0.0
      %355 = vst.msk [vmem:[#allocation2 + $0x148] sm:$0x3] %vm315, 0.0
      %356 = vst.msk [vmem:[#allocation2 + $0x150] sm:$0xff] %vm312, 0.0
      %357 = vst.msk [vmem:[#allocation2 + $0x158] sm:$0xff] %vm312, 0.0
      %358 = vst.msk [vmem:[#allocation2 + $0x160] sm:$0x3] %vm315, 0.0
      %359 = vst.msk [vmem:[#allocation2 + $0x168] sm:$0xff] %vm312, 0.0
      %360 = vst.msk [vmem:[#allocation2 + $0x170] sm:$0xff] %vm312, 0.0
      %361 = vst.msk [vmem:[#allocation2 + $0x178] sm:$0x3] %vm315, 0.0
      %362 = vst.msk [vmem:[#allocation2 + $0x180] sm:$0xff] %vm312, 0.0
      %363 = vst.msk [vmem:[#allocation2 + $0x188] sm:$0xff] %vm312, 0.0
      %364 = vst.msk [vmem:[#allocation2 + $0x190] sm:$0x3] %vm315, 0.0
      %365 = vst.msk [vmem:[#allocation2 + $0x198] sm:$0xff] %vm312, 0.0
      %366 = vst.msk [vmem:[#allocation2 + $0x1a0] sm:$0xff] %vm312, 0.0
      %367 = vst.msk [vmem:[#allocation2 + $0x1a8] sm:$0x3] %vm315, 0.0
      %s368 = scalar_lea.vmem [#allocation2], 24
      %369 = vst.msk [vmem:[%s368 + $0x1] sm:$0xff] %vm312, %v280
      %370 = vst.msk [vmem:[%s368 + $0x9] sm:$0xff] %vm312, %v281
      %371 = vst.msk [vmem:[%s368 + $0x19] sm:$0xff] %vm312, %v282
      %372 = vst.msk [vmem:[%s368 + $0x21] sm:$0xff] %vm312, %v283
      %373 = vst.msk [vmem:[%s368 + $0x31] sm:$0xff] %vm312, %v284
      %374 = vst.msk [vmem:[%s368 + $0x39] sm:$0xff] %vm312, %v285
      %375 = vst.msk [vmem:[%s368 + $0x49] sm:$0xff] %vm312, %v286
      %376 = vst.msk [vmem:[%s368 + $0x51] sm:$0xff] %vm312, %v287
      %377 = vst.msk [vmem:[%s368 + $0x61] sm:$0xff] %vm312, %v288
      %378 = vst.msk [vmem:[%s368 + $0x69] sm:$0xff] %vm312, %v289
      %379 = vst.msk [vmem:[%s368 + $0x79] sm:$0xff] %vm312, %v290
      %380 = vst.msk [vmem:[%s368 + $0x81] sm:$0xff] %vm312, %v291
      %381 = vst.msk [vmem:[%s368 + $0x91] sm:$0xff] %vm312, %v292
      %382 = vst.msk [vmem:[%s368 + $0x99] sm:$0xff] %vm312, %v293
      %383 = vst.msk [vmem:[%s368 + $0xa9] sm:$0xff] %vm312, %v294
      %384 = vst.msk [vmem:[%s368 + $0xb1] sm:$0xff] %vm312, %v295
      %385 = vst.msk [vmem:[%s368 + $0xc1] sm:$0xff] %vm312, %v296
      %386 = vst.msk [vmem:[%s368 + $0xc9] sm:$0xff] %vm312, %v297
      %387 = vst.msk [vmem:[%s368 + $0xd9] sm:$0xff] %vm312, %v298
      %388 = vst.msk [vmem:[%s368 + $0xe1] sm:$0xff] %vm312, %v299
      %389 = vst.msk [vmem:[%s368 + $0xf1] sm:$0xff] %vm312, %v300
      %390 = vst.msk [vmem:[%s368 + $0xf9] sm:$0xff] %vm312, %v301
      %391 = vst.msk [vmem:[%s368 + $0x109] sm:$0xff] %vm312, %v302
      %392 = vst.msk [vmem:[%s368 + $0x111] sm:$0xff] %vm312, %v303
      %393 = vst.msk [vmem:[%s368 + $0x121] sm:$0xff] %vm312, %v304
      %394 = vst.msk [vmem:[%s368 + $0x129] sm:$0xff] %vm312, %v305
      %395 = vst.msk [vmem:[%s368 + $0x139] sm:$0xff] %vm312, %v306
      %396 = vst.msk [vmem:[%s368 + $0x141] sm:$0xff] %vm312, %v307
      %397 = vst.msk [vmem:[%s368 + $0x151] sm:$0xff] %vm312, %v308
      %398 = vst.msk [vmem:[%s368 + $0x159] sm:$0xff] %vm312, %v309
      %399 = vst.msk [vmem:[%s368 + $0x169] sm:$0xff] %vm312, %v310
      %400 = vst.msk [vmem:[%s368 + $0x171] sm:$0xff] %vm312, %v311
      %v401 = vld [vmem:[%s1] sm:$0xff]
      %v402 = vld [vmem:[%s1 + $0x8] sm:$0x1]
      %v403 = vld [vmem:[#allocation2] sm:$0xff]
      %v404 = vld [vmem:[#allocation2 + $0x8] sm:$0xff]
      %v405 = vld [vmem:[#allocation2 + $0x18] sm:$0xff]
      %v406 = vld [vmem:[#allocation2 + $0x20] sm:$0xff]
      %v407 = vld [vmem:[#allocation2 + $0x30] sm:$0xff]
      %v408 = vld [vmem:[#allocation2 + $0x38] sm:$0xff]
      %v409 = vld [vmem:[#allocation2 + $0x48] sm:$0xff]
      %v410 = vld [vmem:[#allocation2 + $0x50] sm:$0xff]
      %v411 = vld [vmem:[#allocation2 + $0x60] sm:$0xff]
      %v412 = vld [vmem:[#allocation2 + $0x68] sm:$0xff]
      %v413 = vld [vmem:[#allocation2 + $0x78] sm:$0xff]
      %v414 = vld [vmem:[#allocation2 + $0x80] sm:$0xff]
      %v415 = vld [vmem:[#allocation2 + $0x90] sm:$0xff]
      %v416 = vld [vmem:[#allocation2 + $0x98] sm:$0xff]
      %v417 = vld [vmem:[#allocation2 + $0xa8] sm:$0xff]
      %v418 = vld [vmem:[#allocation2 + $0xb0] sm:$0xff]
      %v419 = vld [vmem:[#allocation2 + $0xc0] sm:$0xff]
      %v420 = vld [vmem:[#allocation2 + $0xc8] sm:$0xff]
      %v421 = vld [vmem:[#allocation2 + $0xd8] sm:$0xff]
      %v422 = vld [vmem:[#allocation2 + $0xe0] sm:$0xff]
      %v423 = vld [vmem:[#allocation2 + $0xf0] sm:$0xff]
      %v424 = vld [vmem:[#allocation2 + $0xf8] sm:$0xff]
      %v425 = vld [vmem:[#allocation2 + $0x108] sm:$0xff]
      %v426 = vld [vmem:[#allocation2 + $0x110] sm:$0xff]
      %v427 = vld [vmem:[#allocation2 + $0x120] sm:$0xff]
      %v428 = vld [vmem:[#allocation2 + $0x128] sm:$0xff]
      %v429 = vld [vmem:[#allocation2 + $0x138] sm:$0xff]
      %v430 = vld [vmem:[#allocation2 + $0x140] sm:$0xff]
      %v431 = vld [vmem:[#allocation2 + $0x150] sm:$0xff]
      %v432 = vld [vmem:[#allocation2 + $0x158] sm:$0xff]
      %v433 = vld [vmem:[#allocation2 + $0x168] sm:$0xff]
      %v434 = vld [vmem:[#allocation2 + $0x170] sm:$0xff]
      %v435 = vlaneseq
      %v436 = vshrl.u32 %v435, 7
      %v437 = vsub.s32 0, %v436
      %v438 = vrot.slane %v401, %v437
      %v439 = vmul.f32 %v403, %v438
      %v440 = vmul.f32 %v404, %v438
      %v441 = vmul.f32 %v405, %v438
      %v442 = vmul.f32 %v406, %v438
      %v443 = vmul.f32 %v407, %v438
      %v444 = vmul.f32 %v408, %v438
      %v445 = vmul.f32 %v409, %v438
      %v446 = vmul.f32 %v410, %v438
      %v447 = vmul.f32 %v411, %v438
      %v448 = vmul.f32 %v412, %v438
      %v449 = vmul.f32 %v413, %v438
      %v450 = vmul.f32 %v414, %v438
      %v451 = vmul.f32 %v415, %v438
      %v452 = vmul.f32 %v416, %v438
      %v453 = vmul.f32 %v417, %v438
      %v454 = vmul.f32 %v418, %v438
      %v455 = vmul.f32 %v419, %v438
      %v456 = vmul.f32 %v420, %v438
      %v457 = vmul.f32 %v421, %v438
      %v458 = vmul.f32 %v422, %v438
      %v459 = vmul.f32 %v423, %v438
      %v460 = vmul.f32 %v424, %v438
      %v461 = vmul.f32 %v425, %v438
      %v462 = vmul.f32 %v426, %v438
      %v463 = vmul.f32 %v427, %v438
      %v464 = vmul.f32 %v428, %v438
      %v465 = vmul.f32 %v429, %v438
      %v466 = vmul.f32 %v430, %v438
      %v467 = vmul.f32 %v431, %v438
      %v468 = vmul.f32 %v432, %v438
      %v469 = vmul.f32 %v433, %v438
      %v470 = vmul.f32 %v434, %v438
      %v471 = vadd.f32 %v439, 0.0
      %v472 = vadd.f32 %v440, 0.0
      %v473 = vadd.f32 %v441, 0.0
      %v474 = vadd.f32 %v442, 0.0
      %v475 = vadd.f32 %v443, 0.0
      %v476 = vadd.f32 %v444, 0.0
      %v477 = vadd.f32 %v445, 0.0
      %v478 = vadd.f32 %v446, 0.0
      %v479 = vadd.f32 %v447, 0.0
      %v480 = vadd.f32 %v448, 0.0
      %v481 = vadd.f32 %v449, 0.0
      %v482 = vadd.f32 %v450, 0.0
      %v483 = vadd.f32 %v451, 0.0
      %v484 = vadd.f32 %v452, 0.0
      %v485 = vadd.f32 %v453, 0.0
      %v486 = vadd.f32 %v454, 0.0
      %v487 = vadd.f32 %v455, 0.0
      %v488 = vadd.f32 %v456, 0.0
      %v489 = vadd.f32 %v457, 0.0
      %v490 = vadd.f32 %v458, 0.0
      %v491 = vadd.f32 %v459, 0.0
      %v492 = vadd.f32 %v460, 0.0
      %v493 = vadd.f32 %v461, 0.0
      %v494 = vadd.f32 %v462, 0.0
      %v495 = vadd.f32 %v463, 0.0
      %v496 = vadd.f32 %v464, 0.0
      %v497 = vadd.f32 %v465, 0.0
      %v498 = vadd.f32 %v466, 0.0
      %v499 = vadd.f32 %v467, 0.0
      %v500 = vadd.f32 %v468, 0.0
      %v501 = vadd.f32 %v469, 0.0
      %v502 = vadd.f32 %v470, 0.0
      %v503 = vld [vmem:[#allocation2 + $0x1] sm:$0xff]
      %v504 = vld [vmem:[#allocation2 + $0x9] sm:$0xff]
      %v505 = vld [vmem:[#allocation2 + $0x19] sm:$0xff]
      %v506 = vld [vmem:[#allocation2 + $0x21] sm:$0xff]
      %v507 = vld [vmem:[#allocation2 + $0x31] sm:$0xff]
      %v508 = vld [vmem:[#allocation2 + $0x39] sm:$0xff]
      %v509 = vld [vmem:[#allocation2 + $0x49] sm:$0xff]
      %v510 = vld [vmem:[#allocation2 + $0x51] sm:$0xff]
      %v511 = vld [vmem:[#allocation2 + $0x61] sm:$0xff]
      %v512 = vld [vmem:[#allocation2 + $0x69] sm:$0xff]
      %v513 = vld [vmem:[#allocation2 + $0x79] sm:$0xff]
      %v514 = vld [vmem:[#allocation2 + $0x81] sm:$0xff]
      %v515 = vld [vmem:[#allocation2 + $0x91] sm:$0xff]
      %v516 = vld [vmem:[#allocation2 + $0x99] sm:$0xff]
      %v517 = vld [vmem:[#allocation2 + $0xa9] sm:$0xff]
      %v518 = vld [vmem:[#allocation2 + $0xb1] sm:$0xff]
      %v519 = vld [vmem:[#allocation2 + $0xc1] sm:$0xff]
      %v520 = vld [vmem:[#allocation2 + $0xc9] sm:$0xff]
      %v521 = vld [vmem:[#allocation2 + $0xd9] sm:$0xff]
      %v522 = vld [vmem:[#allocation2 + $0xe1] sm:$0xff]
      %v523 = vld [vmem:[#allocation2 + $0xf1] sm:$0xff]
      %v524 = vld [vmem:[#allocation2 + $0xf9] sm:$0xff]
      %v525 = vld [vmem:[#allocation2 + $0x109] sm:$0xff]
      %v526 = vld [vmem:[#allocation2 + $0x111] sm:$0xff]
      %v527 = vld [vmem:[#allocation2 + $0x121] sm:$0xff]
      %v528 = vld [vmem:[#allocation2 + $0x129] sm:$0xff]
      %v529 = vld [vmem:[#allocation2 + $0x139] sm:$0xff]
      %v530 = vld [vmem:[#allocation2 + $0x141] sm:$0xff]
      %v531 = vld [vmem:[#allocation2 + $0x151] sm:$0xff]
      %v532 = vld [vmem:[#allocation2 + $0x159] sm:$0xff]
      %v533 = vld [vmem:[#allocation2 + $0x169] sm:$0xff]
      %v534 = vld [vmem:[#allocation2 + $0x171] sm:$0xff]
      %v535 = vlaneseq
      %v536 = vshrl.u32 %v535, 7
      %v537 = vsub.s32 1, %v536
      %v538 = vrot.slane %v401, %v537
      %v539 = vmul.f32 %v503, %v538
      %v540 = vmul.f32 %v504, %v538
      %v541 = vmul.f32 %v505, %v538
      %v542 = vmul.f32 %v506, %v538
      %v543 = vmul.f32 %v507, %v538
      %v544 = vmul.f32 %v508, %v538
      %v545 = vmul.f32 %v509, %v538
      %v546 = vmul.f32 %v510, %v538
      %v547 = vmul.f32 %v511, %v538
      %v548 = vmul.f32 %v512, %v538
      %v549 = vmul.f32 %v513, %v538
      %v550 = vmul.f32 %v514, %v538
      %v551 = vmul.f32 %v515, %v538
      %v552 = vmul.f32 %v516, %v538
      %v553 = vmul.f32 %v517, %v538
      %v554 = vmul.f32 %v518, %v538
      %v555 = vmul.f32 %v519, %v538
      %v556 = vmul.f32 %v520, %v538
      %v557 = vmul.f32 %v521, %v538
      %v558 = vmul.f32 %v522, %v538
      %v559 = vmul.f32 %v523, %v538
      %v560 = vmul.f32 %v524, %v538
      %v561 = vmul.f32 %v525, %v538
      %v562 = vmul.f32 %v526, %v538
      %v563 = vmul.f32 %v527, %v538
      %v564 = vmul.f32 %v528, %v538
      %v565 = vmul.f32 %v529, %v538
      %v566 = vmul.f32 %v530, %v538
      %v567 = vmul.f32 %v531, %v538
      %v568 = vmul.f32 %v532, %v538
      %v569 = vmul.f32 %v533, %v538
      %v570 = vmul.f32 %v534, %v538
      %v571 = vadd.f32 %v471, %v539
      %v572 = vadd.f32 %v472, %v540
      %v573 = vadd.f32 %v473, %v541
      %v574 = vadd.f32 %v474, %v542
      %v575 = vadd.f32 %v475, %v543
      %v576 = vadd.f32 %v476, %v544
      %v577 = vadd.f32 %v477, %v545
      %v578 = vadd.f32 %v478, %v546
      %v579 = vadd.f32 %v479, %v547
      %v580 = vadd.f32 %v480, %v548
      %v581 = vadd.f32 %v481, %v549
      %v582 = vadd.f32 %v482, %v550
      %v583 = vadd.f32 %v483, %v551
      %v584 = vadd.f32 %v484, %v552
      %v585 = vadd.f32 %v485, %v553
      %v586 = vadd.f32 %v486, %v554
      %v587 = vadd.f32 %v487, %v555
      %v588 = vadd.f32 %v488, %v556
      %v589 = vadd.f32 %v489, %v557
      %v590 = vadd.f32 %v490, %v558
      %v591 = vadd.f32 %v491, %v559
      %v592 = vadd.f32 %v492, %v560
      %v593 = vadd.f32 %v493, %v561
      %v594 = vadd.f32 %v494, %v562
      %v595 = vadd.f32 %v495, %v563
      %v596 = vadd.f32 %v496, %v564
      %v597 = vadd.f32 %v497, %v565
      %v598 = vadd.f32 %v498, %v566
      %v599 = vadd.f32 %v499, %v567
      %v600 = vadd.f32 %v500, %v568
      %v601 = vadd.f32 %v501, %v569
      %v602 = vadd.f32 %v502, %v570
      %v603 = vld [vmem:[#allocation2 + $0x2] sm:$0xff]
      %v604 = vld [vmem:[#allocation2 + $0xa] sm:$0xff]
      %v605 = vld [vmem:[#allocation2 + $0x1a] sm:$0xff]
      %v606 = vld [vmem:[#allocation2 + $0x22] sm:$0xff]
      %v607 = vld [vmem:[#allocation2 + $0x32] sm:$0xff]
      %v608 = vld [vmem:[#allocation2 + $0x3a] sm:$0xff]
      %v609 = vld [vmem:[#allocation2 + $0x4a] sm:$0xff]
      %v610 = vld [vmem:[#allocation2 + $0x52] sm:$0xff]
      %v611 = vld [vmem:[#allocation2 + $0x62] sm:$0xff]
      %v612 = vld [vmem:[#allocation2 + $0x6a] sm:$0xff]
      %v613 = vld [vmem:[#allocation2 + $0x7a] sm:$0xff]
      %v614 = vld [vmem:[#allocation2 + $0x82] sm:$0xff]
      %v615 = vld [vmem:[#allocation2 + $0x92] sm:$0xff]
      %v616 = vld [vmem:[#allocation2 + $0x9a] sm:$0xff]
      %v617 = vld [vmem:[#allocation2 + $0xaa] sm:$0xff]
      %v618 = vld [vmem:[#allocation2 + $0xb2] sm:$0xff]
      %v619 = vld [vmem:[#allocation2 + $0xc2] sm:$0xff]
      %v620 = vld [vmem:[#allocation2 + $0xca] sm:$0xff]
      %v621 = vld [vmem:[#allocation2 + $0xda] sm:$0xff]
      %v622 = vld [vmem:[#allocation2 + $0xe2] sm:$0xff]
      %v623 = vld [vmem:[#allocation2 + $0xf2] sm:$0xff]
      %v624 = vld [vmem:[#allocation2 + $0xfa] sm:$0xff]
      %v625 = vld [vmem:[#allocation2 + $0x10a] sm:$0xff]
      %v626 = vld [vmem:[#allocation2 + $0x112] sm:$0xff]
      %v627 = vld [vmem:[#allocation2 + $0x122] sm:$0xff]
      %v628 = vld [vmem:[#allocation2 + $0x12a] sm:$0xff]
      %v629 = vld [vmem:[#allocation2 + $0x13a] sm:$0xff]
      %v630 = vld [vmem:[#allocation2 + $0x142] sm:$0xff]
      %v631 = vld [vmem:[#allocation2 + $0x152] sm:$0xff]
      %v632 = vld [vmem:[#allocation2 + $0x15a] sm:$0xff]
      %v633 = vld [vmem:[#allocation2 + $0x16a] sm:$0xff]
      %v634 = vld [vmem:[#allocation2 + $0x172] sm:$0xff]
      %v635 = vlaneseq
      %v636 = vshrl.u32 %v635, 7
      %v637 = vsub.s32 2, %v636
      %v638 = vrot.slane %v401, %v637
      %v639 = vmul.f32 %v603, %v638
      %v640 = vmul.f32 %v604, %v638
      %v641 = vmul.f32 %v605, %v638
      %v642 = vmul.f32 %v606, %v638
      %v643 = vmul.f32 %v607, %v638
      %v644 = vmul.f32 %v608, %v638
      %v645 = vmul.f32 %v609, %v638
      %v646 = vmul.f32 %v610, %v638
      %v647 = vmul.f32 %v611, %v638
      %v648 = vmul.f32 %v612, %v638
      %v649 = vmul.f32 %v613, %v638
      %v650 = vmul.f32 %v614, %v638
      %v651 = vmul.f32 %v615, %v638
      %v652 = vmul.f32 %v616, %v638
      %v653 = vmul.f32 %v617, %v638
      %v654 = vmul.f32 %v618, %v638
      %v655 = vmul.f32 %v619, %v638
      %v656 = vmul.f32 %v620, %v638
      %v657 = vmul.f32 %v621, %v638
      %v658 = vmul.f32 %v622, %v638
      %v659 = vmul.f32 %v623, %v638
      %v660 = vmul.f32 %v624, %v638
      %v661 = vmul.f32 %v625, %v638
      %v662 = vmul.f32 %v626, %v638
      %v663 = vmul.f32 %v627, %v638
      %v664 = vmul.f32 %v628, %v638
      %v665 = vmul.f32 %v629, %v638
      %v666 = vmul.f32 %v630, %v638
      %v667 = vmul.f32 %v631, %v638
      %v668 = vmul.f32 %v632, %v638
      %v669 = vmul.f32 %v633, %v638
      %v670 = vmul.f32 %v634, %v638
      %v671 = vadd.f32 %v571, %v639
      %v672 = vadd.f32 %v572, %v640
      %v673 = vadd.f32 %v573, %v641
      %v674 = vadd.f32 %v574, %v642
      %v675 = vadd.f32 %v575, %v643
      %v676 = vadd.f32 %v576, %v644
      %v677 = vadd.f32 %v577, %v645
      %v678 = vadd.f32 %v578, %v646
      %v679 = vadd.f32 %v579, %v647
      %v680 = vadd.f32 %v580, %v648
      %v681 = vadd.f32 %v581, %v649
      %v682 = vadd.f32 %v582, %v650
      %v683 = vadd.f32 %v583, %v651
      %v684 = vadd.f32 %v584, %v652
      %v685 = vadd.f32 %v585, %v653
      %v686 = vadd.f32 %v586, %v654
      %v687 = vadd.f32 %v587, %v655
      %v688 = vadd.f32 %v588, %v656
      %v689 = vadd.f32 %v589, %v657
      %v690 = vadd.f32 %v590, %v658
      %v691 = vadd.f32 %v591, %v659
      %v692 = vadd.f32 %v592, %v660
      %v693 = vadd.f32 %v593, %v661
      %v694 = vadd.f32 %v594, %v662
      %v695 = vadd.f32 %v595, %v663
      %v696 = vadd.f32 %v596, %v664
      %v697 = vadd.f32 %v597, %v665
      %v698 = vadd.f32 %v598, %v666
      %v699 = vadd.f32 %v599, %v667
      %v700 = vadd.f32 %v600, %v668
      %v701 = vadd.f32 %v601, %v669
      %v702 = vadd.f32 %v602, %v670
      %v703 = vld [vmem:[%s368] sm:$0xff]
      %v704 = vld [vmem:[%s368 + $0x8] sm:$0xff]
      %v705 = vld [vmem:[%s368 + $0x18] sm:$0xff]
      %v706 = vld [vmem:[%s368 + $0x20] sm:$0xff]
      %v707 = vld [vmem:[%s368 + $0x30] sm:$0xff]
      %v708 = vld [vmem:[%s368 + $0x38] sm:$0xff]
      %v709 = vld [vmem:[%s368 + $0x48] sm:$0xff]
      %v710 = vld [vmem:[%s368 + $0x50] sm:$0xff]
      %v711 = vld [vmem:[%s368 + $0x60] sm:$0xff]
      %v712 = vld [vmem:[%s368 + $0x68] sm:$0xff]
      %v713 = vld [vmem:[%s368 + $0x78] sm:$0xff]
      %v714 = vld [vmem:[%s368 + $0x80] sm:$0xff]
      %v715 = vld [vmem:[%s368 + $0x90] sm:$0xff]
      %v716 = vld [vmem:[%s368 + $0x98] sm:$0xff]
      %v717 = vld [vmem:[%s368 + $0xa8] sm:$0xff]
      %v718 = vld [vmem:[%s368 + $0xb0] sm:$0xff]
      %v719 = vld [vmem:[%s368 + $0xc0] sm:$0xff]
      %v720 = vld [vmem:[%s368 + $0xc8] sm:$0xff]
      %v721 = vld [vmem:[%s368 + $0xd8] sm:$0xff]
      %v722 = vld [vmem:[%s368 + $0xe0] sm:$0xff]
      %v723 = vld [vmem:[%s368 + $0xf0] sm:$0xff]
      %v724 = vld [vmem:[%s368 + $0xf8] sm:$0xff]
      %v725 = vld [vmem:[%s368 + $0x108] sm:$0xff]
      %v726 = vld [vmem:[%s368 + $0x110] sm:$0xff]
      %v727 = vld [vmem:[%s368 + $0x120] sm:$0xff]
      %v728 = vld [vmem:[%s368 + $0x128] sm:$0xff]
      %v729 = vld [vmem:[%s368 + $0x138] sm:$0xff]
      %v730 = vld [vmem:[%s368 + $0x140] sm:$0xff]
      %v731 = vld [vmem:[%s368 + $0x150] sm:$0xff]
      %v732 = vld [vmem:[%s368 + $0x158] sm:$0xff]
      %v733 = vld [vmem:[%s368 + $0x168] sm:$0xff]
      %v734 = vld [vmem:[%s368 + $0x170] sm:$0xff]
      %v735 = vlaneseq
      %v736 = vshrl.u32 %v735, 7
      %v737 = vsub.s32 3, %v736
      %v738 = vrot.slane %v401, %v737
      %v739 = vmul.f32 %v703, %v738
      %v740 = vmul.f32 %v704, %v738
      %v741 = vmul.f32 %v705, %v738
      %v742 = vmul.f32 %v706, %v738
      %v743 = vmul.f32 %v707, %v738
      %v744 = vmul.f32 %v708, %v738
      %v745 = vmul.f32 %v709, %v738
      %v746 = vmul.f32 %v710, %v738
      %v747 = vmul.f32 %v711, %v738
      %v748 = vmul.f32 %v712, %v738
      %v749 = vmul.f32 %v713, %v738
      %v750 = vmul.f32 %v714, %v738
      %v751 = vmul.f32 %v715, %v738
      %v752 = vmul.f32 %v716, %v738
      %v753 = vmul.f32 %v717, %v738
      %v754 = vmul.f32 %v718, %v738
      %v755 = vmul.f32 %v719, %v738
      %v756 = vmul.f32 %v720, %v738
      %v757 = vmul.f32 %v721, %v738
      %v758 = vmul.f32 %v722, %v738
      %v759 = vmul.f32 %v723, %v738
      %v760 = vmul.f32 %v724, %v738
      %v761 = vmul.f32 %v725, %v738
      %v762 = vmul.f32 %v726, %v738
      %v763 = vmul.f32 %v727, %v738
      %v764 = vmul.f32 %v728, %v738
      %v765 = vmul.f32 %v729, %v738
      %v766 = vmul.f32 %v730, %v738
      %v767 = vmul.f32 %v731, %v738
      %v768 = vmul.f32 %v732, %v738
      %v769 = vmul.f32 %v733, %v738
      %v770 = vmul.f32 %v734, %v738
      %v771 = vadd.f32 %v671, %v739
      %v772 = vadd.f32 %v672, %v740
      %v773 = vadd.f32 %v673, %v741
      %v774 = vadd.f32 %v674, %v742
      %v775 = vadd.f32 %v675, %v743
      %v776 = vadd.f32 %v676, %v744
      %v777 = vadd.f32 %v677, %v745
      %v778 = vadd.f32 %v678, %v746
      %v779 = vadd.f32 %v679, %v747
      %v780 = vadd.f32 %v680, %v748
      %v781 = vadd.f32 %v681, %v749
      %v782 = vadd.f32 %v682, %v750
      %v783 = vadd.f32 %v683, %v751
      %v784 = vadd.f32 %v684, %v752
      %v785 = vadd.f32 %v685, %v753
      %v786 = vadd.f32 %v686, %v754
      %v787 = vadd.f32 %v687, %v755
      %v788 = vadd.f32 %v688, %v756
      %v789 = vadd.f32 %v689, %v757
      %v790 = vadd.f32 %v690, %v758
      %v791 = vadd.f32 %v691, %v759
      %v792 = vadd.f32 %v692, %v760
      %v793 = vadd.f32 %v693, %v761
      %v794 = vadd.f32 %v694, %v762
      %v795 = vadd.f32 %v695, %v763
      %v796 = vadd.f32 %v696, %v764
      %v797 = vadd.f32 %v697, %v765
      %v798 = vadd.f32 %v698, %v766
      %v799 = vadd.f32 %v699, %v767
      %v800 = vadd.f32 %v700, %v768
      %v801 = vadd.f32 %v701, %v769
      %v802 = vadd.f32 %v702, %v770
      %v803 = vld [vmem:[%s368 + $0x1] sm:$0xff]
      %v804 = vld [vmem:[%s368 + $0x9] sm:$0xff]
      %v805 = vld [vmem:[%s368 + $0x19] sm:$0xff]
      %v806 = vld [vmem:[%s368 + $0x21] sm:$0xff]
      %v807 = vld [vmem:[%s368 + $0x31] sm:$0xff]
      %v808 = vld [vmem:[%s368 + $0x39] sm:$0xff]
      %v809 = vld [vmem:[%s368 + $0x49] sm:$0xff]
      %v810 = vld [vmem:[%s368 + $0x51] sm:$0xff]
      %v811 = vld [vmem:[%s368 + $0x61] sm:$0xff]
      %v812 = vld [vmem:[%s368 + $0x69] sm:$0xff]
      %v813 = vld [vmem:[%s368 + $0x79] sm:$0xff]
      %v814 = vld [vmem:[%s368 + $0x81] sm:$0xff]
      %v815 = vld [vmem:[%s368 + $0x91] sm:$0xff]
      %v816 = vld [vmem:[%s368 + $0x99] sm:$0xff]
      %v817 = vld [vmem:[%s368 + $0xa9] sm:$0xff]
      %v818 = vld [vmem:[%s368 + $0xb1] sm:$0xff]
      %v819 = vld [vmem:[%s368 + $0xc1] sm:$0xff]
      %v820 = vld [vmem:[%s368 + $0xc9] sm:$0xff]
      %v821 = vld [vmem:[%s368 + $0xd9] sm:$0xff]
      %v822 = vld [vmem:[%s368 + $0xe1] sm:$0xff]
      %v823 = vld [vmem:[%s368 + $0xf1] sm:$0xff]
      %v824 = vld [vmem:[%s368 + $0xf9] sm:$0xff]
      %v825 = vld [vmem:[%s368 + $0x109] sm:$0xff]
      %v826 = vld [vmem:[%s368 + $0x111] sm:$0xff]
      %v827 = vld [vmem:[%s368 + $0x121] sm:$0xff]
      %v828 = vld [vmem:[%s368 + $0x129] sm:$0xff]
      %v829 = vld [vmem:[%s368 + $0x139] sm:$0xff]
      %v830 = vld [vmem:[%s368 + $0x141] sm:$0xff]
      %v831 = vld [vmem:[%s368 + $0x151] sm:$0xff]
      %v832 = vld [vmem:[%s368 + $0x159] sm:$0xff]
      %v833 = vld [vmem:[%s368 + $0x169] sm:$0xff]
      %v834 = vld [vmem:[%s368 + $0x171] sm:$0xff]
      %v835 = vlaneseq
      %v836 = vshrl.u32 %v835, 7
      %v837 = vsub.s32 4, %v836
      %v838 = vrot.slane %v401, %v837
      %v839 = vmul.f32 %v803, %v838
      %v840 = vmul.f32 %v804, %v838
      %v841 = vmul.f32 %v805, %v838
      %v842 = vmul.f32 %v806, %v838
      %v843 = vmul.f32 %v807, %v838
      %v844 = vmul.f32 %v808, %v838
      %v845 = vmul.f32 %v809, %v838
      %v846 = vmul.f32 %v810, %v838
      %v847 = vmul.f32 %v811, %v838
      %v848 = vmul.f32 %v812, %v838
      %v849 = vmul.f32 %v813, %v838
      %v850 = vmul.f32 %v814, %v838
      %v851 = vmul.f32 %v815, %v838
      %v852 = vmul.f32 %v816, %v838
      %v853 = vmul.f32 %v817, %v838
      %v854 = vmul.f32 %v818, %v838
      %v855 = vmul.f32 %v819, %v838
      %v856 = vmul.f32 %v820, %v838
      %v857 = vmul.f32 %v821, %v838
      %v858 = vmul.f32 %v822, %v838
      %v859 = vmul.f32 %v823, %v838
      %v860 = vmul.f32 %v824, %v838
      %v861 = vmul.f32 %v825, %v838
      %v862 = vmul.f32 %v826, %v838
      %v863 = vmul.f32 %v827, %v838
      %v864 = vmul.f32 %v828, %v838
      %v865 = vmul.f32 %v829, %v838
      %v866 = vmul.f32 %v830, %v838
      %v867 = vmul.f32 %v831, %v838
      %v868 = vmul.f32 %v832, %v838
      %v869 = vmul.f32 %v833, %v838
      %v870 = vmul.f32 %v834, %v838
      %v871 = vadd.f32 %v771, %v839
      %v872 = vadd.f32 %v772, %v840
      %v873 = vadd.f32 %v773, %v841
      %v874 = vadd.f32 %v774, %v842
      %v875 = vadd.f32 %v775, %v843
      %v876 = vadd.f32 %v776, %v844
      %v877 = vadd.f32 %v777, %v845
      %v878 = vadd.f32 %v778, %v846
      %v879 = vadd.f32 %v779, %v847
      %v880 = vadd.f32 %v780, %v848
      %v881 = vadd.f32 %v781, %v849
      %v882 = vadd.f32 %v782, %v850
      %v883 = vadd.f32 %v783, %v851
      %v884 = vadd.f32 %v784, %v852
      %v885 = vadd.f32 %v785, %v853
      %v886 = vadd.f32 %v786, %v854
      %v887 = vadd.f32 %v787, %v855
      %v888 = vadd.f32 %v788, %v856
      %v889 = vadd.f32 %v789, %v857
      %v890 = vadd.f32 %v790, %v858
      %v891 = vadd.f32 %v791, %v859
      %v892 = vadd.f32 %v792, %v860
      %v893 = vadd.f32 %v793, %v861
      %v894 = vadd.f32 %v794, %v862
      %v895 = vadd.f32 %v795, %v863
      %v896 = vadd.f32 %v796, %v864
      %v897 = vadd.f32 %v797, %v865
      %v898 = vadd.f32 %v798, %v866
      %v899 = vadd.f32 %v799, %v867
      %v900 = vadd.f32 %v800, %v868
      %v901 = vadd.f32 %v801, %v869
      %v902 = vadd.f32 %v802, %v870
      %v903 = vld [vmem:[%s368 + $0x2] sm:$0xff]
      %v904 = vld [vmem:[%s368 + $0xa] sm:$0xff]
      %v905 = vld [vmem:[%s368 + $0x1a] sm:$0xff]
      %v906 = vld [vmem:[%s368 + $0x22] sm:$0xff]
      %v907 = vld [vmem:[%s368 + $0x32] sm:$0xff]
      %v908 = vld [vmem:[%s368 + $0x3a] sm:$0xff]
      %v909 = vld [vmem:[%s368 + $0x4a] sm:$0xff]
      %v910 = vld [vmem:[%s368 + $0x52] sm:$0xff]
      %v911 = vld [vmem:[%s368 + $0x62] sm:$0xff]
      %v912 = vld [vmem:[%s368 + $0x6a] sm:$0xff]
      %v913 = vld [vmem:[%s368 + $0x7a] sm:$0xff]
      %v914 = vld [vmem:[%s368 + $0x82] sm:$0xff]
      %v915 = vld [vmem:[%s368 + $0x92] sm:$0xff]
      %v916 = vld [vmem:[%s368 + $0x9a] sm:$0xff]
      %v917 = vld [vmem:[%s368 + $0xaa] sm:$0xff]
      %v918 = vld [vmem:[%s368 + $0xb2] sm:$0xff]
      %v919 = vld [vmem:[%s368 + $0xc2] sm:$0xff]
      %v920 = vld [vmem:[%s368 + $0xca] sm:$0xff]
      %v921 = vld [vmem:[%s368 + $0xda] sm:$0xff]
      %v922 = vld [vmem:[%s368 + $0xe2] sm:$0xff]
      %v923 = vld [vmem:[%s368 + $0xf2] sm:$0xff]
      %v924 = vld [vmem:[%s368 + $0xfa] sm:$0xff]
      %v925 = vld [vmem:[%s368 + $0x10a] sm:$0xff]
      %v926 = vld [vmem:[%s368 + $0x112] sm:$0xff]
      %v927 = vld [vmem:[%s368 + $0x122] sm:$0xff]
      %v928 = vld [vmem:[%s368 + $0x12a] sm:$0xff]
      %v929 = vld [vmem:[%s368 + $0x13a] sm:$0xff]
      %v930 = vld [vmem:[%s368 + $0x142] sm:$0xff]
      %v931 = vld [vmem:[%s368 + $0x152] sm:$0xff]
      %v932 = vld [vmem:[%s368 + $0x15a] sm:$0xff]
      %v933 = vld [vmem:[%s368 + $0x16a] sm:$0xff]
      %v934 = vld [vmem:[%s368 + $0x172] sm:$0xff]
      %v935 = vlaneseq
      %v936 = vshrl.u32 %v935, 7
      %v937 = vsub.s32 5, %v936
      %v938 = vrot.slane %v401, %v937
      %v939 = vmul.f32 %v903, %v938
      %v940 = vmul.f32 %v904, %v938
      %v941 = vmul.f32 %v905, %v938
      %v942 = vmul.f32 %v906, %v938
      %v943 = vmul.f32 %v907, %v938
      %v944 = vmul.f32 %v908, %v938
      %v945 = vmul.f32 %v909, %v938
      %v946 = vmul.f32 %v910, %v938
      %v947 = vmul.f32 %v911, %v938
      %v948 = vmul.f32 %v912, %v938
      %v949 = vmul.f32 %v913, %v938
      %v950 = vmul.f32 %v914, %v938
      %v951 = vmul.f32 %v915, %v938
      %v952 = vmul.f32 %v916, %v938
      %v953 = vmul.f32 %v917, %v938
      %v954 = vmul.f32 %v918, %v938
      %v955 = vmul.f32 %v919, %v938
      %v956 = vmul.f32 %v920, %v938
      %v957 = vmul.f32 %v921, %v938
      %v958 = vmul.f32 %v922, %v938
      %v959 = vmul.f32 %v923, %v938
      %v960 = vmul.f32 %v924, %v938
      %v961 = vmul.f32 %v925, %v938
      %v962 = vmul.f32 %v926, %v938
      %v963 = vmul.f32 %v927, %v938
      %v964 = vmul.f32 %v928, %v938
      %v965 = vmul.f32 %v929, %v938
      %v966 = vmul.f32 %v930, %v938
      %v967 = vmul.f32 %v931, %v938
      %v968 = vmul.f32 %v932, %v938
      %v969 = vmul.f32 %v933, %v938
      %v970 = vmul.f32 %v934, %v938
      %v971 = vadd.f32 %v871, %v939
      %v972 = vadd.f32 %v872, %v940
      %v973 = vadd.f32 %v873, %v941
      %v974 = vadd.f32 %v874, %v942
      %v975 = vadd.f32 %v875, %v943
      %v976 = vadd.f32 %v876, %v944
      %v977 = vadd.f32 %v877, %v945
      %v978 = vadd.f32 %v878, %v946
      %v979 = vadd.f32 %v879, %v947
      %v980 = vadd.f32 %v880, %v948
      %v981 = vadd.f32 %v881, %v949
      %v982 = vadd.f32 %v882, %v950
      %v983 = vadd.f32 %v883, %v951
      %v984 = vadd.f32 %v884, %v952
      %v985 = vadd.f32 %v885, %v953
      %v986 = vadd.f32 %v886, %v954
      %v987 = vadd.f32 %v887, %v955
      %v988 = vadd.f32 %v888, %v956
      %v989 = vadd.f32 %v889, %v957
      %v990 = vadd.f32 %v890, %v958
      %v991 = vadd.f32 %v891, %v959
      %v992 = vadd.f32 %v892, %v960
      %v993 = vadd.f32 %v893, %v961
      %v994 = vadd.f32 %v894, %v962
      %v995 = vadd.f32 %v895, %v963
      %v996 = vadd.f32 %v896, %v964
      %v997 = vadd.f32 %v897, %v965
      %v998 = vadd.f32 %v898, %v966
      %v999 = vadd.f32 %v899, %v967
      %v1000 = vadd.f32 %v900, %v968
      %v1001 = vadd.f32 %v901, %v969
      %v1002 = vadd.f32 %v902, %v970
      %s1003 = scalar_lea.vmem [#allocation2], 48
      %v1004 = vld [vmem:[%s1003] sm:$0xff]
      %v1005 = vld [vmem:[%s1003 + $0x8] sm:$0xff]
      %v1006 = vld [vmem:[%s1003 + $0x18] sm:$0xff]
      %v1007 = vld [vmem:[%s1003 + $0x20] sm:$0xff]
      %v1008 = vld [vmem:[%s1003 + $0x30] sm:$0xff]
      %v1009 = vld [vmem:[%s1003 + $0x38] sm:$0xff]
      %v1010 = vld [vmem:[%s1003 + $0x48] sm:$0xff]
      %v1011 = vld [vmem:[%s1003 + $0x50] sm:$0xff]
      %v1012 = vld [vmem:[%s1003 + $0x60] sm:$0xff]
      %v1013 = vld [vmem:[%s1003 + $0x68] sm:$0xff]
      %v1014 = vld [vmem:[%s1003 + $0x78] sm:$0xff]
      %v1015 = vld [vmem:[%s1003 + $0x80] sm:$0xff]
      %v1016 = vld [vmem:[%s1003 + $0x90] sm:$0xff]
      %v1017 = vld [vmem:[%s1003 + $0x98] sm:$0xff]
      %v1018 = vld [vmem:[%s1003 + $0xa8] sm:$0xff]
      %v1019 = vld [vmem:[%s1003 + $0xb0] sm:$0xff]
      %v1020 = vld [vmem:[%s1003 + $0xc0] sm:$0xff]
      %v1021 = vld [vmem:[%s1003 + $0xc8] sm:$0xff]
      %v1022 = vld [vmem:[%s1003 + $0xd8] sm:$0xff]
      %v1023 = vld [vmem:[%s1003 + $0xe0] sm:$0xff]
      %v1024 = vld [vmem:[%s1003 + $0xf0] sm:$0xff]
      %v1025 = vld [vmem:[%s1003 + $0xf8] sm:$0xff]
      %v1026 = vld [vmem:[%s1003 + $0x108] sm:$0xff]
      %v1027 = vld [vmem:[%s1003 + $0x110] sm:$0xff]
      %v1028 = vld [vmem:[%s1003 + $0x120] sm:$0xff]
      %v1029 = vld [vmem:[%s1003 + $0x128] sm:$0xff]
      %v1030 = vld [vmem:[%s1003 + $0x138] sm:$0xff]
      %v1031 = vld [vmem:[%s1003 + $0x140] sm:$0xff]
      %v1032 = vld [vmem:[%s1003 + $0x150] sm:$0xff]
      %v1033 = vld [vmem:[%s1003 + $0x158] sm:$0xff]
      %v1034 = vld [vmem:[%s1003 + $0x168] sm:$0xff]
      %v1035 = vld [vmem:[%s1003 + $0x170] sm:$0xff]
      %v1036 = vlaneseq
      %v1037 = vshrl.u32 %v1036, 7
      %v1038 = vsub.s32 6, %v1037
      %v1039 = vrot.slane %v401, %v1038
      %v1040 = vmul.f32 %v1004, %v1039
      %v1041 = vmul.f32 %v1005, %v1039
      %v1042 = vmul.f32 %v1006, %v1039
      %v1043 = vmul.f32 %v1007, %v1039
      %v1044 = vmul.f32 %v1008, %v1039
      %v1045 = vmul.f32 %v1009, %v1039
      %v1046 = vmul.f32 %v1010, %v1039
      %v1047 = vmul.f32 %v1011, %v1039
      %v1048 = vmul.f32 %v1012, %v1039
      %v1049 = vmul.f32 %v1013, %v1039
      %v1050 = vmul.f32 %v1014, %v1039
      %v1051 = vmul.f32 %v1015, %v1039
      %v1052 = vmul.f32 %v1016, %v1039
      %v1053 = vmul.f32 %v1017, %v1039
      %v1054 = vmul.f32 %v1018, %v1039
      %v1055 = vmul.f32 %v1019, %v1039
      %v1056 = vmul.f32 %v1020, %v1039
      %v1057 = vmul.f32 %v1021, %v1039
      %v1058 = vmul.f32 %v1022, %v1039
      %v1059 = vmul.f32 %v1023, %v1039
      %v1060 = vmul.f32 %v1024, %v1039
      %v1061 = vmul.f32 %v1025, %v1039
      %v1062 = vmul.f32 %v1026, %v1039
      %v1063 = vmul.f32 %v1027, %v1039
      %v1064 = vmul.f32 %v1028, %v1039
      %v1065 = vmul.f32 %v1029, %v1039
      %v1066 = vmul.f32 %v1030, %v1039
      %v1067 = vmul.f32 %v1031, %v1039
      %v1068 = vmul.f32 %v1032, %v1039
      %v1069 = vmul.f32 %v1033, %v1039
      %v1070 = vmul.f32 %v1034, %v1039
      %v1071 = vmul.f32 %v1035, %v1039
      %v1072 = vadd.f32 %v971, %v1040
      %v1073 = vadd.f32 %v972, %v1041
      %v1074 = vadd.f32 %v973, %v1042
      %v1075 = vadd.f32 %v974, %v1043
      %v1076 = vadd.f32 %v975, %v1044
      %v1077 = vadd.f32 %v976, %v1045
      %v1078 = vadd.f32 %v977, %v1046
      %v1079 = vadd.f32 %v978, %v1047
      %v1080 = vadd.f32 %v979, %v1048
      %v1081 = vadd.f32 %v980, %v1049
      %v1082 = vadd.f32 %v981, %v1050
      %v1083 = vadd.f32 %v982, %v1051
      %v1084 = vadd.f32 %v983, %v1052
      %v1085 = vadd.f32 %v984, %v1053
      %v1086 = vadd.f32 %v985, %v1054
      %v1087 = vadd.f32 %v986, %v1055
      %v1088 = vadd.f32 %v987, %v1056
      %v1089 = vadd.f32 %v988, %v1057
      %v1090 = vadd.f32 %v989, %v1058
      %v1091 = vadd.f32 %v990, %v1059
      %v1092 = vadd.f32 %v991, %v1060
      %v1093 = vadd.f32 %v992, %v1061
      %v1094 = vadd.f32 %v993, %v1062
      %v1095 = vadd.f32 %v994, %v1063
      %v1096 = vadd.f32 %v995, %v1064
      %v1097 = vadd.f32 %v996, %v1065
      %v1098 = vadd.f32 %v997, %v1066
      %v1099 = vadd.f32 %v998, %v1067
      %v1100 = vadd.f32 %v999, %v1068
      %v1101 = vadd.f32 %v1000, %v1069
      %v1102 = vadd.f32 %v1001, %v1070
      %v1103 = vadd.f32 %v1002, %v1071
      %v1104 = vld [vmem:[%s1003 + $0x1] sm:$0xff]
      %v1105 = vld [vmem:[%s1003 + $0x9] sm:$0xff]
      %v1106 = vld [vmem:[%s1003 + $0x19] sm:$0xff]
      %v1107 = vld [vmem:[%s1003 + $0x21] sm:$0xff]
      %v1108 = vld [vmem:[%s1003 + $0x31] sm:$0xff]
      %v1109 = vld [vmem:[%s1003 + $0x39] sm:$0xff]
      %v1110 = vld [vmem:[%s1003 + $0x49] sm:$0xff]
      %v1111 = vld [vmem:[%s1003 + $0x51] sm:$0xff]
      %v1112 = vld [vmem:[%s1003 + $0x61] sm:$0xff]
      %v1113 = vld [vmem:[%s1003 + $0x69] sm:$0xff]
      %v1114 = vld [vmem:[%s1003 + $0x79] sm:$0xff]
      %v1115 = vld [vmem:[%s1003 + $0x81] sm:$0xff]
      %v1116 = vld [vmem:[%s1003 + $0x91] sm:$0xff]
      %v1117 = vld [vmem:[%s1003 + $0x99] sm:$0xff]
      %v1118 = vld [vmem:[%s1003 + $0xa9] sm:$0xff]
      %v1119 = vld [vmem:[%s1003 + $0xb1] sm:$0xff]
      %v1120 = vld [vmem:[%s1003 + $0xc1] sm:$0xff]
      %v1121 = vld [vmem:[%s1003 + $0xc9] sm:$0xff]
      %v1122 = vld [vmem:[%s1003 + $0xd9] sm:$0xff]
      %v1123 = vld [vmem:[%s1003 + $0xe1] sm:$0xff]
      %v1124 = vld [vmem:[%s1003 + $0xf1] sm:$0xff]
      %v1125 = vld [vmem:[%s1003 + $0xf9] sm:$0xff]
      %v1126 = vld [vmem:[%s1003 + $0x109] sm:$0xff]
      %v1127 = vld [vmem:[%s1003 + $0x111] sm:$0xff]
      %v1128 = vld [vmem:[%s1003 + $0x121] sm:$0xff]
      %v1129 = vld [vmem:[%s1003 + $0x129] sm:$0xff]
      %v1130 = vld [vmem:[%s1003 + $0x139] sm:$0xff]
      %v1131 = vld [vmem:[%s1003 + $0x141] sm:$0xff]
      %v1132 = vld [vmem:[%s1003 + $0x151] sm:$0xff]
      %v1133 = vld [vmem:[%s1003 + $0x159] sm:$0xff]
      %v1134 = vld [vmem:[%s1003 + $0x169] sm:$0xff]
      %v1135 = vld [vmem:[%s1003 + $0x171] sm:$0xff]
      %v1136 = vlaneseq
      %v1137 = vshrl.u32 %v1136, 7
      %v1138 = vsub.s32 7, %v1137
      %v1139 = vrot.slane %v401, %v1138
      %v1140 = vmul.f32 %v1104, %v1139
      %v1141 = vmul.f32 %v1105, %v1139
      %v1142 = vmul.f32 %v1106, %v1139
      %v1143 = vmul.f32 %v1107, %v1139
      %v1144 = vmul.f32 %v1108, %v1139
      %v1145 = vmul.f32 %v1109, %v1139
      %v1146 = vmul.f32 %v1110, %v1139
      %v1147 = vmul.f32 %v1111, %v1139
      %v1148 = vmul.f32 %v1112, %v1139
      %v1149 = vmul.f32 %v1113, %v1139
      %v1150 = vmul.f32 %v1114, %v1139
      %v1151 = vmul.f32 %v1115, %v1139
      %v1152 = vmul.f32 %v1116, %v1139
      %v1153 = vmul.f32 %v1117, %v1139
      %v1154 = vmul.f32 %v1118, %v1139
      %v1155 = vmul.f32 %v1119, %v1139
      %v1156 = vmul.f32 %v1120, %v1139
      %v1157 = vmul.f32 %v1121, %v1139
      %v1158 = vmul.f32 %v1122, %v1139
      %v1159 = vmul.f32 %v1123, %v1139
      %v1160 = vmul.f32 %v1124, %v1139
      %v1161 = vmul.f32 %v1125, %v1139
      %v1162 = vmul.f32 %v1126, %v1139
      %v1163 = vmul.f32 %v1127, %v1139
      %v1164 = vmul.f32 %v1128, %v1139
      %v1165 = vmul.f32 %v1129, %v1139
      %v1166 = vmul.f32 %v1130, %v1139
      %v1167 = vmul.f32 %v1131, %v1139
      %v1168 = vmul.f32 %v1132, %v1139
      %v1169 = vmul.f32 %v1133, %v1139
      %v1170 = vmul.f32 %v1134, %v1139
      %v1171 = vmul.f32 %v1135, %v1139
      %v1172 = vadd.f32 %v1072, %v1140
      %v1173 = vadd.f32 %v1073, %v1141
      %v1174 = vadd.f32 %v1074, %v1142
      %v1175 = vadd.f32 %v1075, %v1143
      %v1176 = vadd.f32 %v1076, %v1144
      %v1177 = vadd.f32 %v1077, %v1145
      %v1178 = vadd.f32 %v1078, %v1146
      %v1179 = vadd.f32 %v1079, %v1147
      %v1180 = vadd.f32 %v1080, %v1148
      %v1181 = vadd.f32 %v1081, %v1149
      %v1182 = vadd.f32 %v1082, %v1150
      %v1183 = vadd.f32 %v1083, %v1151
      %v1184 = vadd.f32 %v1084, %v1152
      %v1185 = vadd.f32 %v1085, %v1153
      %v1186 = vadd.f32 %v1086, %v1154
      %v1187 = vadd.f32 %v1087, %v1155
      %v1188 = vadd.f32 %v1088, %v1156
      %v1189 = vadd.f32 %v1089, %v1157
      %v1190 = vadd.f32 %v1090, %v1158
      %v1191 = vadd.f32 %v1091, %v1159
      %v1192 = vadd.f32 %v1092, %v1160
      %v1193 = vadd.f32 %v1093, %v1161
      %v1194 = vadd.f32 %v1094, %v1162
      %v1195 = vadd.f32 %v1095, %v1163
      %v1196 = vadd.f32 %v1096, %v1164
      %v1197 = vadd.f32 %v1097, %v1165
      %v1198 = vadd.f32 %v1098, %v1166
      %v1199 = vadd.f32 %v1099, %v1167
      %v1200 = vadd.f32 %v1100, %v1168
      %v1201 = vadd.f32 %v1101, %v1169
      %v1202 = vadd.f32 %v1102, %v1170
      %v1203 = vadd.f32 %v1103, %v1171
      %v1204 = vld [vmem:[%s1003 + $0x2] sm:$0xff]
      %v1205 = vld [vmem:[%s1003 + $0xa] sm:$0xff]
      %v1206 = vld [vmem:[%s1003 + $0x1a] sm:$0xff]
      %v1207 = vld [vmem:[%s1003 + $0x22] sm:$0xff]
      %v1208 = vld [vmem:[%s1003 + $0x32] sm:$0xff]
      %v1209 = vld [vmem:[%s1003 + $0x3a] sm:$0xff]
      %v1210 = vld [vmem:[%s1003 + $0x4a] sm:$0xff]
      %v1211 = vld [vmem:[%s1003 + $0x52] sm:$0xff]
      %v1212 = vld [vmem:[%s1003 + $0x62] sm:$0xff]
      %v1213 = vld [vmem:[%s1003 + $0x6a] sm:$0xff]
      %v1214 = vld [vmem:[%s1003 + $0x7a] sm:$0xff]
      %v1215 = vld [vmem:[%s1003 + $0x82] sm:$0xff]
      %v1216 = vld [vmem:[%s1003 + $0x92] sm:$0xff]
      %v1217 = vld [vmem:[%s1003 + $0x9a] sm:$0xff]
      %v1218 = vld [vmem:[%s1003 + $0xaa] sm:$0xff]
      %v1219 = vld [vmem:[%s1003 + $0xb2] sm:$0xff]
      %v1220 = vld [vmem:[%s1003 + $0xc2] sm:$0xff]
      %v1221 = vld [vmem:[%s1003 + $0xca] sm:$0xff]
      %v1222 = vld [vmem:[%s1003 + $0xda] sm:$0xff]
      %v1223 = vld [vmem:[%s1003 + $0xe2] sm:$0xff]
      %v1224 = vld [vmem:[%s1003 + $0xf2] sm:$0xff]
      %v1225 = vld [vmem:[%s1003 + $0xfa] sm:$0xff]
      %v1226 = vld [vmem:[%s1003 + $0x10a] sm:$0xff]
      %v1227 = vld [vmem:[%s1003 + $0x112] sm:$0xff]
      %v1228 = vld [vmem:[%s1003 + $0x122] sm:$0xff]
      %v1229 = vld [vmem:[%s1003 + $0x12a] sm:$0xff]
      %v1230 = vld [vmem:[%s1003 + $0x13a] sm:$0xff]
      %v1231 = vld [vmem:[%s1003 + $0x142] sm:$0xff]
      %v1232 = vld [vmem:[%s1003 + $0x152] sm:$0xff]
      %v1233 = vld [vmem:[%s1003 + $0x15a] sm:$0xff]
      %v1234 = vld [vmem:[%s1003 + $0x16a] sm:$0xff]
      %v1235 = vld [vmem:[%s1003 + $0x172] sm:$0xff]
      %v1236 = vlaneseq
      %v1237 = vshrl.u32 %v1236, 7
      %v1238 = vsub.s32 0, %v1237
      %v1239 = vrot.slane %v402, %v1238
      %v1240 = vmul.f32 %v1204, %v1239
      %v1241 = vmul.f32 %v1205, %v1239
      %v1242 = vmul.f32 %v1206, %v1239
      %v1243 = vmul.f32 %v1207, %v1239
      %v1244 = vmul.f32 %v1208, %v1239
      %v1245 = vmul.f32 %v1209, %v1239
      %v1246 = vmul.f32 %v1210, %v1239
      %v1247 = vmul.f32 %v1211, %v1239
      %v1248 = vmul.f32 %v1212, %v1239
      %v1249 = vmul.f32 %v1213, %v1239
      %v1250 = vmul.f32 %v1214, %v1239
      %v1251 = vmul.f32 %v1215, %v1239
      %v1252 = vmul.f32 %v1216, %v1239
      %v1253 = vmul.f32 %v1217, %v1239
      %v1254 = vmul.f32 %v1218, %v1239
      %v1255 = vmul.f32 %v1219, %v1239
      %v1256 = vmul.f32 %v1220, %v1239
      %v1257 = vmul.f32 %v1221, %v1239
      %v1258 = vmul.f32 %v1222, %v1239
      %v1259 = vmul.f32 %v1223, %v1239
      %v1260 = vmul.f32 %v1224, %v1239
      %v1261 = vmul.f32 %v1225, %v1239
      %v1262 = vmul.f32 %v1226, %v1239
      %v1263 = vmul.f32 %v1227, %v1239
      %v1264 = vmul.f32 %v1228, %v1239
      %v1265 = vmul.f32 %v1229, %v1239
      %v1266 = vmul.f32 %v1230, %v1239
      %v1267 = vmul.f32 %v1231, %v1239
      %v1268 = vmul.f32 %v1232, %v1239
      %v1269 = vmul.f32 %v1233, %v1239
      %v1270 = vmul.f32 %v1234, %v1239
      %v1271 = vmul.f32 %v1235, %v1239
      %v1272 = vadd.f32 %v1172, %v1240
      %v1273 = vadd.f32 %v1173, %v1241
      %v1274 = vadd.f32 %v1174, %v1242
      %v1275 = vadd.f32 %v1175, %v1243
      %v1276 = vadd.f32 %v1176, %v1244
      %v1277 = vadd.f32 %v1177, %v1245
      %v1278 = vadd.f32 %v1178, %v1246
      %v1279 = vadd.f32 %v1179, %v1247
      %v1280 = vadd.f32 %v1180, %v1248
      %v1281 = vadd.f32 %v1181, %v1249
      %v1282 = vadd.f32 %v1182, %v1250
      %v1283 = vadd.f32 %v1183, %v1251
      %v1284 = vadd.f32 %v1184, %v1252
      %v1285 = vadd.f32 %v1185, %v1253
      %v1286 = vadd.f32 %v1186, %v1254
      %v1287 = vadd.f32 %v1187, %v1255
      %v1288 = vadd.f32 %v1188, %v1256
      %v1289 = vadd.f32 %v1189, %v1257
      %v1290 = vadd.f32 %v1190, %v1258
      %v1291 = vadd.f32 %v1191, %v1259
      %v1292 = vadd.f32 %v1192, %v1260
      %v1293 = vadd.f32 %v1193, %v1261
      %v1294 = vadd.f32 %v1194, %v1262
      %v1295 = vadd.f32 %v1195, %v1263
      %v1296 = vadd.f32 %v1196, %v1264
      %v1297 = vadd.f32 %v1197, %v1265
      %v1298 = vadd.f32 %v1198, %v1266
      %v1299 = vadd.f32 %v1199, %v1267
      %v1300 = vadd.f32 %v1200, %v1268
      %v1301 = vadd.f32 %v1201, %v1269
      %v1302 = vadd.f32 %v1202, %v1270
      %v1303 = vadd.f32 %v1203, %v1271
      %v1304 = vld [vmem:[%s2] sm:$0x1]
      %v1306 = vlaneseq
      %v1307 = vshrl.u32 %v1306, 7
      %v1308 = vsub.s32 0, %v1307
      %v1309 = vrot.slane %v1304, %v1308
      %v1311 = vmul.f32 %v1272, %v1309
      %v1312 = vmul.f32 %v1273, %v1309
      %v1313 = vmul.f32 %v1274, %v1309
      %v1314 = vmul.f32 %v1275, %v1309
      %v1315 = vmul.f32 %v1276, %v1309
      %v1316 = vmul.f32 %v1277, %v1309
      %v1317 = vmul.f32 %v1278, %v1309
      %v1318 = vmul.f32 %v1279, %v1309
      %v1319 = vmul.f32 %v1280, %v1309
      %v1320 = vmul.f32 %v1281, %v1309
      %v1321 = vmul.f32 %v1282, %v1309
      %v1322 = vmul.f32 %v1283, %v1309
      %v1323 = vmul.f32 %v1284, %v1309
      %v1324 = vmul.f32 %v1285, %v1309
      %v1325 = vmul.f32 %v1286, %v1309
      %v1326 = vmul.f32 %v1287, %v1309
      %v1327 = vmul.f32 %v1288, %v1309
      %v1328 = vmul.f32 %v1289, %v1309
      %v1329 = vmul.f32 %v1290, %v1309
      %v1330 = vmul.f32 %v1291, %v1309
      %v1331 = vmul.f32 %v1292, %v1309
      %v1332 = vmul.f32 %v1293, %v1309
      %v1333 = vmul.f32 %v1294, %v1309
      %v1334 = vmul.f32 %v1295, %v1309
      %v1335 = vmul.f32 %v1296, %v1309
      %v1336 = vmul.f32 %v1297, %v1309
      %v1337 = vmul.f32 %v1298, %v1309
      %v1338 = vmul.f32 %v1299, %v1309
      %v1339 = vmul.f32 %v1300, %v1309
      %v1340 = vmul.f32 %v1301, %v1309
      %v1341 = vmul.f32 %v1302, %v1309
      %v1342 = vmul.f32 %v1303, %v1309
      %v1343 = vld [vmem:[%s3] sm:$0x1]
      %v1345 = vlaneseq
      %v1346 = vshrl.u32 %v1345, 7
      %v1347 = vsub.s32 0, %v1346
      %v1348 = vrot.slane %v1343, %v1347
      %v1350 = vadd.f32 %v1311, %v1348
      %v1351 = vadd.f32 %v1312, %v1348
      %v1352 = vadd.f32 %v1313, %v1348
      %v1353 = vadd.f32 %v1314, %v1348
      %v1354 = vadd.f32 %v1315, %v1348
      %v1355 = vadd.f32 %v1316, %v1348
      %v1356 = vadd.f32 %v1317, %v1348
      %v1357 = vadd.f32 %v1318, %v1348
      %v1358 = vadd.f32 %v1319, %v1348
      %v1359 = vadd.f32 %v1320, %v1348
      %v1360 = vadd.f32 %v1321, %v1348
      %v1361 = vadd.f32 %v1322, %v1348
      %v1362 = vadd.f32 %v1323, %v1348
      %v1363 = vadd.f32 %v1324, %v1348
      %v1364 = vadd.f32 %v1325, %v1348
      %v1365 = vadd.f32 %v1326, %v1348
      %v1366 = vadd.f32 %v1327, %v1348
      %v1367 = vadd.f32 %v1328, %v1348
      %v1368 = vadd.f32 %v1329, %v1348
      %v1369 = vadd.f32 %v1330, %v1348
      %v1370 = vadd.f32 %v1331, %v1348
      %v1371 = vadd.f32 %v1332, %v1348
      %v1372 = vadd.f32 %v1333, %v1348
      %v1373 = vadd.f32 %v1334, %v1348
      %v1374 = vadd.f32 %v1335, %v1348
      %v1375 = vadd.f32 %v1336, %v1348
      %v1376 = vadd.f32 %v1337, %v1348
      %v1377 = vadd.f32 %v1338, %v1348
      %v1378 = vadd.f32 %v1339, %v1348
      %v1379 = vadd.f32 %v1340, %v1348
      %v1380 = vadd.f32 %v1341, %v1348
      %v1381 = vadd.f32 %v1342, %v1348
      %v1382 = vmax.f32 %v1350, 0.0
      %v1383 = vmax.f32 %v1351, 0.0
      %v1384 = vmax.f32 %v1352, 0.0
      %v1385 = vmax.f32 %v1353, 0.0
      %v1386 = vmax.f32 %v1354, 0.0
      %v1387 = vmax.f32 %v1355, 0.0
      %v1388 = vmax.f32 %v1356, 0.0
      %v1389 = vmax.f32 %v1357, 0.0
      %v1390 = vmax.f32 %v1358, 0.0
      %v1391 = vmax.f32 %v1359, 0.0
      %v1392 = vmax.f32 %v1360, 0.0
      %v1393 = vmax.f32 %v1361, 0.0
      %v1394 = vmax.f32 %v1362, 0.0
      %v1395 = vmax.f32 %v1363, 0.0
      %v1396 = vmax.f32 %v1364, 0.0
      %v1397 = vmax.f32 %v1365, 0.0
      %v1398 = vmax.f32 %v1366, 0.0
      %v1399 = vmax.f32 %v1367, 0.0
      %v1400 = vmax.f32 %v1368, 0.0
      %v1401 = vmax.f32 %v1369, 0.0
      %v1402 = vmax.f32 %v1370, 0.0
      %v1403 = vmax.f32 %v1371, 0.0
      %v1404 = vmax.f32 %v1372, 0.0
      %v1405 = vmax.f32 %v1373, 0.0
      %v1406 = vmax.f32 %v1374, 0.0
      %v1407 = vmax.f32 %v1375, 0.0
      %v1408 = vmax.f32 %v1376, 0.0
      %v1409 = vmax.f32 %v1377, 0.0
      %v1410 = vmax.f32 %v1378, 0.0
      %v1411 = vmax.f32 %v1379, 0.0
      %v1412 = vmax.f32 %v1380, 0.0
      %v1413 = vmax.f32 %v1381, 0.0
      %v1414 = vmin.f32 %v1382, 6.0
      %v1415 = vmin.f32 %v1383, 6.0
      %v1416 = vmin.f32 %v1384, 6.0
      %v1417 = vmin.f32 %v1385, 6.0
      %v1418 = vmin.f32 %v1386, 6.0
      %v1419 = vmin.f32 %v1387, 6.0
      %v1420 = vmin.f32 %v1388, 6.0
      %v1421 = vmin.f32 %v1389, 6.0
      %v1422 = vmin.f32 %v1390, 6.0
      %v1423 = vmin.f32 %v1391, 6.0
      %v1424 = vmin.f32 %v1392, 6.0
      %v1425 = vmin.f32 %v1393, 6.0
      %v1426 = vmin.f32 %v1394, 6.0
      %v1427 = vmin.f32 %v1395, 6.0
      %v1428 = vmin.f32 %v1396, 6.0
      %v1429 = vmin.f32 %v1397, 6.0
      %v1430 = vmin.f32 %v1398, 6.0
      %v1431 = vmin.f32 %v1399, 6.0
      %v1432 = vmin.f32 %v1400, 6.0
      %v1433 = vmin.f32 %v1401, 6.0
      %v1434 = vmin.f32 %v1402, 6.0
      %v1435 = vmin.f32 %v1403, 6.0
      %v1436 = vmin.f32 %v1404, 6.0
      %v1437 = vmin.f32 %v1405, 6.0
      %v1438 = vmin.f32 %v1406, 6.0
      %v1439 = vmin.f32 %v1407, 6.0
      %v1440 = vmin.f32 %v1408, 6.0
      %v1441 = vmin.f32 %v1409, 6.0
      %v1442 = vmin.f32 %v1410, 6.0
      %v1443 = vmin.f32 %v1411, 6.0
      %v1444 = vmin.f32 %v1412, 6.0
      %v1445 = vmin.f32 %v1413, 6.0
      %v1446 = vpack.c.bf16 %v1415, %v1414
      %v1447 = vpack.c.bf16 %v1417, %v1416
      %v1448 = vpack.c.bf16 %v1419, %v1418
      %v1449 = vpack.c.bf16 %v1421, %v1420
      %v1450 = vpack.c.bf16 %v1423, %v1422
      %v1451 = vpack.c.bf16 %v1425, %v1424
      %v1452 = vpack.c.bf16 %v1427, %v1426
      %v1453 = vpack.c.bf16 %v1429, %v1428
      %v1454 = vpack.c.bf16 %v1431, %v1430
      %v1455 = vpack.c.bf16 %v1433, %v1432
      %v1456 = vpack.c.bf16 %v1435, %v1434
      %v1457 = vpack.c.bf16 %v1437, %v1436
      %v1458 = vpack.c.bf16 %v1439, %v1438
      %v1459 = vpack.c.bf16 %v1441, %v1440
      %v1460 = vpack.c.bf16 %v1443, %v1442
      %v1461 = vpack.c.bf16 %v1445, %v1444
      %v1462 = vld [vmem:[%s4] sm:$0xf]
      %v1464 = vsel %vm312, %v1446, 0
      %v1467 = vsel %vm312, %v1447, 0
      %v1470 = vsel %vm312, %v1448, 0
      %v1473 = vsel %vm312, %v1449, 0
      %v1476 = vsel %vm312, %v1450, 0
      %v1479 = vsel %vm312, %v1451, 0
      %v1482 = vsel %vm312, %v1452, 0
      %v1485 = vsel %vm312, %v1453, 0
      %v1488 = vsel %vm312, %v1454, 0
      %v1491 = vsel %vm312, %v1455, 0
      %v1494 = vsel %vm312, %v1456, 0
      %v1497 = vsel %vm312, %v1457, 0
      %v1500 = vsel %vm312, %v1458, 0
      %v1503 = vsel %vm312, %v1459, 0
      %v1506 = vsel %vm312, %v1460, 0
      %v1509 = vsel %vm312, %v1461, 0
      %vm1511 = vcmask 1043456
      %v1513 = vsel %vm1511, %v1462, 0
      %1515 = vmatprep.subr.bf16.mxu0 0
      %1516 = vmatpush1.bf16.msra.mxu0 %v1513
      %1517 = vmatprep.subr.bf16.mxu0 0
      %1518 = vmatpush1.bf16.msra.mxu0 0
      %1519 = vmatprep.subr.bf16.mxu0 0
      %1520 = vmatpush1.bf16.msra.mxu0 0
      %1521 = vmatprep.subr.bf16.mxu0 0
      %1522 = vmatpush1.bf16.msra.mxu0 0
      %1523 = vmatprep.subr.bf16.mxu0 0
      %1524 = vmatpush1.bf16.msra.mxu0 0
      %1525 = vmatprep.subr.bf16.mxu0 0
      %1526 = vmatpush1.bf16.msra.mxu0 0
      %1527 = vmatprep.subr.bf16.mxu0 0
      %1528 = vmatpush1.bf16.msra.mxu0 0
      %1529 = vmatprep.subr.bf16.mxu0 0
      %1530 = vmatpush1.bf16.msra.mxu0 0
      %1531 = vmatprep.subr.bf16.mxu0 0
      %1532 = vmatpush1.bf16.msra.mxu0 0
      %1533 = vmatprep.subr.bf16.mxu0 0
      %1534 = vmatpush1.bf16.msra.mxu0 0
      %1535 = vmatprep.subr.bf16.mxu0 0
      %1536 = vmatpush1.bf16.msra.mxu0 0
      %1537 = vmatprep.subr.bf16.mxu0 0
      %1538 = vmatpush1.bf16.msra.mxu0 0
      %1539 = vmatprep.subr.bf16.mxu0 0
      %1540 = vmatpush1.bf16.msra.mxu0 0
      %1541 = vmatprep.subr.bf16.mxu0 0
      %1542 = vmatpush1.bf16.msra.mxu0 0
      %1543 = vmatprep.subr.bf16.mxu0 0
      %1544 = vmatpush1.bf16.msra.mxu0 0
      %1545 = vmatprep.subr.bf16.mxu0 0
      %1546 = vmatpush1.bf16.msra.mxu0 0
      %1547 = vmatprep.mubr.bf16.mxu0 0
      %1548 = vmatmul.mubr.bf16.gmra.mrb[0].mxu0 %v1464
      %v1549 = vpop.f32.mrb[0].mxu0
      %v1550 = vadd.f32 0.0, %v1549
      %v1551 = vpop.f32.mrb[0].mxu0
      %v1552 = vpop.f32.mrb[0].mxu0
      %v1553 = vadd.f32 0.0, %v1552
      %v1554 = vpop.f32.mrb[0].mxu0
      %1555 = vmatprep.mubr.bf16.mxu0 0
      %1556 = vmatmul.mubr.bf16.gmra.mrb[0].mxu0 %v1467
      %v1557 = vpop.f32.mrb[0].mxu0
      %v1558 = vadd.f32 0.0, %v1557
      %v1559 = vpop.f32.mrb[0].mxu0
      %v1560 = vpop.f32.mrb[0].mxu0
      %v1561 = vadd.f32 0.0, %v1560
      %v1562 = vpop.f32.mrb[0].mxu0
      %1563 = vmatprep.mubr.bf16.mxu0 0
      %1564 = vmatmul.mubr.bf16.gmra.mrb[0].mxu0 %v1470
      %v1565 = vpop.f32.mrb[0].mxu0
      %v1566 = vadd.f32 0.0, %v1565
      %v1567 = vpop.f32.mrb[0].mxu0
      %v1568 = vpop.f32.mrb[0].mxu0
      %v1569 = vadd.f32 0.0, %v1568
      %v1570 = vpop.f32.mrb[0].mxu0
      %1571 = vmatprep.mubr.bf16.mxu0 0
      %1572 = vmatmul.mubr.bf16.gmra.mrb[0].mxu0 %v1473
      %v1573 = vpop.f32.mrb[0].mxu0
      %v1574 = vadd.f32 0.0, %v1573
      %v1575 = vpop.f32.mrb[0].mxu0
      %v1576 = vpop.f32.mrb[0].mxu0
      %v1577 = vadd.f32 0.0, %v1576
      %v1578 = vpop.f32.mrb[0].mxu0
      %1579 = vmatprep.mubr.bf16.mxu0 0
      %1580 = vmatmul.mubr.bf16.gmra.mrb[0].mxu0 %v1476
      %v1581 = vpop.f32.mrb[0].mxu0
      %v1582 = vadd.f32 0.0, %v1581
      %v1583 = vpop.f32.mrb[0].mxu0
      %v1584 = vpop.f32.mrb[0].mxu0
      %v1585 = vadd.f32 0.0, %v1584
      %v1586 = vpop.f32.mrb[0].mxu0
      %1587 = vmatprep.mubr.bf16.mxu0 0
      %1588 = vmatmul.mubr.bf16.gmra.mrb[0].mxu0 %v1479
      %v1589 = vpop.f32.mrb[0].mxu0
      %v1590 = vadd.f32 0.0, %v1589
      %v1591 = vpop.f32.mrb[0].mxu0
      %v1592 = vpop.f32.mrb[0].mxu0
      %v1593 = vadd.f32 0.0, %v1592
      %v1594 = vpop.f32.mrb[0].mxu0
      %1595 = vmatprep.mubr.bf16.mxu0 0
      %1596 = vmatmul.mubr.bf16.gmra.mrb[0].mxu0 %v1482
      %v1597 = vpop.f32.mrb[0].mxu0
      %v1598 = vadd.f32 0.0, %v1597
      %v1599 = vpop.f32.mrb[0].mxu0
      %v1600 = vpop.f32.mrb[0].mxu0
      %v1601 = vadd.f32 0.0, %v1600
      %v1602 = vpop.f32.mrb[0].mxu0
      %1603 = vmatprep.mubr.bf16.mxu0 0
      %1604 = vmatmul.mubr.bf16.gmra.mrb[0].mxu0 %v1485
      %v1605 = vpop.f32.mrb[0].mxu0
      %v1606 = vadd.f32 0.0, %v1605
      %v1607 = vpop.f32.mrb[0].mxu0
      %v1608 = vpop.f32.mrb[0].mxu0
      %v1609 = vadd.f32 0.0, %v1608
      %v1610 = vpop.f32.mrb[0].mxu0
      %1611 = vmatprep.mubr.bf16.mxu0 0
      %1612 = vmatmul.mubr.bf16.gmra.mrb[0].mxu0 %v1488
      %v1613 = vpop.f32.mrb[0].mxu0
      %v1614 = vadd.f32 0.0, %v1613
      %v1615 = vpop.f32.mrb[0].mxu0
      %v1616 = vpop.f32.mrb[0].mxu0
      %v1617 = vadd.f32 0.0, %v1616
      %v1618 = vpop.f32.mrb[0].mxu0
      %1619 = vmatprep.mubr.bf16.mxu0 0
      %1620 = vmatmul.mubr.bf16.gmra.mrb[0].mxu0 %v1491
      %v1621 = vpop.f32.mrb[0].mxu0
      %v1622 = vadd.f32 0.0, %v1621
      %v1623 = vpop.f32.mrb[0].mxu0
      %v1624 = vpop.f32.mrb[0].mxu0
      %v1625 = vadd.f32 0.0, %v1624
      %v1626 = vpop.f32.mrb[0].mxu0
      %1627 = vmatprep.mubr.bf16.mxu0 0
      %1628 = vmatmul.mubr.bf16.gmra.mrb[0].mxu0 %v1494
      %v1629 = vpop.f32.mrb[0].mxu0
      %v1630 = vadd.f32 0.0, %v1629
      %v1631 = vpop.f32.mrb[0].mxu0
      %v1632 = vpop.f32.mrb[0].mxu0
      %v1633 = vadd.f32 0.0, %v1632
      %v1634 = vpop.f32.mrb[0].mxu0
      %1635 = vmatprep.mubr.bf16.mxu0 0
      %1636 = vmatmul.mubr.bf16.gmra.mrb[0].mxu0 %v1497
      %v1637 = vpop.f32.mrb[0].mxu0
      %v1638 = vadd.f32 0.0, %v1637
      %v1639 = vpop.f32.mrb[0].mxu0
      %v1640 = vpop.f32.mrb[0].mxu0
      %v1641 = vadd.f32 0.0, %v1640
      %v1642 = vpop.f32.mrb[0].mxu0
      %1643 = vmatprep.mubr.bf16.mxu0 0
      %1644 = vmatmul.mubr.bf16.gmra.mrb[0].mxu0 %v1500
      %v1645 = vpop.f32.mrb[0].mxu0
      %v1646 = vadd.f32 0.0, %v1645
      %v1647 = vpop.f32.mrb[0].mxu0
      %v1648 = vpop.f32.mrb[0].mxu0
      %v1649 = vadd.f32 0.0, %v1648
      %v1650 = vpop.f32.mrb[0].mxu0
      %1651 = vmatprep.mubr.bf16.mxu0 0
      %1652 = vmatmul.mubr.bf16.gmra.mrb[0].mxu0 %v1503
      %v1653 = vpop.f32.mrb[0].mxu0
      %v1654 = vadd.f32 0.0, %v1653
      %v1655 = vpop.f32.mrb[0].mxu0
      %v1656 = vpop.f32.mrb[0].mxu0
      %v1657 = vadd.f32 0.0, %v1656
      %v1658 = vpop.f32.mrb[0].mxu0
      %1659 = vmatprep.mubr.bf16.mxu0 0
      %1660 = vmatmul.mubr.bf16.gmra.mrb[0].mxu0 %v1506
      %v1661 = vpop.f32.mrb[0].mxu0
      %v1662 = vadd.f32 0.0, %v1661
      %v1663 = vpop.f32.mrb[0].mxu0
      %v1664 = vpop.f32.mrb[0].mxu0
      %v1665 = vadd.f32 0.0, %v1664
      %v1666 = vpop.f32.mrb[0].mxu0
      %1667 = vmatprep.mubr.bf16.mxu0 0
      %1668 = vmatmul.mubr.bf16.gmra.mrb[0].mxu0 %v1509
      %v1669 = vpop.f32.mrb[0].mxu0
      %v1670 = vadd.f32 0.0, %v1669
      %v1671 = vpop.f32.mrb[0].mxu0
      %v1672 = vpop.f32.mrb[0].mxu0
      %v1673 = vadd.f32 0.0, %v1672
      %v1674 = vpop.f32.mrb[0].mxu0
      %1675 = vdwg.mxu0
      %v1676 = vld [vmem:[%s5] sm:$0x1]
      %v1678 = vlaneseq
      %v1679 = vshrl.u32 %v1678, 7
      %v1680 = vsub.s32 0, %v1679
      %v1681 = vrot.slane %v1676, %v1680
      %v1683 = vmul.f32 %v1550, %v1681
      %v1684 = vmul.f32 %v1553, %v1681
      %v1685 = vmul.f32 %v1558, %v1681
      %v1686 = vmul.f32 %v1561, %v1681
      %v1687 = vmul.f32 %v1566, %v1681
      %v1688 = vmul.f32 %v1569, %v1681
      %v1689 = vmul.f32 %v1574, %v1681
      %v1690 = vmul.f32 %v1577, %v1681
      %v1691 = vmul.f32 %v1582, %v1681
      %v1692 = vmul.f32 %v1585, %v1681
      %v1693 = vmul.f32 %v1590, %v1681
      %v1694 = vmul.f32 %v1593, %v1681
      %v1695 = vmul.f32 %v1598, %v1681
      %v1696 = vmul.f32 %v1601, %v1681
      %v1697 = vmul.f32 %v1606, %v1681
      %v1698 = vmul.f32 %v1609, %v1681
      %v1699 = vmul.f32 %v1614, %v1681
      %v1700 = vmul.f32 %v1617, %v1681
      %v1701 = vmul.f32 %v1622, %v1681
      %v1702 = vmul.f32 %v1625, %v1681
      %v1703 = vmul.f32 %v1630, %v1681
      %v1704 = vmul.f32 %v1633, %v1681
      %v1705 = vmul.f32 %v1638, %v1681
      %v1706 = vmul.f32 %v1641, %v1681
      %v1707 = vmul.f32 %v1646, %v1681
      %v1708 = vmul.f32 %v1649, %v1681
      %v1709 = vmul.f32 %v1654, %v1681
      %v1710 = vmul.f32 %v1657, %v1681
      %v1711 = vmul.f32 %v1662, %v1681
      %v1712 = vmul.f32 %v1665, %v1681
      %v1713 = vmul.f32 %v1670, %v1681
      %v1714 = vmul.f32 %v1673, %v1681
      %v1715 = vld [vmem:[%s6] sm:$0x1]
      %v1717 = vlaneseq
      %v1718 = vshrl.u32 %v1717, 7
      %v1719 = vsub.s32 0, %v1718
      %v1720 = vrot.slane %v1715, %v1719
      %v1722 = vadd.f32 %v1683, %v1720
      %v1723 = vadd.f32 %v1684, %v1720
      %v1724 = vadd.f32 %v1685, %v1720
      %v1725 = vadd.f32 %v1686, %v1720
      %v1726 = vadd.f32 %v1687, %v1720
      %v1727 = vadd.f32 %v1688, %v1720
      %v1728 = vadd.f32 %v1689, %v1720
      %v1729 = vadd.f32 %v1690, %v1720
      %v1730 = vadd.f32 %v1691, %v1720
      %v1731 = vadd.f32 %v1692, %v1720
      %v1732 = vadd.f32 %v1693, %v1720
      %v1733 = vadd.f32 %v1694, %v1720
      %v1734 = vadd.f32 %v1695, %v1720
      %v1735 = vadd.f32 %v1696, %v1720
      %v1736 = vadd.f32 %v1697, %v1720
      %v1737 = vadd.f32 %v1698, %v1720
      %v1738 = vadd.f32 %v1699, %v1720
      %v1739 = vadd.f32 %v1700, %v1720
      %v1740 = vadd.f32 %v1701, %v1720
      %v1741 = vadd.f32 %v1702, %v1720
      %v1742 = vadd.f32 %v1703, %v1720
      %v1743 = vadd.f32 %v1704, %v1720
      %v1744 = vadd.f32 %v1705, %v1720
      %v1745 = vadd.f32 %v1706, %v1720
      %v1746 = vadd.f32 %v1707, %v1720
      %v1747 = vadd.f32 %v1708, %v1720
      %v1748 = vadd.f32 %v1709, %v1720
      %v1749 = vadd.f32 %v1710, %v1720
      %v1750 = vadd.f32 %v1711, %v1720
      %v1751 = vadd.f32 %v1712, %v1720
      %v1752 = vadd.f32 %v1713, %v1720
      %v1753 = vadd.f32 %v1714, %v1720
      %vm1754 = vcmask 130048
      %1755 = vst.msk [vmem:[%s278] sm:$0xff] %vm1754, %v1722
      %1756 = vst.msk [vmem:[%s278 + $0x8] sm:$0xff] %vm1754, %v1723
      %1757 = vst.msk [vmem:[%s278 + $0x10] sm:$0xff] %vm1754, %v1724
      %1758 = vst.msk [vmem:[%s278 + $0x18] sm:$0xff] %vm1754, %v1725
      %1759 = vst.msk [vmem:[%s278 + $0x20] sm:$0xff] %vm1754, %v1726
      %1760 = vst.msk [vmem:[%s278 + $0x28] sm:$0xff] %vm1754, %v1727
      %1761 = vst.msk [vmem:[%s278 + $0x30] sm:$0xff] %vm1754, %v1728
      %1762 = vst.msk [vmem:[%s278 + $0x38] sm:$0xff] %vm1754, %v1729
      %1763 = vst.msk [vmem:[%s278 + $0x40] sm:$0xff] %vm1754, %v1730
      %1764 = vst.msk [vmem:[%s278 + $0x48] sm:$0xff] %vm1754, %v1731
      %1765 = vst.msk [vmem:[%s278 + $0x50] sm:$0xff] %vm1754, %v1732
      %1766 = vst.msk [vmem:[%s278 + $0x58] sm:$0xff] %vm1754, %v1733
      %1767 = vst.msk [vmem:[%s278 + $0x60] sm:$0xff] %vm1754, %v1734
      %1768 = vst.msk [vmem:[%s278 + $0x68] sm:$0xff] %vm1754, %v1735
      %1769 = vst.msk [vmem:[%s278 + $0x70] sm:$0xff] %vm1754, %v1736
      %1770 = vst.msk [vmem:[%s278 + $0x78] sm:$0xff] %vm1754, %v1737
      %1771 = vst.msk [vmem:[%s278 + $0x80] sm:$0xff] %vm1754, %v1738
      %1772 = vst.msk [vmem:[%s278 + $0x88] sm:$0xff] %vm1754, %v1739
      %1773 = vst.msk [vmem:[%s278 + $0x90] sm:$0xff] %vm1754, %v1740
      %1774 = vst.msk [vmem:[%s278 + $0x98] sm:$0xff] %vm1754, %v1741
      %1775 = vst.msk [vmem:[%s278 + $0xa0] sm:$0xff] %vm1754, %v1742
      %1776 = vst.msk [vmem:[%s278 + $0xa8] sm:$0xff] %vm1754, %v1743
      %1777 = vst.msk [vmem:[%s278 + $0xb0] sm:$0xff] %vm1754, %v1744
      %1778 = vst.msk [vmem:[%s278 + $0xb8] sm:$0xff] %vm1754, %v1745
      %1779 = vst.msk [vmem:[%s278 + $0xc0] sm:$0xff] %vm1754, %v1746
      %1780 = vst.msk [vmem:[%s278 + $0xc8] sm:$0xff] %vm1754, %v1747
      %1781 = vst.msk [vmem:[%s278 + $0xd0] sm:$0xff] %vm1754, %v1748
      %1782 = vst.msk [vmem:[%s278 + $0xd8] sm:$0xff] %vm1754, %v1749
      %1783 = vst.msk [vmem:[%s278 + $0xe0] sm:$0xff] %vm1754, %v1750
      %1784 = vst.msk [vmem:[%s278 + $0xe8] sm:$0xff] %vm1754, %v1751
      %1785 = vst.msk [vmem:[%s278 + $0xf0] sm:$0xff] %vm1754, %v1752
      %1786 = vst.msk [vmem:[%s278 + $0xf8] sm:$0xff] %vm1754, %v1753
      %p1787 = scmp.lt.s32.totalorder %s18, 1
      %s1788 = scalar_select %p1787, %s18, 1
      %s1789 = smul.addr %s1788, 32
      %s1790 = smul.addr %s1789, 8
      %s1791 = scalar_lea.vmem %s7, %s1790
      // Predicated region
      $region49: #{mobilenet_backbone_forward.6} parent=47 // pred_check
        %p1792 = pneg %p188
      $region50: #{mobilenet_backbone_forward.6} parent=47 // pred_check_branch
        %1794 = sbr.rel (%p1792) target = $region52
      $region51: #{mobilenet_backbone_forward.6} parent=47 // pred_region
        _
      $region52: #{mobilenet_backbone_forward.6} parent=47 // pred_fallthru
        _
    $region48: #{mobilenet_backbone_forward.6} parent=5 // pred_fallthru
      _
    %p1795 = scmp.le.s32.totalorder 2, %s13
    // Predicated region
    $region53: #{mobilenet_backbone_forward.6} parent=5 // pred_check
      %p1796 = pneg %p1795
    $region54: #{mobilenet_backbone_forward.6} parent=5 // pred_check_branch
      %1798 = sbr.rel (%p1796) target = $region56
    $region55: #{mobilenet_backbone_forward.6} parent=5 // pred_region
      %s1799 = ssub.s32 %s13, 2
      // Predicated region
      $region57: #{mobilenet_backbone_forward.6} parent=55 // pred_check
        %p1800 = pneg %p194
      $region58: #{mobilenet_backbone_forward.6} parent=55 // pred_check_branch
        %1802 = sbr.rel (%p1800) target = $region60
      $region59: #{mobilenet_backbone_forward.6} parent=55 // pred_region
        %p1803 = scmp.lt.s32.totalorder %s19, 1
        %s1804 = scalar_select %p1803, %s19, 1
        %s1805 = smul.addr %s1804, 32
        %s1806 = smul.addr %s1805, 8
        %s1807 = scalar_lea.vmem %s7, %s1806
      $region60: #{mobilenet_backbone_forward.6} parent=55 // pred_fallthru
        _
    $region56: #{mobilenet_backbone_forward.6} parent=5 // pred_fallthru
      _
  $region6: #{mobilenet_backbone_forward.6} parent=0 // loop_footer
    %s17 = sadd.s32 1, %s13
  $region7: #{mobilenet_backbone_forward.6} parent=0 // loop_footer_branch
    %12 = sbr.rel target = $region3
  $region8: #{mobilenet_backbone_forward.6} parent=0 // loop_exit
    _

// kernel: mobilenet_backbone_forward.9
$region0: #{mobilenet_backbone_forward.9}
  #allocation0 [shape = 'u32[]', space=smem, size = 0x4, offset = 0x4, fixed_abs, tag = 'smem constant byte address 0x4 - core index']
  #allocation1 [shape = 'u32[144,128]{1,0:T(1,128)}', space=vmem, size = 0x12000, scoped, tag = 'internal scratch']
  %s0 = inlined_call_operand.vmem [shape: f32[2,8,8,16], index: 0, kind: input, shape index: {}]
  %s1 = inlined_call_operand.vmem [shape: bf16[16,32], index: 1, kind: input, shape index: {}]
  %s2 = inlined_call_operand.vmem [shape: f32[1,32], index: 2, kind: input, shape index: {}]
  %s3 = inlined_call_operand.vmem [shape: f32[1,32], index: 3, kind: input, shape index: {}]
  %s4 = inlined_call_operand.hbm [shape: f32[2,8,8,32], index: 4, kind: output, shape index: {}]
  %s5 = sld [smem:[#allocation0]]
  $region49: #{mobilenet_backbone_forward.9} parent=0
    _
  %s7 = ssub.s32 1, %s5
  %s8 = scalar_select 0, %s7, %s5
  $region1: #{mobilenet_backbone_forward.9} parent=0
    #allocation2 [shape = 'u8[65536]{0}', space=vmem, size = 0x10000, scoped, tag = 'output window, operand 0']
    #allocation3 [shape = 's32[2]{0}', space=sflag, size = 0x8, scoped, tag = 'scoped memory for mobilenet_backbone_forward.9']
    %9 = vsyncpa [#allocation3], 0
    %s10 = scalar_lea.sflag [#allocation3], 1
    %11 = vsyncpa %s10, 0
    loop: start=0, step=1, limit=4
    $region2: #{mobilenet_backbone_forward.9} parent=1 // loop_pre_header
      _
    $region3: #{mobilenet_backbone_forward.9} parent=1 // loop_header
      %s13 = sphi 0, %s17
      %p14 = scmp.ge.s32.totalorder %s13, 4
      %s23 = sphi 0, %s25
      %s26 = sphi 0, %s23
      %s27 = sphi 0, %s26
      %s43 = sphi 0, %s27
      %s47 = sphi 0, %s47
      %s49 = sphi 0, %s47
      %s50 = sphi 0, %s49
      %s64 = sphi 0, %s50
      %s68 = sphi 0, %s68
      %s70 = sphi 0, %s68
      %s71 = sphi 0, %s70
      %s85 = sphi 0, %s71
      %s89 = sphi 0, %s89
      %s91 = sphi 0, %s89
      %s92 = sphi 0, %s91
      %s106 = sphi 0, %s92
      %s112 = sphi 0, %s114
      %s115 = sphi 0, %s112
      %s116 = sphi 0, %s115
      %s132 = sphi 0, %s116
    $region4: #{mobilenet_backbone_forward.9} parent=1 // loop_header_branch
      %16 = sbr.rel (%p14) target = $region8
    $region5: #{mobilenet_backbone_forward.9} parent=1 // loop_body
      %s18 = ssub.s32 %s13, 1
      %s19 = ssub.s32 %s13, 2
      %s20 = sadd.s32 %s13, 1
      %s21 = ssub.s32 %s13, %s20
      %p22 = scmp.eq.s32.totalorder %s21, 0
      %s24 = sadd.s32 %s23, 1
      %s25 = scalar_select %p22, %s23, %s24
      %p28 = pneg %p22
      %p29 = scmp.eq.s32.totalorder %s13, 1
      %p30 = por %p28, %p29
      %p31 = scmp.ne.s32.totalorder %s23, %s26
      %p32 = scmp.eq.s32.totalorder %s13, 0
      %p33 = por %p31, %p32
      %p34 = scmp.ne.s32.totalorder %s23, %s26
      %p35 = scmp.eq.s32.totalorder %s18, 1
      %p36 = por %p34, %p35
      %p37 = scmp.ne.s32.totalorder %s26, %s27
      %p38 = scmp.eq.s32.totalorder %s18, 0
      %p39 = por %p37, %p38
      %p40 = scmp.ne.s32.totalorder %s26, %s27
      %p41 = scmp.eq.s32.totalorder %s19, 1
      %p42 = por %p40, %p41
      %p44 = scmp.ne.s32.totalorder %s27, %s43
      %p45 = scmp.eq.s32.totalorder %s19, 0
      %p46 = por %p44, %p45
      %s48 = sadd.s32 %s47, 1
      %p51 = scmp.eq.s32.totalorder %s13, 1
      %p52 = scmp.ne.s32.totalorder %s47, %s49
      %p53 = scmp.eq.s32.totalorder %s13, 0
      %p54 = por %p52, %p53
      %p55 = scmp.ne.s32.totalorder %s47, %s49
      %p56 = scmp.eq.s32.totalorder %s18, 1
      %p57 = por %p55, %p56
      %p58 = scmp.ne.s32.totalorder %s49, %s50
      %p59 = scmp.eq.s32.totalorder %s18, 0
      %p60 = por %p58, %p59
      %p61 = scmp.ne.s32.totalorder %s49, %s50
      %p62 = scmp.eq.s32.totalorder %s19, 1
      %p63 = por %p61, %p62
      %p65 = scmp.ne.s32.totalorder %s50, %s64
      %p66 = scmp.eq.s32.totalorder %s19, 0
      %p67 = por %p65, %p66
      %s69 = sadd.s32 %s68, 1
      %p72 = scmp.eq.s32.totalorder %s13, 1
      %p73 = scmp.ne.s32.totalorder %s68, %s70
      %p74 = scmp.eq.s32.totalorder %s13, 0
      %p75 = por %p73, %p74
      %p76 = scmp.ne.s32.totalorder %s68, %s70
      %p77 = scmp.eq.s32.totalorder %s18, 1
      %p78 = por %p76, %p77
      %p79 = scmp.ne.s32.totalorder %s70, %s71
      %p80 = scmp.eq.s32.totalorder %s18, 0
      %p81 = por %p79, %p80
      %p82 = scmp.ne.s32.totalorder %s70, %s71
      %p83 = scmp.eq.s32.totalorder %s19, 1
      %p84 = por %p82, %p83
      %p86 = scmp.ne.s32.totalorder %s71, %s85
      %p87 = scmp.eq.s32.totalorder %s19, 0
      %p88 = por %p86, %p87
      %s90 = sadd.s32 %s89, 1
      %p93 = scmp.eq.s32.totalorder %s13, 1
      %p94 = scmp.ne.s32.totalorder %s89, %s91
      %p95 = scmp.eq.s32.totalorder %s13, 0
      %p96 = por %p94, %p95
      %p97 = scmp.ne.s32.totalorder %s89, %s91
      %p98 = scmp.eq.s32.totalorder %s18, 1
      %p99 = por %p97, %p98
      %p100 = scmp.ne.s32.totalorder %s91, %s92
      %p101 = scmp.eq.s32.totalorder %s18, 0
      %p102 = por %p100, %p101
      %p103 = scmp.ne.s32.totalorder %s91, %s92
      %p104 = scmp.eq.s32.totalorder %s19, 1
      %p105 = por %p103, %p104
      %p107 = scmp.ne.s32.totalorder %s92, %s106
      %p108 = scmp.eq.s32.totalorder %s19, 0
      %p109 = por %p107, %p108
      %s110 = ssub.s32 %s13, %s20
      %p111 = scmp.eq.s32.totalorder %s110, 0
      %s113 = sadd.s32 %s112, 1
      %s114 = scalar_select %p111, %s112, %s113
      %p117 = pneg %p111
      %p118 = scmp.eq.s32.totalorder %s13, 1
      %p119 = por %p117, %p118
      %p120 = scmp.ne.s32.totalorder %s112, %s115
      %p121 = scmp.eq.s32.totalorder %s13, 0
      %p122 = por %p120, %p121
      %p123 = scmp.ne.s32.totalorder %s112, %s115
      %p124 = scmp.eq.s32.totalorder %s18, 1
      %p125 = por %p123, %p124
      %p126 = scmp.ne.s32.totalorder %s115, %s116
      %p127 = scmp.eq.s32.totalorder %s18, 0
      %p128 = por %p126, %p127
      %p129 = scmp.ne.s32.totalorder %s115, %s116
      %p130 = scmp.eq.s32.totalorder %s19, 1
      %p131 = por %p129, %p130
      %p133 = scmp.ne.s32.totalorder %s116, %s132
      %p134 = scmp.eq.s32.totalorder %s19, 0
      %p135 = por %p133, %p134
      %p136 = scmp.le.s32.totalorder 1, %s13
      %p137 = scmp.lt.s32.totalorder %s13, 3
      %p138 = pnand %p136, %p137
      %p139 = pneg %p138
      // Predicated region
      $region9: #{mobilenet_backbone_forward.9} parent=5 // pred_check
        _
      $region10: #{mobilenet_backbone_forward.9} parent=5 // pred_check_branch
        %141 = sbr.rel (%p138) target = $region12
      $region11: #{mobilenet_backbone_forward.9} parent=5 // pred_region
        %s142 = ssub.s32 %s13, 1
        // Predicated region
        $region13: #{mobilenet_backbone_forward.9} parent=11 // pred_check
          %p143 = pneg %p60
        $region14: #{mobilenet_backbone_forward.9} parent=11 // pred_check_branch
          %145 = sbr.rel (%p143) target = $region16
        $region15: #{mobilenet_backbone_forward.9} parent=11 // pred_region
          _
        $region16: #{mobilenet_backbone_forward.9} parent=11 // pred_fallthru
          _
        // Predicated region
        $region17: #{mobilenet_backbone_forward.9} parent=11 // pred_check
          %p146 = pneg %p81
        $region18: #{mobilenet_backbone_forward.9} parent=11 // pred_check_branch
          %148 = sbr.rel (%p146) target = $region20
        $region19: #{mobilenet_backbone_forward.9} parent=11 // pred_region
          _
        $region20: #{mobilenet_backbone_forward.9} parent=11 // pred_fallthru
          _
        // Predicated region
        $region21: #{mobilenet_backbone_forward.9} parent=11 // pred_check
          %p149 = pneg %p102
        $region22: #{mobilenet_backbone_forward.9} parent=11 // pred_check_branch
          %151 = sbr.rel (%p149) target = $region24
        $region23: #{mobilenet_backbone_forward.9} parent=11 // pred_region
          _
        $region24: #{mobilenet_backbone_forward.9} parent=11 // pred_fallthru
          _
      $region12: #{mobilenet_backbone_forward.9} parent=5 // pred_fallthru
        _
      %p152 = scmp.lt.s32.totalorder %s13, 2
      // Predicated region
      $region25: #{mobilenet_backbone_forward.9} parent=5 // pred_check
        %p153 = pneg %p152
      $region26: #{mobilenet_backbone_forward.9} parent=5 // pred_check_branch
        %155 = sbr.rel (%p153) target = $region28
      $region27: #{mobilenet_backbone_forward.9} parent=5 // pred_region
        // Predicated region
        $region29: #{mobilenet_backbone_forward.9} parent=27 // pred_check
          %p156 = pneg %p33
        $region30: #{mobilenet_backbone_forward.9} parent=27 // pred_check_branch
          %158 = sbr.rel (%p156) target = $region32
        $region31: #{mobilenet_backbone_forward.9} parent=27 // pred_region
          %p159 = scmp.lt.s32.totalorder %s13, 1
          %s160 = scalar_select %p159, %s13, 1
          %s161 = smul.addr %s160, 8
          %s162 = smul.addr %s161, 8
          %s163 = scalar_lea.vmem %s0, %s162
        $region32: #{mobilenet_backbone_forward.9} parent=27 // pred_fallthru
          _
      $region28: #{mobilenet_backbone_forward.9} parent=5 // pred_fallthru
        _
      %p164 = scmp.le.s32.totalorder 1, %s13
      %p165 = scmp.lt.s32.totalorder %s13, 3
      %p166 = pnand %p164, %p165
      %p167 = pneg %p166
      // Predicated region
      $region33: #{mobilenet_backbone_forward.9} parent=5 // pred_check
        _
      $region34: #{mobilenet_backbone_forward.9} parent=5 // pred_check_branch
        %169 = sbr.rel (%p166) target = $region36
      $region35: #{mobilenet_backbone_forward.9} parent=5 // pred_region
        %s170 = ssub.s32 %s13, 1
        %p171 = scmp.lt.s32.totalorder %s18, 1
        %s172 = scalar_select %p171, %s18, 1
        %s173 = smul.addr %s172, 8
        %s174 = smul.addr %s173, 8
        %s175 = scalar_lea.vmem %s0, %s174
        %p176 = pneg %p39
        %p177 = pneg %p36
        %p178 = pneg %p60
        %p179 = pneg %p57
        %p180 = pneg %p81
        %p181 = pneg %p78
        %p182 = pneg %p102
        %p183 = pneg %p99
        %p184 = pneg %p128
        %p185 = pneg %p125
        %s186 = sand.u32 %s115, 1
        %s187 = scalar_lea.sflag [#allocation3], %s186
        %s188 = sand.u32 %s115, 1
        %s189 = smul.addr %s188, 64
        %s190 = scalar_lea.vmem [#allocation2], %s189
        %p191 = scmp.lt.s32.totalorder %s18, 1
        %s192 = scalar_select %p191, %s18, 1
        %s193 = smul.addr %s192, 8
        %s194 = smul.addr %s193, 8
        %s195 = scalar_lea.vmem %s0, %s194
        %v197 = vld [vmem:[%s195] sm:$0xff]
        %v198 = vld [vmem:[%s195 + $0x8] sm:$0xff]
        %v199 = vld [vmem:[%s195 + $0x10] sm:$0xff]
        %v200 = vld [vmem:[%s195 + $0x18] sm:$0xff]
        %v201 = vld [vmem:[%s195 + $0x20] sm:$0xff]
        %v202 = vld [vmem:[%s195 + $0x28] sm:$0xff]
        %v203 = vld [vmem:[%s195 + $0x30] sm:$0xff]
        %v204 = vld [vmem:[%s195 + $0x38] sm:$0xff]
        %v205 = vpack.c.bf16 %v198, %v197
        %v206 = vpack.c.bf16 %v200, %v199
        %v207 = vpack.c.bf16 %v202, %v201
        %v208 = vpack.c.bf16 %v204, %v203
        %v209 = vld [vmem:[%s1] sm:$0xf]
        %v210 = vld [vmem:[%s1 + $0x4] sm:$0xf]
        %v213 = vunpack.c.l.b16 %v209
        %v214 = vunpack.c.l.b16 %v210
        %v215 = vpack.c.b16 %v214, %v213
        %vm217 = vcmask 130048
        %v219 = vsel %vm217, %v205, 0
        %v222 = vsel %vm217, %v206, 0
        %v225 = vsel %vm217, %v207, 0
        %v228 = vsel %vm217, %v208, 0
        %230 = vmatprep.subr.bf16.mxu0 0
        %231 = vmatpush1.bf16.msra.mxu0 %v215
        %232 = vmatprep.subr.bf16.mxu0 0
        %233 = vmatpush1.bf16.msra.mxu0 0
        %234 = vmatprep.subr.bf16.mxu0 0
        %235 = vmatpush1.bf16.msra.mxu0 0
        %236 = vmatprep.subr.bf16.mxu0 0
        %237 = vmatpush1.bf16.msra.mxu0 0
        %238 = vmatprep.subr.bf16.mxu0 0
        %239 = vmatpush1.bf16.msra.mxu0 0
        %240 = vmatprep.subr.bf16.mxu0 0
        %241 = vmatpush1.bf16.msra.mxu0 0
        %242 = vmatprep.subr.bf16.mxu0 0
        %243 = vmatpush1.bf16.msra.mxu0 0
        %244 = vmatprep.subr.bf16.mxu0 0
        %245 = vmatpush1.bf16.msra.mxu0 0
        %246 = vmatprep.subr.bf16.mxu0 0
        %247 = vmatpush1.bf16.msra.mxu0 0
        %248 = vmatprep.subr.bf16.mxu0 0
        %249 = vmatpush1.bf16.msra.mxu0 0
        %250 = vmatprep.subr.bf16.mxu0 0
        %251 = vmatpush1.bf16.msra.mxu0 0
        %252 = vmatprep.subr.bf16.mxu0 0
        %253 = vmatpush1.bf16.msra.mxu0 0
        %254 = vmatprep.subr.bf16.mxu0 0
        %255 = vmatpush1.bf16.msra.mxu0 0
        %256 = vmatprep.subr.bf16.mxu0 0
        %257 = vmatpush1.bf16.msra.mxu0 0
        %258 = vmatprep.subr.bf16.mxu0 0
        %259 = vmatpush1.bf16.msra.mxu0 0
        %260 = vmatprep.subr.bf16.mxu0 0
        %261 = vmatpush1.bf16.msra.mxu0 0
        %262 = vmatprep.mubr.bf16.mxu0 0
        %263 = vmatmul.mubr.bf16.gmra.mrb[0].mxu0 %v219
        %v264 = vpop.f32.mrb[0].mxu0
        %v265 = vadd.f32 0.0, %v264
        %v266 = vpop.f32.mrb[0].mxu0
        %v267 = vpop.f32.mrb[0].mxu0
        %v268 = vadd.f32 0.0, %v267
        %v269 = vpop.f32.mrb[0].mxu0
        %270 = vmatprep.mubr.bf16.mxu0 0
        %271 = vmatmul.mubr.bf16.gmra.mrb[0].mxu0 %v222
        %v272 = vpop.f32.mrb[0].mxu0
        %v273 = vadd.f32 0.0, %v272
        %v274 = vpop.f32.mrb[0].mxu0
        %v275 = vpop.f32.mrb[0].mxu0
        %v276 = vadd.f32 0.0, %v275
        %v277 = vpop.f32.mrb[0].mxu0
        %278 = vmatprep.mubr.bf16.mxu0 0
        %279 = vmatmul.mubr.bf16.gmra.mrb[0].mxu0 %v225
        %v280 = vpop.f32.mrb[0].mxu0
        %v281 = vadd.f32 0.0, %v280
        %v282 = vpop.f32.mrb[0].mxu0
        %v283 = vpop.f32.mrb[0].mxu0
        %v284 = vadd.f32 0.0, %v283
        %v285 = vpop.f32.mrb[0].mxu0
        %286 = vmatprep.mubr.bf16.mxu0 0
        %287 = vmatmul.mubr.bf16.gmra.mrb[0].mxu0 %v228
        %v288 = vpop.f32.mrb[0].mxu0
        %v289 = vadd.f32 0.0, %v288
        %v290 = vpop.f32.mrb[0].mxu0
        %v291 = vpop.f32.mrb[0].mxu0
        %v292 = vadd.f32 0.0, %v291
        %v293 = vpop.f32.mrb[0].mxu0
        %294 = vdwg.mxu0
        %v295 = vld [vmem:[%s2] sm:$0x1]
        %v297 = vlaneseq
        %v298 = vshrl.u32 %v297, 7
        %v299 = vsub.s32 0, %v298
        %v300 = vrot.slane %v295, %v299
        %v302 = vmul.f32 %v265, %v300
        %v303 = vmul.f32 %v268, %v300
        %v304 = vmul.f32 %v273, %v300
        %v305 = vmul.f32 %v276, %v300
        %v306 = vmul.f32 %v281, %v300
        %v307 = vmul.f32 %v284, %v300
        %v308 = vmul.f32 %v289, %v300
        %v309 = vmul.f32 %v292, %v300
        %v310 = vld [vmem:[%s3] sm:$0x1]
        %v312 = vlaneseq
        %v313 = vshrl.u32 %v312, 7
        %v314 = vsub.s32 0, %v313
        %v315 = vrot.slane %v310, %v314
        %v317 = vadd.f32 %v302, %v315
        %v318 = vadd.f32 %v303, %v315
        %v319 = vadd.f32 %v304, %v315
        %v320 = vadd.f32 %v305, %v315
        %v321 = vadd.f32 %v306, %v315
        %v322 = vadd.f32 %v307, %v315
        %v323 = vadd.f32 %v308, %v315
        %v324 = vadd.f32 %v309, %v315
        %v325 = vmax.f32 %v317, 0.0
        %v326 = vmax.f32 %v318, 0.0
        %v327 = vmax.f32 %v319, 0.0
        %v328 = vmax.f32 %v320, 0.0
        %v329 = vmax.f32 %v321, 0.0
        %v330 = vmax.f32 %v322, 0.0
        %v331 = vmax.f32 %v323, 0.0
        %v332 = vmax.f32 %v324, 0.0
        %v333 = vmin.f32 %v325, 6.0
        %v334 = vmin.f32 %v326, 6.0
        %v335 = vmin.f32 %v327, 6.0
        %v336 = vmin.f32 %v328, 6.0
        %v337 = vmin.f32 %v329, 6.0
        %v338 = vmin.f32 %v330, 6.0
        %v339 = vmin.f32 %v331, 6.0
        %v340 = vmin.f32 %v332, 6.0
        %vm341 = vcmask 261120
        %342 = vst.msk [vmem:[%s190] sm:$0xff] %vm341, %v333
        %343 = vst.msk [vmem:[%s190 + $0x8] sm:$0xff] %vm341, %v334
        %344 = vst.msk [vmem:[%s190 + $0x10] sm:$0xff] %vm341, %v335
        %345 = vst.msk [vmem:[%s190 + $0x18] sm:$0xff] %vm341, %v336
        %346 = vst.msk [vmem:[%s190 + $0x20] sm:$0xff] %vm341, %v337
        %347 = vst.msk [vmem:[%s190 + $0x28] sm:$0xff] %vm341, %v338
        %348 = vst.msk [vmem:[%s190 + $0x30] sm:$0xff] %vm341, %v339
        %349 = vst.msk [vmem:[%s190 + $0x38] sm:$0xff] %vm341, %v340
        %s350 = sand.u32 %s115, 1
        %s351 = scalar_lea.sflag [#allocation3], %s350
        %s352 = sand.u32 %s115, 1
        %s353 = smul.addr %s352, 64
        %s354 = scalar_lea.vmem [#allocation2], %s353
        // Predicated region
        $region37: #{mobilenet_backbone_forward.9} parent=35 // pred_check
          %p355 = pneg %p125
        $region38: #{mobilenet_backbone_forward.9} parent=35 // pred_check_branch
          %357 = sbr.rel (%p355) target = $region40
        $region39: #{mobilenet_backbone_forward.9} parent=35 // pred_region
          %s359 = ssub.s32 1024, 1024
          %360 = vsyncadd %s351, %s359
          %s361 = smul.addr %s18, 8
          %s362 = smul.addr %s361, 128
          %s363 = scalar_lea.hbm %s4, %s362
          %s364 = sshll.u32 %s354, 4
          %s365 = int_to_ptr.vmem [resolvable:$true] %s364
          %370 = dma.vmem_to_hbm [thread:$0]  %s365, 1024, %s363, %s351, 128, 128, 8
        $region40: #{mobilenet_backbone_forward.9} parent=35 // pred_fallthru
          _
      $region36: #{mobilenet_backbone_forward.9} parent=5 // pred_fallthru
        _
      %p371 = scmp.le.s32.totalorder 2, %s13
      // Predicated region
      $region41: #{mobilenet_backbone_forward.9} parent=5 // pred_check
        %p372 = pneg %p371
      $region42: #{mobilenet_backbone_forward.9} parent=5 // pred_check_branch
        %374 = sbr.rel (%p372) target = $region44
      $region43: #{mobilenet_backbone_forward.9} parent=5 // pred_region
        %s375 = ssub.s32 %s13, 2
        // Predicated region
        $region45: #{mobilenet_backbone_forward.9} parent=43 // pred_check
          %p376 = pneg %p131
        $region46: #{mobilenet_backbone_forward.9} parent=43 // pred_check_branch
          %378 = sbr.rel (%p376) target = $region48
        $region47: #{mobilenet_backbone_forward.9} parent=43 // pred_region
          %s379 = sand.u32 %s116, 1
          %s380 = scalar_lea.sflag [#allocation3], %s379
          %s381 = sand.u32 %s116, 1
          %s382 = smul.addr %s381, 64
          %s383 = scalar_lea.vmem [#allocation2], %s382
          %384 = dma.done %s380, 1024
        $region48: #{mobilenet_backbone_forward.9} parent=43 // pred_fallthru
          _
      $region44: #{mobilenet_backbone_forward.9} parent=5 // pred_fallthru
        _
    $region6: #{mobilenet_backbone_forward.9} parent=1 // loop_footer
      %s17 = sadd.s32 1, %s13
    $region7: #{mobilenet_backbone_forward.9} parent=1 // loop_footer_branch
      %12 = sbr.rel target = $region3
    $region8: #{mobilenet_backbone_forward.9} parent=1 // loop_exit
      _
    %385 = vsyncpa [#allocation3], 1
    %s386 = scalar_lea.sflag [#allocation3], 1
    %387 = vsyncpa %s386, 1

// kernel: mobilenet_backbone_forward.5
$region0: #{mobilenet_backbone_forward.5}
  #allocation0 [shape = 'u32[]', space=smem, size = 0x4, offset = 0x4, fixed_abs, tag = 'smem constant byte address 0x4 - core index']
  #allocation1 [shape = 'u32[144,128]{1,0:T(1,128)}', space=vmem, size = 0x12000, scoped, tag = 'internal scratch']
  #allocation2 [shape = 'f32[34,34,3]{2,1,0:T(8,128)}', space=vmem, size = 0xaa000, scoped, tag = 'scratch operand']
  %s0 = inlined_call_operand.vmem [shape: f32[2,32,32,3], index: 0, kind: input, shape index: {}]
  %s1 = inlined_call_operand.vmem [shape: bf16[9,3,8], index: 1, kind: input, shape index: {}]
  %s2 = inlined_call_operand.vmem [shape: f32[1,8], index: 2, kind: input, shape index: {}]
  %s3 = inlined_call_operand.vmem [shape: f32[1,8], index: 3, kind: input, shape index: {}]
  %s4 = inlined_call_operand.vmem [shape: f32[2,16,16,8], index: 4, kind: output, shape index: {}]
  %s5 = sld [smem:[#allocation0]]
  $region49: #{mobilenet_backbone_forward.5} parent=0
    _
  %s7 = ssub.s32 1, %s5
  %s8 = scalar_select 0, %s7, %s5
  loop: start=0, step=1, limit=4
  $region2: #{mobilenet_backbone_forward.5} parent=0 // loop_pre_header
    _
  $region3: #{mobilenet_backbone_forward.5} parent=0 // loop_header
    %s10 = sphi 0, %s14
    %p11 = scmp.ge.s32.totalorder %s10, 4
    %s20 = sphi 0, %s22
    %s23 = sphi 0, %s20
    %s24 = sphi 0, %s23
    %s40 = sphi 0, %s24
    %s44 = sphi 0, %s44
    %s46 = sphi 0, %s44
    %s47 = sphi 0, %s46
    %s61 = sphi 0, %s47
    %s65 = sphi 0, %s65
    %s67 = sphi 0, %s65
    %s68 = sphi 0, %s67
    %s82 = sphi 0, %s68
    %s86 = sphi 0, %s86
    %s88 = sphi 0, %s86
    %s89 = sphi 0, %s88
    %s103 = sphi 0, %s89
    %s109 = sphi 0, %s111
    %s112 = sphi 0, %s109
    %s113 = sphi 0, %s112
    %s129 = sphi 0, %s113
  $region4: #{mobilenet_backbone_forward.5} parent=0 // loop_header_branch
    %13 = sbr.rel (%p11) target = $region8
  $region5: #{mobilenet_backbone_forward.5} parent=0 // loop_body
    %s15 = ssub.s32 %s10, 1
    %s16 = ssub.s32 %s10, 2
    %s17 = sadd.s32 %s10, 1
    %s18 = ssub.s32 %s10, %s17
    %p19 = scmp.eq.s32.totalorder %s18, 0
    %s21 = sadd.s32 %s20, 1
    %s22 = scalar_select %p19, %s20, %s21
    %p25 = pneg %p19
    %p26 = scmp.eq.s32.totalorder %s10, 1
    %p27 = por %p25, %p26
    %p28 = scmp.ne.s32.totalorder %s20, %s23
    %p29 = scmp.eq.s32.totalorder %s10, 0
    %p30 = por %p28, %p29
    %p31 = scmp.ne.s32.totalorder %s20, %s23
    %p32 = scmp.eq.s32.totalorder %s15, 1
    %p33 = por %p31, %p32
    %p34 = scmp.ne.s32.totalorder %s23, %s24
    %p35 = scmp.eq.s32.totalorder %s15, 0
    %p36 = por %p34, %p35
    %p37 = scmp.ne.s32.totalorder %s23, %s24
    %p38 = scmp.eq.s32.totalorder %s16, 1
    %p39 = por %p37, %p38
    %p41 = scmp.ne.s32.totalorder %s24, %s40
    %p42 = scmp.eq.s32.totalorder %s16, 0
    %p43 = por %p41, %p42
    %s45 = sadd.s32 %s44, 1
    %p48 = scmp.eq.s32.totalorder %s10, 1
    %p49 = scmp.ne.s32.totalorder %s44, %s46
    %p50 = scmp.eq.s32.totalorder %s10, 0
    %p51 = por %p49, %p50
    %p52 = scmp.ne.s32.totalorder %s44, %s46
    %p53 = scmp.eq.s32.totalorder %s15, 1
    %p54 = por %p52, %p53
    %p55 = scmp.ne.s32.totalorder %s46, %s47
    %p56 = scmp.eq.s32.totalorder %s15, 0
    %p57 = por %p55, %p56
    %p58 = scmp.ne.s32.totalorder %s46, %s47
    %p59 = scmp.eq.s32.totalorder %s16, 1
    %p60 = por %p58, %p59
    %p62 = scmp.ne.s32.totalorder %s47, %s61
    %p63 = scmp.eq.s32.totalorder %s16, 0
    %p64 = por %p62, %p63
    %s66 = sadd.s32 %s65, 1
    %p69 = scmp.eq.s32.totalorder %s10, 1
    %p70 = scmp.ne.s32.totalorder %s65, %s67
    %p71 = scmp.eq.s32.totalorder %s10, 0
    %p72 = por %p70, %p71
    %p73 = scmp.ne.s32.totalorder %s65, %s67
    %p74 = scmp.eq.s32.totalorder %s15, 1
    %p75 = por %p73, %p74
    %p76 = scmp.ne.s32.totalorder %s67, %s68
    %p77 = scmp.eq.s32.totalorder %s15, 0
    %p78 = por %p76, %p77
    %p79 = scmp.ne.s32.totalorder %s67, %s68
    %p80 = scmp.eq.s32.totalorder %s16, 1
    %p81 = por %p79, %p80
    %p83 = scmp.ne.s32.totalorder %s68, %s82
    %p84 = scmp.eq.s32.totalorder %s16, 0
    %p85 = por %p83, %p84
    %s87 = sadd.s32 %s86, 1
    %p90 = scmp.eq.s32.totalorder %s10, 1
    %p91 = scmp.ne.s32.totalorder %s86, %s88
    %p92 = scmp.eq.s32.totalorder %s10, 0
    %p93 = por %p91, %p92
    %p94 = scmp.ne.s32.totalorder %s86, %s88
    %p95 = scmp.eq.s32.totalorder %s15, 1
    %p96 = por %p94, %p95
    %p97 = scmp.ne.s32.totalorder %s88, %s89
    %p98 = scmp.eq.s32.totalorder %s15, 0
    %p99 = por %p97, %p98
    %p100 = scmp.ne.s32.totalorder %s88, %s89
    %p101 = scmp.eq.s32.totalorder %s16, 1
    %p102 = por %p100, %p101
    %p104 = scmp.ne.s32.totalorder %s89, %s103
    %p105 = scmp.eq.s32.totalorder %s16, 0
    %p106 = por %p104, %p105
    %s107 = ssub.s32 %s10, %s17
    %p108 = scmp.eq.s32.totalorder %s107, 0
    %s110 = sadd.s32 %s109, 1
    %s111 = scalar_select %p108, %s109, %s110
    %p114 = pneg %p108
    %p115 = scmp.eq.s32.totalorder %s10, 1
    %p116 = por %p114, %p115
    %p117 = scmp.ne.s32.totalorder %s109, %s112
    %p118 = scmp.eq.s32.totalorder %s10, 0
    %p119 = por %p117, %p118
    %p120 = scmp.ne.s32.totalorder %s109, %s112
    %p121 = scmp.eq.s32.totalorder %s15, 1
    %p122 = por %p120, %p121
    %p123 = scmp.ne.s32.totalorder %s112, %s113
    %p124 = scmp.eq.s32.totalorder %s15, 0
    %p125 = por %p123, %p124
    %p126 = scmp.ne.s32.totalorder %s112, %s113
    %p127 = scmp.eq.s32.totalorder %s16, 1
    %p128 = por %p126, %p127
    %p130 = scmp.ne.s32.totalorder %s113, %s129
    %p131 = scmp.eq.s32.totalorder %s16, 0
    %p132 = por %p130, %p131
    %p133 = scmp.le.s32.totalorder 1, %s10
    %p134 = scmp.lt.s32.totalorder %s10, 3
    %p135 = pnand %p133, %p134
    %p136 = pneg %p135
    // Predicated region
    $region9: #{mobilenet_backbone_forward.5} parent=5 // pred_check
      _
    $region10: #{mobilenet_backbone_forward.5} parent=5 // pred_check_branch
      %138 = sbr.rel (%p135) target = $region12
    $region11: #{mobilenet_backbone_forward.5} parent=5 // pred_region
      %s139 = ssub.s32 %s10, 1
      // Predicated region
      $region13: #{mobilenet_backbone_forward.5} parent=11 // pred_check
        %p140 = pneg %p57
      $region14: #{mobilenet_backbone_forward.5} parent=11 // pred_check_branch
        %142 = sbr.rel (%p140) target = $region16
      $region15: #{mobilenet_backbone_forward.5} parent=11 // pred_region
        _
      $region16: #{mobilenet_backbone_forward.5} parent=11 // pred_fallthru
        _
      // Predicated region
      $region17: #{mobilenet_backbone_forward.5} parent=11 // pred_check
        %p143 = pneg %p78
      $region18: #{mobilenet_backbone_forward.5} parent=11 // pred_check_branch
        %145 = sbr.rel (%p143) target = $region20
      $region19: #{mobilenet_backbone_forward.5} parent=11 // pred_region
        _
      $region20: #{mobilenet_backbone_forward.5} parent=11 // pred_fallthru
        _
      // Predicated region
      $region21: #{mobilenet_backbone_forward.5} parent=11 // pred_check
        %p146 = pneg %p99
      $region22: #{mobilenet_backbone_forward.5} parent=11 // pred_check_branch
        %148 = sbr.rel (%p146) target = $region24
      $region23: #{mobilenet_backbone_forward.5} parent=11 // pred_region
        _
      $region24: #{mobilenet_backbone_forward.5} parent=11 // pred_fallthru
        _
    $region12: #{mobilenet_backbone_forward.5} parent=5 // pred_fallthru
      _
    %p149 = scmp.lt.s32.totalorder %s10, 2
    // Predicated region
    $region25: #{mobilenet_backbone_forward.5} parent=5 // pred_check
      %p150 = pneg %p149
    $region26: #{mobilenet_backbone_forward.5} parent=5 // pred_check_branch
      %152 = sbr.rel (%p150) target = $region28
    $region27: #{mobilenet_backbone_forward.5} parent=5 // pred_region
      // Predicated region
      $region29: #{mobilenet_backbone_forward.5} parent=27 // pred_check
        %p153 = pneg %p30
      $region30: #{mobilenet_backbone_forward.5} parent=27 // pred_check_branch
        %155 = sbr.rel (%p153) target = $region32
      $region31: #{mobilenet_backbone_forward.5} parent=27 // pred_region
        %p156 = scmp.lt.s32.totalorder %s10, 1
        %s157 = scalar_select %p156, %s10, 1
        %s158 = smul.addr %s157, 128
        %s159 = smul.addr %s158, 8
        %s160 = scalar_lea.vmem %s0, %s159
      $region32: #{mobilenet_backbone_forward.5} parent=27 // pred_fallthru
        _
    $region28: #{mobilenet_backbone_forward.5} parent=5 // pred_fallthru
      _
    %p161 = scmp.le.s32.totalorder 1, %s10
    %p162 = scmp.lt.s32.totalorder %s10, 3
    %p163 = pnand %p161, %p162
    %p164 = pneg %p163
    // Predicated region
    $region33: #{mobilenet_backbone_forward.5} parent=5 // pred_check
      _
    $region34: #{mobilenet_backbone_forward.5} parent=5 // pred_check_branch
      %166 = sbr.rel (%p163) target = $region36
    $region35: #{mobilenet_backbone_forward.5} parent=5 // pred_region
      %s167 = ssub.s32 %s10, 1
      %p168 = scmp.lt.s32.totalorder %s15, 1
      %s169 = scalar_select %p168, %s15, 1
      %s170 = smul.addr %s169, 128
      %s171 = smul.addr %s170, 8
      %s172 = scalar_lea.vmem %s0, %s171
      %p173 = pneg %p36
      %p174 = pneg %p33
      %p175 = pneg %p57
      %p176 = pneg %p54
      %p177 = pneg %p78
      %p178 = pneg %p75
      %p179 = pneg %p99
      %p180 = pneg %p96
      %p181 = pneg %p125
      %p182 = pneg %p122
      %p183 = scmp.lt.s32.totalorder %s15, 1
      %s184 = scalar_select %p183, %s15, 1
      %s185 = smul.addr %s184, 32
      %s186 = smul.addr %s185, 8
      %s187 = scalar_lea.vmem %s4, %s186
      %p188 = scmp.lt.s32.totalorder %s15, 1
      %s189 = scalar_select %p188, %s15, 1
      %s190 = smul.addr %s189, 128
      %s191 = smul.addr %s190, 8
      %s192 = scalar_lea.vmem %s0, %s191
      %p193 = scmp.lt.s32.totalorder %s15, 1
      %s194 = scalar_select %p193, %s15, 1
      %s195 = smul.addr %s194, 32
      %s196 = smul.addr %s195, 8
      %s197 = scalar_lea.vmem %s4, %s196
      %vm199 = vcmask 23552
      %200 = vst.msk [vmem:[#allocation2] sm:$0xff] %vm199, 0.0
      %201 = vst.msk [vmem:[#allocation2 + $0x8] sm:$0xff] %vm199, 0.0
      %202 = vst.msk [vmem:[#allocation2 + $0x10] sm:$0xff] %vm199, 0.0
      %203 = vst.msk [vmem:[#allocation2 + $0x18] sm:$0xff] %vm199, 0.0
      %vm204 = vcmask 17408
      %205 = vst.msk [vmem:[#allocation2 + $0x20] sm:$0x3] %vm204, 0.0
      %206 = vst.msk [vmem:[#allocation2 + $0x28] sm:$0xff] %vm199, 0.0
      %207 = vst.msk [vmem:[#allocation2 + $0x30] sm:$0xff] %vm199, 0.0
      %208 = vst.msk [vmem:[#allocation2 + $0x38] sm:$0xff] %vm199, 0.0
      %209 = vst.msk [vmem:[#allocation2 + $0x40] sm:$0xff] %vm199, 0.0
      %210 = vst.msk [vmem:[#allocation2 + $0x48] sm:$0x3] %vm204, 0.0
      %211 = vst.msk [vmem:[#allocation2 + $0x50] sm:$0xff] %vm199, 0.0
      %212 = vst.msk [vmem:[#allocation2 + $0x58] sm:$0xff] %vm199, 0.0
      %213 = vst.msk [vmem:[#allocation2 + $0x60] sm:$0xff] %vm199, 0.0
      %214 = vst.msk [vmem:[#allocation2 + $0x68] sm:$0xff] %vm199, 0.0
      %215 = vst.msk [vmem:[#allocation2 + $0x70] sm:$0x3] %vm204, 0.0
      %216 = vst.msk [vmem:[#allocation2 + $0x78] sm:$0xff] %vm199, 0.0
      %217 = vst.msk [vmem:[#allocation2 + $0x80] sm:$0xff] %vm199, 0.0
      %218 = vst.msk [vmem:[#allocation2 + $0x88] sm:$0xff] %vm199, 0.0
      %219 = vst.msk [vmem:[#allocation2 + $0x90] sm:$0xff] %vm199, 0.0
      %220 = vst.msk [vmem:[#allocation2 + $0x98] sm:$0x3] %vm204, 0.0
      %221 = vst.msk [vmem:[#allocation2 + $0xa0] sm:$0xff] %vm199, 0.0
      %222 = vst.msk [vmem:[#allocation2 + $0xa8] sm:$0xff] %vm199, 0.0
      %223 = vst.msk [vmem:[#allocation2 + $0xb0] sm:$0xff] %vm199, 0.0
      %224 = vst.msk [vmem:[#allocation2 + $0xb8] sm:$0xff] %vm199, 0.0
      %225 = vst.msk [vmem:[#allocation2 + $0xc0] sm:$0x3] %vm204, 0.0
      %226 = vst.msk [vmem:[#allocation2 + $0xc8] sm:$0xff] %vm199, 0.0
      %227 = vst.msk [vmem:[#allocation2 + $0xd0] sm:$0xff] %vm199, 0.0
      %228 = vst.msk [vmem:[#allocation2 + $0xd8] sm:$0xff] %vm199, 0.0
      %229 = vst.msk [vmem:[#allocation2 + $0xe0] sm:$0xff] %vm199, 0.0
      %230 = vst.msk [vmem:[#allocation2 + $0xe8] sm:$0x3] %vm204, 0.0
      %231 = vst.msk [vmem:[#allocation2 + $0xf0] sm:$0xff] %vm199, 0.0
      %232 = vst.msk [vmem:[#allocation2 + $0xf8] sm:$0xff] %vm199, 0.0
      %233 = vst.msk [vmem:[#allocation2 + $0x100] sm:$0xff] %vm199, 0.0
      %234 = vst.msk [vmem:[#allocation2 + $0x108] sm:$0xff] %vm199, 0.0
      %235 = vst.msk [vmem:[#allocation2 + $0x110] sm:$0x3] %vm204, 0.0
      %236 = vst.msk [vmem:[#allocation2 + $0x118] sm:$0xff] %vm199, 0.0
      %237 = vst.msk [vmem:[#allocation2 + $0x120] sm:$0xff] %vm199, 0.0
      %238 = vst.msk [vmem:[#allocation2 + $0x128] sm:$0xff] %vm199, 0.0
      %239 = vst.msk [vmem:[#allocation2 + $0x130] sm:$0xff] %vm199, 0.0
      %240 = vst.msk [vmem:[#allocation2 + $0x138] sm:$0x3] %vm204, 0.0
      %241 = vst.msk [vmem:[#allocation2 + $0x140] sm:$0xff] %vm199, 0.0
      %242 = vst.msk [vmem:[#allocation2 + $0x148] sm:$0xff] %vm199, 0.0
      %243 = vst.msk [vmem:[#allocation2 + $0x150] sm:$0xff] %vm199, 0.0
      %244 = vst.msk [vmem:[#allocation2 + $0x158] sm:$0xff] %vm199, 0.0
      %245 = vst.msk [vmem:[#allocation2 + $0x160] sm:$0x3] %vm204, 0.0
      %246 = vst.msk [vmem:[#allocation2 + $0x168] sm:$0xff] %vm199, 0.0
      %247 = vst.msk [vmem:[#allocation2 + $0x170] sm:$0xff] %vm199, 0.0
      %248 = vst.msk [vmem:[#allocation2 + $0x178] sm:$0xff] %vm199, 0.0
      %249 = vst.msk [vmem:[#allocation2 + $0x180] sm:$0xff] %vm199, 0.0
      %250 = vst.msk [vmem:[#allocation2 + $0x188] sm:$0x3] %vm204, 0.0
      %251 = vst.msk [vmem:[#allocation2 + $0x190] sm:$0xff] %vm199, 0.0
      %252 = vst.msk [vmem:[#allocation2 + $0x198] sm:$0xff] %vm199, 0.0
      %253 = vst.msk [vmem:[#allocation2 + $0x1a0] sm:$0xff] %vm199, 0.0
      %254 = vst.msk [vmem:[#allocation2 + $0x1a8] sm:$0xff] %vm199, 0.0
      %255 = vst.msk [vmem:[#allocation2 + $0x1b0] sm:$0x3] %vm204, 0.0
      %256 = vst.msk [vmem:[#allocation2 + $0x1b8] sm:$0xff] %vm199, 0.0
      %257 = vst.msk [vmem:[#allocation2 + $0x1c0] sm:$0xff] %vm199, 0.0
      %258 = vst.msk [vmem:[#allocation2 + $0x1c8] sm:$0xff] %vm199, 0.0
      %259 = vst.msk [vmem:[#allocation2 + $0x1d0] sm:$0xff] %vm199, 0.0
      %260 = vst.msk [vmem:[#allocation2 + $0x1d8] sm:$0x3] %vm204, 0.0
      %261 = vst.msk [vmem:[#allocation2 + $0x1e0] sm:$0xff] %vm199, 0.0
      %262 = vst.msk [vmem:[#allocation2 + $0x1e8] sm:$0xff] %vm199, 0.0
      %263 = vst.msk [vmem:[#allocation2 + $0x1f0] sm:$0xff] %vm199, 0.0
      %264 = vst.msk [vmem:[#allocation2 + $0x1f8] sm:$0xff] %vm199, 0.0
      %265 = vst.msk [vmem:[#allocation2 + $0x200] sm:$0x3] %vm204, 0.0
      %266 = vst.msk [vmem:[#allocation2 + $0x208] sm:$0xff] %vm199, 0.0
      %267 = vst.msk [vmem:[#allocation2 + $0x210] sm:$0xff] %vm199, 0.0
      %268 = vst.msk [vmem:[#allocation2 + $0x218] sm:$0xff] %vm199, 0.0
      %269 = vst.msk [vmem:[#allocation2 + $0x220] sm:$0xff] %vm199, 0.0
      %270 = vst.msk [vmem:[#allocation2 + $0x228] sm:$0x3] %vm204, 0.0
      %271 = vst.msk [vmem:[#allocation2 + $0x230] sm:$0xff] %vm199, 0.0
      %272 = vst.msk [vmem:[#allocation2 + $0x238] sm:$0xff] %vm199, 0.0
      %273 = vst.msk [vmem:[#allocation2 + $0x240] sm:$0xff] %vm199, 0.0
      %274 = vst.msk [vmem:[#allocation2 + $0x248] sm:$0xff] %vm199, 0.0
      %275 = vst.msk [vmem:[#allocation2 + $0x250] sm:$0x3] %vm204, 0.0
      %276 = vst.msk [vmem:[#allocation2 + $0x258] sm:$0xff] %vm199, 0.0
      %277 = vst.msk [vmem:[#allocation2 + $0x260] sm:$0xff] %vm199, 0.0
      %278 = vst.msk [vmem:[#allocation2 + $0x268] sm:$0xff] %vm199, 0.0
      %279 = vst.msk [vmem:[#allocation2 + $0x270] sm:$0xff] %vm199, 0.0
      %280 = vst.msk [vmem:[#allocation2 + $0x278] sm:$0x3] %vm204, 0.0
      %281 = vst.msk [vmem:[#allocation2 + $0x280] sm:$0xff] %vm199, 0.0
      %282 = vst.msk [vmem:[#allocation2 + $0x288] sm:$0xff] %vm199, 0.0
      %283 = vst.msk [vmem:[#allocation2 + $0x290] sm:$0xff] %vm199, 0.0
      %284 = vst.msk [vmem:[#allocation2 + $0x298] sm:$0xff] %vm199, 0.0
      %285 = vst.msk [vmem:[#allocation2 + $0x2a0] sm:$0x3] %vm204, 0.0
      %286 = vst.msk [vmem:[#allocation2 + $0x2a8] sm:$0xff] %vm199, 0.0
      %287 = vst.msk [vmem:[#allocation2 + $0x2b0] sm:$0xff] %vm199, 0.0
      %288 = vst.msk [vmem:[#allocation2 + $0x2b8] sm:$0xff] %vm199, 0.0
      %289 = vst.msk [vmem:[#allocation2 + $0x2c0] sm:$0xff] %vm199, 0.0
      %290 = vst.msk [vmem:[#allocation2 + $0x2c8] sm:$0x3] %vm204, 0.0
      %291 = vst.msk [vmem:[#allocation2 + $0x2d0] sm:$0xff] %vm199, 0.0
      %292 = vst.msk [vmem:[#allocation2 + $0x2d8] sm:$0xff] %vm199, 0.0
      %293 = vst.msk [vmem:[#allocation2 + $0x2e0] sm:$0xff] %vm199, 0.0
      %294 = vst.msk [vmem:[#allocation2 + $0x2e8] sm:$0xff] %vm199, 0.0
      %295 = vst.msk [vmem:[#allocation2 + $0x2f0] sm:$0x3] %vm204, 0.0
      %296 = vst.msk [vmem:[#allocation2 + $0x2f8] sm:$0xff] %vm199, 0.0
      %297 = vst.msk [vmem:[#allocation2 + $0x300] sm:$0xff] %vm199, 0.0
      %298 = vst.msk [vmem:[#allocation2 + $0x308] sm:$0xff] %vm199, 0.0
      %299 = vst.msk [vmem:[#allocation2 + $0x310] sm:$0xff] %vm199, 0.0
      %300 = vst.msk [vmem:[#allocation2 + $0x318] sm:$0x3] %vm204, 0.0
      %301 = vst.msk [vmem:[#allocation2 + $0x320] sm:$0xff] %vm199, 0.0
      %302 = vst.msk [vmem:[#allocation2 + $0x328] sm:$0xff] %vm199, 0.0
      %303 = vst.msk [vmem:[#allocation2 + $0x330] sm:$0xff] %vm199, 0.0
      %304 = vst.msk [vmem:[#allocation2 + $0x338] sm:$0xff] %vm199, 0.0
      %305 = vst.msk [vmem:[#allocation2 + $0x340] sm:$0x3] %vm204, 0.0
      %306 = vst.msk [vmem:[#allocation2 + $0x348] sm:$0xff] %vm199, 0.0
      %307 = vst.msk [vmem:[#allocation2 + $0x350] sm:$0xff] %vm199, 0.0
      %308 = vst.msk [vmem:[#allocation2 + $0x358] sm:$0xff] %vm199, 0.0
      %309 = vst.msk [vmem:[#allocation2 + $0x360] sm:$0xff] %vm199, 0.0
      %310 = vst.msk [vmem:[#allocation2 + $0x368] sm:$0x3] %vm204, 0.0
      %311 = vst.msk [vmem:[#allocation2 + $0x370] sm:$0xff] %vm199, 0.0
      %312 = vst.msk [vmem:[#allocation2 + $0x378] sm:$0xff] %vm199, 0.0
      %313 = vst.msk [vmem:[#allocation2 + $0x380] sm:$0xff] %vm199, 0.0
      %314 = vst.msk [vmem:[#allocation2 + $0x388] sm:$0xff] %vm199, 0.0
      %315 = vst.msk [vmem:[#allocation2 + $0x390] sm:$0x3] %vm204, 0.0
      %316 = vst.msk [vmem:[#allocation2 + $0x398] sm:$0xff] %vm199, 0.0
      %317 = vst.msk [vmem:[#allocation2 + $0x3a0] sm:$0xff] %vm199, 0.0
      %318 = vst.msk [vmem:[#allocation2 + $0x3a8] sm:$0xff] %vm199, 0.0
      %319 = vst.msk [vmem:[#allocation2 + $0x3b0] sm:$0xff] %vm199, 0.0
      %320 = vst.msk [vmem:[#allocation2 + $0x3b8] sm:$0x3] %vm204, 0.0
      %321 = vst.msk [vmem:[#allocation2 + $0x3c0] sm:$0xff] %vm199, 0.0
      %322 = vst.msk [vmem:[#allocation2 + $0x3c8] sm:$0xff] %vm199, 0.0
      %323 = vst.msk [vmem:[#allocation2 + $0x3d0] sm:$0xff] %vm199, 0.0
      %324 = vst.msk [vmem:[#allocation2 + $0x3d8] sm:$0xff] %vm199, 0.0
      %325 = vst.msk [vmem:[#allocation2 + $0x3e0] sm:$0x3] %vm204, 0.0
      %326 = vst.msk [vmem:[#allocation2 + $0x3e8] sm:$0xff] %vm199, 0.0
      %327 = vst.msk [vmem:[#allocation2 + $0x3f0] sm:$0xff] %vm199, 0.0
      %328 = vst.msk [vmem:[#allocation2 + $0x3f8] sm:$0xff] %vm199, 0.0
      %329 = vst.msk [vmem:[#allocation2 + $0x400] sm:$0xff] %vm199, 0.0
      %330 = vst.msk [vmem:[#allocation2 + $0x408] sm:$0x3] %vm204, 0.0
      %331 = vst.msk [vmem:[#allocation2 + $0x410] sm:$0xff] %vm199, 0.0
      %332 = vst.msk [vmem:[#allocation2 + $0x418] sm:$0xff] %vm199, 0.0
      %333 = vst.msk [vmem:[#allocation2 + $0x420] sm:$0xff] %vm199, 0.0
      %334 = vst.msk [vmem:[#allocation2 + $0x428] sm:$0xff] %vm199, 0.0
      %335 = vst.msk [vmem:[#allocation2 + $0x430] sm:$0x3] %vm204, 0.0
      %336 = vst.msk [vmem:[#allocation2 + $0x438] sm:$0xff] %vm199, 0.0
      %337 = vst.msk [vmem:[#allocation2 + $0x440] sm:$0xff] %vm199, 0.0
      %338 = vst.msk [vmem:[#allocation2 + $0x448] sm:$0xff] %vm199, 0.0
      %339 = vst.msk [vmem:[#allocation2 + $0x450] sm:$0xff] %vm199, 0.0
      %340 = vst.msk [vmem:[#allocation2 + $0x458] sm:$0x3] %vm204, 0.0
      %341 = vst.msk [vmem:[#allocation2 + $0x460] sm:$0xff] %vm199, 0.0
      %342 = vst.msk [vmem:[#allocation2 + $0x468] sm:$0xff] %vm199, 0.0
      %343 = vst.msk [vmem:[#allocation2 + $0x470] sm:$0xff] %vm199, 0.0
      %344 = vst.msk [vmem:[#allocation2 + $0x478] sm:$0xff] %vm199, 0.0
      %345 = vst.msk [vmem:[#allocation2 + $0x480] sm:$0x3] %vm204, 0.0
      %346 = vst.msk [vmem:[#allocation2 + $0x488] sm:$0xff] %vm199, 0.0
      %347 = vst.msk [vmem:[#allocation2 + $0x490] sm:$0xff] %vm199, 0.0
      %348 = vst.msk [vmem:[#allocation2 + $0x498] sm:$0xff] %vm199, 0.0
      %349 = vst.msk [vmem:[#allocation2 + $0x4a0] sm:$0xff] %vm199, 0.0
      %350 = vst.msk [vmem:[#allocation2 + $0x4a8] sm:$0x3] %vm204, 0.0
      %351 = vst.msk [vmem:[#allocation2 + $0x4b0] sm:$0xff] %vm199, 0.0
      %352 = vst.msk [vmem:[#allocation2 + $0x4b8] sm:$0xff] %vm199, 0.0
      %353 = vst.msk [vmem:[#allocation2 + $0x4c0] sm:$0xff] %vm199, 0.0
      %354 = vst.msk [vmem:[#allocation2 + $0x4c8] sm:$0xff] %vm199, 0.0
      %355 = vst.msk [vmem:[#allocation2 + $0x4d0] sm:$0x3] %vm204, 0.0
      %356 = vst.msk [vmem:[#allocation2 + $0x4d8] sm:$0xff] %vm199, 0.0
      %357 = vst.msk [vmem:[#allocation2 + $0x4e0] sm:$0xff] %vm199, 0.0
      %358 = vst.msk [vmem:[#allocation2 + $0x4e8] sm:$0xff] %vm199, 0.0
      %359 = vst.msk [vmem:[#allocation2 + $0x4f0] sm:$0xff] %vm199, 0.0
      %360 = vst.msk [vmem:[#allocation2 + $0x4f8] sm:$0x3] %vm204, 0.0
      %361 = vst.msk [vmem:[#allocation2 + $0x500] sm:$0xff] %vm199, 0.0
      %362 = vst.msk [vmem:[#allocation2 + $0x508] sm:$0xff] %vm199, 0.0
      %363 = vst.msk [vmem:[#allocation2 + $0x510] sm:$0xff] %vm199, 0.0
      %364 = vst.msk [vmem:[#allocation2 + $0x518] sm:$0xff] %vm199, 0.0
      %365 = vst.msk [vmem:[#allocation2 + $0x520] sm:$0x3] %vm204, 0.0
      %366 = vst.msk [vmem:[#allocation2 + $0x528] sm:$0xff] %vm199, 0.0
      %367 = vst.msk [vmem:[#allocation2 + $0x530] sm:$0xff] %vm199, 0.0
      %368 = vst.msk [vmem:[#allocation2 + $0x538] sm:$0xff] %vm199, 0.0
      %369 = vst.msk [vmem:[#allocation2 + $0x540] sm:$0xff] %vm199, 0.0
      %370 = vst.msk [vmem:[#allocation2 + $0x548] sm:$0x3] %vm204, 0.0
      %v371 = vld [vmem:[%s192] sm:$0xff]
      %v372 = vld [vmem:[%s192 + $0x8] sm:$0xff]
      %v373 = vld [vmem:[%s192 + $0x10] sm:$0xff]
      %v374 = vld [vmem:[%s192 + $0x18] sm:$0xff]
      %v375 = vld [vmem:[%s192 + $0x20] sm:$0xff]
      %v376 = vld [vmem:[%s192 + $0x28] sm:$0xff]
      %v377 = vld [vmem:[%s192 + $0x30] sm:$0xff]
      %v378 = vld [vmem:[%s192 + $0x38] sm:$0xff]
      %v379 = vld [vmem:[%s192 + $0x40] sm:$0xff]
      %v380 = vld [vmem:[%s192 + $0x48] sm:$0xff]
      %v381 = vld [vmem:[%s192 + $0x50] sm:$0xff]
      %v382 = vld [vmem:[%s192 + $0x58] sm:$0xff]
      %v383 = vld [vmem:[%s192 + $0x60] sm:$0xff]
      %v384 = vld [vmem:[%s192 + $0x68] sm:$0xff]
      %v385 = vld [vmem:[%s192 + $0x70] sm:$0xff]
      %v386 = vld [vmem:[%s192 + $0x78] sm:$0xff]
      %v387 = vld [vmem:[%s192 + $0x80] sm:$0xff]
      %v388 = vld [vmem:[%s192 + $0x88] sm:$0xff]
      %v389 = vld [vmem:[%s192 + $0x90] sm:$0xff]
      %v390 = vld [vmem:[%s192 + $0x98] sm:$0xff]
      %v391 = vld [vmem:[%s192 + $0xa0] sm:$0xff]
      %v392 = vld [vmem:[%s192 + $0xa8] sm:$0xff]
      %v393 = vld [vmem:[%s192 + $0xb0] sm:$0xff]
      %v394 = vld [vmem:[%s192 + $0xb8] sm:$0xff]
      %v395 = vld [vmem:[%s192 + $0xc0] sm:$0xff]
      %v396 = vld [vmem:[%s192 + $0xc8] sm:$0xff]
      %v397 = vld [vmem:[%s192 + $0xd0] sm:$0xff]
      %v398 = vld [vmem:[%s192 + $0xd8] sm:$0xff]
      %v399 = vld [vmem:[%s192 + $0xe0] sm:$0xff]
      %v400 = vld [vmem:[%s192 + $0xe8] sm:$0xff]
      %v401 = vld [vmem:[%s192 + $0xf0] sm:$0xff]
      %v402 = vld [vmem:[%s192 + $0xf8] sm:$0xff]
      %v403 = vld [vmem:[%s192 + $0x100] sm:$0xff]
      %v404 = vld [vmem:[%s192 + $0x108] sm:$0xff]
      %v405 = vld [vmem:[%s192 + $0x110] sm:$0xff]
      %v406 = vld [vmem:[%s192 + $0x118] sm:$0xff]
      %v407 = vld [vmem:[%s192 + $0x120] sm:$0xff]
      %v408 = vld [vmem:[%s192 + $0x128] sm:$0xff]
      %v409 = vld [vmem:[%s192 + $0x130] sm:$0xff]
      %v410 = vld [vmem:[%s192 + $0x138] sm:$0xff]
      %v411 = vld [vmem:[%s192 + $0x140] sm:$0xff]
      %v412 = vld [vmem:[%s192 + $0x148] sm:$0xff]
      %v413 = vld [vmem:[%s192 + $0x150] sm:$0xff]
      %v414 = vld [vmem:[%s192 + $0x158] sm:$0xff]
      %v415 = vld [vmem:[%s192 + $0x160] sm:$0xff]
      %v416 = vld [vmem:[%s192 + $0x168] sm:$0xff]
      %v417 = vld [vmem:[%s192 + $0x170] sm:$0xff]
      %v418 = vld [vmem:[%s192 + $0x178] sm:$0xff]
      %v419 = vld [vmem:[%s192 + $0x180] sm:$0xff]
      %v420 = vld [vmem:[%s192 + $0x188] sm:$0xff]
      %v421 = vld [vmem:[%s192 + $0x190] sm:$0xff]
      %v422 = vld [vmem:[%s192 + $0x198] sm:$0xff]
      %v423 = vld [vmem:[%s192 + $0x1a0] sm:$0xff]
      %v424 = vld [vmem:[%s192 + $0x1a8] sm:$0xff]
      %v425 = vld [vmem:[%s192 + $0x1b0] sm:$0xff]
      %v426 = vld [vmem:[%s192 + $0x1b8] sm:$0xff]
      %v427 = vld [vmem:[%s192 + $0x1c0] sm:$0xff]
      %v428 = vld [vmem:[%s192 + $0x1c8] sm:$0xff]
      %v429 = vld [vmem:[%s192 + $0x1d0] sm:$0xff]
      %v430 = vld [vmem:[%s192 + $0x1d8] sm:$0xff]
      %v431 = vld [vmem:[%s192 + $0x1e0] sm:$0xff]
      %v432 = vld [vmem:[%s192 + $0x1e8] sm:$0xff]
      %v433 = vld [vmem:[%s192 + $0x1f0] sm:$0xff]
      %v434 = vld [vmem:[%s192 + $0x1f8] sm:$0xff]
      %v435 = vld [vmem:[%s192 + $0x200] sm:$0xff]
      %v436 = vld [vmem:[%s192 + $0x208] sm:$0xff]
      %v437 = vld [vmem:[%s192 + $0x210] sm:$0xff]
      %v438 = vld [vmem:[%s192 + $0x218] sm:$0xff]
      %v439 = vld [vmem:[%s192 + $0x220] sm:$0xff]
      %v440 = vld [vmem:[%s192 + $0x228] sm:$0xff]
      %v441 = vld [vmem:[%s192 + $0x230] sm:$0xff]
      %v442 = vld [vmem:[%s192 + $0x238] sm:$0xff]
      %v443 = vld [vmem:[%s192 + $0x240] sm:$0xff]
      %v444 = vld [vmem:[%s192 + $0x248] sm:$0xff]
      %v445 = vld [vmem:[%s192 + $0x250] sm:$0xff]
      %v446 = vld [vmem:[%s192 + $0x258] sm:$0xff]
      %v447 = vld [vmem:[%s192 + $0x260] sm:$0xff]
      %v448 = vld [vmem:[%s192 + $0x268] sm:$0xff]
      %v449 = vld [vmem:[%s192 + $0x270] sm:$0xff]
      %v450 = vld [vmem:[%s192 + $0x278] sm:$0xff]
      %v451 = vld [vmem:[%s192 + $0x280] sm:$0xff]
      %v452 = vld [vmem:[%s192 + $0x288] sm:$0xff]
      %v453 = vld [vmem:[%s192 + $0x290] sm:$0xff]
      %v454 = vld [vmem:[%s192 + $0x298] sm:$0xff]
      %v455 = vld [vmem:[%s192 + $0x2a0] sm:$0xff]
      %v456 = vld [vmem:[%s192 + $0x2a8] sm:$0xff]
      %v457 = vld [vmem:[%s192 + $0x2b0] sm:$0xff]
      %v458 = vld [vmem:[%s192 + $0x2b8] sm:$0xff]
      %v459 = vld [vmem:[%s192 + $0x2c0] sm:$0xff]
      %v460 = vld [vmem:[%s192 + $0x2c8] sm:$0xff]
      %v461 = vld [vmem:[%s192 + $0x2d0] sm:$0xff]
      %v462 = vld [vmem:[%s192 + $0x2d8] sm:$0xff]
      %v463 = vld [vmem:[%s192 + $0x2e0] sm:$0xff]
      %v464 = vld [vmem:[%s192 + $0x2e8] sm:$0xff]
      %v465 = vld [vmem:[%s192 + $0x2f0] sm:$0xff]
      %v466 = vld [vmem:[%s192 + $0x2f8] sm:$0xff]
      %v467 = vld [vmem:[%s192 + $0x300] sm:$0xff]
      %v468 = vld [vmem:[%s192 + $0x308] sm:$0xff]
      %v469 = vld [vmem:[%s192 + $0x310] sm:$0xff]
      %v470 = vld [vmem:[%s192 + $0x318] sm:$0xff]
      %v471 = vld [vmem:[%s192 + $0x320] sm:$0xff]
      %v472 = vld [vmem:[%s192 + $0x328] sm:$0xff]
      %v473 = vld [vmem:[%s192 + $0x330] sm:$0xff]
      %v474 = vld [vmem:[%s192 + $0x338] sm:$0xff]
      %v475 = vld [vmem:[%s192 + $0x340] sm:$0xff]
      %v476 = vld [vmem:[%s192 + $0x348] sm:$0xff]
      %v477 = vld [vmem:[%s192 + $0x350] sm:$0xff]
      %v478 = vld [vmem:[%s192 + $0x358] sm:$0xff]
      %v479 = vld [vmem:[%s192 + $0x360] sm:$0xff]
      %v480 = vld [vmem:[%s192 + $0x368] sm:$0xff]
      %v481 = vld [vmem:[%s192 + $0x370] sm:$0xff]
      %v482 = vld [vmem:[%s192 + $0x378] sm:$0xff]
      %v483 = vld [vmem:[%s192 + $0x380] sm:$0xff]
      %v484 = vld [vmem:[%s192 + $0x388] sm:$0xff]
      %v485 = vld [vmem:[%s192 + $0x390] sm:$0xff]
      %v486 = vld [vmem:[%s192 + $0x398] sm:$0xff]
      %v487 = vld [vmem:[%s192 + $0x3a0] sm:$0xff]
      %v488 = vld [vmem:[%s192 + $0x3a8] sm:$0xff]
      %v489 = vld [vmem:[%s192 + $0x3b0] sm:$0xff]
      %v490 = vld [vmem:[%s192 + $0x3b8] sm:$0xff]
      %v491 = vld [vmem:[%s192 + $0x3c0] sm:$0xff]
      %v492 = vld [vmem:[%s192 + $0x3c8] sm:$0xff]
      %v493 = vld [vmem:[%s192 + $0x3d0] sm:$0xff]
      %v494 = vld [vmem:[%s192 + $0x3d8] sm:$0xff]
      %v495 = vld [vmem:[%s192 + $0x3e0] sm:$0xff]
      %v496 = vld [vmem:[%s192 + $0x3e8] sm:$0xff]
      %v497 = vld [vmem:[%s192 + $0x3f0] sm:$0xff]
      %v498 = vld [vmem:[%s192 + $0x3f8] sm:$0xff]
      %s499 = scalar_lea.vmem [#allocation2], 40
      %500 = vst.msk [vmem:[%s499 + $0x1] sm:$0xff] %vm199, %v371
      %501 = vst.msk [vmem:[%s499 + $0x9] sm:$0xff] %vm199, %v372
      %502 = vst.msk [vmem:[%s499 + $0x11] sm:$0xff] %vm199, %v373
      %503 = vst.msk [vmem:[%s499 + $0x19] sm:$0xff] %vm199, %v374
      %504 = vst.msk [vmem:[%s499 + $0x29] sm:$0xff] %vm199, %v375
      %505 = vst.msk [vmem:[%s499 + $0x31] sm:$0xff] %vm199, %v376
      %506 = vst.msk [vmem:[%s499 + $0x39] sm:$0xff] %vm199, %v377
      %507 = vst.msk [vmem:[%s499 + $0x41] sm:$0xff] %vm199, %v378
      %508 = vst.msk [vmem:[%s499 + $0x51] sm:$0xff] %vm199, %v379
      %509 = vst.msk [vmem:[%s499 + $0x59] sm:$0xff] %vm199, %v380
      %510 = vst.msk [vmem:[%s499 + $0x61] sm:$0xff] %vm199, %v381
      %511 = vst.msk [vmem:[%s499 + $0x69] sm:$0xff] %vm199, %v382
      %512 = vst.msk [vmem:[%s499 + $0x79] sm:$0xff] %vm199, %v383
      %513 = vst.msk [vmem:[%s499 + $0x81] sm:$0xff] %vm199, %v384
      %514 = vst.msk [vmem:[%s499 + $0x89] sm:$0xff] %vm199, %v385
      %515 = vst.msk [vmem:[%s499 + $0x91] sm:$0xff] %vm199, %v386
      %516 = vst.msk [vmem:[%s499 + $0xa1] sm:$0xff] %vm199, %v387
      %517 = vst.msk [vmem:[%s499 + $0xa9] sm:$0xff] %vm199, %v388
      %518 = vst.msk [vmem:[%s499 + $0xb1] sm:$0xff] %vm199, %v389
      %519 = vst.msk [vmem:[%s499 + $0xb9] sm:$0xff] %vm199, %v390
      %520 = vst.msk [vmem:[%s499 + $0xc9] sm:$0xff] %vm199, %v391
      %521 = vst.msk [vmem:[%s499 + $0xd1] sm:$0xff] %vm199, %v392
      %522 = vst.msk [vmem:[%s499 + $0xd9] sm:$0xff] %vm199, %v393
      %523 = vst.msk [vmem:[%s499 + $0xe1] sm:$0xff] %vm199, %v394
      %524 = vst.msk [vmem:[%s499 + $0xf1] sm:$0xff] %vm199, %v395
      %525 = vst.msk [vmem:[%s499 + $0xf9] sm:$0xff] %vm199, %v396
      %526 = vst.msk [vmem:[%s499 + $0x101] sm:$0xff] %vm199, %v397
      %527 = vst.msk [vmem:[%s499 + $0x109] sm:$0xff] %vm199, %v398
      %528 = vst.msk [vmem:[%s499 + $0x119] sm:$0xff] %vm199, %v399
      %529 = vst.msk [vmem:[%s499 + $0x121] sm:$0xff] %vm199, %v400
      %530 = vst.msk [vmem:[%s499 + $0x129] sm:$0xff] %vm199, %v401
      %531 = vst.msk [vmem:[%s499 + $0x131] sm:$0xff] %vm199, %v402
      %532 = vst.msk [vmem:[%s499 + $0x141] sm:$0xff] %vm199, %v403
      %533 = vst.msk [vmem:[%s499 + $0x149] sm:$0xff] %vm199, %v404
      %534 = vst.msk [vmem:[%s499 + $0x151] sm:$0xff] %vm199, %v405
      %535 = vst.msk [vmem:[%s499 + $0x159] sm:$0xff] %vm199, %v406
      %536 = vst.msk [vmem:[%s499 + $0x169] sm:$0xff] %vm199, %v407
      %537 = vst.msk [vmem:[%s499 + $0x171] sm:$0xff] %vm199, %v408
      %538 = vst.msk [vmem:[%s499 + $0x179] sm:$0xff] %vm199, %v409
      %539 = vst.msk [vmem:[%s499 + $0x181] sm:$0xff] %vm199, %v410
      %540 = vst.msk [vmem:[%s499 + $0x191] sm:$0xff] %vm199, %v411
      %541 = vst.msk [vmem:[%s499 + $0x199] sm:$0xff] %vm199, %v412
      %542 = vst.msk [vmem:[%s499 + $0x1a1] sm:$0xff] %vm199, %v413
      %543 = vst.msk [vmem:[%s499 + $0x1a9] sm:$0xff] %vm199, %v414
      %544 = vst.msk [vmem:[%s499 + $0x1b9] sm:$0xff] %vm199, %v415
      %545 = vst.msk [vmem:[%s499 + $0x1c1] sm:$0xff] %vm199, %v416
      %546 = vst.msk [vmem:[%s499 + $0x1c9] sm:$0xff] %vm199, %v417
      %547 = vst.msk [vmem:[%s499 + $0x1d1] sm:$0xff] %vm199, %v418
      %548 = vst.msk [vmem:[%s499 + $0x1e1] sm:$0xff] %vm199, %v419
      %549 = vst.msk [vmem:[%s499 + $0x1e9] sm:$0xff] %vm199, %v420
      %550 = vst.msk [vmem:[%s499 + $0x1f1] sm:$0xff] %vm199, %v421
      %551 = vst.msk [vmem:[%s499 + $0x1f9] sm:$0xff] %vm199, %v422
      %552 = vst.msk [vmem:[%s499 + $0x209] sm:$0xff] %vm199, %v423
      %553 = vst.msk [vmem:[%s499 + $0x211] sm:$0xff] %vm199, %v424
      %554 = vst.msk [vmem:[%s499 + $0x219] sm:$0xff] %vm199, %v425
      %555 = vst.msk [vmem:[%s499 + $0x221] sm:$0xff] %vm199, %v426
      %556 = vst.msk [vmem:[%s499 + $0x231] sm:$0xff] %vm199, %v427
      %557 = vst.msk [vmem:[%s499 + $0x239] sm:$0xff] %vm199, %v428
      %558 = vst.msk [vmem:[%s499 + $0x241] sm:$0xff] %vm199, %v429
      %559 = vst.msk [vmem:[%s499 + $0x249] sm:$0xff] %vm199, %v430
      %560 = vst.msk [vmem:[%s499 + $0x259] sm:$0xff] %vm199, %v431
      %561 = vst.msk [vmem:[%s499 + $0x261] sm:$0xff] %vm199, %v432
      %562 = vst.msk [vmem:[%s499 + $0x269] sm:$0xff] %vm199, %v433
      %563 = vst.msk [vmem:[%s499 + $0x271] sm:$0xff] %vm199, %v434
      %564 = vst.msk [vmem:[%s499 + $0x281] sm:$0xff] %vm199, %v435
      %565 = vst.msk [vmem:[%s499 + $0x289] sm:$0xff] %vm199, %v436
      %566 = vst.msk [vmem:[%s499 + $0x291] sm:$0xff] %vm199, %v437
      %567 = vst.msk [vmem:[%s499 + $0x299] sm:$0xff] %vm199, %v438
      %568 = vst.msk [vmem:[%s499 + $0x2a9] sm:$0xff] %vm199, %v439
      %569 = vst.msk [vmem:[%s499 + $0x2b1] sm:$0xff] %vm199, %v440
      %570 = vst.msk [vmem:[%s499 + $0x2b9] sm:$0xff] %vm199, %v441
      %571 = vst.msk [vmem:[%s499 + $0x2c1] sm:$0xff] %vm199, %v442
      %572 = vst.msk [vmem:[%s499 + $0x2d1] sm:$0xff] %vm199, %v443
      %573 = vst.msk [vmem:[%s499 + $0x2d9] sm:$0xff] %vm199, %v444
      %574 = vst.msk [vmem:[%s499 + $0x2e1] sm:$0xff] %vm199, %v445
      %575 = vst.msk [vmem:[%s499 + $0x2e9] sm:$0xff] %vm199, %v446
      %576 = vst.msk [vmem:[%s499 + $0x2f9] sm:$0xff] %vm199, %v447
      %577 = vst.msk [vmem:[%s499 + $0x301] sm:$0xff] %vm199, %v448
      %578 = vst.msk [vmem:[%s499 + $0x309] sm:$0xff] %vm199, %v449
      %579 = vst.msk [vmem:[%s499 + $0x311] sm:$0xff] %vm199, %v450
      %580 = vst.msk [vmem:[%s499 + $0x321] sm:$0xff] %vm199, %v451
      %581 = vst.msk [vmem:[%s499 + $0x329] sm:$0xff] %vm199, %v452
      %582 = vst.msk [vmem:[%s499 + $0x331] sm:$0xff] %vm199, %v453
      %583 = vst.msk [vmem:[%s499 + $0x339] sm:$0xff] %vm199, %v454
      %584 = vst.msk [vmem:[%s499 + $0x349] sm:$0xff] %vm199, %v455
      %585 = vst.msk [vmem:[%s499 + $0x351] sm:$0xff] %vm199, %v456
      %586 = vst.msk [vmem:[%s499 + $0x359] sm:$0xff] %vm199, %v457
      %587 = vst.msk [vmem:[%s499 + $0x361] sm:$0xff] %vm199, %v458
      %588 = vst.msk [vmem:[%s499 + $0x371] sm:$0xff] %vm199, %v459
      %589 = vst.msk [vmem:[%s499 + $0x379] sm:$0xff] %vm199, %v460
      %590 = vst.msk [vmem:[%s499 + $0x381] sm:$0xff] %vm199, %v461
      %591 = vst.msk [vmem:[%s499 + $0x389] sm:$0xff] %vm199, %v462
      %592 = vst.msk [vmem:[%s499 + $0x399] sm:$0xff] %vm199, %v463
      %593 = vst.msk [vmem:[%s499 + $0x3a1] sm:$0xff] %vm199, %v464
      %594 = vst.msk [vmem:[%s499 + $0x3a9] sm:$0xff] %vm199, %v465
      %595 = vst.msk [vmem:[%s499 + $0x3b1] sm:$0xff] %vm199, %v466
      %596 = vst.msk [vmem:[%s499 + $0x3c1] sm:$0xff] %vm199, %v467
      %597 = vst.msk [vmem:[%s499 + $0x3c9] sm:$0xff] %vm199, %v468
      %598 = vst.msk [vmem:[%s499 + $0x3d1] sm:$0xff] %vm199, %v469
      %599 = vst.msk [vmem:[%s499 + $0x3d9] sm:$0xff] %vm199, %v470
      %600 = vst.msk [vmem:[%s499 + $0x3e9] sm:$0xff] %vm199, %v471
      %601 = vst.msk [vmem:[%s499 + $0x3f1] sm:$0xff] %vm199, %v472
      %602 = vst.msk [vmem:[%s499 + $0x3f9] sm:$0xff] %vm199, %v473
      %603 = vst.msk [vmem:[%s499 + $0x401] sm:$0xff] %vm199, %v474
      %604 = vst.msk [vmem:[%s499 + $0x411] sm:$0xff] %vm199, %v475
      %605 = vst.msk [vmem:[%s499 + $0x419] sm:$0xff] %vm199, %v476
      %606 = vst.msk [vmem:[%s499 + $0x421] sm:$0xff] %vm199, %v477
      %607 = vst.msk [vmem:[%s499 + $0x429] sm:$0xff] %vm199, %v478
      %608 = vst.msk [vmem:[%s499 + $0x439] sm:$0xff] %vm199, %v479
      %609 = vst.msk [vmem:[%s499 + $0x441] sm:$0xff] %vm199, %v480
      %610 = vst.msk [vmem:[%s499 + $0x449] sm:$0xff] %vm199, %v481
      %611 = vst.msk [vmem:[%s499 + $0x451] sm:$0xff] %vm199, %v482
      %612 = vst.msk [vmem:[%s499 + $0x461] sm:$0xff] %vm199, %v483
      %613 = vst.msk [vmem:[%s499 + $0x469] sm:$0xff] %vm199, %v484
      %614 = vst.msk [vmem:[%s499 + $0x471] sm:$0xff] %vm199, %v485
      %615 = vst.msk [vmem:[%s499 + $0x479] sm:$0xff] %vm199, %v486
      %616 = vst.msk [vmem:[%s499 + $0x489] sm:$0xff] %vm199, %v487
      %617 = vst.msk [vmem:[%s499 + $0x491] sm:$0xff] %vm199, %v488
      %618 = vst.msk [vmem:[%s499 + $0x499] sm:$0xff] %vm199, %v489
      %619 = vst.msk [vmem:[%s499 + $0x4a1] sm:$0xff] %vm199, %v490
      %620 = vst.msk [vmem:[%s499 + $0x4b1] sm:$0xff] %vm199, %v491
      %621 = vst.msk [vmem:[%s499 + $0x4b9] sm:$0xff] %vm199, %v492
      %622 = vst.msk [vmem:[%s499 + $0x4c1] sm:$0xff] %vm199, %v493
      %623 = vst.msk [vmem:[%s499 + $0x4c9] sm:$0xff] %vm199, %v494
      %624 = vst.msk [vmem:[%s499 + $0x4d9] sm:$0xff] %vm199, %v495
      %625 = vst.msk [vmem:[%s499 + $0x4e1] sm:$0xff] %vm199, %v496
      %626 = vst.msk [vmem:[%s499 + $0x4e9] sm:$0xff] %vm199, %v497
      %627 = vst.msk [vmem:[%s499 + $0x4f1] sm:$0xff] %vm199, %v498
      %v628 = vld [vmem:[#allocation2] ss:$2 sm:$0xff]
      %s629 = scalar_lea.vmem [#allocation2], 16
      %v630 = vld [vmem:[%s629] ss:$2 sm:$0xff]
      %s631 = scalar_lea.vmem [#allocation2], 80
      %v632 = vld [vmem:[%s631] ss:$2 sm:$0xff]
      %s633 = scalar_lea.vmem [#allocation2], 96
      %v634 = vld [vmem:[%s633] ss:$2 sm:$0xff]
      %s635 = scalar_lea.vmem [#allocation2], 160
      %v636 = vld [vmem:[%s635] ss:$2 sm:$0xff]
      %s637 = scalar_lea.vmem [#allocation2], 176
      %v638 = vld [vmem:[%s637] ss:$2 sm:$0xff]
      %s639 = scalar_lea.vmem [#allocation2], 240
      %v640 = vld [vmem:[%s639] ss:$2 sm:$0xff]
      %s641 = scalar_lea.vmem [#allocation2], 256
      %v642 = vld [vmem:[%s641] ss:$2 sm:$0xff]
      %s643 = scalar_lea.vmem [#allocation2], 320
      %v644 = vld [vmem:[%s643] ss:$2 sm:$0xff]
      %s645 = scalar_lea.vmem [#allocation2], 336
      %v646 = vld [vmem:[%s645] ss:$2 sm:$0xff]
      %s647 = scalar_lea.vmem [#allocation2], 400
      %v648 = vld [vmem:[%s647] ss:$2 sm:$0xff]
      %s649 = scalar_lea.vmem [#allocation2], 416
      %v650 = vld [vmem:[%s649] ss:$2 sm:$0xff]
      %s651 = scalar_lea.vmem [#allocation2], 480
      %v652 = vld [vmem:[%s651] ss:$2 sm:$0xff]
      %s653 = scalar_lea.vmem [#allocation2], 496
      %v654 = vld [vmem:[%s653] ss:$2 sm:$0xff]
      %s655 = scalar_lea.vmem [#allocation2], 560
      %v656 = vld [vmem:[%s655] ss:$2 sm:$0xff]
      %s657 = scalar_lea.vmem [#allocation2], 576
      %v658 = vld [vmem:[%s657] ss:$2 sm:$0xff]
      %s659 = scalar_lea.vmem [#allocation2], 640
      %v660 = vld [vmem:[%s659] ss:$2 sm:$0xff]
      %s661 = scalar_lea.vmem [#allocation2], 656
      %v662 = vld [vmem:[%s661] ss:$2 sm:$0xff]
      %s663 = scalar_lea.vmem [#allocation2], 720
      %v664 = vld [vmem:[%s663] ss:$2 sm:$0xff]
      %s665 = scalar_lea.vmem [#allocation2], 736
      %v666 = vld [vmem:[%s665] ss:$2 sm:$0xff]
      %s667 = scalar_lea.vmem [#allocation2], 800
      %v668 = vld [vmem:[%s667] ss:$2 sm:$0xff]
      %s669 = scalar_lea.vmem [#allocation2], 816
      %v670 = vld [vmem:[%s669] ss:$2 sm:$0xff]
      %s671 = scalar_lea.vmem [#allocation2], 880
      %v672 = vld [vmem:[%s671] ss:$2 sm:$0xff]
      %s673 = scalar_lea.vmem [#allocation2], 896
      %v674 = vld [vmem:[%s673] ss:$2 sm:$0xff]
      %s675 = scalar_lea.vmem [#allocation2], 960
      %v676 = vld [vmem:[%s675] ss:$2 sm:$0xff]
      %s677 = scalar_lea.vmem [#allocation2], 976
      %v678 = vld [vmem:[%s677] ss:$2 sm:$0xff]
      %s679 = scalar_lea.vmem [#allocation2], 1040
      %v680 = vld [vmem:[%s679] ss:$2 sm:$0xff]
      %s681 = scalar_lea.vmem [#allocation2], 1056
      %v682 = vld [vmem:[%s681] ss:$2 sm:$0xff]
      %s683 = scalar_lea.vmem [#allocation2], 1120
      %v684 = vld [vmem:[%s683] ss:$2 sm:$0xff]
      %s685 = scalar_lea.vmem [#allocation2], 1136
      %v686 = vld [vmem:[%s685] ss:$2 sm:$0xff]
      %s687 = scalar_lea.vmem [#allocation2], 1200
      %v688 = vld [vmem:[%s687] ss:$2 sm:$0xff]
      %s689 = scalar_lea.vmem [#allocation2], 1216
      %v690 = vld [vmem:[%s689] ss:$2 sm:$0xff]
      %v691 = vpack.c.bf16 %v630, %v628
      %v692 = vpack.c.bf16 %v634, %v632
      %v693 = vpack.c.bf16 %v638, %v636
      %v694 = vpack.c.bf16 %v642, %v640
      %v695 = vpack.c.bf16 %v646, %v644
      %v696 = vpack.c.bf16 %v650, %v648
      %v697 = vpack.c.bf16 %v654, %v652
      %v698 = vpack.c.bf16 %v658, %v656
      %v699 = vpack.c.bf16 %v662, %v660
      %v700 = vpack.c.bf16 %v666, %v664
      %v701 = vpack.c.bf16 %v670, %v668
      %v702 = vpack.c.bf16 %v674, %v672
      %v703 = vpack.c.bf16 %v678, %v676
      %v704 = vpack.c.bf16 %v682, %v680
      %v705 = vpack.c.bf16 %v686, %v684
      %v706 = vpack.c.bf16 %v690, %v688
      %v707 = vld [vmem:[%s1] sm:$0x3]
      %s708 = scalar_lea.vmem [#allocation2], 1
      %v709 = vld [vmem:[%s708] ss:$2 sm:$0xff]
      %s710 = scalar_lea.vmem [#allocation2], 17
      %v711 = vld [vmem:[%s710] ss:$2 sm:$0xff]
      %s712 = scalar_lea.vmem [#allocation2], 81
      %v713 = vld [vmem:[%s712] ss:$2 sm:$0xff]
      %s714 = scalar_lea.vmem [#allocation2], 97
      %v715 = vld [vmem:[%s714] ss:$2 sm:$0xff]
      %s716 = scalar_lea.vmem [#allocation2], 161
      %v717 = vld [vmem:[%s716] ss:$2 sm:$0xff]
      %s718 = scalar_lea.vmem [#allocation2], 177
      %v719 = vld [vmem:[%s718] ss:$2 sm:$0xff]
      %s720 = scalar_lea.vmem [#allocation2], 241
      %v721 = vld [vmem:[%s720] ss:$2 sm:$0xff]
      %s722 = scalar_lea.vmem [#allocation2], 257
      %v723 = vld [vmem:[%s722] ss:$2 sm:$0xff]
      %s724 = scalar_lea.vmem [#allocation2], 321
      %v725 = vld [vmem:[%s724] ss:$2 sm:$0xff]
      %s726 = scalar_lea.vmem [#allocation2], 337
      %v727 = vld [vmem:[%s726] ss:$2 sm:$0xff]
      %s728 = scalar_lea.vmem [#allocation2], 401
      %v729 = vld [vmem:[%s728] ss:$2 sm:$0xff]
      %s730 = scalar_lea.vmem [#allocation2], 417
      %v731 = vld [vmem:[%s730] ss:$2 sm:$0xff]
      %s732 = scalar_lea.vmem [#allocation2], 481
      %v733 = vld [vmem:[%s732] ss:$2 sm:$0xff]
      %s734 = scalar_lea.vmem [#allocation2], 497
      %v735 = vld [vmem:[%s734] ss:$2 sm:$0xff]
      %s736 = scalar_lea.vmem [#allocation2], 561
      %v737 = vld [vmem:[%s736] ss:$2 sm:$0xff]
      %s738 = scalar_lea.vmem [#allocation2], 577
      %v739 = vld [vmem:[%s738] ss:$2 sm:$0xff]
      %s740 = scalar_lea.vmem [#allocation2], 641
      %v741 = vld [vmem:[%s740] ss:$2 sm:$0xff]
      %s742 = scalar_lea.vmem [#allocation2], 657
      %v743 = vld [vmem:[%s742] ss:$2 sm:$0xff]
      %s744 = scalar_lea.vmem [#allocation2], 721
      %v745 = vld [vmem:[%s744] ss:$2 sm:$0xff]
      %s746 = scalar_lea.vmem [#allocation2], 737
      %v747 = vld [vmem:[%s746] ss:$2 sm:$0xff]
      %s748 = scalar_lea.vmem [#allocation2], 801
      %v749 = vld [vmem:[%s748] ss:$2 sm:$0xff]
      %s750 = scalar_lea.vmem [#allocation2], 817
      %v751 = vld [vmem:[%s750] ss:$2 sm:$0xff]
      %s752 = scalar_lea.vmem [#allocation2], 881
      %v753 = vld [vmem:[%s752] ss:$2 sm:$0xff]
      %s754 = scalar_lea.vmem [#allocation2], 897
      %v755 = vld [vmem:[%s754] ss:$2 sm:$0xff]
      %s756 = scalar_lea.vmem [#allocation2], 961
      %v757 = vld [vmem:[%s756] ss:$2 sm:$0xff]
      %s758 = scalar_lea.vmem [#allocation2], 977
      %v759 = vld [vmem:[%s758] ss:$2 sm:$0xff]
      %s760 = scalar_lea.vmem [#allocation2], 1041
      %v761 = vld [vmem:[%s760] ss:$2 sm:$0xff]
      %s762 = scalar_lea.vmem [#allocation2], 1057
      %v763 = vld [vmem:[%s762] ss:$2 sm:$0xff]
      %s764 = scalar_lea.vmem [#allocation2], 1121
      %v765 = vld [vmem:[%s764] ss:$2 sm:$0xff]
      %s766 = scalar_lea.vmem [#allocation2], 1137
      %v767 = vld [vmem:[%s766] ss:$2 sm:$0xff]
      %s768 = scalar_lea.vmem [#allocation2], 1201
      %v769 = vld [vmem:[%s768] ss:$2 sm:$0xff]
      %s770 = scalar_lea.vmem [#allocation2], 1217
      %v771 = vld [vmem:[%s770] ss:$2 sm:$0xff]
      %v772 = vpack.c.bf16 %v711, %v709
      %v773 = vpack.c.bf16 %v715, %v713
      %v774 = vpack.c.bf16 %v719, %v717
      %v775 = vpack.c.bf16 %v723, %v721
      %v776 = vpack.c.bf16 %v727, %v725
      %v777 = vpack.c.bf16 %v731, %v729
      %v778 = vpack.c.bf16 %v735, %v733
      %v779 = vpack.c.bf16 %v739, %v737
      %v780 = vpack.c.bf16 %v743, %v741
      %v781 = vpack.c.bf16 %v747, %v745
      %v782 = vpack.c.bf16 %v751, %v749
      %v783 = vpack.c.bf16 %v755, %v753
      %v784 = vpack.c.bf16 %v759, %v757
      %v785 = vpack.c.bf16 %v763, %v761
      %v786 = vpack.c.bf16 %v767, %v765
      %v787 = vpack.c.bf16 %v771, %v769
      %s788 = scalar_lea.vmem %s1, 2
      %v789 = vld [vmem:[%s788] sm:$0x3]
      %v791 = vsel %vm199, %v772, 0
      %v794 = vsel %vm199, %v773, 0
      %v797 = vsel %vm199, %v774, 0
      %v800 = vsel %vm199, %v775, 0
      %v803 = vsel %vm199, %v776, 0
      %v806 = vsel %vm199, %v777, 0
      %v809 = vsel %vm199, %v778, 0
      %v812 = vsel %vm199, %v779, 0
      %v815 = vsel %vm199, %v780, 0
      %v818 = vsel %vm199, %v781, 0
      %v821 = vsel %vm199, %v782, 0
      %v824 = vsel %vm199, %v783, 0
      %v827 = vsel %vm199, %v784, 0
      %v830 = vsel %vm199, %v785, 0
      %v833 = vsel %vm199, %v786, 0
      %v836 = vsel %vm199, %v787, 0
      %vm838 = vcmask 1040384
      %vm839 = vcmask 1041408
      %v840 = vsel %vm838, 4294967295, 65535
      %v841 = vsel %vm839, %v840, 0
      %v843 = vand.u32 %v789, %v841
      %845 = vmatprep.subr.bf16.mxu0 0
      %846 = vmatpush1.bf16.msra.mxu0 %v843
      %847 = vmatprep.subr.bf16.mxu0 0
      %848 = vmatpush1.bf16.msra.mxu0 0
      %849 = vmatprep.subr.bf16.mxu0 0
      %850 = vmatpush1.bf16.msra.mxu0 0
      %851 = vmatprep.subr.bf16.mxu0 0
      %852 = vmatpush1.bf16.msra.mxu0 0
      %853 = vmatprep.subr.bf16.mxu0 0
      %854 = vmatpush1.bf16.msra.mxu0 0
      %855 = vmatprep.subr.bf16.mxu0 0
      %856 = vmatpush1.bf16.msra.mxu0 0
      %857 = vmatprep.subr.bf16.mxu0 0
      %858 = vmatpush1.bf16.msra.mxu0 0
      %859 = vmatprep.subr.bf16.mxu0 0
      %860 = vmatpush1.bf16.msra.mxu0 0
      %861 = vmatprep.subr.bf16.mxu0 0
      %862 = vmatpush1.bf16.msra.mxu0 0
      %863 = vmatprep.subr.bf16.mxu0 0
      %864 = vmatpush1.bf16.msra.mxu0 0
      %865 = vmatprep.subr.bf16.mxu0 0
      %866 = vmatpush1.bf16.msra.mxu0 0
      %867 = vmatprep.subr.bf16.mxu0 0
      %868 = vmatpush1.bf16.msra.mxu0 0
      %869 = vmatprep.subr.bf16.mxu0 0
      %870 = vmatpush1.bf16.msra.mxu0 0
      %871 = vmatprep.subr.bf16.mxu0 0
      %872 = vmatpush1.bf16.msra.mxu0 0
      %873 = vmatprep.subr.bf16.mxu0 0
      %874 = vmatpush1.bf16.msra.mxu0 0
      %875 = vmatprep.subr.bf16.mxu0 0
      %876 = vmatpush1.bf16.msra.mxu0 0
      %877 = vmatprep.mubr.bf16.mxu0 0
      %878 = vmatmul.mubr.bf16.gmra.mrb[0].mxu0 %v791
      %v879 = vpop.f32.mrb[0].mxu0
      %v880 = vadd.f32 0.0, %v879
      %v881 = vpop.f32.mrb[0].mxu0
      %v882 = vpop.f32.mrb[0].mxu0
      %v883 = vadd.f32 0.0, %v882
      %v884 = vpop.f32.mrb[0].mxu0
      %885 = vmatprep.mubr.bf16.mxu0 0
      %886 = vmatmul.mubr.bf16.gmra.mrb[0].mxu0 %v794
      %v887 = vpop.f32.mrb[0].mxu0
      %v888 = vadd.f32 0.0, %v887
      %v889 = vpop.f32.mrb[0].mxu0
      %v890 = vpop.f32.mrb[0].mxu0
      %v891 = vadd.f32 0.0, %v890
      %v892 = vpop.f32.mrb[0].mxu0
      %893 = vmatprep.mubr.bf16.mxu0 0
      %894 = vmatmul.mubr.bf16.gmra.mrb[0].mxu0 %v797
      %v895 = vpop.f32.mrb[0].mxu0
      %v896 = vadd.f32 0.0, %v895
      %v897 = vpop.f32.mrb[0].mxu0
      %v898 = vpop.f32.mrb[0].mxu0
      %v899 = vadd.f32 0.0, %v898
      %v900 = vpop.f32.mrb[0].mxu0
      %901 = vmatprep.mubr.bf16.mxu0 0
      %902 = vmatmul.mubr.bf16.gmra.mrb[0].mxu0 %v800
      %v903 = vpop.f32.mrb[0].mxu0
      %v904 = vadd.f32 0.0, %v903
      %v905 = vpop.f32.mrb[0].mxu0
      %v906 = vpop.f32.mrb[0].mxu0
      %v907 = vadd.f32 0.0, %v906
      %v908 = vpop.f32.mrb[0].mxu0
      %909 = vmatprep.mubr.bf16.mxu0 0
      %910 = vmatmul.mubr.bf16.gmra.mrb[0].mxu0 %v803
      %v911 = vpop.f32.mrb[0].mxu0
      %v912 = vadd.f32 0.0, %v911
      %v913 = vpop.f32.mrb[0].mxu0
      %v914 = vpop.f32.mrb[0].mxu0
      %v915 = vadd.f32 0.0, %v914
      %v916 = vpop.f32.mrb[0].mxu0
      %917 = vmatprep.mubr.bf16.mxu0 0
      %918 = vmatmul.mubr.bf16.gmra.mrb[0].mxu0 %v806
      %v919 = vpop.f32.mrb[0].mxu0
      %v920 = vadd.f32 0.0, %v919
      %v921 = vpop.f32.mrb[0].mxu0
      %v922 = vpop.f32.mrb[0].mxu0
      %v923 = vadd.f32 0.0, %v922
      %v924 = vpop.f32.mrb[0].mxu0
      %925 = vmatprep.mubr.bf16.mxu0 0
      %926 = vmatmul.mubr.bf16.gmra.mrb[0].mxu0 %v809
      %v927 = vpop.f32.mrb[0].mxu0
      %v928 = vadd.f32 0.0, %v927
      %v929 = vpop.f32.mrb[0].mxu0
      %v930 = vpop.f32.mrb[0].mxu0
      %v931 = vadd.f32 0.0, %v930
      %v932 = vpop.f32.mrb[0].mxu0
      %933 = vmatprep.mubr.bf16.mxu0 0
      %934 = vmatmul.mubr.bf16.gmra.mrb[0].mxu0 %v812
      %v935 = vpop.f32.mrb[0].mxu0
      %v936 = vadd.f32 0.0, %v935
      %v937 = vpop.f32.mrb[0].mxu0
      %v938 = vpop.f32.mrb[0].mxu0
      %v939 = vadd.f32 0.0, %v938
      %v940 = vpop.f32.mrb[0].mxu0
      %941 = vmatprep.mubr.bf16.mxu0 0
      %942 = vmatmul.mubr.bf16.gmra.mrb[0].mxu0 %v815
      %v943 = vpop.f32.mrb[0].mxu0
      %v944 = vadd.f32 0.0, %v943
      %v945 = vpop.f32.mrb[0].mxu0
      %v946 = vpop.f32.mrb[0].mxu0
      %v947 = vadd.f32 0.0, %v946
      %v948 = vpop.f32.mrb[0].mxu0
      %949 = vmatprep.mubr.bf16.mxu0 0
      %950 = vmatmul.mubr.bf16.gmra.mrb[0].mxu0 %v818
      %v951 = vpop.f32.mrb[0].mxu0
      %v952 = vadd.f32 0.0, %v951
      %v953 = vpop.f32.mrb[0].mxu0
      %v954 = vpop.f32.mrb[0].mxu0
      %v955 = vadd.f32 0.0, %v954
      %v956 = vpop.f32.mrb[0].mxu0
      %957 = vmatprep.mubr.bf16.mxu0 0
      %958 = vmatmul.mubr.bf16.gmra.mrb[0].mxu0 %v821
      %v959 = vpop.f32.mrb[0].mxu0
      %v960 = vadd.f32 0.0, %v959
      %v961 = vpop.f32.mrb[0].mxu0
      %v962 = vpop.f32.mrb[0].mxu0
      %v963 = vadd.f32 0.0, %v962
      %v964 = vpop.f32.mrb[0].mxu0
      %965 = vmatprep.mubr.bf16.mxu0 0
      %966 = vmatmul.mubr.bf16.gmra.mrb[0].mxu0 %v824
      %v967 = vpop.f32.mrb[0].mxu0
      %v968 = vadd.f32 0.0, %v967
      %v969 = vpop.f32.mrb[0].mxu0
      %v970 = vpop.f32.mrb[0].mxu0
      %v971 = vadd.f32 0.0, %v970
      %v972 = vpop.f32.mrb[0].mxu0
      %973 = vmatprep.mubr.bf16.mxu0 0
      %974 = vmatmul.mubr.bf16.gmra.mrb[0].mxu0 %v827
      %v975 = vpop.f32.mrb[0].mxu0
      %v976 = vadd.f32 0.0, %v975
      %v977 = vpop.f32.mrb[0].mxu0
      %v978 = vpop.f32.mrb[0].mxu0
      %v979 = vadd.f32 0.0, %v978
      %v980 = vpop.f32.mrb[0].mxu0
      %981 = vmatprep.mubr.bf16.mxu0 0
      %982 = vmatmul.mubr.bf16.gmra.mrb[0].mxu0 %v830
      %v983 = vpop.f32.mrb[0].mxu0
      %v984 = vadd.f32 0.0, %v983
      %v985 = vpop.f32.mrb[0].mxu0
      %v986 = vpop.f32.mrb[0].mxu0
      %v987 = vadd.f32 0.0, %v986
      %v988 = vpop.f32.mrb[0].mxu0
      %989 = vmatprep.mubr.bf16.mxu0 0
      %990 = vmatmul.mubr.bf16.gmra.mrb[0].mxu0 %v833
      %v991 = vpop.f32.mrb[0].mxu0
      %v992 = vadd.f32 0.0, %v991
      %v993 = vpop.f32.mrb[0].mxu0
      %v994 = vpop.f32.mrb[0].mxu0
      %v995 = vadd.f32 0.0, %v994
      %v996 = vpop.f32.mrb[0].mxu0
      %997 = vmatprep.mubr.bf16.mxu0 0
      %998 = vmatmul.mubr.bf16.gmra.mrb[0].mxu0 %v836
      %v999 = vpop.f32.mrb[0].mxu0
      %v1000 = vadd.f32 0.0, %v999
      %v1001 = vpop.f32.mrb[0].mxu0
      %v1002 = vpop.f32.mrb[0].mxu0
      %v1003 = vadd.f32 0.0, %v1002
      %v1004 = vpop.f32.mrb[0].mxu0
      %1005 = vdwg.mxu0
      %v1007 = vsel %vm199, %v691, 0
      %v1010 = vsel %vm199, %v692, 0
      %v1013 = vsel %vm199, %v693, 0
      %v1016 = vsel %vm199, %v694, 0
      %v1019 = vsel %vm199, %v695, 0
      %v1022 = vsel %vm199, %v696, 0
      %v1025 = vsel %vm199, %v697, 0
      %v1028 = vsel %vm199, %v698, 0
      %v1031 = vsel %vm199, %v699, 0
      %v1034 = vsel %vm199, %v700, 0
      %v1037 = vsel %vm199, %v701, 0
      %v1040 = vsel %vm199, %v702, 0
      %v1043 = vsel %vm199, %v703, 0
      %v1046 = vsel %vm199, %v704, 0
      %v1049 = vsel %vm199, %v705, 0
      %v1052 = vsel %vm199, %v706, 0
      %v1055 = vand.u32 %v707, %v841
      %1057 = vmatprep.subr.bf16.mxu0 0
      %1058 = vmatpush1.bf16.msra.mxu0 %v1055
      %1059 = vmatprep.subr.bf16.mxu0 0
      %1060 = vmatpush1.bf16.msra.mxu0 0
      %1061 = vmatprep.subr.bf16.mxu0 0
      %1062 = vmatpush1.bf16.msra.mxu0 0
      %1063 = vmatprep.subr.bf16.mxu0 0
      %1064 = vmatpush1.bf16.msra.mxu0 0
      %1065 = vmatprep.subr.bf16.mxu0 0
      %1066 = vmatpush1.bf16.msra.mxu0 0
      %1067 = vmatprep.subr.bf16.mxu0 0
      %1068 = vmatpush1.bf16.msra.mxu0 0
      %1069 = vmatprep.subr.bf16.mxu0 0
      %1070 = vmatpush1.bf16.msra.mxu0 0
      %1071 = vmatprep.subr.bf16.mxu0 0
      %1072 = vmatpush1.bf16.msra.mxu0 0
      %1073 = vmatprep.subr.bf16.mxu0 0
      %1074 = vmatpush1.bf16.msra.mxu0 0
      %1075 = vmatprep.subr.bf16.mxu0 0
      %1076 = vmatpush1.bf16.msra.mxu0 0
      %1077 = vmatprep.subr.bf16.mxu0 0
      %1078 = vmatpush1.bf16.msra.mxu0 0
      %1079 = vmatprep.subr.bf16.mxu0 0
      %1080 = vmatpush1.bf16.msra.mxu0 0
      %1081 = vmatprep.subr.bf16.mxu0 0
      %1082 = vmatpush1.bf16.msra.mxu0 0
      %1083 = vmatprep.subr.bf16.mxu0 0
      %1084 = vmatpush1.bf16.msra.mxu0 0
      %1085 = vmatprep.subr.bf16.mxu0 0
      %1086 = vmatpush1.bf16.msra.mxu0 0
      %1087 = vmatprep.subr.bf16.mxu0 0
      %1088 = vmatpush1.bf16.msra.mxu0 0
      %1089 = vmatprep.mubr.bf16.mxu0 0
      %1090 = vmatmul.mubr.bf16.gmra.mrb[0].mxu0 %v1007
      %v1091 = vpop.f32.mrb[0].mxu0
      %v1092 = vadd.f32 %v880, %v1091
      %v1093 = vpop.f32.mrb[0].mxu0
      %v1094 = vpop.f32.mrb[0].mxu0
      %v1095 = vadd.f32 %v883, %v1094
      %v1096 = vpop.f32.mrb[0].mxu0
      %1097 = vmatprep.mubr.bf16.mxu0 0
      %1098 = vmatmul.mubr.bf16.gmra.mrb[0].mxu0 %v1010
      %v1099 = vpop.f32.mrb[0].mxu0
      %v1100 = vadd.f32 %v888, %v1099
      %v1101 = vpop.f32.mrb[0].mxu0
      %v1102 = vpop.f32.mrb[0].mxu0
      %v1103 = vadd.f32 %v891, %v1102
      %v1104 = vpop.f32.mrb[0].mxu0
      %1105 = vmatprep.mubr.bf16.mxu0 0
      %1106 = vmatmul.mubr.bf16.gmra.mrb[0].mxu0 %v1013
      %v1107 = vpop.f32.mrb[0].mxu0
      %v1108 = vadd.f32 %v896, %v1107
      %v1109 = vpop.f32.mrb[0].mxu0
      %v1110 = vpop.f32.mrb[0].mxu0
      %v1111 = vadd.f32 %v899, %v1110
      %v1112 = vpop.f32.mrb[0].mxu0
      %1113 = vmatprep.mubr.bf16.mxu0 0
      %1114 = vmatmul.mubr.bf16.gmra.mrb[0].mxu0 %v1016
      %v1115 = vpop.f32.mrb[0].mxu0
      %v1116 = vadd.f32 %v904, %v1115
      %v1117 = vpop.f32.mrb[0].mxu0
      %v1118 = vpop.f32.mrb[0].mxu0
      %v1119 = vadd.f32 %v907, %v1118
      %v1120 = vpop.f32.mrb[0].mxu0
      %1121 = vmatprep.mubr.bf16.mxu0 0
      %1122 = vmatmul.mubr.bf16.gmra.mrb[0].mxu0 %v1019
      %v1123 = vpop.f32.mrb[0].mxu0
      %v1124 = vadd.f32 %v912, %v1123
      %v1125 = vpop.f32.mrb[0].mxu0
      %v1126 = vpop.f32.mrb[0].mxu0
      %v1127 = vadd.f32 %v915, %v1126
      %v1128 = vpop.f32.mrb[0].mxu0
      %1129 = vmatprep.mubr.bf16.mxu0 0
      %1130 = vmatmul.mubr.bf16.gmra.mrb[0].mxu0 %v1022
      %v1131 = vpop.f32.mrb[0].mxu0
      %v1132 = vadd.f32 %v920, %v1131
      %v1133 = vpop.f32.mrb[0].mxu0
      %v1134 = vpop.f32.mrb[0].mxu0
      %v1135 = vadd.f32 %v923, %v1134
      %v1136 = vpop.f32.mrb[0].mxu0
      %1137 = vmatprep.mubr.bf16.mxu0 0
      %1138 = vmatmul.mubr.bf16.gmra.mrb[0].mxu0 %v1025
      %v1139 = vpop.f32.mrb[0].mxu0
      %v1140 = vadd.f32 %v928, %v1139
      %v1141 = vpop.f32.mrb[0].mxu0
      %v1142 = vpop.f32.mrb[0].mxu0
      %v1143 = vadd.f32 %v931, %v1142
      %v1144 = vpop.f32.mrb[0].mxu0
      %1145 = vmatprep.mubr.bf16.mxu0 0
      %1146 = vmatmul.mubr.bf16.gmra.mrb[0].mxu0 %v1028
      %v1147 = vpop.f32.mrb[0].mxu0
      %v1148 = vadd.f32 %v936, %v1147
      %v1149 = vpop.f32.mrb[0].mxu0
      %v1150 = vpop.f32.mrb[0].mxu0
      %v1151 = vadd.f32 %v939, %v1150
      %v1152 = vpop.f32.mrb[0].mxu0
      %1153 = vmatprep.mubr.bf16.mxu0 0
      %1154 = vmatmul.mubr.bf16.gmra.mrb[0].mxu0 %v1031
      %v1155 = vpop.f32.mrb[0].mxu0
      %v1156 = vadd.f32 %v944, %v1155
      %v1157 = vpop.f32.mrb[0].mxu0
      %v1158 = vpop.f32.mrb[0].mxu0
      %v1159 = vadd.f32 %v947, %v1158
      %v1160 = vpop.f32.mrb[0].mxu0
      %1161 = vmatprep.mubr.bf16.mxu0 0
      %1162 = vmatmul.mubr.bf16.gmra.mrb[0].mxu0 %v1034
      %v1163 = vpop.f32.mrb[0].mxu0
      %v1164 = vadd.f32 %v952, %v1163
      %v1165 = vpop.f32.mrb[0].mxu0
      %v1166 = vpop.f32.mrb[0].mxu0
      %v1167 = vadd.f32 %v955, %v1166
      %v1168 = vpop.f32.mrb[0].mxu0
      %1169 = vmatprep.mubr.bf16.mxu0 0
      %1170 = vmatmul.mubr.bf16.gmra.mrb[0].mxu0 %v1037
      %v1171 = vpop.f32.mrb[0].mxu0
      %v1172 = vadd.f32 %v960, %v1171
      %v1173 = vpop.f32.mrb[0].mxu0
      %v1174 = vpop.f32.mrb[0].mxu0
      %v1175 = vadd.f32 %v963, %v1174
      %v1176 = vpop.f32.mrb[0].mxu0
      %1177 = vmatprep.mubr.bf16.mxu0 0
      %1178 = vmatmul.mubr.bf16.gmra.mrb[0].mxu0 %v1040
      %v1179 = vpop.f32.mrb[0].mxu0
      %v1180 = vadd.f32 %v968, %v1179
      %v1181 = vpop.f32.mrb[0].mxu0
      %v1182 = vpop.f32.mrb[0].mxu0
      %v1183 = vadd.f32 %v971, %v1182
      %v1184 = vpop.f32.mrb[0].mxu0
      %1185 = vmatprep.mubr.bf16.mxu0 0
      %1186 = vmatmul.mubr.bf16.gmra.mrb[0].mxu0 %v1043
      %v1187 = vpop.f32.mrb[0].mxu0
      %v1188 = vadd.f32 %v976, %v1187
      %v1189 = vpop.f32.mrb[0].mxu0
      %v1190 = vpop.f32.mrb[0].mxu0
      %v1191 = vadd.f32 %v979, %v1190
      %v1192 = vpop.f32.mrb[0].mxu0
      %1193 = vmatprep.mubr.bf16.mxu0 0
      %1194 = vmatmul.mubr.bf16.gmra.mrb[0].mxu0 %v1046
      %v1195 = vpop.f32.mrb[0].mxu0
      %v1196 = vadd.f32 %v984, %v1195
      %v1197 = vpop.f32.mrb[0].mxu0
      %v1198 = vpop.f32.mrb[0].mxu0
      %v1199 = vadd.f32 %v987, %v1198
      %v1200 = vpop.f32.mrb[0].mxu0
      %1201 = vmatprep.mubr.bf16.mxu0 0
      %1202 = vmatmul.mubr.bf16.gmra.mrb[0].mxu0 %v1049
      %v1203 = vpop.f32.mrb[0].mxu0
      %v1204 = vadd.f32 %v992, %v1203
      %v1205 = vpop.f32.mrb[0].mxu0
      %v1206 = vpop.f32.mrb[0].mxu0
      %v1207 = vadd.f32 %v995, %v1206
      %v1208 = vpop.f32.mrb[0].mxu0
      %1209 = vmatprep.mubr.bf16.mxu0 0
      %1210 = vmatmul.mubr.bf16.gmra.mrb[0].mxu0 %v1052
      %v1211 = vpop.f32.mrb[0].mxu0
      %v1212 = vadd.f32 %v1000, %v1211
      %v1213 = vpop.f32.mrb[0].mxu0
      %v1214 = vpop.f32.mrb[0].mxu0
      %v1215 = vadd.f32 %v1003, %v1214
      %v1216 = vpop.f32.mrb[0].mxu0
      %1217 = vdwg.mxu0
      %s1218 = scalar_lea.vmem [#allocation2], 2
      %v1219 = vld [vmem:[%s1218] ss:$2 sm:$0xff]
      %s1220 = scalar_lea.vmem [#allocation2], 18
      %v1221 = vld [vmem:[%s1220] ss:$2 sm:$0xff]
      %s1222 = scalar_lea.vmem [#allocation2], 82
      %v1223 = vld [vmem:[%s1222] ss:$2 sm:$0xff]
      %s1224 = scalar_lea.vmem [#allocation2], 98
      %v1225 = vld [vmem:[%s1224] ss:$2 sm:$0xff]
      %s1226 = scalar_lea.vmem [#allocation2], 162
      %v1227 = vld [vmem:[%s1226] ss:$2 sm:$0xff]
      %s1228 = scalar_lea.vmem [#allocation2], 178
      %v1229 = vld [vmem:[%s1228] ss:$2 sm:$0xff]
      %s1230 = scalar_lea.vmem [#allocation2], 242
      %v1231 = vld [vmem:[%s1230] ss:$2 sm:$0xff]
      %s1232 = scalar_lea.vmem [#allocation2], 258
      %v1233 = vld [vmem:[%s1232] ss:$2 sm:$0xff]
      %s1234 = scalar_lea.vmem [#allocation2], 322
      %v1235 = vld [vmem:[%s1234] ss:$2 sm:$0xff]
      %s1236 = scalar_lea.vmem [#allocation2], 338
      %v1237 = vld [vmem:[%s1236] ss:$2 sm:$0xff]
      %s1238 = scalar_lea.vmem [#allocation2], 402
      %v1239 = vld [vmem:[%s1238] ss:$2 sm:$0xff]
      %s1240 = scalar_lea.vmem [#allocation2], 418
      %v1241 = vld [vmem:[%s1240] ss:$2 sm:$0xff]
      %s1242 = scalar_lea.vmem [#allocation2], 482
      %v1243 = vld [vmem:[%s1242] ss:$2 sm:$0xff]
      %s1244 = scalar_lea.vmem [#allocation2], 498
      %v1245 = vld [vmem:[%s1244] ss:$2 sm:$0xff]
      %s1246 = scalar_lea.vmem [#allocation2], 562
      %v1247 = vld [vmem:[%s1246] ss:$2 sm:$0xff]
      %s1248 = scalar_lea.vmem [#allocation2], 578
      %v1249 = vld [vmem:[%s1248] ss:$2 sm:$0xff]
      %s1250 = scalar_lea.vmem [#allocation2], 642
      %v1251 = vld [vmem:[%s1250] ss:$2 sm:$0xff]
      %s1252 = scalar_lea.vmem [#allocation2], 658
      %v1253 = vld [vmem:[%s1252] ss:$2 sm:$0xff]
      %s1254 = scalar_lea.vmem [#allocation2], 722
      %v1255 = vld [vmem:[%s1254] ss:$2 sm:$0xff]
      %s1256 = scalar_lea.vmem [#allocation2], 738
      %v1257 = vld [vmem:[%s1256] ss:$2 sm:$0xff]
      %s1258 = scalar_lea.vmem [#allocation2], 802
      %v1259 = vld [vmem:[%s1258] ss:$2 sm:$0xff]
      %s1260 = scalar_lea.vmem [#allocation2], 818
      %v1261 = vld [vmem:[%s1260] ss:$2 sm:$0xff]
      %s1262 = scalar_lea.vmem [#allocation2], 882
      %v1263 = vld [vmem:[%s1262] ss:$2 sm:$0xff]
      %s1264 = scalar_lea.vmem [#allocation2], 898
      %v1265 = vld [vmem:[%s1264] ss:$2 sm:$0xff]
      %s1266 = scalar_lea.vmem [#allocation2], 962
      %v1267 = vld [vmem:[%s1266] ss:$2 sm:$0xff]
      %s1268 = scalar_lea.vmem [#allocation2], 978
      %v1269 = vld [vmem:[%s1268] ss:$2 sm:$0xff]
      %s1270 = scalar_lea.vmem [#allocation2], 1042
      %v1271 = vld [vmem:[%s1270] ss:$2 sm:$0xff]
      %s1272 = scalar_lea.vmem [#allocation2], 1058
      %v1273 = vld [vmem:[%s1272] ss:$2 sm:$0xff]
      %s1274 = scalar_lea.vmem [#allocation2], 1122
      %v1275 = vld [vmem:[%s1274] ss:$2 sm:$0xff]
      %s1276 = scalar_lea.vmem [#allocation2], 1138
      %v1277 = vld [vmem:[%s1276] ss:$2 sm:$0xff]
      %s1278 = scalar_lea.vmem [#allocation2], 1202
      %v1279 = vld [vmem:[%s1278] ss:$2 sm:$0xff]
      %s1280 = scalar_lea.vmem [#allocation2], 1218
      %v1281 = vld [vmem:[%s1280] ss:$2 sm:$0xff]
      %v1282 = vpack.c.bf16 %v1221, %v1219
      %v1283 = vpack.c.bf16 %v1225, %v1223
      %v1284 = vpack.c.bf16 %v1229, %v1227
      %v1285 = vpack.c.bf16 %v1233, %v1231
      %v1286 = vpack.c.bf16 %v1237, %v1235
      %v1287 = vpack.c.bf16 %v1241, %v1239
      %v1288 = vpack.c.bf16 %v1245, %v1243
      %v1289 = vpack.c.bf16 %v1249, %v1247
      %v1290 = vpack.c.bf16 %v1253, %v1251
      %v1291 = vpack.c.bf16 %v1257, %v1255
      %v1292 = vpack.c.bf16 %v1261, %v1259
      %v1293 = vpack.c.bf16 %v1265, %v1263
      %v1294 = vpack.c.bf16 %v1269, %v1267
      %v1295 = vpack.c.bf16 %v1273, %v1271
      %v1296 = vpack.c.bf16 %v1277, %v1275
      %v1297 = vpack.c.bf16 %v1281, %v1279
      %s1298 = scalar_lea.vmem %s1, 4
      %v1299 = vld [vmem:[%s1298] sm:$0x3]
      %v1301 = vsel %vm199, %v1282, 0
      %v1304 = vsel %vm199, %v1283, 0
      %v1307 = vsel %vm199, %v1284, 0
      %v1310 = vsel %vm199, %v1285, 0
      %v1313 = vsel %vm199, %v1286, 0
      %v1316 = vsel %vm199, %v1287, 0
      %v1319 = vsel %vm199, %v1288, 0
      %v1322 = vsel %vm199, %v1289, 0
      %v1325 = vsel %vm199, %v1290, 0
      %v1328 = vsel %vm199, %v1291, 0
      %v1331 = vsel %vm199, %v1292, 0
      %v1334 = vsel %vm199, %v1293, 0
      %v1337 = vsel %vm199, %v1294, 0
      %v1340 = vsel %vm199, %v1295, 0
      %v1343 = vsel %vm199, %v1296, 0
      %v1346 = vsel %vm199, %v1297, 0
      %v1349 = vand.u32 %v1299, %v841
      %1351 = vmatprep.subr.bf16.mxu0 0
      %1352 = vmatpush1.bf16.msra.mxu0 %v1349
      %1353 = vmatprep.subr.bf16.mxu0 0
      %1354 = vmatpush1.bf16.msra.mxu0 0
      %1355 = vmatprep.subr.bf16.mxu0 0
      %1356 = vmatpush1.bf16.msra.mxu0 0
      %1357 = vmatprep.subr.bf16.mxu0 0
      %1358 = vmatpush1.bf16.msra.mxu0 0
      %1359 = vmatprep.subr.bf16.mxu0 0
      %1360 = vmatpush1.bf16.msra.mxu0 0
      %1361 = vmatprep.subr.bf16.mxu0 0
      %1362 = vmatpush1.bf16.msra.mxu0 0
      %1363 = vmatprep.subr.bf16.mxu0 0
      %1364 = vmatpush1.bf16.msra.mxu0 0
      %1365 = vmatprep.subr.bf16.mxu0 0
      %1366 = vmatpush1.bf16.msra.mxu0 0
      %1367 = vmatprep.subr.bf16.mxu0 0
      %1368 = vmatpush1.bf16.msra.mxu0 0
      %1369 = vmatprep.subr.bf16.mxu0 0
      %1370 = vmatpush1.bf16.msra.mxu0 0
      %1371 = vmatprep.subr.bf16.mxu0 0
      %1372 = vmatpush1.bf16.msra.mxu0 0
      %1373 = vmatprep.subr.bf16.mxu0 0
      %1374 = vmatpush1.bf16.msra.mxu0 0
      %1375 = vmatprep.subr.bf16.mxu0 0
      %1376 = vmatpush1.bf16.msra.mxu0 0
      %1377 = vmatprep.subr.bf16.mxu0 0
      %1378 = vmatpush1.bf16.msra.mxu0 0
      %1379 = vmatprep.subr.bf16.mxu0 0
      %1380 = vmatpush1.bf16.msra.mxu0 0
      %1381 = vmatprep.subr.bf16.mxu0 0
      %1382 = vmatpush1.bf16.msra.mxu0 0
      %1383 = vmatprep.mubr.bf16.mxu0 0
      %1384 = vmatmul.mubr.bf16.gmra.mrb[0].mxu0 %v1301
      %v1385 = vpop.f32.mrb[0].mxu0
      %v1386 = vadd.f32 0.0, %v1385
      %v1387 = vpop.f32.mrb[0].mxu0
      %v1388 = vpop.f32.mrb[0].mxu0
      %v1389 = vadd.f32 0.0, %v1388
      %v1390 = vpop.f32.mrb[0].mxu0
      %1391 = vmatprep.mubr.bf16.mxu0 0
      %1392 = vmatmul.mubr.bf16.gmra.mrb[0].mxu0 %v1304
      %v1393 = vpop.f32.mrb[0].mxu0
      %v1394 = vadd.f32 0.0, %v1393
      %v1395 = vpop.f32.mrb[0].mxu0
      %v1396 = vpop.f32.mrb[0].mxu0
      %v1397 = vadd.f32 0.0, %v1396
      %v1398 = vpop.f32.mrb[0].mxu0
      %1399 = vmatprep.mubr.bf16.mxu0 0
      %1400 = vmatmul.mubr.bf16.gmra.mrb[0].mxu0 %v1307
      %v1401 = vpop.f32.mrb[0].mxu0
      %v1402 = vadd.f32 0.0, %v1401
      %v1403 = vpop.f32.mrb[0].mxu0
      %v1404 = vpop.f32.mrb[0].mxu0
      %v1405 = vadd.f32 0.0, %v1404
      %v1406 = vpop.f32.mrb[0].mxu0
      %1407 = vmatprep.mubr.bf16.mxu0 0
      %1408 = vmatmul.mubr.bf16.gmra.mrb[0].mxu0 %v1310
      %v1409 = vpop.f32.mrb[0].mxu0
      %v1410 = vadd.f32 0.0, %v1409
      %v1411 = vpop.f32.mrb[0].mxu0
      %v1412 = vpop.f32.mrb[0].mxu0
      %v1413 = vadd.f32 0.0, %v1412
      %v1414 = vpop.f32.mrb[0].mxu0
      %1415 = vmatprep.mubr.bf16.mxu0 0
      %1416 = vmatmul.mubr.bf16.gmra.mrb[0].mxu0 %v1313
      %v1417 = vpop.f32.mrb[0].mxu0
      %v1418 = vadd.f32 0.0, %v1417
      %v1419 = vpop.f32.mrb[0].mxu0
      %v1420 = vpop.f32.mrb[0].mxu0
      %v1421 = vadd.f32 0.0, %v1420
      %v1422 = vpop.f32.mrb[0].mxu0
      %1423 = vmatprep.mubr.bf16.mxu0 0
      %1424 = vmatmul.mubr.bf16.gmra.mrb[0].mxu0 %v1316
      %v1425 = vpop.f32.mrb[0].mxu0
      %v1426 = vadd.f32 0.0, %v1425
      %v1427 = vpop.f32.mrb[0].mxu0
      %v1428 = vpop.f32.mrb[0].mxu0
      %v1429 = vadd.f32 0.0, %v1428
      %v1430 = vpop.f32.mrb[0].mxu0
      %1431 = vmatprep.mubr.bf16.mxu0 0
      %1432 = vmatmul.mubr.bf16.gmra.mrb[0].mxu0 %v1319
      %v1433 = vpop.f32.mrb[0].mxu0
      %v1434 = vadd.f32 0.0, %v1433
      %v1435 = vpop.f32.mrb[0].mxu0
      %v1436 = vpop.f32.mrb[0].mxu0
      %v1437 = vadd.f32 0.0, %v1436
      %v1438 = vpop.f32.mrb[0].mxu0
      %1439 = vmatprep.mubr.bf16.mxu0 0
      %1440 = vmatmul.mubr.bf16.gmra.mrb[0].mxu0 %v1322
      %v1441 = vpop.f32.mrb[0].mxu0
      %v1442 = vadd.f32 0.0, %v1441
      %v1443 = vpop.f32.mrb[0].mxu0
      %v1444 = vpop.f32.mrb[0].mxu0
      %v1445 = vadd.f32 0.0, %v1444
      %v1446 = vpop.f32.mrb[0].mxu0
      %1447 = vmatprep.mubr.bf16.mxu0 0
      %1448 = vmatmul.mubr.bf16.gmra.mrb[0].mxu0 %v1325
      %v1449 = vpop.f32.mrb[0].mxu0
      %v1450 = vadd.f32 0.0, %v1449
      %v1451 = vpop.f32.mrb[0].mxu0
      %v1452 = vpop.f32.mrb[0].mxu0
      %v1453 = vadd.f32 0.0, %v1452
      %v1454 = vpop.f32.mrb[0].mxu0
      %1455 = vmatprep.mubr.bf16.mxu0 0
      %1456 = vmatmul.mubr.bf16.gmra.mrb[0].mxu0 %v1328
      %v1457 = vpop.f32.mrb[0].mxu0
      %v1458 = vadd.f32 0.0, %v1457
      %v1459 = vpop.f32.mrb[0].mxu0
      %v1460 = vpop.f32.mrb[0].mxu0
      %v1461 = vadd.f32 0.0, %v1460
      %v1462 = vpop.f32.mrb[0].mxu0
      %1463 = vmatprep.mubr.bf16.mxu0 0
      %1464 = vmatmul.mubr.bf16.gmra.mrb[0].mxu0 %v1331
      %v1465 = vpop.f32.mrb[0].mxu0
      %v1466 = vadd.f32 0.0, %v1465
      %v1467 = vpop.f32.mrb[0].mxu0
      %v1468 = vpop.f32.mrb[0].mxu0
      %v1469 = vadd.f32 0.0, %v1468
      %v1470 = vpop.f32.mrb[0].mxu0
      %1471 = vmatprep.mubr.bf16.mxu0 0
      %1472 = vmatmul.mubr.bf16.gmra.mrb[0].mxu0 %v1334
      %v1473 = vpop.f32.mrb[0].mxu0
      %v1474 = vadd.f32 0.0, %v1473
      %v1475 = vpop.f32.mrb[0].mxu0
      %v1476 = vpop.f32.mrb[0].mxu0
      %v1477 = vadd.f32 0.0, %v1476
      %v1478 = vpop.f32.mrb[0].mxu0
      %1479 = vmatprep.mubr.bf16.mxu0 0
      %1480 = vmatmul.mubr.bf16.gmra.mrb[0].mxu0 %v1337
      %v1481 = vpop.f32.mrb[0].mxu0
      %v1482 = vadd.f32 0.0, %v1481
      %v1483 = vpop.f32.mrb[0].mxu0
      %v1484 = vpop.f32.mrb[0].mxu0
      %v1485 = vadd.f32 0.0, %v1484
      %v1486 = vpop.f32.mrb[0].mxu0
      %1487 = vmatprep.mubr.bf16.mxu0 0
      %1488 = vmatmul.mubr.bf16.gmra.mrb[0].mxu0 %v1340
      %v1489 = vpop.f32.mrb[0].mxu0
      %v1490 = vadd.f32 0.0, %v1489
      %v1491 = vpop.f32.mrb[0].mxu0
      %v1492 = vpop.f32.mrb[0].mxu0
      %v1493 = vadd.f32 0.0, %v1492
      %v1494 = vpop.f32.mrb[0].mxu0
      %1495 = vmatprep.mubr.bf16.mxu0 0
      %1496 = vmatmul.mubr.bf16.gmra.mrb[0].mxu0 %v1343
      %v1497 = vpop.f32.mrb[0].mxu0
      %v1498 = vadd.f32 0.0, %v1497
      %v1499 = vpop.f32.mrb[0].mxu0
      %v1500 = vpop.f32.mrb[0].mxu0
      %v1501 = vadd.f32 0.0, %v1500
      %v1502 = vpop.f32.mrb[0].mxu0
      %1503 = vmatprep.mubr.bf16.mxu0 0
      %1504 = vmatmul.mubr.bf16.gmra.mrb[0].mxu0 %v1346
      %v1505 = vpop.f32.mrb[0].mxu0
      %v1506 = vadd.f32 0.0, %v1505
      %v1507 = vpop.f32.mrb[0].mxu0
      %v1508 = vpop.f32.mrb[0].mxu0
      %v1509 = vadd.f32 0.0, %v1508
      %v1510 = vpop.f32.mrb[0].mxu0
      %1511 = vdwg.mxu0
      %v1512 = vadd.f32 %v1092, %v1386
      %v1513 = vadd.f32 %v1095, %v1389
      %v1514 = vadd.f32 %v1100, %v1394
      %v1515 = vadd.f32 %v1103, %v1397
      %v1516 = vadd.f32 %v1108, %v1402
      %v1517 = vadd.f32 %v1111, %v1405
      %v1518 = vadd.f32 %v1116, %v1410
      %v1519 = vadd.f32 %v1119, %v1413
      %v1520 = vadd.f32 %v1124, %v1418
      %v1521 = vadd.f32 %v1127, %v1421
      %v1522 = vadd.f32 %v1132, %v1426
      %v1523 = vadd.f32 %v1135, %v1429
      %v1524 = vadd.f32 %v1140, %v1434
      %v1525 = vadd.f32 %v1143, %v1437
      %v1526 = vadd.f32 %v1148, %v1442
      %v1527 = vadd.f32 %v1151, %v1445
      %v1528 = vadd.f32 %v1156, %v1450
      %v1529 = vadd.f32 %v1159, %v1453
      %v1530 = vadd.f32 %v1164, %v1458
      %v1531 = vadd.f32 %v1167, %v1461
      %v1532 = vadd.f32 %v1172, %v1466
      %v1533 = vadd.f32 %v1175, %v1469
      %v1534 = vadd.f32 %v1180, %v1474
      %v1535 = vadd.f32 %v1183, %v1477
      %v1536 = vadd.f32 %v1188, %v1482
      %v1537 = vadd.f32 %v1191, %v1485
      %v1538 = vadd.f32 %v1196, %v1490
      %v1539 = vadd.f32 %v1199, %v1493
      %v1540 = vadd.f32 %v1204, %v1498
      %v1541 = vadd.f32 %v1207, %v1501
      %v1542 = vadd.f32 %v1212, %v1506
      %v1543 = vadd.f32 %v1215, %v1509
      %v1544 = vld [vmem:[%s499] ss:$2 sm:$0xff]
      %s1545 = scalar_lea.vmem %s499, 16 [#allocation2]
      %v1546 = vld [vmem:[%s1545] ss:$2 sm:$0xff]
      %s1547 = scalar_lea.vmem %s499, 80 [#allocation2]
      %v1548 = vld [vmem:[%s1547] ss:$2 sm:$0xff]
      %s1549 = scalar_lea.vmem %s499, 96 [#allocation2]
      %v1550 = vld [vmem:[%s1549] ss:$2 sm:$0xff]
      %s1551 = scalar_lea.vmem %s499, 160 [#allocation2]
      %v1552 = vld [vmem:[%s1551] ss:$2 sm:$0xff]
      %s1553 = scalar_lea.vmem %s499, 176 [#allocation2]
      %v1554 = vld [vmem:[%s1553] ss:$2 sm:$0xff]
      %s1555 = scalar_lea.vmem %s499, 240 [#allocation2]
      %v1556 = vld [vmem:[%s1555] ss:$2 sm:$0xff]
      %s1557 = scalar_lea.vmem %s499, 256 [#allocation2]
      %v1558 = vld [vmem:[%s1557] ss:$2 sm:$0xff]
      %s1559 = scalar_lea.vmem %s499, 320 [#allocation2]
      %v1560 = vld [vmem:[%s1559] ss:$2 sm:$0xff]
      %s1561 = scalar_lea.vmem %s499, 336 [#allocation2]
      %v1562 = vld [vmem:[%s1561] ss:$2 sm:$0xff]
      %s1563 = scalar_lea.vmem %s499, 400 [#allocation2]
      %v1564 = vld [vmem:[%s1563] ss:$2 sm:$0xff]
      %s1565 = scalar_lea.vmem %s499, 416 [#allocation2]
      %v1566 = vld [vmem:[%s1565] ss:$2 sm:$0xff]
      %s1567 = scalar_lea.vmem %s499, 480 [#allocation2]
      %v1568 = vld [vmem:[%s1567] ss:$2 sm:$0xff]
      %s1569 = scalar_lea.vmem %s499, 496 [#allocation2]
      %v1570 = vld [vmem:[%s1569] ss:$2 sm:$0xff]
      %s1571 = scalar_lea.vmem %s499, 560 [#allocation2]
      %v1572 = vld [vmem:[%s1571] ss:$2 sm:$0xff]
      %s1573 = scalar_lea.vmem %s499, 576 [#allocation2]
      %v1574 = vld [vmem:[%s1573] ss:$2 sm:$0xff]
      %s1575 = scalar_lea.vmem %s499, 640 [#allocation2]
      %v1576 = vld [vmem:[%s1575] ss:$2 sm:$0xff]
      %s1577 = scalar_lea.vmem %s499, 656 [#allocation2]
      %v1578 = vld [vmem:[%s1577] ss:$2 sm:$0xff]
      %s1579 = scalar_lea.vmem %s499, 720 [#allocation2]
      %v1580 = vld [vmem:[%s1579] ss:$2 sm:$0xff]
      %s1581 = scalar_lea.vmem %s499, 736 [#allocation2]
      %v1582 = vld [vmem:[%s1581] ss:$2 sm:$0xff]
      %s1583 = scalar_lea.vmem %s499, 800 [#allocation2]
      %v1584 = vld [vmem:[%s1583] ss:$2 sm:$0xff]
      %s1585 = scalar_lea.vmem %s499, 816 [#allocation2]
      %v1586 = vld [vmem:[%s1585] ss:$2 sm:$0xff]
      %s1587 = scalar_lea.vmem %s499, 880 [#allocation2]
      %v1588 = vld [vmem:[%s1587] ss:$2 sm:$0xff]
      %s1589 = scalar_lea.vmem %s499, 896 [#allocation2]
      %v1590 = vld [vmem:[%s1589] ss:$2 sm:$0xff]
      %s1591 = scalar_lea.vmem %s499, 960 [#allocation2]
      %v1592 = vld [vmem:[%s1591] ss:$2 sm:$0xff]
      %s1593 = scalar_lea.vmem %s499, 976 [#allocation2]
      %v1594 = vld [vmem:[%s1593] ss:$2 sm:$0xff]
      %s1595 = scalar_lea.vmem %s499, 1040 [#allocation2]
      %v1596 = vld [vmem:[%s1595] ss:$2 sm:$0xff]
      %s1597 = scalar_lea.vmem %s499, 1056 [#allocation2]
      %v1598 = vld [vmem:[%s1597] ss:$2 sm:$0xff]
      %s1599 = scalar_lea.vmem %s499, 1120 [#allocation2]
      %v1600 = vld [vmem:[%s1599] ss:$2 sm:$0xff]
      %s1601 = scalar_lea.vmem %s499, 1136 [#allocation2]
      %v1602 = vld [vmem:[%s1601] ss:$2 sm:$0xff]
      %s1603 = scalar_lea.vmem %s499, 1200 [#allocation2]
      %v1604 = vld [vmem:[%s1603] ss:$2 sm:$0xff]
      %s1605 = scalar_lea.vmem %s499, 1216 [#allocation2]
      %v1606 = vld [vmem:[%s1605] ss:$2 sm:$0xff]
      %v1607 = vpack.c.bf16 %v1546, %v1544
      %v1608 = vpack.c.bf16 %v1550, %v1548
      %v1609 = vpack.c.bf16 %v1554, %v1552
      %v1610 = vpack.c.bf16 %v1558, %v1556
      %v1611 = vpack.c.bf16 %v1562, %v1560
      %v1612 = vpack.c.bf16 %v1566, %v1564
      %v1613 = vpack.c.bf16 %v1570, %v1568
      %v1614 = vpack.c.bf16 %v1574, %v1572
      %v1615 = vpack.c.bf16 %v1578, %v1576
      %v1616 = vpack.c.bf16 %v1582, %v1580
      %v1617 = vpack.c.bf16 %v1586, %v1584
      %v1618 = vpack.c.bf16 %v1590, %v1588
      %v1619 = vpack.c.bf16 %v1594, %v1592
      %v1620 = vpack.c.bf16 %v1598, %v1596
      %v1621 = vpack.c.bf16 %v1602, %v1600
      %v1622 = vpack.c.bf16 %v1606, %v1604
      %s1623 = scalar_lea.vmem %s1, 6
      %v1624 = vld [vmem:[%s1623] sm:$0x3]
      %v1626 = vsel %vm199, %v1607, 0
      %v1629 = vsel %vm199, %v1608, 0
      %v1632 = vsel %vm199, %v1609, 0
      %v1635 = vsel %vm199, %v1610, 0
      %v1638 = vsel %vm199, %v1611, 0
      %v1641 = vsel %vm199, %v1612, 0
      %v1644 = vsel %vm199, %v1613, 0
      %v1647 = vsel %vm199, %v1614, 0
      %v1650 = vsel %vm199, %v1615, 0
      %v1653 = vsel %vm199, %v1616, 0
      %v1656 = vsel %vm199, %v1617, 0
      %v1659 = vsel %vm199, %v1618, 0
      %v1662 = vsel %vm199, %v1619, 0
      %v1665 = vsel %vm199, %v1620, 0
      %v1668 = vsel %vm199, %v1621, 0
      %v1671 = vsel %vm199, %v1622, 0
      %v1674 = vand.u32 %v1624, %v841
      %1676 = vmatprep.subr.bf16.mxu0 0
      %1677 = vmatpush1.bf16.msra.mxu0 %v1674
      %1678 = vmatprep.subr.bf16.mxu0 0
      %1679 = vmatpush1.bf16.msra.mxu0 0
      %1680 = vmatprep.subr.bf16.mxu0 0
      %1681 = vmatpush1.bf16.msra.mxu0 0
      %1682 = vmatprep.subr.bf16.mxu0 0
      %1683 = vmatpush1.bf16.msra.mxu0 0
      %1684 = vmatprep.subr.bf16.mxu0 0
      %1685 = vmatpush1.bf16.msra.mxu0 0
      %1686 = vmatprep.subr.bf16.mxu0 0
      %1687 = vmatpush1.bf16.msra.mxu0 0
      %1688 = vmatprep.subr.bf16.mxu0 0
      %1689 = vmatpush1.bf16.msra.mxu0 0
      %1690 = vmatprep.subr.bf16.mxu0 0
      %1691 = vmatpush1.bf16.msra.mxu0 0
      %1692 = vmatprep.subr.bf16.mxu0 0
      %1693 = vmatpush1.bf16.msra.mxu0 0
      %1694 = vmatprep.subr.bf16.mxu0 0
      %1695 = vmatpush1.bf16.msra.mxu0 0
      %1696 = vmatprep.subr.bf16.mxu0 0
      %1697 = vmatpush1.bf16.msra.mxu0 0
      %1698 = vmatprep.subr.bf16.mxu0 0
      %1699 = vmatpush1.bf16.msra.mxu0 0
      %1700 = vmatprep.subr.bf16.mxu0 0
      %1701 = vmatpush1.bf16.msra.mxu0 0
      %1702 = vmatprep.subr.bf16.mxu0 0
      %1703 = vmatpush1.bf16.msra.mxu0 0
      %1704 = vmatprep.subr.bf16.mxu0 0
      %1705 = vmatpush1.bf16.msra.mxu0 0
      %1706 = vmatprep.subr.bf16.mxu0 0
      %1707 = vmatpush1.bf16.msra.mxu0 0
      %1708 = vmatprep.mubr.bf16.mxu0 0
      %1709 = vmatmul.mubr.bf16.gmra.mrb[0].mxu0 %v1626
      %v1710 = vpop.f32.mrb[0].mxu0
      %v1711 = vadd.f32 0.0, %v1710
      %v1712 = vpop.f32.mrb[0].mxu0
      %v1713 = vpop.f32.mrb[0].mxu0
      %v1714 = vadd.f32 0.0, %v1713
      %v1715 = vpop.f32.mrb[0].mxu0
      %1716 = vmatprep.mubr.bf16.mxu0 0
      %1717 = vmatmul.mubr.bf16.gmra.mrb[0].mxu0 %v1629
      %v1718 = vpop.f32.mrb[0].mxu0
      %v1719 = vadd.f32 0.0, %v1718
      %v1720 = vpop.f32.mrb[0].mxu0
      %v1721 = vpop.f32.mrb[0].mxu0
      %v1722 = vadd.f32 0.0, %v1721
      %v1723 = vpop.f32.mrb[0].mxu0
      %1724 = vmatprep.mubr.bf16.mxu0 0
      %1725 = vmatmul.mubr.bf16.gmra.mrb[0].mxu0 %v1632
      %v1726 = vpop.f32.mrb[0].mxu0
      %v1727 = vadd.f32 0.0, %v1726
      %v1728 = vpop.f32.mrb[0].mxu0
      %v1729 = vpop.f32.mrb[0].mxu0
      %v1730 = vadd.f32 0.0, %v1729
      %v1731 = vpop.f32.mrb[0].mxu0
      %1732 = vmatprep.mubr.bf16.mxu0 0
      %1733 = vmatmul.mubr.bf16.gmra.mrb[0].mxu0 %v1635
      %v1734 = vpop.f32.mrb[0].mxu0
      %v1735 = vadd.f32 0.0, %v1734
      %v1736 = vpop.f32.mrb[0].mxu0
      %v1737 = vpop.f32.mrb[0].mxu0
      %v1738 = vadd.f32 0.0, %v1737
      %v1739 = vpop.f32.mrb[0].mxu0
      %1740 = vmatprep.mubr.bf16.mxu0 0
      %1741 = vmatmul.mubr.bf16.gmra.mrb[0].mxu0 %v1638
      %v1742 = vpop.f32.mrb[0].mxu0
      %v1743 = vadd.f32 0.0, %v1742
      %v1744 = vpop.f32.mrb[0].mxu0
      %v1745 = vpop.f32.mrb[0].mxu0
      %v1746 = vadd.f32 0.0, %v1745
      %v1747 = vpop.f32.mrb[0].mxu0
      %1748 = vmatprep.mubr.bf16.mxu0 0
      %1749 = vmatmul.mubr.bf16.gmra.mrb[0].mxu0 %v1641
      %v1750 = vpop.f32.mrb[0].mxu0
      %v1751 = vadd.f32 0.0, %v1750
      %v1752 = vpop.f32.mrb[0].mxu0
      %v1753 = vpop.f32.mrb[0].mxu0
      %v1754 = vadd.f32 0.0, %v1753
      %v1755 = vpop.f32.mrb[0].mxu0
      %1756 = vmatprep.mubr.bf16.mxu0 0
      %1757 = vmatmul.mubr.bf16.gmra.mrb[0].mxu0 %v1644
      %v1758 = vpop.f32.mrb[0].mxu0
      %v1759 = vadd.f32 0.0, %v1758
      %v1760 = vpop.f32.mrb[0].mxu0
      %v1761 = vpop.f32.mrb[0].mxu0
      %v1762 = vadd.f32 0.0, %v1761
      %v1763 = vpop.f32.mrb[0].mxu0
      %1764 = vmatprep.mubr.bf16.mxu0 0
      %1765 = vmatmul.mubr.bf16.gmra.mrb[0].mxu0 %v1647
      %v1766 = vpop.f32.mrb[0].mxu0
      %v1767 = vadd.f32 0.0, %v1766
      %v1768 = vpop.f32.mrb[0].mxu0
      %v1769 = vpop.f32.mrb[0].mxu0
      %v1770 = vadd.f32 0.0, %v1769
      %v1771 = vpop.f32.mrb[0].mxu0
      %1772 = vmatprep.mubr.bf16.mxu0 0
      %1773 = vmatmul.mubr.bf16.gmra.mrb[0].mxu0 %v1650
      %v1774 = vpop.f32.mrb[0].mxu0
      %v1775 = vadd.f32 0.0, %v1774
      %v1776 = vpop.f32.mrb[0].mxu0
      %v1777 = vpop.f32.mrb[0].mxu0
      %v1778 = vadd.f32 0.0, %v1777
      %v1779 = vpop.f32.mrb[0].mxu0
      %1780 = vmatprep.mubr.bf16.mxu0 0
      %1781 = vmatmul.mubr.bf16.gmra.mrb[0].mxu0 %v1653
      %v1782 = vpop.f32.mrb[0].mxu0
      %v1783 = vadd.f32 0.0, %v1782
      %v1784 = vpop.f32.mrb[0].mxu0
      %v1785 = vpop.f32.mrb[0].mxu0
      %v1786 = vadd.f32 0.0, %v1785
      %v1787 = vpop.f32.mrb[0].mxu0
      %1788 = vmatprep.mubr.bf16.mxu0 0
      %1789 = vmatmul.mubr.bf16.gmra.mrb[0].mxu0 %v1656
      %v1790 = vpop.f32.mrb[0].mxu0
      %v1791 = vadd.f32 0.0, %v1790
      %v1792 = vpop.f32.mrb[0].mxu0
      %v1793 = vpop.f32.mrb[0].mxu0
      %v1794 = vadd.f32 0.0, %v1793
      %v1795 = vpop.f32.mrb[0].mxu0
      %1796 = vmatprep.mubr.bf16.mxu0 0
      %1797 = vmatmul.mubr.bf16.gmra.mrb[0].mxu0 %v1659
      %v1798 = vpop.f32.mrb[0].mxu0
      %v1799 = vadd.f32 0.0, %v1798
      %v1800 = vpop.f32.mrb[0].mxu0
      %v1801 = vpop.f32.mrb[0].mxu0
      %v1802 = vadd.f32 0.0, %v1801
      %v1803 = vpop.f32.mrb[0].mxu0
      %1804 = vmatprep.mubr.bf16.mxu0 0
      %1805 = vmatmul.mubr.bf16.gmra.mrb[0].mxu0 %v1662
      %v1806 = vpop.f32.mrb[0].mxu0
      %v1807 = vadd.f32 0.0, %v1806
      %v1808 = vpop.f32.mrb[0].mxu0
      %v1809 = vpop.f32.mrb[0].mxu0
      %v1810 = vadd.f32 0.0, %v1809
      %v1811 = vpop.f32.mrb[0].mxu0
      %1812 = vmatprep.mubr.bf16.mxu0 0
      %1813 = vmatmul.mubr.bf16.gmra.mrb[0].mxu0 %v1665
      %v1814 = vpop.f32.mrb[0].mxu0
      %v1815 = vadd.f32 0.0, %v1814
      %v1816 = vpop.f32.mrb[0].mxu0
      %v1817 = vpop.f32.mrb[0].mxu0
      %v1818 = vadd.f32 0.0, %v1817
      %v1819 = vpop.f32.mrb[0].mxu0
      %1820 = vmatprep.mubr.bf16.mxu0 0
      %1821 = vmatmul.mubr.bf16.gmra.mrb[0].mxu0 %v1668
      %v1822 = vpop.f32.mrb[0].mxu0
      %v1823 = vadd.f32 0.0, %v1822
      %v1824 = vpop.f32.mrb[0].mxu0
      %v1825 = vpop.f32.mrb[0].mxu0
      %v1826 = vadd.f32 0.0, %v1825
      %v1827 = vpop.f32.mrb[0].mxu0
      %1828 = vmatprep.mubr.bf16.mxu0 0
      %1829 = vmatmul.mubr.bf16.gmra.mrb[0].mxu0 %v1671
      %v1830 = vpop.f32.mrb[0].mxu0
      %v1831 = vadd.f32 0.0, %v1830
      %v1832 = vpop.f32.mrb[0].mxu0
      %v1833 = vpop.f32.mrb[0].mxu0
      %v1834 = vadd.f32 0.0, %v1833
      %v1835 = vpop.f32.mrb[0].mxu0
      %1836 = vdwg.mxu0
      %v1837 = vadd.f32 %v1512, %v1711
      %v1838 = vadd.f32 %v1513, %v1714
      %v1839 = vadd.f32 %v1514, %v1719
      %v1840 = vadd.f32 %v1515, %v1722
      %v1841 = vadd.f32 %v1516, %v1727
      %v1842 = vadd.f32 %v1517, %v1730
      %v1843 = vadd.f32 %v1518, %v1735
      %v1844 = vadd.f32 %v1519, %v1738
      %v1845 = vadd.f32 %v1520, %v1743
      %v1846 = vadd.f32 %v1521, %v1746
      %v1847 = vadd.f32 %v1522, %v1751
      %v1848 = vadd.f32 %v1523, %v1754
      %v1849 = vadd.f32 %v1524, %v1759
      %v1850 = vadd.f32 %v1525, %v1762
      %v1851 = vadd.f32 %v1526, %v1767
      %v1852 = vadd.f32 %v1527, %v1770
      %v1853 = vadd.f32 %v1528, %v1775
      %v1854 = vadd.f32 %v1529, %v1778
      %v1855 = vadd.f32 %v1530, %v1783
      %v1856 = vadd.f32 %v1531, %v1786
      %v1857 = vadd.f32 %v1532, %v1791
      %v1858 = vadd.f32 %v1533, %v1794
      %v1859 = vadd.f32 %v1534, %v1799
      %v1860 = vadd.f32 %v1535, %v1802
      %v1861 = vadd.f32 %v1536, %v1807
      %v1862 = vadd.f32 %v1537, %v1810
      %v1863 = vadd.f32 %v1538, %v1815
      %v1864 = vadd.f32 %v1539, %v1818
      %v1865 = vadd.f32 %v1540, %v1823
      %v1866 = vadd.f32 %v1541, %v1826
      %v1867 = vadd.f32 %v1542, %v1831
      %v1868 = vadd.f32 %v1543, %v1834
      %s1869 = scalar_lea.vmem %s499, 1 [#allocation2]
      %v1870 = vld [vmem:[%s1869] ss:$2 sm:$0xff]
      %s1871 = scalar_lea.vmem %s499, 17 [#allocation2]
      %v1872 = vld [vmem:[%s1871] ss:$2 sm:$0xff]
      %s1873 = scalar_lea.vmem %s499, 81 [#allocation2]
      %v1874 = vld [vmem:[%s1873] ss:$2 sm:$0xff]
      %s1875 = scalar_lea.vmem %s499, 97 [#allocation2]
      %v1876 = vld [vmem:[%s1875] ss:$2 sm:$0xff]
      %s1877 = scalar_lea.vmem %s499, 161 [#allocation2]
      %v1878 = vld [vmem:[%s1877] ss:$2 sm:$0xff]
      %s1879 = scalar_lea.vmem %s499, 177 [#allocation2]
      %v1880 = vld [vmem:[%s1879] ss:$2 sm:$0xff]
      %s1881 = scalar_lea.vmem %s499, 241 [#allocation2]
      %v1882 = vld [vmem:[%s1881] ss:$2 sm:$0xff]
      %s1883 = scalar_lea.vmem %s499, 257 [#allocation2]
      %v1884 = vld [vmem:[%s1883] ss:$2 sm:$0xff]
      %s1885 = scalar_lea.vmem %s499, 321 [#allocation2]
      %v1886 = vld [vmem:[%s1885] ss:$2 sm:$0xff]
      %s1887 = scalar_lea.vmem %s499, 337 [#allocation2]
      %v1888 = vld [vmem:[%s1887] ss:$2 sm:$0xff]
      %s1889 = scalar_lea.vmem %s499, 401 [#allocation2]
      %v1890 = vld [vmem:[%s1889] ss:$2 sm:$0xff]
      %s1891 = scalar_lea.vmem %s499, 417 [#allocation2]
      %v1892 = vld [vmem:[%s1891] ss:$2 sm:$0xff]
      %s1893 = scalar_lea.vmem %s499, 481 [#allocation2]
      %v1894 = vld [vmem:[%s1893] ss:$2 sm:$0xff]
      %s1895 = scalar_lea.vmem %s499, 497 [#allocation2]
      %v1896 = vld [vmem:[%s1895] ss:$2 sm:$0xff]
      %s1897 = scalar_lea.vmem %s499, 561 [#allocation2]
      %v1898 = vld [vmem:[%s1897] ss:$2 sm:$0xff]
      %s1899 = scalar_lea.vmem %s499, 577 [#allocation2]
      %v1900 = vld [vmem:[%s1899] ss:$2 sm:$0xff]
      %s1901 = scalar_lea.vmem %s499, 641 [#allocation2]
      %v1902 = vld [vmem:[%s1901] ss:$2 sm:$0xff]
      %s1903 = scalar_lea.vmem %s499, 657 [#allocation2]
      %v1904 = vld [vmem:[%s1903] ss:$2 sm:$0xff]
      %s1905 = scalar_lea.vmem %s499, 721 [#allocation2]
      %v1906 = vld [vmem:[%s1905] ss:$2 sm:$0xff]
      %s1907 = scalar_lea.vmem %s499, 737 [#allocation2]
      %v1908 = vld [vmem:[%s1907] ss:$2 sm:$0xff]
      %s1909 = scalar_lea.vmem %s499, 801 [#allocation2]
      %v1910 = vld [vmem:[%s1909] ss:$2 sm:$0xff]
      %s1911 = scalar_lea.vmem %s499, 817 [#allocation2]
      %v1912 = vld [vmem:[%s1911] ss:$2 sm:$0xff]
      %s1913 = scalar_lea.vmem %s499, 881 [#allocation2]
      %v1914 = vld [vmem:[%s1913] ss:$2 sm:$0xff]
      %s1915 = scalar_lea.vmem %s499, 897 [#allocation2]
      %v1916 = vld [vmem:[%s1915] ss:$2 sm:$0xff]
      %s1917 = scalar_lea.vmem %s499, 961 [#allocation2]
      %v1918 = vld [vmem:[%s1917] ss:$2 sm:$0xff]
      %s1919 = scalar_lea.vmem %s499, 977 [#allocation2]
      %v1920 = vld [vmem:[%s1919] ss:$2 sm:$0xff]
      %s1921 = scalar_lea.vmem %s499, 1041 [#allocation2]
      %v1922 = vld [vmem:[%s1921] ss:$2 sm:$0xff]
      %s1923 = scalar_lea.vmem %s499, 1057 [#allocation2]
      %v1924 = vld [vmem:[%s1923] ss:$2 sm:$0xff]
      %s1925 = scalar_lea.vmem %s499, 1121 [#allocation2]
      %v1926 = vld [vmem:[%s1925] ss:$2 sm:$0xff]
      %s1927 = scalar_lea.vmem %s499, 1137 [#allocation2]
      %v1928 = vld [vmem:[%s1927] ss:$2 sm:$0xff]
      %s1929 = scalar_lea.vmem %s499, 1201 [#allocation2]
      %v1930 = vld [vmem:[%s1929] ss:$2 sm:$0xff]
      %s1931 = scalar_lea.vmem %s499, 1217 [#allocation2]
      %v1932 = vld [vmem:[%s1931] ss:$2 sm:$0xff]
      %v1933 = vpack.c.bf16 %v1872, %v1870
      %v1934 = vpack.c.bf16 %v1876, %v1874
      %v1935 = vpack.c.bf16 %v1880, %v1878
      %v1936 = vpack.c.bf16 %v1884, %v1882
      %v1937 = vpack.c.bf16 %v1888, %v1886
      %v1938 = vpack.c.bf16 %v1892, %v1890
      %v1939 = vpack.c.bf16 %v1896, %v1894
      %v1940 = vpack.c.bf16 %v1900, %v1898
      %v1941 = vpack.c.bf16 %v1904, %v1902
      %v1942 = vpack.c.bf16 %v1908, %v1906
      %v1943 = vpack.c.bf16 %v1912, %v1910
      %v1944 = vpack.c.bf16 %v1916, %v1914
      %v1945 = vpack.c.bf16 %v1920, %v1918
      %v1946 = vpack.c.bf16 %v1924, %v1922
      %v1947 = vpack.c.bf16 %v1928, %v1926
      %v1948 = vpack.c.bf16 %v1932, %v1930
      %s1949 = scalar_lea.vmem %s1, 8
      %v1950 = vld [vmem:[%s1949] sm:$0x3]
      %v1952 = vsel %vm199, %v1933, 0
      %v1955 = vsel %vm199, %v1934, 0
      %v1958 = vsel %vm199, %v1935, 0
      %v1961 = vsel %vm199, %v1936, 0
      %v1964 = vsel %vm199, %v1937, 0
      %v1967 = vsel %vm199, %v1938, 0
      %v1970 = vsel %vm199, %v1939, 0
      %v1973 = vsel %vm199, %v1940, 0
      %v1976 = vsel %vm199, %v1941, 0
      %v1979 = vsel %vm199, %v1942, 0
      %v1982 = vsel %vm199, %v1943, 0
      %v1985 = vsel %vm199, %v1944, 0
      %v1988 = vsel %vm199, %v1945, 0
      %v1991 = vsel %vm199, %v1946, 0
      %v1994 = vsel %vm199, %v1947, 0
      %v1997 = vsel %vm199, %v1948, 0
      %v2000 = vand.u32 %v1950, %v841
      %2002 = vmatprep.subr.bf16.mxu0 0
      %2003 = vmatpush1.bf16.msra.mxu0 %v2000
      %2004 = vmatprep.subr.bf16.mxu0 0
      %2005 = vmatpush1.bf16.msra.mxu0 0
      %2006 = vmatprep.subr.bf16.mxu0 0
      %2007 = vmatpush1.bf16.msra.mxu0 0
      %2008 = vmatprep.subr.bf16.mxu0 0
      %2009 = vmatpush1.bf16.msra.mxu0 0
      %2010 = vmatprep.subr.bf16.mxu0 0
      %2011 = vmatpush1.bf16.msra.mxu0 0
      %2012 = vmatprep.subr.bf16.mxu0 0
      %2013 = vmatpush1.bf16.msra.mxu0 0
      %2014 = vmatprep.subr.bf16.mxu0 0
      %2015 = vmatpush1.bf16.msra.mxu0 0
      %2016 = vmatprep.subr.bf16.mxu0 0
      %2017 = vmatpush1.bf16.msra.mxu0 0
      %2018 = vmatprep.subr.bf16.mxu0 0
      %2019 = vmatpush1.bf16.msra.mxu0 0
      %2020 = vmatprep.subr.bf16.mxu0 0
      %2021 = vmatpush1.bf16.msra.mxu0 0
      %2022 = vmatprep.subr.bf16.mxu0 0
      %2023 = vmatpush1.bf16.msra.mxu0 0
      %2024 = vmatprep.subr.bf16.mxu0 0
      %2025 = vmatpush1.bf16.msra.mxu0 0
      %2026 = vmatprep.subr.bf16.mxu0 0
      %2027 = vmatpush1.bf16.msra.mxu0 0
      %2028 = vmatprep.subr.bf16.mxu0 0
      %2029 = vmatpush1.bf16.msra.mxu0 0
      %2030 = vmatprep.subr.bf16.mxu0 0
      %2031 = vmatpush1.bf16.msra.mxu0 0
      %2032 = vmatprep.subr.bf16.mxu0 0
      %2033 = vmatpush1.bf16.msra.mxu0 0
      %2034 = vmatprep.mubr.bf16.mxu0 0
      %2035 = vmatmul.mubr.bf16.gmra.mrb[0].mxu0 %v1952
      %v2036 = vpop.f32.mrb[0].mxu0
      %v2037 = vadd.f32 0.0, %v2036
      %v2038 = vpop.f32.mrb[0].mxu0
      %v2039 = vpop.f32.mrb[0].mxu0
      %v2040 = vadd.f32 0.0, %v2039
      %v2041 = vpop.f32.mrb[0].mxu0
      %2042 = vmatprep.mubr.bf16.mxu0 0
      %2043 = vmatmul.mubr.bf16.gmra.mrb[0].mxu0 %v1955
      %v2044 = vpop.f32.mrb[0].mxu0
      %v2045 = vadd.f32 0.0, %v2044
      %v2046 = vpop.f32.mrb[0].mxu0
      %v2047 = vpop.f32.mrb[0].mxu0
      %v2048 = vadd.f32 0.0, %v2047
      %v2049 = vpop.f32.mrb[0].mxu0
      %2050 = vmatprep.mubr.bf16.mxu0 0
      %2051 = vmatmul.mubr.bf16.gmra.mrb[0].mxu0 %v1958
      %v2052 = vpop.f32.mrb[0].mxu0
      %v2053 = vadd.f32 0.0, %v2052
      %v2054 = vpop.f32.mrb[0].mxu0
      %v2055 = vpop.f32.mrb[0].mxu0
      %v2056 = vadd.f32 0.0, %v2055
      %v2057 = vpop.f32.mrb[0].mxu0
      %2058 = vmatprep.mubr.bf16.mxu0 0
      %2059 = vmatmul.mubr.bf16.gmra.mrb[0].mxu0 %v1961
      %v2060 = vpop.f32.mrb[0].mxu0
      %v2061 = vadd.f32 0.0, %v2060
      %v2062 = vpop.f32.mrb[0].mxu0
      %v2063 = vpop.f32.mrb[0].mxu0
      %v2064 = vadd.f32 0.0, %v2063
      %v2065 = vpop.f32.mrb[0].mxu0
      %2066 = vmatprep.mubr.bf16.mxu0 0
      %2067 = vmatmul.mubr.bf16.gmra.mrb[0].mxu0 %v1964
      %v2068 = vpop.f32.mrb[0].mxu0
      %v2069 = vadd.f32 0.0, %v2068
      %v2070 = vpop.f32.mrb[0].mxu0
      %v2071 = vpop.f32.mrb[0].mxu0
      %v2072 = vadd.f32 0.0, %v2071
      %v2073 = vpop.f32.mrb[0].mxu0
      %2074 = vmatprep.mubr.bf16.mxu0 0
      %2075 = vmatmul.mubr.bf16.gmra.mrb[0].mxu0 %v1967
      %v2076 = vpop.f32.mrb[0].mxu0
      %v2077 = vadd.f32 0.0, %v2076
      %v2078 = vpop.f32.mrb[0].mxu0
      %v2079 = vpop.f32.mrb[0].mxu0
      %v2080 = vadd.f32 0.0, %v2079
      %v2081 = vpop.f32.mrb[0].mxu0
      %2082 = vmatprep.mubr.bf16.mxu0 0
      %2083 = vmatmul.mubr.bf16.gmra.mrb[0].mxu0 %v1970
      %v2084 = vpop.f32.mrb[0].mxu0
      %v2085 = vadd.f32 0.0, %v2084
      %v2086 = vpop.f32.mrb[0].mxu0
      %v2087 = vpop.f32.mrb[0].mxu0
      %v2088 = vadd.f32 0.0, %v2087
      %v2089 = vpop.f32.mrb[0].mxu0
      %2090 = vmatprep.mubr.bf16.mxu0 0
      %2091 = vmatmul.mubr.bf16.gmra.mrb[0].mxu0 %v1973
      %v2092 = vpop.f32.mrb[0].mxu0
      %v2093 = vadd.f32 0.0, %v2092
      %v2094 = vpop.f32.mrb[0].mxu0
      %v2095 = vpop.f32.mrb[0].mxu0
      %v2096 = vadd.f32 0.0, %v2095
      %v2097 = vpop.f32.mrb[0].mxu0
      %2098 = vmatprep.mubr.bf16.mxu0 0
      %2099 = vmatmul.mubr.bf16.gmra.mrb[0].mxu0 %v1976
      %v2100 = vpop.f32.mrb[0].mxu0
      %v2101 = vadd.f32 0.0, %v2100
      %v2102 = vpop.f32.mrb[0].mxu0
      %v2103 = vpop.f32.mrb[0].mxu0
      %v2104 = vadd.f32 0.0, %v2103
      %v2105 = vpop.f32.mrb[0].mxu0
      %2106 = vmatprep.mubr.bf16.mxu0 0
      %2107 = vmatmul.mubr.bf16.gmra.mrb[0].mxu0 %v1979
      %v2108 = vpop.f32.mrb[0].mxu0
      %v2109 = vadd.f32 0.0, %v2108
      %v2110 = vpop.f32.mrb[0].mxu0
      %v2111 = vpop.f32.mrb[0].mxu0
      %v2112 = vadd.f32 0.0, %v2111
      %v2113 = vpop.f32.mrb[0].mxu0
      %2114 = vmatprep.mubr.bf16.mxu0 0
      %2115 = vmatmul.mubr.bf16.gmra.mrb[0].mxu0 %v1982
      %v2116 = vpop.f32.mrb[0].mxu0
      %v2117 = vadd.f32 0.0, %v2116
      %v2118 = vpop.f32.mrb[0].mxu0
      %v2119 = vpop.f32.mrb[0].mxu0
      %v2120 = vadd.f32 0.0, %v2119
      %v2121 = vpop.f32.mrb[0].mxu0
      %2122 = vmatprep.mubr.bf16.mxu0 0
      %2123 = vmatmul.mubr.bf16.gmra.mrb[0].mxu0 %v1985
      %v2124 = vpop.f32.mrb[0].mxu0
      %v2125 = vadd.f32 0.0, %v2124
      %v2126 = vpop.f32.mrb[0].mxu0
      %v2127 = vpop.f32.mrb[0].mxu0
      %v2128 = vadd.f32 0.0, %v2127
      %v2129 = vpop.f32.mrb[0].mxu0
      %2130 = vmatprep.mubr.bf16.mxu0 0
      %2131 = vmatmul.mubr.bf16.gmra.mrb[0].mxu0 %v1988
      %v2132 = vpop.f32.mrb[0].mxu0
      %v2133 = vadd.f32 0.0, %v2132
      %v2134 = vpop.f32.mrb[0].mxu0
      %v2135 = vpop.f32.mrb[0].mxu0
      %v2136 = vadd.f32 0.0, %v2135
      %v2137 = vpop.f32.mrb[0].mxu0
      %2138 = vmatprep.mubr.bf16.mxu0 0
      %2139 = vmatmul.mubr.bf16.gmra.mrb[0].mxu0 %v1991
      %v2140 = vpop.f32.mrb[0].mxu0
      %v2141 = vadd.f32 0.0, %v2140
      %v2142 = vpop.f32.mrb[0].mxu0
      %v2143 = vpop.f32.mrb[0].mxu0
      %v2144 = vadd.f32 0.0, %v2143
      %v2145 = vpop.f32.mrb[0].mxu0
      %2146 = vmatprep.mubr.bf16.mxu0 0
      %2147 = vmatmul.mubr.bf16.gmra.mrb[0].mxu0 %v1994
      %v2148 = vpop.f32.mrb[0].mxu0
      %v2149 = vadd.f32 0.0, %v2148
      %v2150 = vpop.f32.mrb[0].mxu0
      %v2151 = vpop.f32.mrb[0].mxu0
      %v2152 = vadd.f32 0.0, %v2151
      %v2153 = vpop.f32.mrb[0].mxu0
      %2154 = vmatprep.mubr.bf16.mxu0 0
      %2155 = vmatmul.mubr.bf16.gmra.mrb[0].mxu0 %v1997
      %v2156 = vpop.f32.mrb[0].mxu0
      %v2157 = vadd.f32 0.0, %v2156
      %v2158 = vpop.f32.mrb[0].mxu0
      %v2159 = vpop.f32.mrb[0].mxu0
      %v2160 = vadd.f32 0.0, %v2159
      %v2161 = vpop.f32.mrb[0].mxu0
      %2162 = vdwg.mxu0
      %v2163 = vadd.f32 %v1837, %v2037
      %v2164 = vadd.f32 %v1838, %v2040
      %v2165 = vadd.f32 %v1839, %v2045
      %v2166 = vadd.f32 %v1840, %v2048
      %v2167 = vadd.f32 %v1841, %v2053
      %v2168 = vadd.f32 %v1842, %v2056
      %v2169 = vadd.f32 %v1843, %v2061
      %v2170 = vadd.f32 %v1844, %v2064
      %v2171 = vadd.f32 %v1845, %v2069
      %v2172 = vadd.f32 %v1846, %v2072
      %v2173 = vadd.f32 %v1847, %v2077
      %v2174 = vadd.f32 %v1848, %v2080
      %v2175 = vadd.f32 %v1849, %v2085
      %v2176 = vadd.f32 %v1850, %v2088
      %v2177 = vadd.f32 %v1851, %v2093
      %v2178 = vadd.f32 %v1852, %v2096
      %v2179 = vadd.f32 %v1853, %v2101
      %v2180 = vadd.f32 %v1854, %v2104
      %v2181 = vadd.f32 %v1855, %v2109
      %v2182 = vadd.f32 %v1856, %v2112
      %v2183 = vadd.f32 %v1857, %v2117
      %v2184 = vadd.f32 %v1858, %v2120
      %v2185 = vadd.f32 %v1859, %v2125
      %v2186 = vadd.f32 %v1860, %v2128
      %v2187 = vadd.f32 %v1861, %v2133
      %v2188 = vadd.f32 %v1862, %v2136
      %v2189 = vadd.f32 %v1863, %v2141
      %v2190 = vadd.f32 %v1864, %v2144
      %v2191 = vadd.f32 %v1865, %v2149
      %v2192 = vadd.f32 %v1866, %v2152
      %v2193 = vadd.f32 %v1867, %v2157
      %v2194 = vadd.f32 %v1868, %v2160
      %s2195 = scalar_lea.vmem %s499, 2 [#allocation2]
      %v2196 = vld [vmem:[%s2195] ss:$2 sm:$0xff]
      %s2197 = scalar_lea.vmem %s499, 18 [#allocation2]
      %v2198 = vld [vmem:[%s2197] ss:$2 sm:$0xff]
      %s2199 = scalar_lea.vmem %s499, 82 [#allocation2]
      %v2200 = vld [vmem:[%s2199] ss:$2 sm:$0xff]
      %s2201 = scalar_lea.vmem %s499, 98 [#allocation2]
      %v2202 = vld [vmem:[%s2201] ss:$2 sm:$0xff]
      %s2203 = scalar_lea.vmem %s499, 162 [#allocation2]
      %v2204 = vld [vmem:[%s2203] ss:$2 sm:$0xff]
      %s2205 = scalar_lea.vmem %s499, 178 [#allocation2]
      %v2206 = vld [vmem:[%s2205] ss:$2 sm:$0xff]
      %s2207 = scalar_lea.vmem %s499, 242 [#allocation2]
      %v2208 = vld [vmem:[%s2207] ss:$2 sm:$0xff]
      %s2209 = scalar_lea.vmem %s499, 258 [#allocation2]
      %v2210 = vld [vmem:[%s2209] ss:$2 sm:$0xff]
      %s2211 = scalar_lea.vmem %s499, 322 [#allocation2]
      %v2212 = vld [vmem:[%s2211] ss:$2 sm:$0xff]
      %s2213 = scalar_lea.vmem %s499, 338 [#allocation2]
      %v2214 = vld [vmem:[%s2213] ss:$2 sm:$0xff]
      %s2215 = scalar_lea.vmem %s499, 402 [#allocation2]
      %v2216 = vld [vmem:[%s2215] ss:$2 sm:$0xff]
      %s2217 = scalar_lea.vmem %s499, 418 [#allocation2]
      %v2218 = vld [vmem:[%s2217] ss:$2 sm:$0xff]
      %s2219 = scalar_lea.vmem %s499, 482 [#allocation2]
      %v2220 = vld [vmem:[%s2219] ss:$2 sm:$0xff]
      %s2221 = scalar_lea.vmem %s499, 498 [#allocation2]
      %v2222 = vld [vmem:[%s2221] ss:$2 sm:$0xff]
      %s2223 = scalar_lea.vmem %s499, 562 [#allocation2]
      %v2224 = vld [vmem:[%s2223] ss:$2 sm:$0xff]
      %s2225 = scalar_lea.vmem %s499, 578 [#allocation2]
      %v2226 = vld [vmem:[%s2225] ss:$2 sm:$0xff]
      %s2227 = scalar_lea.vmem %s499, 642 [#allocation2]
      %v2228 = vld [vmem:[%s2227] ss:$2 sm:$0xff]
      %s2229 = scalar_lea.vmem %s499, 658 [#allocation2]
      %v2230 = vld [vmem:[%s2229] ss:$2 sm:$0xff]
      %s2231 = scalar_lea.vmem %s499, 722 [#allocation2]
      %v2232 = vld [vmem:[%s2231] ss:$2 sm:$0xff]
      %s2233 = scalar_lea.vmem %s499, 738 [#allocation2]
      %v2234 = vld [vmem:[%s2233] ss:$2 sm:$0xff]
      %s2235 = scalar_lea.vmem %s499, 802 [#allocation2]
      %v2236 = vld [vmem:[%s2235] ss:$2 sm:$0xff]
      %s2237 = scalar_lea.vmem %s499, 818 [#allocation2]
      %v2238 = vld [vmem:[%s2237] ss:$2 sm:$0xff]
      %s2239 = scalar_lea.vmem %s499, 882 [#allocation2]
      %v2240 = vld [vmem:[%s2239] ss:$2 sm:$0xff]
      %s2241 = scalar_lea.vmem %s499, 898 [#allocation2]
      %v2242 = vld [vmem:[%s2241] ss:$2 sm:$0xff]
      %s2243 = scalar_lea.vmem %s499, 962 [#allocation2]
      %v2244 = vld [vmem:[%s2243] ss:$2 sm:$0xff]
      %s2245 = scalar_lea.vmem %s499, 978 [#allocation2]
      %v2246 = vld [vmem:[%s2245] ss:$2 sm:$0xff]
      %s2247 = scalar_lea.vmem %s499, 1042 [#allocation2]
      %v2248 = vld [vmem:[%s2247] ss:$2 sm:$0xff]
      %s2249 = scalar_lea.vmem %s499, 1058 [#allocation2]
      %v2250 = vld [vmem:[%s2249] ss:$2 sm:$0xff]
      %s2251 = scalar_lea.vmem %s499, 1122 [#allocation2]
      %v2252 = vld [vmem:[%s2251] ss:$2 sm:$0xff]
      %s2253 = scalar_lea.vmem %s499, 1138 [#allocation2]
      %v2254 = vld [vmem:[%s2253] ss:$2 sm:$0xff]
      %s2255 = scalar_lea.vmem %s499, 1202 [#allocation2]
      %v2256 = vld [vmem:[%s2255] ss:$2 sm:$0xff]
      %s2257 = scalar_lea.vmem %s499, 1218 [#allocation2]
      %v2258 = vld [vmem:[%s2257] ss:$2 sm:$0xff]
      %v2259 = vpack.c.bf16 %v2198, %v2196
      %v2260 = vpack.c.bf16 %v2202, %v2200
      %v2261 = vpack.c.bf16 %v2206, %v2204
      %v2262 = vpack.c.bf16 %v2210, %v2208
      %v2263 = vpack.c.bf16 %v2214, %v2212
      %v2264 = vpack.c.bf16 %v2218, %v2216
      %v2265 = vpack.c.bf16 %v2222, %v2220
      %v2266 = vpack.c.bf16 %v2226, %v2224
      %v2267 = vpack.c.bf16 %v2230, %v2228
      %v2268 = vpack.c.bf16 %v2234, %v2232
      %v2269 = vpack.c.bf16 %v2238, %v2236
      %v2270 = vpack.c.bf16 %v2242, %v2240
      %v2271 = vpack.c.bf16 %v2246, %v2244
      %v2272 = vpack.c.bf16 %v2250, %v2248
      %v2273 = vpack.c.bf16 %v2254, %v2252
      %v2274 = vpack.c.bf16 %v2258, %v2256
      %s2275 = scalar_lea.vmem %s1, 10
      %v2276 = vld [vmem:[%s2275] sm:$0x3]
      %v2278 = vsel %vm199, %v2259, 0
      %v2281 = vsel %vm199, %v2260, 0
      %v2284 = vsel %vm199, %v2261, 0
      %v2287 = vsel %vm199, %v2262, 0
      %v2290 = vsel %vm199, %v2263, 0
      %v2293 = vsel %vm199, %v2264, 0
      %v2296 = vsel %vm199, %v2265, 0
      %v2299 = vsel %vm199, %v2266, 0
      %v2302 = vsel %vm199, %v2267, 0
      %v2305 = vsel %vm199, %v2268, 0
      %v2308 = vsel %vm199, %v2269, 0
      %v2311 = vsel %vm199, %v2270, 0
      %v2314 = vsel %vm199, %v2271, 0
      %v2317 = vsel %vm199, %v2272, 0
      %v2320 = vsel %vm199, %v2273, 0
      %v2323 = vsel %vm199, %v2274, 0
      %v2326 = vand.u32 %v2276, %v841
      %2328 = vmatprep.subr.bf16.mxu0 0
      %2329 = vmatpush1.bf16.msra.mxu0 %v2326
      %2330 = vmatprep.subr.bf16.mxu0 0
      %2331 = vmatpush1.bf16.msra.mxu0 0
      %2332 = vmatprep.subr.bf16.mxu0 0
      %2333 = vmatpush1.bf16.msra.mxu0 0
      %2334 = vmatprep.subr.bf16.mxu0 0
      %2335 = vmatpush1.bf16.msra.mxu0 0
      %2336 = vmatprep.subr.bf16.mxu0 0
      %2337 = vmatpush1.bf16.msra.mxu0 0
      %2338 = vmatprep.subr.bf16.mxu0 0
      %2339 = vmatpush1.bf16.msra.mxu0 0
      %2340 = vmatprep.subr.bf16.mxu0 0
      %2341 = vmatpush1.bf16.msra.mxu0 0
      %2342 = vmatprep.subr.bf16.mxu0 0
      %2343 = vmatpush1.bf16.msra.mxu0 0
      %2344 = vmatprep.subr.bf16.mxu0 0
      %2345 = vmatpush1.bf16.msra.mxu0 0
      %2346 = vmatprep.subr.bf16.mxu0 0
      %2347 = vmatpush1.bf16.msra.mxu0 0
      %2348 = vmatprep.subr.bf16.mxu0 0
      %2349 = vmatpush1.bf16.msra.mxu0 0
      %2350 = vmatprep.subr.bf16.mxu0 0
      %2351 = vmatpush1.bf16.msra.mxu0 0
      %2352 = vmatprep.subr.bf16.mxu0 0
      %2353 = vmatpush1.bf16.msra.mxu0 0
      %2354 = vmatprep.subr.bf16.mxu0 0
      %2355 = vmatpush1.bf16.msra.mxu0 0
      %2356 = vmatprep.subr.bf16.mxu0 0
      %2357 = vmatpush1.bf16.msra.mxu0 0
      %2358 = vmatprep.subr.bf16.mxu0 0
      %2359 = vmatpush1.bf16.msra.mxu0 0
      %2360 = vmatprep.mubr.bf16.mxu0 0
      %2361 = vmatmul.mubr.bf16.gmra.mrb[0].mxu0 %v2278
      %v2362 = vpop.f32.mrb[0].mxu0
      %v2363 = vadd.f32 0.0, %v2362
      %v2364 = vpop.f32.mrb[0].mxu0
      %v2365 = vpop.f32.mrb[0].mxu0
      %v2366 = vadd.f32 0.0, %v2365
      %v2367 = vpop.f32.mrb[0].mxu0
      %2368 = vmatprep.mubr.bf16.mxu0 0
      %2369 = vmatmul.mubr.bf16.gmra.mrb[0].mxu0 %v2281
      %v2370 = vpop.f32.mrb[0].mxu0
      %v2371 = vadd.f32 0.0, %v2370
      %v2372 = vpop.f32.mrb[0].mxu0
      %v2373 = vpop.f32.mrb[0].mxu0
      %v2374 = vadd.f32 0.0, %v2373
      %v2375 = vpop.f32.mrb[0].mxu0
      %2376 = vmatprep.mubr.bf16.mxu0 0
      %2377 = vmatmul.mubr.bf16.gmra.mrb[0].mxu0 %v2284
      %v2378 = vpop.f32.mrb[0].mxu0
      %v2379 = vadd.f32 0.0, %v2378
      %v2380 = vpop.f32.mrb[0].mxu0
      %v2381 = vpop.f32.mrb[0].mxu0
      %v2382 = vadd.f32 0.0, %v2381
      %v2383 = vpop.f32.mrb[0].mxu0
      %2384 = vmatprep.mubr.bf16.mxu0 0
      %2385 = vmatmul.mubr.bf16.gmra.mrb[0].mxu0 %v2287
      %v2386 = vpop.f32.mrb[0].mxu0
      %v2387 = vadd.f32 0.0, %v2386
      %v2388 = vpop.f32.mrb[0].mxu0
      %v2389 = vpop.f32.mrb[0].mxu0
      %v2390 = vadd.f32 0.0, %v2389
      %v2391 = vpop.f32.mrb[0].mxu0
      %2392 = vmatprep.mubr.bf16.mxu0 0
      %2393 = vmatmul.mubr.bf16.gmra.mrb[0].mxu0 %v2290
      %v2394 = vpop.f32.mrb[0].mxu0
      %v2395 = vadd.f32 0.0, %v2394
      %v2396 = vpop.f32.mrb[0].mxu0
      %v2397 = vpop.f32.mrb[0].mxu0
      %v2398 = vadd.f32 0.0, %v2397
      %v2399 = vpop.f32.mrb[0].mxu0
      %2400 = vmatprep.mubr.bf16.mxu0 0
      %2401 = vmatmul.mubr.bf16.gmra.mrb[0].mxu0 %v2293
      %v2402 = vpop.f32.mrb[0].mxu0
      %v2403 = vadd.f32 0.0, %v2402
      %v2404 = vpop.f32.mrb[0].mxu0
      %v2405 = vpop.f32.mrb[0].mxu0
      %v2406 = vadd.f32 0.0, %v2405
      %v2407 = vpop.f32.mrb[0].mxu0
      %2408 = vmatprep.mubr.bf16.mxu0 0
      %2409 = vmatmul.mubr.bf16.gmra.mrb[0].mxu0 %v2296
      %v2410 = vpop.f32.mrb[0].mxu0
      %v2411 = vadd.f32 0.0, %v2410
      %v2412 = vpop.f32.mrb[0].mxu0
      %v2413 = vpop.f32.mrb[0].mxu0
      %v2414 = vadd.f32 0.0, %v2413
      %v2415 = vpop.f32.mrb[0].mxu0
      %2416 = vmatprep.mubr.bf16.mxu0 0
      %2417 = vmatmul.mubr.bf16.gmra.mrb[0].mxu0 %v2299
      %v2418 = vpop.f32.mrb[0].mxu0
      %v2419 = vadd.f32 0.0, %v2418
      %v2420 = vpop.f32.mrb[0].mxu0
      %v2421 = vpop.f32.mrb[0].mxu0
      %v2422 = vadd.f32 0.0, %v2421
      %v2423 = vpop.f32.mrb[0].mxu0
      %2424 = vmatprep.mubr.bf16.mxu0 0
      %2425 = vmatmul.mubr.bf16.gmra.mrb[0].mxu0 %v2302
      %v2426 = vpop.f32.mrb[0].mxu0
      %v2427 = vadd.f32 0.0, %v2426
      %v2428 = vpop.f32.mrb[0].mxu0
      %v2429 = vpop.f32.mrb[0].mxu0
      %v2430 = vadd.f32 0.0, %v2429
      %v2431 = vpop.f32.mrb[0].mxu0
      %2432 = vmatprep.mubr.bf16.mxu0 0
      %2433 = vmatmul.mubr.bf16.gmra.mrb[0].mxu0 %v2305
      %v2434 = vpop.f32.mrb[0].mxu0
      %v2435 = vadd.f32 0.0, %v2434
      %v2436 = vpop.f32.mrb[0].mxu0
      %v2437 = vpop.f32.mrb[0].mxu0
      %v2438 = vadd.f32 0.0, %v2437
      %v2439 = vpop.f32.mrb[0].mxu0
      %2440 = vmatprep.mubr.bf16.mxu0 0
      %2441 = vmatmul.mubr.bf16.gmra.mrb[0].mxu0 %v2308
      %v2442 = vpop.f32.mrb[0].mxu0
      %v2443 = vadd.f32 0.0, %v2442
      %v2444 = vpop.f32.mrb[0].mxu0
      %v2445 = vpop.f32.mrb[0].mxu0
      %v2446 = vadd.f32 0.0, %v2445
      %v2447 = vpop.f32.mrb[0].mxu0
      %2448 = vmatprep.mubr.bf16.mxu0 0
      %2449 = vmatmul.mubr.bf16.gmra.mrb[0].mxu0 %v2311
      %v2450 = vpop.f32.mrb[0].mxu0
      %v2451 = vadd.f32 0.0, %v2450
      %v2452 = vpop.f32.mrb[0].mxu0
      %v2453 = vpop.f32.mrb[0].mxu0
      %v2454 = vadd.f32 0.0, %v2453
      %v2455 = vpop.f32.mrb[0].mxu0
      %2456 = vmatprep.mubr.bf16.mxu0 0
      %2457 = vmatmul.mubr.bf16.gmra.mrb[0].mxu0 %v2314
      %v2458 = vpop.f32.mrb[0].mxu0
      %v2459 = vadd.f32 0.0, %v2458
      %v2460 = vpop.f32.mrb[0].mxu0
      %v2461 = vpop.f32.mrb[0].mxu0
      %v2462 = vadd.f32 0.0, %v2461
      %v2463 = vpop.f32.mrb[0].mxu0
      %2464 = vmatprep.mubr.bf16.mxu0 0
      %2465 = vmatmul.mubr.bf16.gmra.mrb[0].mxu0 %v2317
      %v2466 = vpop.f32.mrb[0].mxu0
      %v2467 = vadd.f32 0.0, %v2466
      %v2468 = vpop.f32.mrb[0].mxu0
      %v2469 = vpop.f32.mrb[0].mxu0
      %v2470 = vadd.f32 0.0, %v2469
      %v2471 = vpop.f32.mrb[0].mxu0
      %2472 = vmatprep.mubr.bf16.mxu0 0
      %2473 = vmatmul.mubr.bf16.gmra.mrb[0].mxu0 %v2320
      %v2474 = vpop.f32.mrb[0].mxu0
      %v2475 = vadd.f32 0.0, %v2474
      %v2476 = vpop.f32.mrb[0].mxu0
      %v2477 = vpop.f32.mrb[0].mxu0
      %v2478 = vadd.f32 0.0, %v2477
      %v2479 = vpop.f32.mrb[0].mxu0
      %2480 = vmatprep.mubr.bf16.mxu0 0
      %2481 = vmatmul.mubr.bf16.gmra.mrb[0].mxu0 %v2323
      %v2482 = vpop.f32.mrb[0].mxu0
      %v2483 = vadd.f32 0.0, %v2482
      %v2484 = vpop.f32.mrb[0].mxu0
      %v2485 = vpop.f32.mrb[0].mxu0
      %v2486 = vadd.f32 0.0, %v2485
      %v2487 = vpop.f32.mrb[0].mxu0
      %2488 = vdwg.mxu0
      %v2489 = vadd.f32 %v2163, %v2363
      %v2490 = vadd.f32 %v2164, %v2366
      %v2491 = vadd.f32 %v2165, %v2371
      %v2492 = vadd.f32 %v2166, %v2374
      %v2493 = vadd.f32 %v2167, %v2379
      %v2494 = vadd.f32 %v2168, %v2382
      %v2495 = vadd.f32 %v2169, %v2387
      %v2496 = vadd.f32 %v2170, %v2390
      %v2497 = vadd.f32 %v2171, %v2395
      %v2498 = vadd.f32 %v2172, %v2398
      %v2499 = vadd.f32 %v2173, %v2403
      %v2500 = vadd.f32 %v2174, %v2406
      %v2501 = vadd.f32 %v2175, %v2411
      %v2502 = vadd.f32 %v2176, %v2414
      %v2503 = vadd.f32 %v2177, %v2419
      %v2504 = vadd.f32 %v2178, %v2422
      %v2505 = vadd.f32 %v2179, %v2427
      %v2506 = vadd.f32 %v2180, %v2430
      %v2507 = vadd.f32 %v2181, %v2435
      %v2508 = vadd.f32 %v2182, %v2438
      %v2509 = vadd.f32 %v2183, %v2443
      %v2510 = vadd.f32 %v2184, %v2446
      %v2511 = vadd.f32 %v2185, %v2451
      %v2512 = vadd.f32 %v2186, %v2454
      %v2513 = vadd.f32 %v2187, %v2459
      %v2514 = vadd.f32 %v2188, %v2462
      %v2515 = vadd.f32 %v2189, %v2467
      %v2516 = vadd.f32 %v2190, %v2470
      %v2517 = vadd.f32 %v2191, %v2475
      %v2518 = vadd.f32 %v2192, %v2478
      %v2519 = vadd.f32 %v2193, %v2483
      %v2520 = vadd.f32 %v2194, %v2486
      %s2521 = scalar_lea.vmem [#allocation2], 80
      %v2522 = vld [vmem:[%s2521] ss:$2 sm:$0xff]
      %s2523 = scalar_lea.vmem %s2521, 16 [#allocation2]
      %v2524 = vld [vmem:[%s2523] ss:$2 sm:$0xff]
      %s2525 = scalar_lea.vmem %s2521, 80 [#allocation2]
      %v2526 = vld [vmem:[%s2525] ss:$2 sm:$0xff]
      %s2527 = scalar_lea.vmem %s2521, 96 [#allocation2]
      %v2528 = vld [vmem:[%s2527] ss:$2 sm:$0xff]
      %s2529 = scalar_lea.vmem %s2521, 160 [#allocation2]
      %v2530 = vld [vmem:[%s2529] ss:$2 sm:$0xff]
      %s2531 = scalar_lea.vmem %s2521, 176 [#allocation2]
      %v2532 = vld [vmem:[%s2531] ss:$2 sm:$0xff]
      %s2533 = scalar_lea.vmem %s2521, 240 [#allocation2]
      %v2534 = vld [vmem:[%s2533] ss:$2 sm:$0xff]
      %s2535 = scalar_lea.vmem %s2521, 256 [#allocation2]
      %v2536 = vld [vmem:[%s2535] ss:$2 sm:$0xff]
      %s2537 = scalar_lea.vmem %s2521, 320 [#allocation2]
      %v2538 = vld [vmem:[%s2537] ss:$2 sm:$0xff]
      %s2539 = scalar_lea.vmem %s2521, 336 [#allocation2]
      %v2540 = vld [vmem:[%s2539] ss:$2 sm:$0xff]
      %s2541 = scalar_lea.vmem %s2521, 400 [#allocation2]
      %v2542 = vld [vmem:[%s2541] ss:$2 sm:$0xff]
      %s2543 = scalar_lea.vmem %s2521, 416 [#allocation2]
      %v2544 = vld [vmem:[%s2543] ss:$2 sm:$0xff]
      %s2545 = scalar_lea.vmem %s2521, 480 [#allocation2]
      %v2546 = vld [vmem:[%s2545] ss:$2 sm:$0xff]
      %s2547 = scalar_lea.vmem %s2521, 496 [#allocation2]
      %v2548 = vld [vmem:[%s2547] ss:$2 sm:$0xff]
      %s2549 = scalar_lea.vmem %s2521, 560 [#allocation2]
      %v2550 = vld [vmem:[%s2549] ss:$2 sm:$0xff]
      %s2551 = scalar_lea.vmem %s2521, 576 [#allocation2]
      %v2552 = vld [vmem:[%s2551] ss:$2 sm:$0xff]
      %s2553 = scalar_lea.vmem %s2521, 640 [#allocation2]
      %v2554 = vld [vmem:[%s2553] ss:$2 sm:$0xff]
      %s2555 = scalar_lea.vmem %s2521, 656 [#allocation2]
      %v2556 = vld [vmem:[%s2555] ss:$2 sm:$0xff]
      %s2557 = scalar_lea.vmem %s2521, 720 [#allocation2]
      %v2558 = vld [vmem:[%s2557] ss:$2 sm:$0xff]
      %s2559 = scalar_lea.vmem %s2521, 736 [#allocation2]
      %v2560 = vld [vmem:[%s2559] ss:$2 sm:$0xff]
      %s2561 = scalar_lea.vmem %s2521, 800 [#allocation2]
      %v2562 = vld [vmem:[%s2561] ss:$2 sm:$0xff]
      %s2563 = scalar_lea.vmem %s2521, 816 [#allocation2]
      %v2564 = vld [vmem:[%s2563] ss:$2 sm:$0xff]
      %s2565 = scalar_lea.vmem %s2521, 880 [#allocation2]
      %v2566 = vld [vmem:[%s2565] ss:$2 sm:$0xff]
      %s2567 = scalar_lea.vmem %s2521, 896 [#allocation2]
      %v2568 = vld [vmem:[%s2567] ss:$2 sm:$0xff]
      %s2569 = scalar_lea.vmem %s2521, 960 [#allocation2]
      %v2570 = vld [vmem:[%s2569] ss:$2 sm:$0xff]
      %s2571 = scalar_lea.vmem %s2521, 976 [#allocation2]
      %v2572 = vld [vmem:[%s2571] ss:$2 sm:$0xff]
      %s2573 = scalar_lea.vmem %s2521, 1040 [#allocation2]
      %v2574 = vld [vmem:[%s2573] ss:$2 sm:$0xff]
      %s2575 = scalar_lea.vmem %s2521, 1056 [#allocation2]
      %v2576 = vld [vmem:[%s2575] ss:$2 sm:$0xff]
      %s2577 = scalar_lea.vmem %s2521, 1120 [#allocation2]
      %v2578 = vld [vmem:[%s2577] ss:$2 sm:$0xff]
      %s2579 = scalar_lea.vmem %s2521, 1136 [#allocation2]
      %v2580 = vld [vmem:[%s2579] ss:$2 sm:$0xff]
      %s2581 = scalar_lea.vmem %s2521, 1200 [#allocation2]
      %v2582 = vld [vmem:[%s2581] ss:$2 sm:$0xff]
      %s2583 = scalar_lea.vmem %s2521, 1216 [#allocation2]
      %v2584 = vld [vmem:[%s2583] ss:$2 sm:$0xff]
      %v2585 = vpack.c.bf16 %v2524, %v2522
      %v2586 = vpack.c.bf16 %v2528, %v2526
      %v2587 = vpack.c.bf16 %v2532, %v2530
      %v2588 = vpack.c.bf16 %v2536, %v2534
      %v2589 = vpack.c.bf16 %v2540, %v2538
      %v2590 = vpack.c.bf16 %v2544, %v2542
      %v2591 = vpack.c.bf16 %v2548, %v2546
      %v2592 = vpack.c.bf16 %v2552, %v2550
      %v2593 = vpack.c.bf16 %v2556, %v2554
      %v2594 = vpack.c.bf16 %v2560, %v2558
      %v2595 = vpack.c.bf16 %v2564, %v2562
      %v2596 = vpack.c.bf16 %v2568, %v2566
      %v2597 = vpack.c.bf16 %v2572, %v2570
      %v2598 = vpack.c.bf16 %v2576, %v2574
      %v2599 = vpack.c.bf16 %v2580, %v2578
      %v2600 = vpack.c.bf16 %v2584, %v2582
      %s2601 = scalar_lea.vmem %s1, 12
      %v2602 = vld [vmem:[%s2601] sm:$0x3]
      %v2604 = vsel %vm199, %v2585, 0
      %v2607 = vsel %vm199, %v2586, 0
      %v2610 = vsel %vm199, %v2587, 0
      %v2613 = vsel %vm199, %v2588, 0
      %v2616 = vsel %vm199, %v2589, 0
      %v2619 = vsel %vm199, %v2590, 0
      %v2622 = vsel %vm199, %v2591, 0
      %v2625 = vsel %vm199, %v2592, 0
      %v2628 = vsel %vm199, %v2593, 0
      %v2631 = vsel %vm199, %v2594, 0
      %v2634 = vsel %vm199, %v2595, 0
      %v2637 = vsel %vm199, %v2596, 0
      %v2640 = vsel %vm199, %v2597, 0
      %v2643 = vsel %vm199, %v2598, 0
      %v2646 = vsel %vm199, %v2599, 0
      %v2649 = vsel %vm199, %v2600, 0
      %v2652 = vand.u32 %v2602, %v841
      %2654 = vmatprep.subr.bf16.mxu0 0
      %2655 = vmatpush1.bf16.msra.mxu0 %v2652
      %2656 = vmatprep.subr.bf16.mxu0 0
      %2657 = vmatpush1.bf16.msra.mxu0 0
      %2658 = vmatprep.subr.bf16.mxu0 0
      %2659 = vmatpush1.bf16.msra.mxu0 0
      %2660 = vmatprep.subr.bf16.mxu0 0
      %2661 = vmatpush1.bf16.msra.mxu0 0
      %2662 = vmatprep.subr.bf16.mxu0 0
      %2663 = vmatpush1.bf16.msra.mxu0 0
      %2664 = vmatprep.subr.bf16.mxu0 0
      %2665 = vmatpush1.bf16.msra.mxu0 0
      %2666 = vmatprep.subr.bf16.mxu0 0
      %2667 = vmatpush1.bf16.msra.mxu0 0
      %2668 = vmatprep.subr.bf16.mxu0 0
      %2669 = vmatpush1.bf16.msra.mxu0 0
      %2670 = vmatprep.subr.bf16.mxu0 0
      %2671 = vmatpush1.bf16.msra.mxu0 0
      %2672 = vmatprep.subr.bf16.mxu0 0
      %2673 = vmatpush1.bf16.msra.mxu0 0
      %2674 = vmatprep.subr.bf16.mxu0 0
      %2675 = vmatpush1.bf16.msra.mxu0 0
      %2676 = vmatprep.subr.bf16.mxu0 0
      %2677 = vmatpush1.bf16.msra.mxu0 0
      %2678 = vmatprep.subr.bf16.mxu0 0
      %2679 = vmatpush1.bf16.msra.mxu0 0
      %2680 = vmatprep.subr.bf16.mxu0 0
      %2681 = vmatpush1.bf16.msra.mxu0 0
      %2682 = vmatprep.subr.bf16.mxu0 0
      %2683 = vmatpush1.bf16.msra.mxu0 0
      %2684 = vmatprep.subr.bf16.mxu0 0
      %2685 = vmatpush1.bf16.msra.mxu0 0
      %2686 = vmatprep.mubr.bf16.mxu0 0
      %2687 = vmatmul.mubr.bf16.gmra.mrb[0].mxu0 %v2604
      %v2688 = vpop.f32.mrb[0].mxu0
      %v2689 = vadd.f32 0.0, %v2688
      %v2690 = vpop.f32.mrb[0].mxu0
      %v2691 = vpop.f32.mrb[0].mxu0
      %v2692 = vadd.f32 0.0, %v2691
      %v2693 = vpop.f32.mrb[0].mxu0
      %2694 = vmatprep.mubr.bf16.mxu0 0
      %2695 = vmatmul.mubr.bf16.gmra.mrb[0].mxu0 %v2607
      %v2696 = vpop.f32.mrb[0].mxu0
      %v2697 = vadd.f32 0.0, %v2696
      %v2698 = vpop.f32.mrb[0].mxu0
      %v2699 = vpop.f32.mrb[0].mxu0
      %v2700 = vadd.f32 0.0, %v2699
      %v2701 = vpop.f32.mrb[0].mxu0
      %2702 = vmatprep.mubr.bf16.mxu0 0
      %2703 = vmatmul.mubr.bf16.gmra.mrb[0].mxu0 %v2610
      %v2704 = vpop.f32.mrb[0].mxu0
      %v2705 = vadd.f32 0.0, %v2704
      %v2706 = vpop.f32.mrb[0].mxu0
      %v2707 = vpop.f32.mrb[0].mxu0
      %v2708 = vadd.f32 0.0, %v2707
      %v2709 = vpop.f32.mrb[0].mxu0
      %2710 = vmatprep.mubr.bf16.mxu0 0
      %2711 = vmatmul.mubr.bf16.gmra.mrb[0].mxu0 %v2613
      %v2712 = vpop.f32.mrb[0].mxu0
      %v2713 = vadd.f32 0.0, %v2712
      %v2714 = vpop.f32.mrb[0].mxu0
      %v2715 = vpop.f32.mrb[0].mxu0
      %v2716 = vadd.f32 0.0, %v2715
      %v2717 = vpop.f32.mrb[0].mxu0
      %2718 = vmatprep.mubr.bf16.mxu0 0
      %2719 = vmatmul.mubr.bf16.gmra.mrb[0].mxu0 %v2616
      %v2720 = vpop.f32.mrb[0].mxu0
      %v2721 = vadd.f32 0.0, %v2720
      %v2722 = vpop.f32.mrb[0].mxu0
      %v2723 = vpop.f32.mrb[0].mxu0
      %v2724 = vadd.f32 0.0, %v2723
      %v2725 = vpop.f32.mrb[0].mxu0
      %2726 = vmatprep.mubr.bf16.mxu0 0
      %2727 = vmatmul.mubr.bf16.gmra.mrb[0].mxu0 %v2619
      %v2728 = vpop.f32.mrb[0].mxu0
      %v2729 = vadd.f32 0.0, %v2728
      %v2730 = vpop.f32.mrb[0].mxu0
      %v2731 = vpop.f32.mrb[0].mxu0
      %v2732 = vadd.f32 0.0, %v2731
      %v2733 = vpop.f32.mrb[0].mxu0
      %2734 = vmatprep.mubr.bf16.mxu0 0
      %2735 = vmatmul.mubr.bf16.gmra.mrb[0].mxu0 %v2622
      %v2736 = vpop.f32.mrb[0].mxu0
      %v2737 = vadd.f32 0.0, %v2736
      %v2738 = vpop.f32.mrb[0].mxu0
      %v2739 = vpop.f32.mrb[0].mxu0
      %v2740 = vadd.f32 0.0, %v2739
      %v2741 = vpop.f32.mrb[0].mxu0
      %2742 = vmatprep.mubr.bf16.mxu0 0
      %2743 = vmatmul.mubr.bf16.gmra.mrb[0].mxu0 %v2625
      %v2744 = vpop.f32.mrb[0].mxu0
      %v2745 = vadd.f32 0.0, %v2744
      %v2746 = vpop.f32.mrb[0].mxu0
      %v2747 = vpop.f32.mrb[0].mxu0
      %v2748 = vadd.f32 0.0, %v2747
      %v2749 = vpop.f32.mrb[0].mxu0
      %2750 = vmatprep.mubr.bf16.mxu0 0
      %2751 = vmatmul.mubr.bf16.gmra.mrb[0].mxu0 %v2628
      %v2752 = vpop.f32.mrb[0].mxu0
      %v2753 = vadd.f32 0.0, %v2752
      %v2754 = vpop.f32.mrb[0].mxu0
      %v2755 = vpop.f32.mrb[0].mxu0
      %v2756 = vadd.f32 0.0, %v2755
      %v2757 = vpop.f32.mrb[0].mxu0
      %2758 = vmatprep.mubr.bf16.mxu0 0
      %2759 = vmatmul.mubr.bf16.gmra.mrb[0].mxu0 %v2631
      %v2760 = vpop.f32.mrb[0].mxu0
      %v2761 = vadd.f32 0.0, %v2760
      %v2762 = vpop.f32.mrb[0].mxu0
      %v2763 = vpop.f32.mrb[0].mxu0
      %v2764 = vadd.f32 0.0, %v2763
      %v2765 = vpop.f32.mrb[0].mxu0
      %2766 = vmatprep.mubr.bf16.mxu0 0
      %2767 = vmatmul.mubr.bf16.gmra.mrb[0].mxu0 %v2634
      %v2768 = vpop.f32.mrb[0].mxu0
      %v2769 = vadd.f32 0.0, %v2768
      %v2770 = vpop.f32.mrb[0].mxu0
      %v2771 = vpop.f32.mrb[0].mxu0
      %v2772 = vadd.f32 0.0, %v2771
      %v2773 = vpop.f32.mrb[0].mxu0
      %2774 = vmatprep.mubr.bf16.mxu0 0
      %2775 = vmatmul.mubr.bf16.gmra.mrb[0].mxu0 %v2637
      %v2776 = vpop.f32.mrb[0].mxu0
      %v2777 = vadd.f32 0.0, %v2776
      %v2778 = vpop.f32.mrb[0].mxu0
      %v2779 = vpop.f32.mrb[0].mxu0
      %v2780 = vadd.f32 0.0, %v2779
      %v2781 = vpop.f32.mrb[0].mxu0
      %2782 = vmatprep.mubr.bf16.mxu0 0
      %2783 = vmatmul.mubr.bf16.gmra.mrb[0].mxu0 %v2640
      %v2784 = vpop.f32.mrb[0].mxu0
      %v2785 = vadd.f32 0.0, %v2784
      %v2786 = vpop.f32.mrb[0].mxu0
      %v2787 = vpop.f32.mrb[0].mxu0
      %v2788 = vadd.f32 0.0, %v2787
      %v2789 = vpop.f32.mrb[0].mxu0
      %2790 = vmatprep.mubr.bf16.mxu0 0
      %2791 = vmatmul.mubr.bf16.gmra.mrb[0].mxu0 %v2643
      %v2792 = vpop.f32.mrb[0].mxu0
      %v2793 = vadd.f32 0.0, %v2792
      %v2794 = vpop.f32.mrb[0].mxu0
      %v2795 = vpop.f32.mrb[0].mxu0
      %v2796 = vadd.f32 0.0, %v2795
      %v2797 = vpop.f32.mrb[0].mxu0
      %2798 = vmatprep.mubr.bf16.mxu0 0
      %2799 = vmatmul.mubr.bf16.gmra.mrb[0].mxu0 %v2646
      %v2800 = vpop.f32.mrb[0].mxu0
      %v2801 = vadd.f32 0.0, %v2800
      %v2802 = vpop.f32.mrb[0].mxu0
      %v2803 = vpop.f32.mrb[0].mxu0
      %v2804 = vadd.f32 0.0, %v2803
      %v2805 = vpop.f32.mrb[0].mxu0
      %2806 = vmatprep.mubr.bf16.mxu0 0
      %2807 = vmatmul.mubr.bf16.gmra.mrb[0].mxu0 %v2649
      %v2808 = vpop.f32.mrb[0].mxu0
      %v2809 = vadd.f32 0.0, %v2808
      %v2810 = vpop.f32.mrb[0].mxu0
      %v2811 = vpop.f32.mrb[0].mxu0
      %v2812 = vadd.f32 0.0, %v2811
      %v2813 = vpop.f32.mrb[0].mxu0
      %2814 = vdwg.mxu0
      %v2815 = vadd.f32 %v2489, %v2689
      %v2816 = vadd.f32 %v2490, %v2692
      %v2817 = vadd.f32 %v2491, %v2697
      %v2818 = vadd.f32 %v2492, %v2700
      %v2819 = vadd.f32 %v2493, %v2705
      %v2820 = vadd.f32 %v2494, %v2708
      %v2821 = vadd.f32 %v2495, %v2713
      %v2822 = vadd.f32 %v2496, %v2716
      %v2823 = vadd.f32 %v2497, %v2721
      %v2824 = vadd.f32 %v2498, %v2724
      %v2825 = vadd.f32 %v2499, %v2729
      %v2826 = vadd.f32 %v2500, %v2732
      %v2827 = vadd.f32 %v2501, %v2737
      %v2828 = vadd.f32 %v2502, %v2740
      %v2829 = vadd.f32 %v2503, %v2745
      %v2830 = vadd.f32 %v2504, %v2748
      %v2831 = vadd.f32 %v2505, %v2753
      %v2832 = vadd.f32 %v2506, %v2756
      %v2833 = vadd.f32 %v2507, %v2761
      %v2834 = vadd.f32 %v2508, %v2764
      %v2835 = vadd.f32 %v2509, %v2769
      %v2836 = vadd.f32 %v2510, %v2772
      %v2837 = vadd.f32 %v2511, %v2777
      %v2838 = vadd.f32 %v2512, %v2780
      %v2839 = vadd.f32 %v2513, %v2785
      %v2840 = vadd.f32 %v2514, %v2788
      %v2841 = vadd.f32 %v2515, %v2793
      %v2842 = vadd.f32 %v2516, %v2796
      %v2843 = vadd.f32 %v2517, %v2801
      %v2844 = vadd.f32 %v2518, %v2804
      %v2845 = vadd.f32 %v2519, %v2809
      %v2846 = vadd.f32 %v2520, %v2812
      %s2847 = scalar_lea.vmem %s2521, 1 [#allocation2]
      %v2848 = vld [vmem:[%s2847] ss:$2 sm:$0xff]
      %s2849 = scalar_lea.vmem %s2521, 17 [#allocation2]
      %v2850 = vld [vmem:[%s2849] ss:$2 sm:$0xff]
      %s2851 = scalar_lea.vmem %s2521, 81 [#allocation2]
      %v2852 = vld [vmem:[%s2851] ss:$2 sm:$0xff]
      %s2853 = scalar_lea.vmem %s2521, 97 [#allocation2]
      %v2854 = vld [vmem:[%s2853] ss:$2 sm:$0xff]
      %s2855 = scalar_lea.vmem %s2521, 161 [#allocation2]
      %v2856 = vld [vmem:[%s2855] ss:$2 sm:$0xff]
      %s2857 = scalar_lea.vmem %s2521, 177 [#allocation2]
      %v2858 = vld [vmem:[%s2857] ss:$2 sm:$0xff]
      %s2859 = scalar_lea.vmem %s2521, 241 [#allocation2]
      %v2860 = vld [vmem:[%s2859] ss:$2 sm:$0xff]
      %s2861 = scalar_lea.vmem %s2521, 257 [#allocation2]
      %v2862 = vld [vmem:[%s2861] ss:$2 sm:$0xff]
      %s2863 = scalar_lea.vmem %s2521, 321 [#allocation2]
      %v2864 = vld [vmem:[%s2863] ss:$2 sm:$0xff]
      %s2865 = scalar_lea.vmem %s2521, 337 [#allocation2]
      %v2866 = vld [vmem:[%s2865] ss:$2 sm:$0xff]
      %s2867 = scalar_lea.vmem %s2521, 401 [#allocation2]
      %v2868 = vld [vmem:[%s2867] ss:$2 sm:$0xff]
      %s2869 = scalar_lea.vmem %s2521, 417 [#allocation2]
      %v2870 = vld [vmem:[%s2869] ss:$2 sm:$0xff]
      %s2871 = scalar_lea.vmem %s2521, 481 [#allocation2]
      %v2872 = vld [vmem:[%s2871] ss:$2 sm:$0xff]
      %s2873 = scalar_lea.vmem %s2521, 497 [#allocation2]
      %v2874 = vld [vmem:[%s2873] ss:$2 sm:$0xff]
      %s2875 = scalar_lea.vmem %s2521, 561 [#allocation2]
      %v2876 = vld [vmem:[%s2875] ss:$2 sm:$0xff]
      %s2877 = scalar_lea.vmem %s2521, 577 [#allocation2]
      %v2878 = vld [vmem:[%s2877] ss:$2 sm:$0xff]
      %s2879 = scalar_lea.vmem %s2521, 641 [#allocation2]
      %v2880 = vld [vmem:[%s2879] ss:$2 sm:$0xff]
      %s2881 = scalar_lea.vmem %s2521, 657 [#allocation2]
      %v2882 = vld [vmem:[%s2881] ss:$2 sm:$0xff]
      %s2883 = scalar_lea.vmem %s2521, 721 [#allocation2]
      %v2884 = vld [vmem:[%s2883] ss:$2 sm:$0xff]
      %s2885 = scalar_lea.vmem %s2521, 737 [#allocation2]
      %v2886 = vld [vmem:[%s2885] ss:$2 sm:$0xff]
      %s2887 = scalar_lea.vmem %s2521, 801 [#allocation2]
      %v2888 = vld [vmem:[%s2887] ss:$2 sm:$0xff]
      %s2889 = scalar_lea.vmem %s2521, 817 [#allocation2]
      %v2890 = vld [vmem:[%s2889] ss:$2 sm:$0xff]
      %s2891 = scalar_lea.vmem %s2521, 881 [#allocation2]
      %v2892 = vld [vmem:[%s2891] ss:$2 sm:$0xff]
      %s2893 = scalar_lea.vmem %s2521, 897 [#allocation2]
      %v2894 = vld [vmem:[%s2893] ss:$2 sm:$0xff]
      %s2895 = scalar_lea.vmem %s2521, 961 [#allocation2]
      %v2896 = vld [vmem:[%s2895] ss:$2 sm:$0xff]
      %s2897 = scalar_lea.vmem %s2521, 977 [#allocation2]
      %v2898 = vld [vmem:[%s2897] ss:$2 sm:$0xff]
      %s2899 = scalar_lea.vmem %s2521, 1041 [#allocation2]
      %v2900 = vld [vmem:[%s2899] ss:$2 sm:$0xff]
      %s2901 = scalar_lea.vmem %s2521, 1057 [#allocation2]
      %v2902 = vld [vmem:[%s2901] ss:$2 sm:$0xff]
      %s2903 = scalar_lea.vmem %s2521, 1121 [#allocation2]
      %v2904 = vld [vmem:[%s2903] ss:$2 sm:$0xff]
      %s2905 = scalar_lea.vmem %s2521, 1137 [#allocation2]
      %v2906 = vld [vmem:[%s2905] ss:$2 sm:$0xff]
      %s2907 = scalar_lea.vmem %s2521, 1201 [#allocation2]
      %v2908 = vld [vmem:[%s2907] ss:$2 sm:$0xff]
      %s2909 = scalar_lea.vmem %s2521, 1217 [#allocation2]
      %v2910 = vld [vmem:[%s2909] ss:$2 sm:$0xff]
      %v2911 = vpack.c.bf16 %v2850, %v2848
      %v2912 = vpack.c.bf16 %v2854, %v2852
      %v2913 = vpack.c.bf16 %v2858, %v2856
      %v2914 = vpack.c.bf16 %v2862, %v2860
      %v2915 = vpack.c.bf16 %v2866, %v2864
      %v2916 = vpack.c.bf16 %v2870, %v2868
      %v2917 = vpack.c.bf16 %v2874, %v2872
      %v2918 = vpack.c.bf16 %v2878, %v2876
      %v2919 = vpack.c.bf16 %v2882, %v2880
      %v2920 = vpack.c.bf16 %v2886, %v2884
      %v2921 = vpack.c.bf16 %v2890, %v2888
      %v2922 = vpack.c.bf16 %v2894, %v2892
      %v2923 = vpack.c.bf16 %v2898, %v2896
      %v2924 = vpack.c.bf16 %v2902, %v2900
      %v2925 = vpack.c.bf16 %v2906, %v2904
      %v2926 = vpack.c.bf16 %v2910, %v2908
      %s2927 = scalar_lea.vmem %s1, 14
      %v2928 = vld [vmem:[%s2927] sm:$0x3]
      %v2930 = vsel %vm199, %v2911, 0
      %v2933 = vsel %vm199, %v2912, 0
      %v2936 = vsel %vm199, %v2913, 0
      %v2939 = vsel %vm199, %v2914, 0
      %v2942 = vsel %vm199, %v2915, 0
      %v2945 = vsel %vm199, %v2916, 0
      %v2948 = vsel %vm199, %v2917, 0
      %v2951 = vsel %vm199, %v2918, 0
      %v2954 = vsel %vm199, %v2919, 0
      %v2957 = vsel %vm199, %v2920, 0
      %v2960 = vsel %vm199, %v2921, 0
      %v2963 = vsel %vm199, %v2922, 0
      %v2966 = vsel %vm199, %v2923, 0
      %v2969 = vsel %vm199, %v2924, 0
      %v2972 = vsel %vm199, %v2925, 0
      %v2975 = vsel %vm199, %v2926, 0
      %v2978 = vand.u32 %v2928, %v841
      %2980 = vmatprep.subr.bf16.mxu0 0
      %2981 = vmatpush1.bf16.msra.mxu0 %v2978
      %2982 = vmatprep.subr.bf16.mxu0 0
      %2983 = vmatpush1.bf16.msra.mxu0 0
      %2984 = vmatprep.subr.bf16.mxu0 0
      %2985 = vmatpush1.bf16.msra.mxu0 0
      %2986 = vmatprep.subr.bf16.mxu0 0
      %2987 = vmatpush1.bf16.msra.mxu0 0
      %2988 = vmatprep.subr.bf16.mxu0 0
      %2989 = vmatpush1.bf16.msra.mxu0 0
      %2990 = vmatprep.subr.bf16.mxu0 0
      %2991 = vmatpush1.bf16.msra.mxu0 0
      %2992 = vmatprep.subr.bf16.mxu0 0
      %2993 = vmatpush1.bf16.msra.mxu0 0
      %2994 = vmatprep.subr.bf16.mxu0 0
      %2995 = vmatpush1.bf16.msra.mxu0 0
      %2996 = vmatprep.subr.bf16.mxu0 0
      %2997 = vmatpush1.bf16.msra.mxu0 0
      %2998 = vmatprep.subr.bf16.mxu0 0
      %2999 = vmatpush1.bf16.msra.mxu0 0
      %3000 = vmatprep.subr.bf16.mxu0 0
      %3001 = vmatpush1.bf16.msra.mxu0 0
      %3002 = vmatprep.subr.bf16.mxu0 0
      %3003 = vmatpush1.bf16.msra.mxu0 0
      %3004 = vmatprep.subr.bf16.mxu0 0
      %3005 = vmatpush1.bf16.msra.mxu0 0
      %3006 = vmatprep.subr.bf16.mxu0 0
      %3007 = vmatpush1.bf16.msra.mxu0 0
      %3008 = vmatprep.subr.bf16.mxu0 0
      %3009 = vmatpush1.bf16.msra.mxu0 0
      %3010 = vmatprep.subr.bf16.mxu0 0
      %3011 = vmatpush1.bf16.msra.mxu0 0
      %3012 = vmatprep.mubr.bf16.mxu0 0
      %3013 = vmatmul.mubr.bf16.gmra.mrb[0].mxu0 %v2930
      %v3014 = vpop.f32.mrb[0].mxu0
      %v3015 = vadd.f32 0.0, %v3014
      %v3016 = vpop.f32.mrb[0].mxu0
      %v3017 = vpop.f32.mrb[0].mxu0
      %v3018 = vadd.f32 0.0, %v3017
      %v3019 = vpop.f32.mrb[0].mxu0
      %3020 = vmatprep.mubr.bf16.mxu0 0
      %3021 = vmatmul.mubr.bf16.gmra.mrb[0].mxu0 %v2933
      %v3022 = vpop.f32.mrb[0].mxu0
      %v3023 = vadd.f32 0.0, %v3022
      %v3024 = vpop.f32.mrb[0].mxu0
      %v3025 = vpop.f32.mrb[0].mxu0
      %v3026 = vadd.f32 0.0, %v3025
      %v3027 = vpop.f32.mrb[0].mxu0
      %3028 = vmatprep.mubr.bf16.mxu0 0
      %3029 = vmatmul.mubr.bf16.gmra.mrb[0].mxu0 %v2936
      %v3030 = vpop.f32.mrb[0].mxu0
      %v3031 = vadd.f32 0.0, %v3030
      %v3032 = vpop.f32.mrb[0].mxu0
      %v3033 = vpop.f32.mrb[0].mxu0
      %v3034 = vadd.f32 0.0, %v3033
      %v3035 = vpop.f32.mrb[0].mxu0
      %3036 = vmatprep.mubr.bf16.mxu0 0
      %3037 = vmatmul.mubr.bf16.gmra.mrb[0].mxu0 %v2939
      %v3038 = vpop.f32.mrb[0].mxu0
      %v3039 = vadd.f32 0.0, %v3038
      %v3040 = vpop.f32.mrb[0].mxu0
      %v3041 = vpop.f32.mrb[0].mxu0
      %v3042 = vadd.f32 0.0, %v3041
      %v3043 = vpop.f32.mrb[0].mxu0
      %3044 = vmatprep.mubr.bf16.mxu0 0
      %3045 = vmatmul.mubr.bf16.gmra.mrb[0].mxu0 %v2942
      %v3046 = vpop.f32.mrb[0].mxu0
      %v3047 = vadd.f32 0.0, %v3046
      %v3048 = vpop.f32.mrb[0].mxu0
      %v3049 = vpop.f32.mrb[0].mxu0
      %v3050 = vadd.f32 0.0, %v3049
      %v3051 = vpop.f32.mrb[0].mxu0
      %3052 = vmatprep.mubr.bf16.mxu0 0
      %3053 = vmatmul.mubr.bf16.gmra.mrb[0].mxu0 %v2945
      %v3054 = vpop.f32.mrb[0].mxu0
      %v3055 = vadd.f32 0.0, %v3054
      %v3056 = vpop.f32.mrb[0].mxu0
      %v3057 = vpop.f32.mrb[0].mxu0
      %v3058 = vadd.f32 0.0, %v3057
      %v3059 = vpop.f32.mrb[0].mxu0
      %3060 = vmatprep.mubr.bf16.mxu0 0
      %3061 = vmatmul.mubr.bf16.gmra.mrb[0].mxu0 %v2948
      %v3062 = vpop.f32.mrb[0].mxu0
      %v3063 = vadd.f32 0.0, %v3062
      %v3064 = vpop.f32.mrb[0].mxu0
      %v3065 = vpop.f32.mrb[0].mxu0
      %v3066 = vadd.f32 0.0, %v3065
      %v3067 = vpop.f32.mrb[0].mxu0
      %3068 = vmatprep.mubr.bf16.mxu0 0
      %3069 = vmatmul.mubr.bf16.gmra.mrb[0].mxu0 %v2951
      %v3070 = vpop.f32.mrb[0].mxu0
      %v3071 = vadd.f32 0.0, %v3070
      %v3072 = vpop.f32.mrb[0].mxu0
      %v3073 = vpop.f32.mrb[0].mxu0
      %v3074 = vadd.f32 0.0, %v3073
      %v3075 = vpop.f32.mrb[0].mxu0
      %3076 = vmatprep.mubr.bf16.mxu0 0
      %3077 = vmatmul.mubr.bf16.gmra.mrb[0].mxu0 %v2954
      %v3078 = vpop.f32.mrb[0].mxu0
      %v3079 = vadd.f32 0.0, %v3078
      %v3080 = vpop.f32.mrb[0].mxu0
      %v3081 = vpop.f32.mrb[0].mxu0
      %v3082 = vadd.f32 0.0, %v3081
      %v3083 = vpop.f32.mrb[0].mxu0
      %3084 = vmatprep.mubr.bf16.mxu0 0
      %3085 = vmatmul.mubr.bf16.gmra.mrb[0].mxu0 %v2957
      %v3086 = vpop.f32.mrb[0].mxu0
      %v3087 = vadd.f32 0.0, %v3086
      %v3088 = vpop.f32.mrb[0].mxu0
      %v3089 = vpop.f32.mrb[0].mxu0
      %v3090 = vadd.f32 0.0, %v3089
      %v3091 = vpop.f32.mrb[0].mxu0
      %3092 = vmatprep.mubr.bf16.mxu0 0
      %3093 = vmatmul.mubr.bf16.gmra.mrb[0].mxu0 %v2960
      %v3094 = vpop.f32.mrb[0].mxu0
      %v3095 = vadd.f32 0.0, %v3094
      %v3096 = vpop.f32.mrb[0].mxu0
      %v3097 = vpop.f32.mrb[0].mxu0
      %v3098 = vadd.f32 0.0, %v3097
      %v3099 = vpop.f32.mrb[0].mxu0
      %3100 = vmatprep.mubr.bf16.mxu0 0
      %3101 = vmatmul.mubr.bf16.gmra.mrb[0].mxu0 %v2963
      %v3102 = vpop.f32.mrb[0].mxu0
      %v3103 = vadd.f32 0.0, %v3102
      %v3104 = vpop.f32.mrb[0].mxu0
      %v3105 = vpop.f32.mrb[0].mxu0
      %v3106 = vadd.f32 0.0, %v3105
      %v3107 = vpop.f32.mrb[0].mxu0
      %3108 = vmatprep.mubr.bf16.mxu0 0
      %3109 = vmatmul.mubr.bf16.gmra.mrb[0].mxu0 %v2966
      %v3110 = vpop.f32.mrb[0].mxu0
      %v3111 = vadd.f32 0.0, %v3110
      %v3112 = vpop.f32.mrb[0].mxu0
      %v3113 = vpop.f32.mrb[0].mxu0
      %v3114 = vadd.f32 0.0, %v3113
      %v3115 = vpop.f32.mrb[0].mxu0
      %3116 = vmatprep.mubr.bf16.mxu0 0
      %3117 = vmatmul.mubr.bf16.gmra.mrb[0].mxu0 %v2969
      %v3118 = vpop.f32.mrb[0].mxu0
      %v3119 = vadd.f32 0.0, %v3118
      %v3120 = vpop.f32.mrb[0].mxu0
      %v3121 = vpop.f32.mrb[0].mxu0
      %v3122 = vadd.f32 0.0, %v3121
      %v3123 = vpop.f32.mrb[0].mxu0
      %3124 = vmatprep.mubr.bf16.mxu0 0
      %3125 = vmatmul.mubr.bf16.gmra.mrb[0].mxu0 %v2972
      %v3126 = vpop.f32.mrb[0].mxu0
      %v3127 = vadd.f32 0.0, %v3126
      %v3128 = vpop.f32.mrb[0].mxu0
      %v3129 = vpop.f32.mrb[0].mxu0
      %v3130 = vadd.f32 0.0, %v3129
      %v3131 = vpop.f32.mrb[0].mxu0
      %3132 = vmatprep.mubr.bf16.mxu0 0
      %3133 = vmatmul.mubr.bf16.gmra.mrb[0].mxu0 %v2975
      %v3134 = vpop.f32.mrb[0].mxu0
      %v3135 = vadd.f32 0.0, %v3134
      %v3136 = vpop.f32.mrb[0].mxu0
      %v3137 = vpop.f32.mrb[0].mxu0
      %v3138 = vadd.f32 0.0, %v3137
      %v3139 = vpop.f32.mrb[0].mxu0
      %3140 = vdwg.mxu0
      %v3141 = vadd.f32 %v2815, %v3015
      %v3142 = vadd.f32 %v2816, %v3018
      %v3143 = vadd.f32 %v2817, %v3023
      %v3144 = vadd.f32 %v2818, %v3026
      %v3145 = vadd.f32 %v2819, %v3031
      %v3146 = vadd.f32 %v2820, %v3034
      %v3147 = vadd.f32 %v2821, %v3039
      %v3148 = vadd.f32 %v2822, %v3042
      %v3149 = vadd.f32 %v2823, %v3047
      %v3150 = vadd.f32 %v2824, %v3050
      %v3151 = vadd.f32 %v2825, %v3055
      %v3152 = vadd.f32 %v2826, %v3058
      %v3153 = vadd.f32 %v2827, %v3063
      %v3154 = vadd.f32 %v2828, %v3066
      %v3155 = vadd.f32 %v2829, %v3071
      %v3156 = vadd.f32 %v2830, %v3074
      %v3157 = vadd.f32 %v2831, %v3079
      %v3158 = vadd.f32 %v2832, %v3082
      %v3159 = vadd.f32 %v2833, %v3087
      %v3160 = vadd.f32 %v2834, %v3090
      %v3161 = vadd.f32 %v2835, %v3095
      %v3162 = vadd.f32 %v2836, %v3098
      %v3163 = vadd.f32 %v2837, %v3103
      %v3164 = vadd.f32 %v2838, %v3106
      %v3165 = vadd.f32 %v2839, %v3111
      %v3166 = vadd.f32 %v2840, %v3114
      %v3167 = vadd.f32 %v2841, %v3119
      %v3168 = vadd.f32 %v2842, %v3122
      %v3169 = vadd.f32 %v2843, %v3127
      %v3170 = vadd.f32 %v2844, %v3130
      %v3171 = vadd.f32 %v2845, %v3135
      %v3172 = vadd.f32 %v2846, %v3138
      %s3173 = scalar_lea.vmem %s2521, 2 [#allocation2]
      %v3174 = vld [vmem:[%s3173] ss:$2 sm:$0xff]
      %s3175 = scalar_lea.vmem %s2521, 18 [#allocation2]
      %v3176 = vld [vmem:[%s3175] ss:$2 sm:$0xff]
      %s3177 = scalar_lea.vmem %s2521, 82 [#allocation2]
      %v3178 = vld [vmem:[%s3177] ss:$2 sm:$0xff]
      %s3179 = scalar_lea.vmem %s2521, 98 [#allocation2]
      %v3180 = vld [vmem:[%s3179] ss:$2 sm:$0xff]
      %s3181 = scalar_lea.vmem %s2521, 162 [#allocation2]
      %v3182 = vld [vmem:[%s3181] ss:$2 sm:$0xff]
      %s3183 = scalar_lea.vmem %s2521, 178 [#allocation2]
      %v3184 = vld [vmem:[%s3183] ss:$2 sm:$0xff]
      %s3185 = scalar_lea.vmem %s2521, 242 [#allocation2]
      %v3186 = vld [vmem:[%s3185] ss:$2 sm:$0xff]
      %s3187 = scalar_lea.vmem %s2521, 258 [#allocation2]
      %v3188 = vld [vmem:[%s3187] ss:$2 sm:$0xff]
      %s3189 = scalar_lea.vmem %s2521, 322 [#allocation2]
      %v3190 = vld [vmem:[%s3189] ss:$2 sm:$0xff]
      %s3191 = scalar_lea.vmem %s2521, 338 [#allocation2]
      %v3192 = vld [vmem:[%s3191] ss:$2 sm:$0xff]
      %s3193 = scalar_lea.vmem %s2521, 402 [#allocation2]
      %v3194 = vld [vmem:[%s3193] ss:$2 sm:$0xff]
      %s3195 = scalar_lea.vmem %s2521, 418 [#allocation2]
      %v3196 = vld [vmem:[%s3195] ss:$2 sm:$0xff]
      %s3197 = scalar_lea.vmem %s2521, 482 [#allocation2]
      %v3198 = vld [vmem:[%s3197] ss:$2 sm:$0xff]
      %s3199 = scalar_lea.vmem %s2521, 498 [#allocation2]
      %v3200 = vld [vmem:[%s3199] ss:$2 sm:$0xff]
      %s3201 = scalar_lea.vmem %s2521, 562 [#allocation2]
      %v3202 = vld [vmem:[%s3201] ss:$2 sm:$0xff]
      %s3203 = scalar_lea.vmem %s2521, 578 [#allocation2]
      %v3204 = vld [vmem:[%s3203] ss:$2 sm:$0xff]
      %s3205 = scalar_lea.vmem %s2521, 642 [#allocation2]
      %v3206 = vld [vmem:[%s3205] ss:$2 sm:$0xff]
      %s3207 = scalar_lea.vmem %s2521, 658 [#allocation2]
      %v3208 = vld [vmem:[%s3207] ss:$2 sm:$0xff]
      %s3209 = scalar_lea.vmem %s2521, 722 [#allocation2]
      %v3210 = vld [vmem:[%s3209] ss:$2 sm:$0xff]
      %s3211 = scalar_lea.vmem %s2521, 738 [#allocation2]
      %v3212 = vld [vmem:[%s3211] ss:$2 sm:$0xff]
      %s3213 = scalar_lea.vmem %s2521, 802 [#allocation2]
      %v3214 = vld [vmem:[%s3213] ss:$2 sm:$0xff]
      %s3215 = scalar_lea.vmem %s2521, 818 [#allocation2]
      %v3216 = vld [vmem:[%s3215] ss:$2 sm:$0xff]
      %s3217 = scalar_lea.vmem %s2521, 882 [#allocation2]
      %v3218 = vld [vmem:[%s3217] ss:$2 sm:$0xff]
      %s3219 = scalar_lea.vmem %s2521, 898 [#allocation2]
      %v3220 = vld [vmem:[%s3219] ss:$2 sm:$0xff]
      %s3221 = scalar_lea.vmem %s2521, 962 [#allocation2]
      %v3222 = vld [vmem:[%s3221] ss:$2 sm:$0xff]
      %s3223 = scalar_lea.vmem %s2521, 978 [#allocation2]
      %v3224 = vld [vmem:[%s3223] ss:$2 sm:$0xff]
      %s3225 = scalar_lea.vmem %s2521, 1042 [#allocation2]
      %v3226 = vld [vmem:[%s3225] ss:$2 sm:$0xff]
      %s3227 = scalar_lea.vmem %s2521, 1058 [#allocation2]
      %v3228 = vld [vmem:[%s3227] ss:$2 sm:$0xff]
      %s3229 = scalar_lea.vmem %s2521, 1122 [#allocation2]
      %v3230 = vld [vmem:[%s3229] ss:$2 sm:$0xff]
      %s3231 = scalar_lea.vmem %s2521, 1138 [#allocation2]
      %v3232 = vld [vmem:[%s3231] ss:$2 sm:$0xff]
      %s3233 = scalar_lea.vmem %s2521, 1202 [#allocation2]
      %v3234 = vld [vmem:[%s3233] ss:$2 sm:$0xff]
      %s3235 = scalar_lea.vmem %s2521, 1218 [#allocation2]
      %v3236 = vld [vmem:[%s3235] ss:$2 sm:$0xff]
      %v3237 = vpack.c.bf16 %v3176, %v3174
      %v3238 = vpack.c.bf16 %v3180, %v3178
      %v3239 = vpack.c.bf16 %v3184, %v3182
      %v3240 = vpack.c.bf16 %v3188, %v3186
      %v3241 = vpack.c.bf16 %v3192, %v3190
      %v3242 = vpack.c.bf16 %v3196, %v3194
      %v3243 = vpack.c.bf16 %v3200, %v3198
      %v3244 = vpack.c.bf16 %v3204, %v3202
      %v3245 = vpack.c.bf16 %v3208, %v3206
      %v3246 = vpack.c.bf16 %v3212, %v3210
      %v3247 = vpack.c.bf16 %v3216, %v3214
      %v3248 = vpack.c.bf16 %v3220, %v3218
      %v3249 = vpack.c.bf16 %v3224, %v3222
      %v3250 = vpack.c.bf16 %v3228, %v3226
      %v3251 = vpack.c.bf16 %v3232, %v3230
      %v3252 = vpack.c.bf16 %v3236, %v3234
      %s3253 = scalar_lea.vmem %s1, 16
      %v3254 = vld [vmem:[%s3253] sm:$0x3]
      %v3256 = vsel %vm199, %v3237, 0
      %v3259 = vsel %vm199, %v3238, 0
      %v3262 = vsel %vm199, %v3239, 0
      %v3265 = vsel %vm199, %v3240, 0
      %v3268 = vsel %vm199, %v3241, 0
      %v3271 = vsel %vm199, %v3242, 0
      %v3274 = vsel %vm199, %v3243, 0
      %v3277 = vsel %vm199, %v3244, 0
      %v3280 = vsel %vm199, %v3245, 0
      %v3283 = vsel %vm199, %v3246, 0
      %v3286 = vsel %vm199, %v3247, 0
      %v3289 = vsel %vm199, %v3248, 0
      %v3292 = vsel %vm199, %v3249, 0
      %v3295 = vsel %vm199, %v3250, 0
      %v3298 = vsel %vm199, %v3251, 0
      %v3301 = vsel %vm199, %v3252, 0
      %v3304 = vand.u32 %v3254, %v841
      %3306 = vmatprep.subr.bf16.mxu0 0
      %3307 = vmatpush1.bf16.msra.mxu0 %v3304
      %3308 = vmatprep.subr.bf16.mxu0 0
      %3309 = vmatpush1.bf16.msra.mxu0 0
      %3310 = vmatprep.subr.bf16.mxu0 0
      %3311 = vmatpush1.bf16.msra.mxu0 0
      %3312 = vmatprep.subr.bf16.mxu0 0
      %3313 = vmatpush1.bf16.msra.mxu0 0
      %3314 = vmatprep.subr.bf16.mxu0 0
      %3315 = vmatpush1.bf16.msra.mxu0 0
      %3316 = vmatprep.subr.bf16.mxu0 0
      %3317 = vmatpush1.bf16.msra.mxu0 0
      %3318 = vmatprep.subr.bf16.mxu0 0
      %3319 = vmatpush1.bf16.msra.mxu0 0
      %3320 = vmatprep.subr.bf16.mxu0 0
      %3321 = vmatpush1.bf16.msra.mxu0 0
      %3322 = vmatprep.subr.bf16.mxu0 0
      %3323 = vmatpush1.bf16.msra.mxu0 0
      %3324 = vmatprep.subr.bf16.mxu0 0
      %3325 = vmatpush1.bf16.msra.mxu0 0
      %3326 = vmatprep.subr.bf16.mxu0 0
      %3327 = vmatpush1.bf16.msra.mxu0 0
      %3328 = vmatprep.subr.bf16.mxu0 0
      %3329 = vmatpush1.bf16.msra.mxu0 0
      %3330 = vmatprep.subr.bf16.mxu0 0
      %3331 = vmatpush1.bf16.msra.mxu0 0
      %3332 = vmatprep.subr.bf16.mxu0 0
      %3333 = vmatpush1.bf16.msra.mxu0 0
      %3334 = vmatprep.subr.bf16.mxu0 0
      %3335 = vmatpush1.bf16.msra.mxu0 0
      %3336 = vmatprep.subr.bf16.mxu0 0
      %3337 = vmatpush1.bf16.msra.mxu0 0
      %3338 = vmatprep.mubr.bf16.mxu0 0
      %3339 = vmatmul.mubr.bf16.gmra.mrb[0].mxu0 %v3256
      %v3340 = vpop.f32.mrb[0].mxu0
      %v3341 = vadd.f32 0.0, %v3340
      %v3342 = vpop.f32.mrb[0].mxu0
      %v3343 = vpop.f32.mrb[0].mxu0
      %v3344 = vadd.f32 0.0, %v3343
      %v3345 = vpop.f32.mrb[0].mxu0
      %3346 = vmatprep.mubr.bf16.mxu0 0
      %3347 = vmatmul.mubr.bf16.gmra.mrb[0].mxu0 %v3259
      %v3348 = vpop.f32.mrb[0].mxu0
      %v3349 = vadd.f32 0.0, %v3348
      %v3350 = vpop.f32.mrb[0].mxu0
      %v3351 = vpop.f32.mrb[0].mxu0
      %v3352 = vadd.f32 0.0, %v3351
      %v3353 = vpop.f32.mrb[0].mxu0
      %3354 = vmatprep.mubr.bf16.mxu0 0
      %3355 = vmatmul.mubr.bf16.gmra.mrb[0].mxu0 %v3262
      %v3356 = vpop.f32.mrb[0].mxu0
      %v3357 = vadd.f32 0.0, %v3356
      %v3358 = vpop.f32.mrb[0].mxu0
      %v3359 = vpop.f32.mrb[0].mxu0
      %v3360 = vadd.f32 0.0, %v3359
      %v3361 = vpop.f32.mrb[0].mxu0
      %3362 = vmatprep.mubr.bf16.mxu0 0
      %3363 = vmatmul.mubr.bf16.gmra.mrb[0].mxu0 %v3265
      %v3364 = vpop.f32.mrb[0].mxu0
      %v3365 = vadd.f32 0.0, %v3364
      %v3366 = vpop.f32.mrb[0].mxu0
      %v3367 = vpop.f32.mrb[0].mxu0
      %v3368 = vadd.f32 0.0, %v3367
      %v3369 = vpop.f32.mrb[0].mxu0
      %3370 = vmatprep.mubr.bf16.mxu0 0
      %3371 = vmatmul.mubr.bf16.gmra.mrb[0].mxu0 %v3268
      %v3372 = vpop.f32.mrb[0].mxu0
      %v3373 = vadd.f32 0.0, %v3372
      %v3374 = vpop.f32.mrb[0].mxu0
      %v3375 = vpop.f32.mrb[0].mxu0
      %v3376 = vadd.f32 0.0, %v3375
      %v3377 = vpop.f32.mrb[0].mxu0
      %3378 = vmatprep.mubr.bf16.mxu0 0
      %3379 = vmatmul.mubr.bf16.gmra.mrb[0].mxu0 %v3271
      %v3380 = vpop.f32.mrb[0].mxu0
      %v3381 = vadd.f32 0.0, %v3380
      %v3382 = vpop.f32.mrb[0].mxu0
      %v3383 = vpop.f32.mrb[0].mxu0
      %v3384 = vadd.f32 0.0, %v3383
      %v3385 = vpop.f32.mrb[0].mxu0
      %3386 = vmatprep.mubr.bf16.mxu0 0
      %3387 = vmatmul.mubr.bf16.gmra.mrb[0].mxu0 %v3274
      %v3388 = vpop.f32.mrb[0].mxu0
      %v3389 = vadd.f32 0.0, %v3388
      %v3390 = vpop.f32.mrb[0].mxu0
      %v3391 = vpop.f32.mrb[0].mxu0
      %v3392 = vadd.f32 0.0, %v3391
      %v3393 = vpop.f32.mrb[0].mxu0
      %3394 = vmatprep.mubr.bf16.mxu0 0
      %3395 = vmatmul.mubr.bf16.gmra.mrb[0].mxu0 %v3277
      %v3396 = vpop.f32.mrb[0].mxu0
      %v3397 = vadd.f32 0.0, %v3396
      %v3398 = vpop.f32.mrb[0].mxu0
      %v3399 = vpop.f32.mrb[0].mxu0
      %v3400 = vadd.f32 0.0, %v3399
      %v3401 = vpop.f32.mrb[0].mxu0
      %3402 = vmatprep.mubr.bf16.mxu0 0
      %3403 = vmatmul.mubr.bf16.gmra.mrb[0].mxu0 %v3280
      %v3404 = vpop.f32.mrb[0].mxu0
      %v3405 = vadd.f32 0.0, %v3404
      %v3406 = vpop.f32.mrb[0].mxu0
      %v3407 = vpop.f32.mrb[0].mxu0
      %v3408 = vadd.f32 0.0, %v3407
      %v3409 = vpop.f32.mrb[0].mxu0
      %3410 = vmatprep.mubr.bf16.mxu0 0
      %3411 = vmatmul.mubr.bf16.gmra.mrb[0].mxu0 %v3283
      %v3412 = vpop.f32.mrb[0].mxu0
      %v3413 = vadd.f32 0.0, %v3412
      %v3414 = vpop.f32.mrb[0].mxu0
      %v3415 = vpop.f32.mrb[0].mxu0
      %v3416 = vadd.f32 0.0, %v3415
      %v3417 = vpop.f32.mrb[0].mxu0
      %3418 = vmatprep.mubr.bf16.mxu0 0
      %3419 = vmatmul.mubr.bf16.gmra.mrb[0].mxu0 %v3286
      %v3420 = vpop.f32.mrb[0].mxu0
      %v3421 = vadd.f32 0.0, %v3420
      %v3422 = vpop.f32.mrb[0].mxu0
      %v3423 = vpop.f32.mrb[0].mxu0
      %v3424 = vadd.f32 0.0, %v3423
      %v3425 = vpop.f32.mrb[0].mxu0
      %3426 = vmatprep.mubr.bf16.mxu0 0
      %3427 = vmatmul.mubr.bf16.gmra.mrb[0].mxu0 %v3289
      %v3428 = vpop.f32.mrb[0].mxu0
      %v3429 = vadd.f32 0.0, %v3428
      %v3430 = vpop.f32.mrb[0].mxu0
      %v3431 = vpop.f32.mrb[0].mxu0
      %v3432 = vadd.f32 0.0, %v3431
      %v3433 = vpop.f32.mrb[0].mxu0
      %3434 = vmatprep.mubr.bf16.mxu0 0
      %3435 = vmatmul.mubr.bf16.gmra.mrb[0].mxu0 %v3292
      %v3436 = vpop.f32.mrb[0].mxu0
      %v3437 = vadd.f32 0.0, %v3436
      %v3438 = vpop.f32.mrb[0].mxu0
      %v3439 = vpop.f32.mrb[0].mxu0
      %v3440 = vadd.f32 0.0, %v3439
      %v3441 = vpop.f32.mrb[0].mxu0
      %3442 = vmatprep.mubr.bf16.mxu0 0
      %3443 = vmatmul.mubr.bf16.gmra.mrb[0].mxu0 %v3295
      %v3444 = vpop.f32.mrb[0].mxu0
      %v3445 = vadd.f32 0.0, %v3444
      %v3446 = vpop.f32.mrb[0].mxu0
      %v3447 = vpop.f32.mrb[0].mxu0
      %v3448 = vadd.f32 0.0, %v3447
      %v3449 = vpop.f32.mrb[0].mxu0
      %3450 = vmatprep.mubr.bf16.mxu0 0
      %3451 = vmatmul.mubr.bf16.gmra.mrb[0].mxu0 %v3298
      %v3452 = vpop.f32.mrb[0].mxu0
      %v3453 = vadd.f32 0.0, %v3452
      %v3454 = vpop.f32.mrb[0].mxu0
      %v3455 = vpop.f32.mrb[0].mxu0
      %v3456 = vadd.f32 0.0, %v3455
      %v3457 = vpop.f32.mrb[0].mxu0
      %3458 = vmatprep.mubr.bf16.mxu0 0
      %3459 = vmatmul.mubr.bf16.gmra.mrb[0].mxu0 %v3301
      %v3460 = vpop.f32.mrb[0].mxu0
      %v3461 = vadd.f32 0.0, %v3460
      %v3462 = vpop.f32.mrb[0].mxu0
      %v3463 = vpop.f32.mrb[0].mxu0
      %v3464 = vadd.f32 0.0, %v3463
      %v3465 = vpop.f32.mrb[0].mxu0
      %3466 = vdwg.mxu0
      %v3467 = vadd.f32 %v3141, %v3341
      %v3468 = vadd.f32 %v3142, %v3344
      %v3469 = vadd.f32 %v3143, %v3349
      %v3470 = vadd.f32 %v3144, %v3352
      %v3471 = vadd.f32 %v3145, %v3357
      %v3472 = vadd.f32 %v3146, %v3360
      %v3473 = vadd.f32 %v3147, %v3365
      %v3474 = vadd.f32 %v3148, %v3368
      %v3475 = vadd.f32 %v3149, %v3373
      %v3476 = vadd.f32 %v3150, %v3376
      %v3477 = vadd.f32 %v3151, %v3381
      %v3478 = vadd.f32 %v3152, %v3384
      %v3479 = vadd.f32 %v3153, %v3389
      %v3480 = vadd.f32 %v3154, %v3392
      %v3481 = vadd.f32 %v3155, %v3397
      %v3482 = vadd.f32 %v3156, %v3400
      %v3483 = vadd.f32 %v3157, %v3405
      %v3484 = vadd.f32 %v3158, %v3408
      %v3485 = vadd.f32 %v3159, %v3413
      %v3486 = vadd.f32 %v3160, %v3416
      %v3487 = vadd.f32 %v3161, %v3421
      %v3488 = vadd.f32 %v3162, %v3424
      %v3489 = vadd.f32 %v3163, %v3429
      %v3490 = vadd.f32 %v3164, %v3432
      %v3491 = vadd.f32 %v3165, %v3437
      %v3492 = vadd.f32 %v3166, %v3440
      %v3493 = vadd.f32 %v3167, %v3445
      %v3494 = vadd.f32 %v3168, %v3448
      %v3495 = vadd.f32 %v3169, %v3453
      %v3496 = vadd.f32 %v3170, %v3456
      %v3497 = vadd.f32 %v3171, %v3461
      %v3498 = vadd.f32 %v3172, %v3464
      %v3499 = vld [vmem:[%s2] sm:$0x1]
      %v3501 = vlaneseq
      %v3502 = vshrl.u32 %v3501, 7
      %v3503 = vsub.s32 0, %v3502
      %v3504 = vrot.slane %v3499, %v3503
      %v3506 = vmul.f32 %v3467, %v3504
      %v3507 = vmul.f32 %v3468, %v3504
      %v3508 = vmul.f32 %v3469, %v3504
      %v3509 = vmul.f32 %v3470, %v3504
      %v3510 = vmul.f32 %v3471, %v3504
      %v3511 = vmul.f32 %v3472, %v3504
      %v3512 = vmul.f32 %v3473, %v3504
      %v3513 = vmul.f32 %v3474, %v3504
      %v3514 = vmul.f32 %v3475, %v3504
      %v3515 = vmul.f32 %v3476, %v3504
      %v3516 = vmul.f32 %v3477, %v3504
      %v3517 = vmul.f32 %v3478, %v3504
      %v3518 = vmul.f32 %v3479, %v3504
      %v3519 = vmul.f32 %v3480, %v3504
      %v3520 = vmul.f32 %v3481, %v3504
      %v3521 = vmul.f32 %v3482, %v3504
      %v3522 = vmul.f32 %v3483, %v3504
      %v3523 = vmul.f32 %v3484, %v3504
      %v3524 = vmul.f32 %v3485, %v3504
      %v3525 = vmul.f32 %v3486, %v3504
      %v3526 = vmul.f32 %v3487, %v3504
      %v3527 = vmul.f32 %v3488, %v3504
      %v3528 = vmul.f32 %v3489, %v3504
      %v3529 = vmul.f32 %v3490, %v3504
      %v3530 = vmul.f32 %v3491, %v3504
      %v3531 = vmul.f32 %v3492, %v3504
      %v3532 = vmul.f32 %v3493, %v3504
      %v3533 = vmul.f32 %v3494, %v3504
      %v3534 = vmul.f32 %v3495, %v3504
      %v3535 = vmul.f32 %v3496, %v3504
      %v3536 = vmul.f32 %v3497, %v3504
      %v3537 = vmul.f32 %v3498, %v3504
      %v3538 = vld [vmem:[%s3] sm:$0x1]
      %v3540 = vlaneseq
      %v3541 = vshrl.u32 %v3540, 7
      %v3542 = vsub.s32 0, %v3541
      %v3543 = vrot.slane %v3538, %v3542
      %v3545 = vadd.f32 %v3506, %v3543
      %v3546 = vadd.f32 %v3507, %v3543
      %v3547 = vadd.f32 %v3508, %v3543
      %v3548 = vadd.f32 %v3509, %v3543
      %v3549 = vadd.f32 %v3510, %v3543
      %v3550 = vadd.f32 %v3511, %v3543
      %v3551 = vadd.f32 %v3512, %v3543
      %v3552 = vadd.f32 %v3513, %v3543
      %v3553 = vadd.f32 %v3514, %v3543
      %v3554 = vadd.f32 %v3515, %v3543
      %v3555 = vadd.f32 %v3516, %v3543
      %v3556 = vadd.f32 %v3517, %v3543
      %v3557 = vadd.f32 %v3518, %v3543
      %v3558 = vadd.f32 %v3519, %v3543
      %v3559 = vadd.f32 %v3520, %v3543
      %v3560 = vadd.f32 %v3521, %v3543
      %v3561 = vadd.f32 %v3522, %v3543
      %v3562 = vadd.f32 %v3523, %v3543
      %v3563 = vadd.f32 %v3524, %v3543
      %v3564 = vadd.f32 %v3525, %v3543
      %v3565 = vadd.f32 %v3526, %v3543
      %v3566 = vadd.f32 %v3527, %v3543
      %v3567 = vadd.f32 %v3528, %v3543
      %v3568 = vadd.f32 %v3529, %v3543
      %v3569 = vadd.f32 %v3530, %v3543
      %v3570 = vadd.f32 %v3531, %v3543
      %v3571 = vadd.f32 %v3532, %v3543
      %v3572 = vadd.f32 %v3533, %v3543
      %v3573 = vadd.f32 %v3534, %v3543
      %v3574 = vadd.f32 %v3535, %v3543
      %v3575 = vadd.f32 %v3536, %v3543
      %v3576 = vadd.f32 %v3537, %v3543
      %v3577 = vmax.f32 %v3545, 0.0
      %v3578 = vmax.f32 %v3546, 0.0
      %v3579 = vmax.f32 %v3547, 0.0
      %v3580 = vmax.f32 %v3548, 0.0
      %v3581 = vmax.f32 %v3549, 0.0
      %v3582 = vmax.f32 %v3550, 0.0
      %v3583 = vmax.f32 %v3551, 0.0
      %v3584 = vmax.f32 %v3552, 0.0
      %v3585 = vmax.f32 %v3553, 0.0
      %v3586 = vmax.f32 %v3554, 0.0
      %v3587 = vmax.f32 %v3555, 0.0
      %v3588 = vmax.f32 %v3556, 0.0
      %v3589 = vmax.f32 %v3557, 0.0
      %v3590 = vmax.f32 %v3558, 0.0
      %v3591 = vmax.f32 %v3559, 0.0
      %v3592 = vmax.f32 %v3560, 0.0
      %v3593 = vmax.f32 %v3561, 0.0
      %v3594 = vmax.f32 %v3562, 0.0
      %v3595 = vmax.f32 %v3563, 0.0
      %v3596 = vmax.f32 %v3564, 0.0
      %v3597 = vmax.f32 %v3565, 0.0
      %v3598 = vmax.f32 %v3566, 0.0
      %v3599 = vmax.f32 %v3567, 0.0
      %v3600 = vmax.f32 %v3568, 0.0
      %v3601 = vmax.f32 %v3569, 0.0
      %v3602 = vmax.f32 %v3570, 0.0
      %v3603 = vmax.f32 %v3571, 0.0
      %v3604 = vmax.f32 %v3572, 0.0
      %v3605 = vmax.f32 %v3573, 0.0
      %v3606 = vmax.f32 %v3574, 0.0
      %v3607 = vmax.f32 %v3575, 0.0
      %v3608 = vmax.f32 %v3576, 0.0
      %v3609 = vmin.f32 %v3577, 6.0
      %v3610 = vmin.f32 %v3578, 6.0
      %v3611 = vmin.f32 %v3579, 6.0
      %v3612 = vmin.f32 %v3580, 6.0
      %v3613 = vmin.f32 %v3581, 6.0
      %v3614 = vmin.f32 %v3582, 6.0
      %v3615 = vmin.f32 %v3583, 6.0
      %v3616 = vmin.f32 %v3584, 6.0
      %v3617 = vmin.f32 %v3585, 6.0
      %v3618 = vmin.f32 %v3586, 6.0
      %v3619 = vmin.f32 %v3587, 6.0
      %v3620 = vmin.f32 %v3588, 6.0
      %v3621 = vmin.f32 %v3589, 6.0
      %v3622 = vmin.f32 %v3590, 6.0
      %v3623 = vmin.f32 %v3591, 6.0
      %v3624 = vmin.f32 %v3592, 6.0
      %v3625 = vmin.f32 %v3593, 6.0
      %v3626 = vmin.f32 %v3594, 6.0
      %v3627 = vmin.f32 %v3595, 6.0
      %v3628 = vmin.f32 %v3596, 6.0
      %v3629 = vmin.f32 %v3597, 6.0
      %v3630 = vmin.f32 %v3598, 6.0
      %v3631 = vmin.f32 %v3599, 6.0
      %v3632 = vmin.f32 %v3600, 6.0
      %v3633 = vmin.f32 %v3601, 6.0
      %v3634 = vmin.f32 %v3602, 6.0
      %v3635 = vmin.f32 %v3603, 6.0
      %v3636 = vmin.f32 %v3604, 6.0
      %v3637 = vmin.f32 %v3605, 6.0
      %v3638 = vmin.f32 %v3606, 6.0
      %v3639 = vmin.f32 %v3607, 6.0
      %v3640 = vmin.f32 %v3608, 6.0
      %vm3641 = vcmask 64512
      %3642 = vst.msk [vmem:[%s197] sm:$0xff] %vm3641, %v3609
      %3643 = vst.msk [vmem:[%s197 + $0x8] sm:$0xff] %vm3641, %v3610
      %3644 = vst.msk [vmem:[%s197 + $0x10] sm:$0xff] %vm3641, %v3611
      %3645 = vst.msk [vmem:[%s197 + $0x18] sm:$0xff] %vm3641, %v3612
      %3646 = vst.msk [vmem:[%s197 + $0x20] sm:$0xff] %vm3641, %v3613
      %3647 = vst.msk [vmem:[%s197 + $0x28] sm:$0xff] %vm3641, %v3614
      %3648 = vst.msk [vmem:[%s197 + $0x30] sm:$0xff] %vm3641, %v3615
      %3649 = vst.msk [vmem:[%s197 + $0x38] sm:$0xff] %vm3641, %v3616
      %3650 = vst.msk [vmem:[%s197 + $0x40] sm:$0xff] %vm3641, %v3617
      %3651 = vst.msk [vmem:[%s197 + $0x48] sm:$0xff] %vm3641, %v3618
      %3652 = vst.msk [vmem:[%s197 + $0x50] sm:$0xff] %vm3641, %v3619
      %3653 = vst.msk [vmem:[%s197 + $0x58] sm:$0xff] %vm3641, %v3620
      %3654 = vst.msk [vmem:[%s197 + $0x60] sm:$0xff] %vm3641, %v3621
      %3655 = vst.msk [vmem:[%s197 + $0x68] sm:$0xff] %vm3641, %v3622
      %3656 = vst.msk [vmem:[%s197 + $0x70] sm:$0xff] %vm3641, %v3623
      %3657 = vst.msk [vmem:[%s197 + $0x78] sm:$0xff] %vm3641, %v3624
      %3658 = vst.msk [vmem:[%s197 + $0x80] sm:$0xff] %vm3641, %v3625
      %3659 = vst.msk [vmem:[%s197 + $0x88] sm:$0xff] %vm3641, %v3626
      %3660 = vst.msk [vmem:[%s197 + $0x90] sm:$0xff] %vm3641, %v3627
      %3661 = vst.msk [vmem:[%s197 + $0x98] sm:$0xff] %vm3641, %v3628
      %3662 = vst.msk [vmem:[%s197 + $0xa0] sm:$0xff] %vm3641, %v3629
      %3663 = vst.msk [vmem:[%s197 + $0xa8] sm:$0xff] %vm3641, %v3630
      %3664 = vst.msk [vmem:[%s197 + $0xb0] sm:$0xff] %vm3641, %v3631
      %3665 = vst.msk [vmem:[%s197 + $0xb8] sm:$0xff] %vm3641, %v3632
      %3666 = vst.msk [vmem:[%s197 + $0xc0] sm:$0xff] %vm3641, %v3633
      %3667 = vst.msk [vmem:[%s197 + $0xc8] sm:$0xff] %vm3641, %v3634
      %3668 = vst.msk [vmem:[%s197 + $0xd0] sm:$0xff] %vm3641, %v3635
      %3669 = vst.msk [vmem:[%s197 + $0xd8] sm:$0xff] %vm3641, %v3636
      %3670 = vst.msk [vmem:[%s197 + $0xe0] sm:$0xff] %vm3641, %v3637
      %3671 = vst.msk [vmem:[%s197 + $0xe8] sm:$0xff] %vm3641, %v3638
      %3672 = vst.msk [vmem:[%s197 + $0xf0] sm:$0xff] %vm3641, %v3639
      %3673 = vst.msk [vmem:[%s197 + $0xf8] sm:$0xff] %vm3641, %v3640
      %p3674 = scmp.lt.s32.totalorder %s15, 1
      %s3675 = scalar_select %p3674, %s15, 1
      %s3676 = smul.addr %s3675, 32
      %s3677 = smul.addr %s3676, 8
      %s3678 = scalar_lea.vmem %s4, %s3677
      // Predicated region
      $region37: #{mobilenet_backbone_forward.5} parent=35 // pred_check
        %p3679 = pneg %p122
      $region38: #{mobilenet_backbone_forward.5} parent=35 // pred_check_branch
        %3681 = sbr.rel (%p3679) target = $region40
      $region39: #{mobilenet_backbone_forward.5} parent=35 // pred_region
        _
      $region40: #{mobilenet_backbone_forward.5} parent=35 // pred_fallthru
        _
    $region36: #{mobilenet_backbone_forward.5} parent=5 // pred_fallthru
      _
    %p3682 = scmp.le.s32.totalorder 2, %s10
    // Predicated region
    $region41: #{mobilenet_backbone_forward.5} parent=5 // pred_check
      %p3683 = pneg %p3682
    $region42: #{mobilenet_backbone_forward.5} parent=5 // pred_check_branch
      %3685 = sbr.rel (%p3683) target = $region44
    $region43: #{mobilenet_backbone_forward.5} parent=5 // pred_region
      %s3686 = ssub.s32 %s10, 2
      // Predicated region
      $region45: #{mobilenet_backbone_forward.5} parent=43 // pred_check
        %p3687 = pneg %p128
      $region46: #{mobilenet_backbone_forward.5} parent=43 // pred_check_branch
        %3689 = sbr.rel (%p3687) target = $region48
      $region47: #{mobilenet_backbone_forward.5} parent=43 // pred_region
        %p3690 = scmp.lt.s32.totalorder %s16, 1
        %s3691 = scalar_select %p3690, %s16, 1
        %s3692 = smul.addr %s3691, 32
        %s3693 = smul.addr %s3692, 8
        %s3694 = scalar_lea.vmem %s4, %s3693
      $region48: #{mobilenet_backbone_forward.5} parent=43 // pred_fallthru
        _
    $region44: #{mobilenet_backbone_forward.5} parent=5 // pred_fallthru
      _
  $region6: #{mobilenet_backbone_forward.5} parent=0 // loop_footer
    %s14 = sadd.s32 1, %s10
  $region7: #{mobilenet_backbone_forward.5} parent=0 // loop_footer_branch
    %9 = sbr.rel target = $region3
  $region8: #{mobilenet_backbone_forward.5} parent=0 // loop_exit
    _

</llo_original>
